<compile_context>
chip_gen: v6e
topology: v6e:2x2x1
jax: 0.10.0
libtpu: 0.0.40
codegen_flags: <defaults>
</compile_context>

<pallas_src>
import functools

import jax
import jax.numpy as jnp
from jax.experimental import pallas as pl
from jax.experimental.pallas import tpu as pltpu


# ----------------------------------------------------------------------------
# Activations (f32 epilogue; applied inside the kernel)
# ----------------------------------------------------------------------------
def _apply_act(name, x):
    if name == "relu":
        return jnp.maximum(x, 0.0)
    if name == "sigmoid":
        return jax.nn.sigmoid(x)
    if name == "tanh":
        return jnp.tanh(x)
    if name in ("identity", "linear", "none"):
        return x
    raise ValueError(f"unsupported activation: {name!r}")


# ----------------------------------------------------------------------------
# Kernel
# ----------------------------------------------------------------------------
def _make_sae_kernel(activations):
    act0, act1 = activations

    def kernel(x_ref,
               w1_ref, b1_ref, w2_ref, b2_ref, w3_ref, b3_ref,   # encoder
               w4_ref, b4_ref, w5_ref, b5_ref, w6_ref, b6_ref,   # decoder
               z_ref, xr_ref):
        # bf16 MXU dots with f32 accumulation; f32 epilogue (bias + activation);
        # cast back to bf16 only to feed the next dot.
        def layer(h_bf16, w_ref, b_ref, act):
            acc = jnp.dot(h_bf16, w_ref[...],
                          preferred_element_type=jnp.float32)
            acc = acc + b_ref[...]          # bias kept in f32
            if act is not None:
                acc = _apply_act(act, acc)
            return acc

        # x arrives as an f32 tile; cast to bf16 in-kernel (cheap VPU op that is
        # fully hidden under the HBM-bound pipeline).
        x = x_ref[...].astype(jnp.bfloat16)
        h = layer(x, w1_ref, b1_ref, act0).astype(jnp.bfloat16)
        h = layer(h, w2_ref, b2_ref, act1).astype(jnp.bfloat16)
        z = layer(h, w3_ref, b3_ref, None)                          # f32
        z_ref[...] = z.astype(z_ref.dtype)

        d = layer(z.astype(jnp.bfloat16), w4_ref, b4_ref, act1).astype(jnp.bfloat16)
        d = layer(d, w5_ref, b5_ref, act0).astype(jnp.bfloat16)
        xr = layer(d, w6_ref, b6_ref, None)                         # f32
        xr_ref[...] = xr.astype(xr_ref.dtype)                       # bf16 store

    return kernel


# ----------------------------------------------------------------------------
# Wrapper
# ----------------------------------------------------------------------------
def _round_up(n, m):
    return ((n + m - 1) // m) * m


def prepare_params(params):
    """One-time param prep (call once, outside the hot path).

    Weights -> bf16 [in, out]; biases -> f32 [1, out].
    """
    prepped = {}
    for idx in range(1, 7):
        prepped[f"w{idx}"] = jnp.asarray(params[f"w{idx}"], jnp.bfloat16)
        prepped[f"b{idx}"] = jnp.asarray(params[f"b{idx}"], jnp.float32).reshape(1, -1)
    return prepped


@functools.partial(jax.jit, static_argnames=("activations", "batch_tile"))
def sae_forward(x, prepped, activations=("relu", "relu"), batch_tile=512):
    """Fused SAE forward.

    x: [B, in] f32 (true width, no pre-padding).
    prepped: output of prepare_params (bf16 weights, f32 biases).
    Returns (z [B, bottleneck] f32, x_reconstructed [B, in] bf16).
    """
    assert batch_tile % 8 == 0

    B, in_dim = x.shape
    bott = prepped["w3"].shape[1]

    # Only the batch axis ever needs padding (to a tile multiple); the demo
    # batch is an exact multiple so this is a no-op there.
    Bp = _round_up(B, batch_tile)
    x_p = x if Bp == B else jnp.pad(x, ((0, Bp - B), (0, 0)))

    # x: pipelined (double-buffered) over the batch grid, f32, true width.
    args = [x_p]
    in_specs = [pl.BlockSpec((batch_tile, in_dim), lambda i: (i, 0))]

    # Weights/biases: whole-array VMEM residents (single copy, not
    # double-buffered per grid step).
    resident = pl.BlockSpec(memory_space=pltpu.MemorySpace.VMEM)
    for idx in range(1, 7):
        args.append(prepped[f"w{idx}"])
        in_specs.append(resident)
        args.append(prepped[f"b{idx}"])
        in_specs.append(resident)

    # Outputs at true widths: no post-kernel slice pass. xr in bf16 halves the
    # dominant HBM writeback stream.
    out_shape = (
        jax.ShapeDtypeStruct((Bp, bott), jnp.float32),
        jax.ShapeDtypeStruct((Bp, in_dim), jnp.bfloat16),
    )
    out_specs = (
        pl.BlockSpec((batch_tile, bott), lambda i: (i, 0)),
        pl.BlockSpec((batch_tile, in_dim), lambda i: (i, 0)),
    )

    z, xr = pl.pallas_call(
        _make_sae_kernel(activations),
        out_shape=out_shape,
        grid_spec=pltpu.PrefetchScalarGridSpec(
            num_scalar_prefetch=0,
            grid=(Bp // batch_tile,),
            in_specs=in_specs,
            out_specs=out_specs,
        ),
        compiler_params=pltpu.CompilerParams(
            dimension_semantics=("parallel",),        # batch axis: megacore-shardable
            vmem_limit_bytes=32 * 1024 * 1024,        # actual footprint ~5 MB
        ),
    )(*args)

    if Bp != B:
        z, xr = z[:B], xr[:B]
    return z, xr


# ----------------------------------------------------------------------------
# Params + pure-JAX reference
# ----------------------------------------------------------------------------
def init_params(key, input_size, layer_sizes, bottleneck_size):
    """Deterministic init; weights stored as [in, out], biases as [1, out] (f32)."""
    dims = [
        (input_size, layer_sizes[0]),       # w1
        (layer_sizes[0], layer_sizes[1]),   # w2
        (layer_sizes[1], bottleneck_size),  # w3
        (bottleneck_size, layer_sizes[1]),  # w4
        (layer_sizes[1], layer_sizes[0]),   # w5
        (layer_sizes[0], input_size),       # w6
    ]
    params = {}
    for idx, (fan_in, fan_out) in enumerate(dims, start=1):
        key, kw, kb = jax.random.split(key, 3)
        bound = 1.0 / jnp.sqrt(fan_in)      # matches torch.nn.Linear default init
        params[f"w{idx}"] = jax.random.uniform(
            kw, (fan_in, fan_out), jnp.float32, -bound, bound)
        params[f"b{idx}"] = jax.random.uniform(
            kb, (1, fan_out), jnp.float32, -bound, bound)
    return params


def sae_reference(x, p, activations=("relu", "relu")):
    """Pure-JAX reference mirroring the kernel's bf16-input / f32-accum matmuls."""
    act0, act1 = activations

    def lin(a, w, b):
        return jnp.dot(a.astype(jnp.bfloat16), w.astype(jnp.bfloat16),
                       preferred_element_type=jnp.float32) + b.reshape(1, -1)

    h = _apply_act(act0, lin(x, p["w1"], p["b1"]))
    h = _apply_act(act1, lin(h, p["w2"], p["b2"]))
    z = lin(h, p["w3"], p["b3"])
    d = _apply_act(act1, lin(z, p["w4"], p["b4"]))
    d = _apply_act(act0, lin(d, p["w5"], p["b5"]))
    xr = lin(d, p["w6"], p["b6"])
    return z, xr


# ----------------------------------------------------------------------------
# Demo / self-check
# ----------------------------------------------------------------------------
if __name__ == "__main__":
    input_size = 784            # matches the reference script
    layer_sizes = (128, 64)
    bottleneck_size = 32
    batch = 2048
    batch_tile = 512            # 4 grid steps -> 2 per TC on v7x with pipelining

    key = jax.random.PRNGKey(0)
    key, kx = jax.random.split(key)
    x = jax.random.normal(kx, (batch, input_size), jnp.float32)
    raw_params = init_params(key, input_size, layer_sizes, bottleneck_size)
    params = prepare_params(raw_params)     # one-time bf16 cast, outside hot path

    z, xr = sae_forward(x, params, activations=("relu", "relu"),
                        batch_tile=batch_tile)
    jax.block_until_ready((z, xr))

    z_ref, xr_ref = sae_reference(x, raw_params, ("relu", "relu"))
    assert z.shape == (batch, bottleneck_size)
    assert xr.shape == (batch, input_size)
    assert xr.dtype == jnp.bfloat16
    err_z = float(jnp.max(jnp.abs(z - z_ref)))
    err_x = float(jnp.max(jnp.abs(xr.astype(jnp.float32) - xr_ref)))
    assert err_z < 3e-2, err_z     # same bf16 dot path as reference -> tiny
    assert err_x < 6e-2, err_x     # bf16 output rounding on O(1) values

    print("KERNEL_OK")
</pallas_src>

<mosaic_0001>
module attributes {stable_mosaic.version = 11 : i64} {
  func.func @kernel(%arg0: i32, %arg1: memref<512x784xf32, #tpu.memory_space<vmem>>, %arg2: memref<784x128xbf16, #tpu.memory_space<vmem>>, %arg3: memref<1x128xf32, #tpu.memory_space<vmem>>, %arg4: memref<128x64xbf16, #tpu.memory_space<vmem>>, %arg5: memref<1x64xf32, #tpu.memory_space<vmem>>, %arg6: memref<64x32xbf16, #tpu.memory_space<vmem>>, %arg7: memref<1x32xf32, #tpu.memory_space<vmem>>, %arg8: memref<32x64xbf16, #tpu.memory_space<vmem>>, %arg9: memref<1x64xf32, #tpu.memory_space<vmem>>, %arg10: memref<64x128xbf16, #tpu.memory_space<vmem>>, %arg11: memref<1x128xf32, #tpu.memory_space<vmem>>, %arg12: memref<128x784xbf16, #tpu.memory_space<vmem>>, %arg13: memref<1x784xf32, #tpu.memory_space<vmem>>, %arg14: memref<512x32xf32, #tpu.memory_space<vmem>>, %arg15: memref<512x784xbf16, #tpu.memory_space<vmem>>) attributes {dimension_semantics = [#tpu.dimension_semantics<parallel>], iteration_bounds = array<i64: 4>, scalar_prefetch = 0 : i64, scratch_operands = 0 : i64, tpu.core_type = #tpu.core_type<tc>, window_params = [{transform_indices = @transform_0, window_bounds = array<i64: 512, 784>}, {pipeline_mode = #tpu.pipeline_mode<synchronous>, transform_indices = @transform_1, window_bounds = array<i64: 784, 128>}, {pipeline_mode = #tpu.pipeline_mode<synchronous>, transform_indices = @transform_2, window_bounds = array<i64: 1, 128>}, {pipeline_mode = #tpu.pipeline_mode<synchronous>, transform_indices = @transform_3, window_bounds = array<i64: 128, 64>}, {pipeline_mode = #tpu.pipeline_mode<synchronous>, transform_indices = @transform_4, window_bounds = array<i64: 1, 64>}, {pipeline_mode = #tpu.pipeline_mode<synchronous>, transform_indices = @transform_5, window_bounds = array<i64: 64, 32>}, {pipeline_mode = #tpu.pipeline_mode<synchronous>, transform_indices = @transform_6, window_bounds = array<i64: 1, 32>}, {pipeline_mode = #tpu.pipeline_mode<synchronous>, transform_indices = @transform_7, window_bounds = array<i64: 32, 64>}, {pipeline_mode = #tpu.pipeline_mode<synchronous>, transform_indices = @transform_8, window_bounds = array<i64: 1, 64>}, {pipeline_mode = #tpu.pipeline_mode<synchronous>, transform_indices = @transform_9, window_bounds = array<i64: 64, 128>}, {pipeline_mode = #tpu.pipeline_mode<synchronous>, transform_indices = @transform_10, window_bounds = array<i64: 1, 128>}, {pipeline_mode = #tpu.pipeline_mode<synchronous>, transform_indices = @transform_11, window_bounds = array<i64: 128, 784>}, {pipeline_mode = #tpu.pipeline_mode<synchronous>, transform_indices = @transform_12, window_bounds = array<i64: 1, 784>}, {transform_indices = @transform_13, window_bounds = array<i64: 512, 32>}, {transform_indices = @transform_14, window_bounds = array<i64: 512, 784>}]} {
    %c0 = arith.constant 0 : index
    %c0_0 = arith.constant 0 : index
    %0 = vector.load %arg1[%c0, %c0_0] : memref<512x784xf32, #tpu.memory_space<vmem>>, vector<512x784xf32>
    %1 = arith.truncf %0 : vector<512x784xf32> to vector<512x784xbf16>
    %c0_1 = arith.constant 0 : index
    %c0_2 = arith.constant 0 : index
    %2 = vector.load %arg2[%c0_1, %c0_2] : memref<784x128xbf16, #tpu.memory_space<vmem>>, vector<784x128xbf16>
    %cst = arith.constant dense<0.000000e+00> : vector<512x128xf32>
    %3 = tpu.matmul %1, %2, %cst {dimension_numbers = #tpu.dot_dimension_numbers<[1], [0], [0], [1], [0, 0, 1, 1], [], []>} : vector<512x784xbf16>, vector<784x128xbf16>, vector<512x128xf32> -> vector<512x128xf32>
    %c0_3 = arith.constant 0 : index
    %c0_4 = arith.constant 0 : index
    %4 = vector.load %arg3[%c0_3, %c0_4] : memref<1x128xf32, #tpu.memory_space<vmem>>, vector<1x128xf32>
    %5 = vector.broadcast %4 : vector<1x128xf32> to vector<512x128xf32>
    %6 = arith.addf %3, %5 : vector<512x128xf32>
    %cst_5 = arith.constant 0.000000e+00 : f32
    %7 = vector.broadcast %cst_5 : f32 to vector<512x128xf32>
    %8 = arith.maximumf %6, %7 : vector<512x128xf32>
    %9 = arith.truncf %8 : vector<512x128xf32> to vector<512x128xbf16>
    %c0_6 = arith.constant 0 : index
    %c0_7 = arith.constant 0 : index
    %10 = vector.load %arg4[%c0_6, %c0_7] : memref<128x64xbf16, #tpu.memory_space<vmem>>, vector<128x64xbf16>
    %cst_8 = arith.constant dense<0.000000e+00> : vector<512x64xf32>
    %11 = tpu.matmul %9, %10, %cst_8 {dimension_numbers = #tpu.dot_dimension_numbers<[1], [0], [0], [1], [0, 0, 1, 1], [], []>} : vector<512x128xbf16>, vector<128x64xbf16>, vector<512x64xf32> -> vector<512x64xf32>
    %c0_9 = arith.constant 0 : index
    %c0_10 = arith.constant 0 : index
    %12 = vector.load %arg5[%c0_9, %c0_10] : memref<1x64xf32, #tpu.memory_space<vmem>>, vector<1x64xf32>
    %13 = vector.broadcast %12 : vector<1x64xf32> to vector<512x64xf32>
    %14 = arith.addf %11, %13 : vector<512x64xf32>
    %cst_11 = arith.constant 0.000000e+00 : f32
    %15 = vector.broadcast %cst_11 : f32 to vector<512x64xf32>
    %16 = arith.maximumf %14, %15 : vector<512x64xf32>
    %17 = arith.truncf %16 : vector<512x64xf32> to vector<512x64xbf16>
    %c0_12 = arith.constant 0 : index
    %c0_13 = arith.constant 0 : index
    %18 = vector.load %arg6[%c0_12, %c0_13] : memref<64x32xbf16, #tpu.memory_space<vmem>>, vector<64x32xbf16>
    %cst_14 = arith.constant dense<0.000000e+00> : vector<512x32xf32>
    %19 = tpu.matmul %17, %18, %cst_14 {dimension_numbers = #tpu.dot_dimension_numbers<[1], [0], [0], [1], [0, 0, 1, 1], [], []>} : vector<512x64xbf16>, vector<64x32xbf16>, vector<512x32xf32> -> vector<512x32xf32>
    %c0_15 = arith.constant 0 : index
    %c0_16 = arith.constant 0 : index
    %20 = vector.load %arg7[%c0_15, %c0_16] : memref<1x32xf32, #tpu.memory_space<vmem>>, vector<1x32xf32>
    %21 = vector.broadcast %20 : vector<1x32xf32> to vector<512x32xf32>
    %22 = arith.addf %19, %21 : vector<512x32xf32>
    %c0_17 = arith.constant 0 : index
    %c0_18 = arith.constant 0 : index
    %23 = vector.load %arg14[%c0_17, %c0_18] : memref<512x32xf32, #tpu.memory_space<vmem>>, vector<512x32xf32>
    tpu.vector_store %arg14[%c0_17, %c0_18], %22 {strides = array<i32>} : memref<512x32xf32, #tpu.memory_space<vmem>>, vector<512x32xf32>,
    %24 = arith.truncf %22 : vector<512x32xf32> to vector<512x32xbf16>
    %c0_19 = arith.constant 0 : index
    %c0_20 = arith.constant 0 : index
    %25 = vector.load %arg8[%c0_19, %c0_20] : memref<32x64xbf16, #tpu.memory_space<vmem>>, vector<32x64xbf16>
    %cst_21 = arith.constant dense<0.000000e+00> : vector<512x64xf32>
    %26 = tpu.matmul %24, %25, %cst_21 {dimension_numbers = #tpu.dot_dimension_numbers<[1], [0], [0], [1], [0, 0, 1, 1], [], []>} : vector<512x32xbf16>, vector<32x64xbf16>, vector<512x64xf32> -> vector<512x64xf32>
    %c0_22 = arith.constant 0 : index
    %c0_23 = arith.constant 0 : index
    %27 = vector.load %arg9[%c0_22, %c0_23] : memref<1x64xf32, #tpu.memory_space<vmem>>, vector<1x64xf32>
    %28 = vector.broadcast %27 : vector<1x64xf32> to vector<512x64xf32>
    %29 = arith.addf %26, %28 : vector<512x64xf32>
    %cst_24 = arith.constant 0.000000e+00 : f32
    %30 = vector.broadcast %cst_24 : f32 to vector<512x64xf32>
    %31 = arith.maximumf %29, %30 : vector<512x64xf32>
    %32 = arith.truncf %31 : vector<512x64xf32> to vector<512x64xbf16>
    %c0_25 = arith.constant 0 : index
    %c0_26 = arith.constant 0 : index
    %33 = vector.load %arg10[%c0_25, %c0_26] : memref<64x128xbf16, #tpu.memory_space<vmem>>, vector<64x128xbf16>
    %cst_27 = arith.constant dense<0.000000e+00> : vector<512x128xf32>
    %34 = tpu.matmul %32, %33, %cst_27 {dimension_numbers = #tpu.dot_dimension_numbers<[1], [0], [0], [1], [0, 0, 1, 1], [], []>} : vector<512x64xbf16>, vector<64x128xbf16>, vector<512x128xf32> -> vector<512x128xf32>
    %c0_28 = arith.constant 0 : index
    %c0_29 = arith.constant 0 : index
    %35 = vector.load %arg11[%c0_28, %c0_29] : memref<1x128xf32, #tpu.memory_space<vmem>>, vector<1x128xf32>
    %36 = vector.broadcast %35 : vector<1x128xf32> to vector<512x128xf32>
    %37 = arith.addf %34, %36 : vector<512x128xf32>
    %cst_30 = arith.constant 0.000000e+00 : f32
    %38 = vector.broadcast %cst_30 : f32 to vector<512x128xf32>
    %39 = arith.maximumf %37, %38 : vector<512x128xf32>
    %40 = arith.truncf %39 : vector<512x128xf32> to vector<512x128xbf16>
    %c0_31 = arith.constant 0 : index
    %c0_32 = arith.constant 0 : index
    %41 = vector.load %arg12[%c0_31, %c0_32] : memref<128x784xbf16, #tpu.memory_space<vmem>>, vector<128x784xbf16>
    %cst_33 = arith.constant dense<0.000000e+00> : vector<512x784xf32>
    %42 = tpu.matmul %40, %41, %cst_33 {dimension_numbers = #tpu.dot_dimension_numbers<[1], [0], [0], [1], [0, 0, 1, 1], [], []>} : vector<512x128xbf16>, vector<128x784xbf16>, vector<512x784xf32> -> vector<512x784xf32>
    %c0_34 = arith.constant 0 : index
    %c0_35 = arith.constant 0 : index
    %43 = vector.load %arg13[%c0_34, %c0_35] : memref<1x784xf32, #tpu.memory_space<vmem>>, vector<1x784xf32>
    %44 = vector.broadcast %43 : vector<1x784xf32> to vector<512x784xf32>
    %45 = arith.addf %42, %44 : vector<512x784xf32>
    %46 = arith.truncf %45 : vector<512x784xf32> to vector<512x784xbf16>
    %c0_36 = arith.constant 0 : index
    %c0_37 = arith.constant 0 : index
    %47 = vector.load %arg15[%c0_36, %c0_37] : memref<512x784xbf16, #tpu.memory_space<vmem>>, vector<512x784xbf16>
    tpu.vector_store %arg15[%c0_36, %c0_37], %46 {strides = array<i32>} : memref<512x784xbf16, #tpu.memory_space<vmem>>, vector<512x784xbf16>,
    return
  }
  func.func @transform_0(%arg0: i32) -> (i32, i32) {
    %c0_i32 = arith.constant 0 : i32
    %c0_i32_0 = arith.constant 0 : i32
    return %arg0, %c0_i32 : i32, i32
  }
  func.func @transform_1(%arg0: i32) -> (i32, i32) {
    %c0_i32 = arith.constant 0 : i32
    %c0_i32_0 = arith.constant 0 : i32
    %c0_i32_1 = arith.constant 0 : i32
    return %c0_i32, %c0_i32_0 : i32, i32
  }
  func.func @transform_2(%arg0: i32) -> (i32, i32) {
    %c0_i32 = arith.constant 0 : i32
    %c0_i32_0 = arith.constant 0 : i32
    %c0_i32_1 = arith.constant 0 : i32
    return %c0_i32, %c0_i32_0 : i32, i32
  }
  func.func @transform_3(%arg0: i32) -> (i32, i32) {
    %c0_i32 = arith.constant 0 : i32
    %c0_i32_0 = arith.constant 0 : i32
    %c0_i32_1 = arith.constant 0 : i32
    return %c0_i32, %c0_i32_0 : i32, i32
  }
  func.func @transform_4(%arg0: i32) -> (i32, i32) {
    %c0_i32 = arith.constant 0 : i32
    %c0_i32_0 = arith.constant 0 : i32
    %c0_i32_1 = arith.constant 0 : i32
    return %c0_i32, %c0_i32_0 : i32, i32
  }
  func.func @transform_5(%arg0: i32) -> (i32, i32) {
    %c0_i32 = arith.constant 0 : i32
    %c0_i32_0 = arith.constant 0 : i32
    %c0_i32_1 = arith.constant 0 : i32
    return %c0_i32, %c0_i32_0 : i32, i32
  }
  func.func @transform_6(%arg0: i32) -> (i32, i32) {
    %c0_i32 = arith.constant 0 : i32
    %c0_i32_0 = arith.constant 0 : i32
    %c0_i32_1 = arith.constant 0 : i32
    return %c0_i32, %c0_i32_0 : i32, i32
  }
  func.func @transform_7(%arg0: i32) -> (i32, i32) {
    %c0_i32 = arith.constant 0 : i32
    %c0_i32_0 = arith.constant 0 : i32
    %c0_i32_1 = arith.constant 0 : i32
    return %c0_i32, %c0_i32_0 : i32, i32
  }
  func.func @transform_8(%arg0: i32) -> (i32, i32) {
    %c0_i32 = arith.constant 0 : i32
    %c0_i32_0 = arith.constant 0 : i32
    %c0_i32_1 = arith.constant 0 : i32
    return %c0_i32, %c0_i32_0 : i32, i32
  }
  func.func @transform_9(%arg0: i32) -> (i32, i32) {
    %c0_i32 = arith.constant 0 : i32
    %c0_i32_0 = arith.constant 0 : i32
    %c0_i32_1 = arith.constant 0 : i32
    return %c0_i32, %c0_i32_0 : i32, i32
  }
  func.func @transform_10(%arg0: i32) -> (i32, i32) {
    %c0_i32 = arith.constant 0 : i32
    %c0_i32_0 = arith.constant 0 : i32
    %c0_i32_1 = arith.constant 0 : i32
    return %c0_i32, %c0_i32_0 : i32, i32
  }
  func.func @transform_11(%arg0: i32) -> (i32, i32) {
    %c0_i32 = arith.constant 0 : i32
    %c0_i32_0 = arith.constant 0 : i32
    %c0_i32_1 = arith.constant 0 : i32
    return %c0_i32, %c0_i32_0 : i32, i32
  }
  func.func @transform_12(%arg0: i32) -> (i32, i32) {
    %c0_i32 = arith.constant 0 : i32
    %c0_i32_0 = arith.constant 0 : i32
    %c0_i32_1 = arith.constant 0 : i32
    return %c0_i32, %c0_i32_0 : i32, i32
  }
  func.func @transform_13(%arg0: i32) -> (i32, i32) {
    %c0_i32 = arith.constant 0 : i32
    %c0_i32_0 = arith.constant 0 : i32
    return %arg0, %c0_i32 : i32, i32
  }
  func.func @transform_14(%arg0: i32) -> (i32, i32) {
    %c0_i32 = arith.constant 0 : i32
    %c0_i32_0 = arith.constant 0 : i32
    return %arg0, %c0_i32 : i32, i32
  }
}

</mosaic_0001>

<llo_original>
// kernel: sae_forward.1
$region0: #{sae_forward.1}
  #allocation0 [shape = 'u32[]', space=smem, size = 0x4, offset = 0x4, fixed_abs, tag = 'smem constant byte address 0x4 - core index']
  #allocation1 [shape = 'u32[144,128]{1,0:T(1,128)}', space=vmem, size = 0x12000, scoped, tag = 'internal scratch']
  %s0 = inlined_call_operand.vmem [shape: f32[2048,784], index: 0, kind: input, shape index: {}]
  %s1 = inlined_call_operand.vmem [shape: bf16[784,128], index: 1, kind: input, shape index: {}]
  %s2 = inlined_call_operand.vmem [shape: f32[1,128], index: 2, kind: input, shape index: {}]
  %s3 = inlined_call_operand.vmem [shape: bf16[128,64], index: 3, kind: input, shape index: {}]
  %s4 = inlined_call_operand.vmem [shape: f32[1,64], index: 4, kind: input, shape index: {}]
  %s5 = inlined_call_operand.vmem [shape: bf16[64,32], index: 5, kind: input, shape index: {}]
  %s6 = inlined_call_operand.vmem [shape: f32[1,32], index: 6, kind: input, shape index: {}]
  %s7 = inlined_call_operand.vmem [shape: bf16[32,64], index: 7, kind: input, shape index: {}]
  %s8 = inlined_call_operand.vmem [shape: f32[1,64], index: 8, kind: input, shape index: {}]
  %s9 = inlined_call_operand.vmem [shape: bf16[64,128], index: 9, kind: input, shape index: {}]
  %s10 = inlined_call_operand.vmem [shape: f32[1,128], index: 10, kind: input, shape index: {}]
  %s11 = inlined_call_operand.vmem [shape: bf16[128,784], index: 11, kind: input, shape index: {}]
  %s12 = inlined_call_operand.vmem [shape: f32[1,784], index: 12, kind: input, shape index: {}]
  %s13 = inlined_call_operand.vmem [shape: f32[2048,32], index: 13, kind: output, shape index: {0}]
  %s14 = inlined_call_operand.vmem [shape: bf16[2048,784], index: 14, kind: output, shape index: {1}]
  %15 = xla_tuple %s13, %s14
  %s16 = sld [smem:[#allocation0]]
  $region93: #{sae_forward.1} parent=0
    _
  %s18 = ssub.s32 1, %s16
  %s19 = scalar_select 0, %s18, %s16
  loop: start=0, step=1, limit=6
  $region2: #{sae_forward.1} parent=0 // loop_pre_header
    _
  $region3: #{sae_forward.1} parent=0 // loop_header
    %s21 = sphi 0, %s25
    %p22 = scmp.ge.s32.totalorder %s21, 6
    %s31 = sphi 0, %s33
    %s34 = sphi 0, %s31
    %s35 = sphi 0, %s34
    %s51 = sphi 0, %s35
    %s55 = sphi 0, %s55
    %s57 = sphi 0, %s55
    %s58 = sphi 0, %s57
    %s72 = sphi 0, %s58
    %s76 = sphi 0, %s76
    %s78 = sphi 0, %s76
    %s79 = sphi 0, %s78
    %s93 = sphi 0, %s79
    %s97 = sphi 0, %s97
    %s99 = sphi 0, %s97
    %s100 = sphi 0, %s99
    %s114 = sphi 0, %s100
    %s118 = sphi 0, %s118
    %s120 = sphi 0, %s118
    %s121 = sphi 0, %s120
    %s135 = sphi 0, %s121
    %s139 = sphi 0, %s139
    %s141 = sphi 0, %s139
    %s142 = sphi 0, %s141
    %s156 = sphi 0, %s142
    %s160 = sphi 0, %s160
    %s162 = sphi 0, %s160
    %s163 = sphi 0, %s162
    %s177 = sphi 0, %s163
    %s181 = sphi 0, %s181
    %s183 = sphi 0, %s181
    %s184 = sphi 0, %s183
    %s198 = sphi 0, %s184
    %s202 = sphi 0, %s202
    %s204 = sphi 0, %s202
    %s205 = sphi 0, %s204
    %s219 = sphi 0, %s205
    %s223 = sphi 0, %s223
    %s225 = sphi 0, %s223
    %s226 = sphi 0, %s225
    %s240 = sphi 0, %s226
    %s244 = sphi 0, %s244
    %s246 = sphi 0, %s244
    %s247 = sphi 0, %s246
    %s261 = sphi 0, %s247
    %s265 = sphi 0, %s265
    %s267 = sphi 0, %s265
    %s268 = sphi 0, %s267
    %s282 = sphi 0, %s268
    %s286 = sphi 0, %s286
    %s288 = sphi 0, %s286
    %s289 = sphi 0, %s288
    %s303 = sphi 0, %s289
    %s309 = sphi 0, %s311
    %s312 = sphi 0, %s309
    %s313 = sphi 0, %s312
    %s329 = sphi 0, %s313
    %s335 = sphi 0, %s337
    %s338 = sphi 0, %s335
    %s339 = sphi 0, %s338
    %s355 = sphi 0, %s339
  $region4: #{sae_forward.1} parent=0 // loop_header_branch
    %24 = sbr.rel (%p22) target = $region8
  $region5: #{sae_forward.1} parent=0 // loop_body
    %s26 = ssub.s32 %s21, 1
    %s27 = ssub.s32 %s21, 2
    %s28 = sadd.s32 %s21, 1
    %s29 = ssub.s32 %s21, %s28
    %p30 = scmp.eq.s32.totalorder %s29, 0
    %s32 = sadd.s32 %s31, 1
    %s33 = scalar_select %p30, %s31, %s32
    %p36 = pneg %p30
    %p37 = scmp.eq.s32.totalorder %s21, 3
    %p38 = por %p36, %p37
    %p39 = scmp.ne.s32.totalorder %s31, %s34
    %p40 = scmp.eq.s32.totalorder %s21, 0
    %p41 = por %p39, %p40
    %p42 = scmp.ne.s32.totalorder %s31, %s34
    %p43 = scmp.eq.s32.totalorder %s26, 3
    %p44 = por %p42, %p43
    %p45 = scmp.ne.s32.totalorder %s34, %s35
    %p46 = scmp.eq.s32.totalorder %s26, 0
    %p47 = por %p45, %p46
    %p48 = scmp.ne.s32.totalorder %s34, %s35
    %p49 = scmp.eq.s32.totalorder %s27, 3
    %p50 = por %p48, %p49
    %p52 = scmp.ne.s32.totalorder %s35, %s51
    %p53 = scmp.eq.s32.totalorder %s27, 0
    %p54 = por %p52, %p53
    %s56 = sadd.s32 %s55, 1
    %p59 = scmp.eq.s32.totalorder %s21, 3
    %p60 = scmp.ne.s32.totalorder %s55, %s57
    %p61 = scmp.eq.s32.totalorder %s21, 0
    %p62 = por %p60, %p61
    %p63 = scmp.ne.s32.totalorder %s55, %s57
    %p64 = scmp.eq.s32.totalorder %s26, 3
    %p65 = por %p63, %p64
    %p66 = scmp.ne.s32.totalorder %s57, %s58
    %p67 = scmp.eq.s32.totalorder %s26, 0
    %p68 = por %p66, %p67
    %p69 = scmp.ne.s32.totalorder %s57, %s58
    %p70 = scmp.eq.s32.totalorder %s27, 3
    %p71 = por %p69, %p70
    %p73 = scmp.ne.s32.totalorder %s58, %s72
    %p74 = scmp.eq.s32.totalorder %s27, 0
    %p75 = por %p73, %p74
    %s77 = sadd.s32 %s76, 1
    %p80 = scmp.eq.s32.totalorder %s21, 3
    %p81 = scmp.ne.s32.totalorder %s76, %s78
    %p82 = scmp.eq.s32.totalorder %s21, 0
    %p83 = por %p81, %p82
    %p84 = scmp.ne.s32.totalorder %s76, %s78
    %p85 = scmp.eq.s32.totalorder %s26, 3
    %p86 = por %p84, %p85
    %p87 = scmp.ne.s32.totalorder %s78, %s79
    %p88 = scmp.eq.s32.totalorder %s26, 0
    %p89 = por %p87, %p88
    %p90 = scmp.ne.s32.totalorder %s78, %s79
    %p91 = scmp.eq.s32.totalorder %s27, 3
    %p92 = por %p90, %p91
    %p94 = scmp.ne.s32.totalorder %s79, %s93
    %p95 = scmp.eq.s32.totalorder %s27, 0
    %p96 = por %p94, %p95
    %s98 = sadd.s32 %s97, 1
    %p101 = scmp.eq.s32.totalorder %s21, 3
    %p102 = scmp.ne.s32.totalorder %s97, %s99
    %p103 = scmp.eq.s32.totalorder %s21, 0
    %p104 = por %p102, %p103
    %p105 = scmp.ne.s32.totalorder %s97, %s99
    %p106 = scmp.eq.s32.totalorder %s26, 3
    %p107 = por %p105, %p106
    %p108 = scmp.ne.s32.totalorder %s99, %s100
    %p109 = scmp.eq.s32.totalorder %s26, 0
    %p110 = por %p108, %p109
    %p111 = scmp.ne.s32.totalorder %s99, %s100
    %p112 = scmp.eq.s32.totalorder %s27, 3
    %p113 = por %p111, %p112
    %p115 = scmp.ne.s32.totalorder %s100, %s114
    %p116 = scmp.eq.s32.totalorder %s27, 0
    %p117 = por %p115, %p116
    %s119 = sadd.s32 %s118, 1
    %p122 = scmp.eq.s32.totalorder %s21, 3
    %p123 = scmp.ne.s32.totalorder %s118, %s120
    %p124 = scmp.eq.s32.totalorder %s21, 0
    %p125 = por %p123, %p124
    %p126 = scmp.ne.s32.totalorder %s118, %s120
    %p127 = scmp.eq.s32.totalorder %s26, 3
    %p128 = por %p126, %p127
    %p129 = scmp.ne.s32.totalorder %s120, %s121
    %p130 = scmp.eq.s32.totalorder %s26, 0
    %p131 = por %p129, %p130
    %p132 = scmp.ne.s32.totalorder %s120, %s121
    %p133 = scmp.eq.s32.totalorder %s27, 3
    %p134 = por %p132, %p133
    %p136 = scmp.ne.s32.totalorder %s121, %s135
    %p137 = scmp.eq.s32.totalorder %s27, 0
    %p138 = por %p136, %p137
    %s140 = sadd.s32 %s139, 1
    %p143 = scmp.eq.s32.totalorder %s21, 3
    %p144 = scmp.ne.s32.totalorder %s139, %s141
    %p145 = scmp.eq.s32.totalorder %s21, 0
    %p146 = por %p144, %p145
    %p147 = scmp.ne.s32.totalorder %s139, %s141
    %p148 = scmp.eq.s32.totalorder %s26, 3
    %p149 = por %p147, %p148
    %p150 = scmp.ne.s32.totalorder %s141, %s142
    %p151 = scmp.eq.s32.totalorder %s26, 0
    %p152 = por %p150, %p151
    %p153 = scmp.ne.s32.totalorder %s141, %s142
    %p154 = scmp.eq.s32.totalorder %s27, 3
    %p155 = por %p153, %p154
    %p157 = scmp.ne.s32.totalorder %s142, %s156
    %p158 = scmp.eq.s32.totalorder %s27, 0
    %p159 = por %p157, %p158
    %s161 = sadd.s32 %s160, 1
    %p164 = scmp.eq.s32.totalorder %s21, 3
    %p165 = scmp.ne.s32.totalorder %s160, %s162
    %p166 = scmp.eq.s32.totalorder %s21, 0
    %p167 = por %p165, %p166
    %p168 = scmp.ne.s32.totalorder %s160, %s162
    %p169 = scmp.eq.s32.totalorder %s26, 3
    %p170 = por %p168, %p169
    %p171 = scmp.ne.s32.totalorder %s162, %s163
    %p172 = scmp.eq.s32.totalorder %s26, 0
    %p173 = por %p171, %p172
    %p174 = scmp.ne.s32.totalorder %s162, %s163
    %p175 = scmp.eq.s32.totalorder %s27, 3
    %p176 = por %p174, %p175
    %p178 = scmp.ne.s32.totalorder %s163, %s177
    %p179 = scmp.eq.s32.totalorder %s27, 0
    %p180 = por %p178, %p179
    %s182 = sadd.s32 %s181, 1
    %p185 = scmp.eq.s32.totalorder %s21, 3
    %p186 = scmp.ne.s32.totalorder %s181, %s183
    %p187 = scmp.eq.s32.totalorder %s21, 0
    %p188 = por %p186, %p187
    %p189 = scmp.ne.s32.totalorder %s181, %s183
    %p190 = scmp.eq.s32.totalorder %s26, 3
    %p191 = por %p189, %p190
    %p192 = scmp.ne.s32.totalorder %s183, %s184
    %p193 = scmp.eq.s32.totalorder %s26, 0
    %p194 = por %p192, %p193
    %p195 = scmp.ne.s32.totalorder %s183, %s184
    %p196 = scmp.eq.s32.totalorder %s27, 3
    %p197 = por %p195, %p196
    %p199 = scmp.ne.s32.totalorder %s184, %s198
    %p200 = scmp.eq.s32.totalorder %s27, 0
    %p201 = por %p199, %p200
    %s203 = sadd.s32 %s202, 1
    %p206 = scmp.eq.s32.totalorder %s21, 3
    %p207 = scmp.ne.s32.totalorder %s202, %s204
    %p208 = scmp.eq.s32.totalorder %s21, 0
    %p209 = por %p207, %p208
    %p210 = scmp.ne.s32.totalorder %s202, %s204
    %p211 = scmp.eq.s32.totalorder %s26, 3
    %p212 = por %p210, %p211
    %p213 = scmp.ne.s32.totalorder %s204, %s205
    %p214 = scmp.eq.s32.totalorder %s26, 0
    %p215 = por %p213, %p214
    %p216 = scmp.ne.s32.totalorder %s204, %s205
    %p217 = scmp.eq.s32.totalorder %s27, 3
    %p218 = por %p216, %p217
    %p220 = scmp.ne.s32.totalorder %s205, %s219
    %p221 = scmp.eq.s32.totalorder %s27, 0
    %p222 = por %p220, %p221
    %s224 = sadd.s32 %s223, 1
    %p227 = scmp.eq.s32.totalorder %s21, 3
    %p228 = scmp.ne.s32.totalorder %s223, %s225
    %p229 = scmp.eq.s32.totalorder %s21, 0
    %p230 = por %p228, %p229
    %p231 = scmp.ne.s32.totalorder %s223, %s225
    %p232 = scmp.eq.s32.totalorder %s26, 3
    %p233 = por %p231, %p232
    %p234 = scmp.ne.s32.totalorder %s225, %s226
    %p235 = scmp.eq.s32.totalorder %s26, 0
    %p236 = por %p234, %p235
    %p237 = scmp.ne.s32.totalorder %s225, %s226
    %p238 = scmp.eq.s32.totalorder %s27, 3
    %p239 = por %p237, %p238
    %p241 = scmp.ne.s32.totalorder %s226, %s240
    %p242 = scmp.eq.s32.totalorder %s27, 0
    %p243 = por %p241, %p242
    %s245 = sadd.s32 %s244, 1
    %p248 = scmp.eq.s32.totalorder %s21, 3
    %p249 = scmp.ne.s32.totalorder %s244, %s246
    %p250 = scmp.eq.s32.totalorder %s21, 0
    %p251 = por %p249, %p250
    %p252 = scmp.ne.s32.totalorder %s244, %s246
    %p253 = scmp.eq.s32.totalorder %s26, 3
    %p254 = por %p252, %p253
    %p255 = scmp.ne.s32.totalorder %s246, %s247
    %p256 = scmp.eq.s32.totalorder %s26, 0
    %p257 = por %p255, %p256
    %p258 = scmp.ne.s32.totalorder %s246, %s247
    %p259 = scmp.eq.s32.totalorder %s27, 3
    %p260 = por %p258, %p259
    %p262 = scmp.ne.s32.totalorder %s247, %s261
    %p263 = scmp.eq.s32.totalorder %s27, 0
    %p264 = por %p262, %p263
    %s266 = sadd.s32 %s265, 1
    %p269 = scmp.eq.s32.totalorder %s21, 3
    %p270 = scmp.ne.s32.totalorder %s265, %s267
    %p271 = scmp.eq.s32.totalorder %s21, 0
    %p272 = por %p270, %p271
    %p273 = scmp.ne.s32.totalorder %s265, %s267
    %p274 = scmp.eq.s32.totalorder %s26, 3
    %p275 = por %p273, %p274
    %p276 = scmp.ne.s32.totalorder %s267, %s268
    %p277 = scmp.eq.s32.totalorder %s26, 0
    %p278 = por %p276, %p277
    %p279 = scmp.ne.s32.totalorder %s267, %s268
    %p280 = scmp.eq.s32.totalorder %s27, 3
    %p281 = por %p279, %p280
    %p283 = scmp.ne.s32.totalorder %s268, %s282
    %p284 = scmp.eq.s32.totalorder %s27, 0
    %p285 = por %p283, %p284
    %s287 = sadd.s32 %s286, 1
    %p290 = scmp.eq.s32.totalorder %s21, 3
    %p291 = scmp.ne.s32.totalorder %s286, %s288
    %p292 = scmp.eq.s32.totalorder %s21, 0
    %p293 = por %p291, %p292
    %p294 = scmp.ne.s32.totalorder %s286, %s288
    %p295 = scmp.eq.s32.totalorder %s26, 3
    %p296 = por %p294, %p295
    %p297 = scmp.ne.s32.totalorder %s288, %s289
    %p298 = scmp.eq.s32.totalorder %s26, 0
    %p299 = por %p297, %p298
    %p300 = scmp.ne.s32.totalorder %s288, %s289
    %p301 = scmp.eq.s32.totalorder %s27, 3
    %p302 = por %p300, %p301
    %p304 = scmp.ne.s32.totalorder %s289, %s303
    %p305 = scmp.eq.s32.totalorder %s27, 0
    %p306 = por %p304, %p305
    %s307 = ssub.s32 %s21, %s28
    %p308 = scmp.eq.s32.totalorder %s307, 0
    %s310 = sadd.s32 %s309, 1
    %s311 = scalar_select %p308, %s309, %s310
    %p314 = pneg %p308
    %p315 = scmp.eq.s32.totalorder %s21, 3
    %p316 = por %p314, %p315
    %p317 = scmp.ne.s32.totalorder %s309, %s312
    %p318 = scmp.eq.s32.totalorder %s21, 0
    %p319 = por %p317, %p318
    %p320 = scmp.ne.s32.totalorder %s309, %s312
    %p321 = scmp.eq.s32.totalorder %s26, 3
    %p322 = por %p320, %p321
    %p323 = scmp.ne.s32.totalorder %s312, %s313
    %p324 = scmp.eq.s32.totalorder %s26, 0
    %p325 = por %p323, %p324
    %p326 = scmp.ne.s32.totalorder %s312, %s313
    %p327 = scmp.eq.s32.totalorder %s27, 3
    %p328 = por %p326, %p327
    %p330 = scmp.ne.s32.totalorder %s313, %s329
    %p331 = scmp.eq.s32.totalorder %s27, 0
    %p332 = por %p330, %p331
    %s333 = ssub.s32 %s21, %s28
    %p334 = scmp.eq.s32.totalorder %s333, 0
    %s336 = sadd.s32 %s335, 1
    %s337 = scalar_select %p334, %s335, %s336
    %p340 = pneg %p334
    %p341 = scmp.eq.s32.totalorder %s21, 3
    %p342 = por %p340, %p341
    %p343 = scmp.ne.s32.totalorder %s335, %s338
    %p344 = scmp.eq.s32.totalorder %s21, 0
    %p345 = por %p343, %p344
    %p346 = scmp.ne.s32.totalorder %s335, %s338
    %p347 = scmp.eq.s32.totalorder %s26, 3
    %p348 = por %p346, %p347
    %p349 = scmp.ne.s32.totalorder %s338, %s339
    %p350 = scmp.eq.s32.totalorder %s26, 0
    %p351 = por %p349, %p350
    %p352 = scmp.ne.s32.totalorder %s338, %s339
    %p353 = scmp.eq.s32.totalorder %s27, 3
    %p354 = por %p352, %p353
    %p356 = scmp.ne.s32.totalorder %s339, %s355
    %p357 = scmp.eq.s32.totalorder %s27, 0
    %p358 = por %p356, %p357
    %p359 = scmp.le.s32.totalorder 1, %s21
    %p360 = scmp.lt.s32.totalorder %s21, 5
    %p361 = pnand %p359, %p360
    %p362 = pneg %p361
    // Predicated region
    $region9: #{sae_forward.1} parent=5 // pred_check
      _
    $region10: #{sae_forward.1} parent=5 // pred_check_branch
      %364 = sbr.rel (%p361) target = $region12
    $region11: #{sae_forward.1} parent=5 // pred_region
      %s365 = ssub.s32 %s21, 1
      // Predicated region
      $region13: #{sae_forward.1} parent=11 // pred_check
        %p366 = pneg %p68
      $region14: #{sae_forward.1} parent=11 // pred_check_branch
        %368 = sbr.rel (%p366) target = $region16
      $region15: #{sae_forward.1} parent=11 // pred_region
        _
      $region16: #{sae_forward.1} parent=11 // pred_fallthru
        _
      // Predicated region
      $region17: #{sae_forward.1} parent=11 // pred_check
        %p369 = pneg %p89
      $region18: #{sae_forward.1} parent=11 // pred_check_branch
        %371 = sbr.rel (%p369) target = $region20
      $region19: #{sae_forward.1} parent=11 // pred_region
        _
      $region20: #{sae_forward.1} parent=11 // pred_fallthru
        _
      // Predicated region
      $region21: #{sae_forward.1} parent=11 // pred_check
        %p372 = pneg %p110
      $region22: #{sae_forward.1} parent=11 // pred_check_branch
        %374 = sbr.rel (%p372) target = $region24
      $region23: #{sae_forward.1} parent=11 // pred_region
        _
      $region24: #{sae_forward.1} parent=11 // pred_fallthru
        _
      // Predicated region
      $region25: #{sae_forward.1} parent=11 // pred_check
        %p375 = pneg %p131
      $region26: #{sae_forward.1} parent=11 // pred_check_branch
        %377 = sbr.rel (%p375) target = $region28
      $region27: #{sae_forward.1} parent=11 // pred_region
        _
      $region28: #{sae_forward.1} parent=11 // pred_fallthru
        _
      // Predicated region
      $region29: #{sae_forward.1} parent=11 // pred_check
        %p378 = pneg %p152
      $region30: #{sae_forward.1} parent=11 // pred_check_branch
        %380 = sbr.rel (%p378) target = $region32
      $region31: #{sae_forward.1} parent=11 // pred_region
        _
      $region32: #{sae_forward.1} parent=11 // pred_fallthru
        _
      // Predicated region
      $region33: #{sae_forward.1} parent=11 // pred_check
        %p381 = pneg %p173
      $region34: #{sae_forward.1} parent=11 // pred_check_branch
        %383 = sbr.rel (%p381) target = $region36
      $region35: #{sae_forward.1} parent=11 // pred_region
        _
      $region36: #{sae_forward.1} parent=11 // pred_fallthru
        _
      // Predicated region
      $region37: #{sae_forward.1} parent=11 // pred_check
        %p384 = pneg %p194
      $region38: #{sae_forward.1} parent=11 // pred_check_branch
        %386 = sbr.rel (%p384) target = $region40
      $region39: #{sae_forward.1} parent=11 // pred_region
        _
      $region40: #{sae_forward.1} parent=11 // pred_fallthru
        _
      // Predicated region
      $region41: #{sae_forward.1} parent=11 // pred_check
        %p387 = pneg %p215
      $region42: #{sae_forward.1} parent=11 // pred_check_branch
        %389 = sbr.rel (%p387) target = $region44
      $region43: #{sae_forward.1} parent=11 // pred_region
        _
      $region44: #{sae_forward.1} parent=11 // pred_fallthru
        _
      // Predicated region
      $region45: #{sae_forward.1} parent=11 // pred_check
        %p390 = pneg %p236
      $region46: #{sae_forward.1} parent=11 // pred_check_branch
        %392 = sbr.rel (%p390) target = $region48
      $region47: #{sae_forward.1} parent=11 // pred_region
        _
      $region48: #{sae_forward.1} parent=11 // pred_fallthru
        _
      // Predicated region
      $region49: #{sae_forward.1} parent=11 // pred_check
        %p393 = pneg %p257
      $region50: #{sae_forward.1} parent=11 // pred_check_branch
        %395 = sbr.rel (%p393) target = $region52
      $region51: #{sae_forward.1} parent=11 // pred_region
        _
      $region52: #{sae_forward.1} parent=11 // pred_fallthru
        _
      // Predicated region
      $region53: #{sae_forward.1} parent=11 // pred_check
        %p396 = pneg %p278
      $region54: #{sae_forward.1} parent=11 // pred_check_branch
        %398 = sbr.rel (%p396) target = $region56
      $region55: #{sae_forward.1} parent=11 // pred_region
        _
      $region56: #{sae_forward.1} parent=11 // pred_fallthru
        _
      // Predicated region
      $region57: #{sae_forward.1} parent=11 // pred_check
        %p399 = pneg %p299
      $region58: #{sae_forward.1} parent=11 // pred_check_branch
        %401 = sbr.rel (%p399) target = $region60
      $region59: #{sae_forward.1} parent=11 // pred_region
        _
      $region60: #{sae_forward.1} parent=11 // pred_fallthru
        _
    $region12: #{sae_forward.1} parent=5 // pred_fallthru
      _
    %p402 = scmp.lt.s32.totalorder %s21, 4
    // Predicated region
    $region61: #{sae_forward.1} parent=5 // pred_check
      %p403 = pneg %p402
    $region62: #{sae_forward.1} parent=5 // pred_check_branch
      %405 = sbr.rel (%p403) target = $region64
    $region63: #{sae_forward.1} parent=5 // pred_region
      // Predicated region
      $region65: #{sae_forward.1} parent=63 // pred_check
        %p406 = pneg %p41
      $region66: #{sae_forward.1} parent=63 // pred_check_branch
        %408 = sbr.rel (%p406) target = $region68
      $region67: #{sae_forward.1} parent=63 // pred_region
        %s409 = smul.u32 64, %s21
        %p410 = scmp.lt.s32.totalorder %s409, 255
        %s411 = scalar_select %p410, %s409, 255
        %s412 = smul.addr %s411, 7
        %s413 = smul.addr %s412, 8
        %s414 = scalar_lea.vmem %s0, %s413
        %s415 = smul.u32 64, %s21
      $region68: #{sae_forward.1} parent=63 // pred_fallthru
        _
    $region64: #{sae_forward.1} parent=5 // pred_fallthru
      _
    %p416 = scmp.le.s32.totalorder 1, %s21
    %p417 = scmp.lt.s32.totalorder %s21, 5
    %p418 = pnand %p416, %p417
    %p419 = pneg %p418
    // Predicated region
    $region69: #{sae_forward.1} parent=5 // pred_check
      _
    $region70: #{sae_forward.1} parent=5 // pred_check_branch
      %421 = sbr.rel (%p418) target = $region72
    $region71: #{sae_forward.1} parent=5 // pred_region
      %s422 = ssub.s32 %s21, 1
      %s423 = smul.u32 64, %s26
      %p424 = scmp.lt.s32.totalorder %s423, 255
      %s425 = scalar_select %p424, %s423, 255
      %s426 = smul.addr %s425, 7
      %s427 = smul.addr %s426, 8
      %s428 = scalar_lea.vmem %s0, %s427
      %p429 = pneg %p47
      %p430 = pneg %p44
      %p431 = pneg %p68
      %p432 = pneg %p65
      %p433 = pneg %p89
      %p434 = pneg %p86
      %p435 = pneg %p110
      %p436 = pneg %p107
      %p437 = pneg %p131
      %p438 = pneg %p128
      %p439 = pneg %p152
      %p440 = pneg %p149
      %p441 = pneg %p173
      %p442 = pneg %p170
      %p443 = pneg %p194
      %p444 = pneg %p191
      %p445 = pneg %p215
      %p446 = pneg %p212
      %p447 = pneg %p236
      %p448 = pneg %p233
      %p449 = pneg %p257
      %p450 = pneg %p254
      %p451 = pneg %p278
      %p452 = pneg %p275
      %p453 = pneg %p299
      %p454 = pneg %p296
      %p455 = pneg %p325
      %p456 = pneg %p322
      %s457 = smul.u32 64, %s26
      %p458 = scmp.lt.s32.totalorder %s457, 255
      %s459 = scalar_select %p458, %s457, 255
      %s460 = smul.addr %s459, 8
      %s461 = scalar_lea.vmem %s13, %s460
      %p462 = pneg %p351
      %p463 = pneg %p348
      %s464 = smul.u32 64, %s26
      %p465 = scmp.lt.s32.totalorder %s464, 255
      %s466 = scalar_select %p465, %s464, 255
      %s467 = smul.addr %s466, 7
      %s468 = smul.addr %s467, 4
      %s469 = scalar_lea.vmem %s14, %s468
      %s470 = smul.u32 64, %s26
      %p471 = scmp.lt.s32.totalorder %s470, 255
      %s472 = scalar_select %p471, %s470, 255
      %s473 = smul.addr %s472, 7
      %s474 = smul.addr %s473, 8
      %s475 = scalar_lea.vmem %s0, %s474
      %s476 = smul.u32 64, %s26
      %s477 = smul.u32 64, %s26
      %p478 = scmp.lt.s32.totalorder %s477, 255
      %s479 = scalar_select %p478, %s477, 255
      %s480 = smul.addr %s479, 8
      %s481 = scalar_lea.vmem %s13, %s480
      %s482 = smul.u32 64, %s26
      %s483 = smul.u32 64, %s26
      %p484 = scmp.lt.s32.totalorder %s483, 255
      %s485 = scalar_select %p484, %s483, 255
      %s486 = smul.addr %s485, 7
      %s487 = smul.addr %s486, 4
      %s488 = scalar_lea.vmem %s14, %s487
      %s489 = smul.u32 64, %s26
      %v491 = vld [vmem:[%s475] sm:$0xff]
      %v492 = vld [vmem:[%s475 + $0x8] sm:$0xff]
      %v493 = vld [vmem:[%s475 + $0x10] sm:$0xff]
      %v494 = vld [vmem:[%s475 + $0x18] sm:$0xff]
      %v495 = vld [vmem:[%s475 + $0x20] sm:$0xff]
      %v496 = vld [vmem:[%s475 + $0x28] sm:$0xff]
      %v497 = vld [vmem:[%s475 + $0x30] sm:$0xff]
      %v498 = vld [vmem:[%s475 + $0x38] sm:$0xff]
      %v499 = vld [vmem:[%s475 + $0x40] sm:$0xff]
      %v500 = vld [vmem:[%s475 + $0x48] sm:$0xff]
      %v501 = vld [vmem:[%s475 + $0x50] sm:$0xff]
      %v502 = vld [vmem:[%s475 + $0x58] sm:$0xff]
      %v503 = vld [vmem:[%s475 + $0x60] sm:$0xff]
      %v504 = vld [vmem:[%s475 + $0x68] sm:$0xff]
      %v505 = vld [vmem:[%s475 + $0x70] sm:$0xff]
      %v506 = vld [vmem:[%s475 + $0x78] sm:$0xff]
      %v507 = vld [vmem:[%s475 + $0x80] sm:$0xff]
      %v508 = vld [vmem:[%s475 + $0x88] sm:$0xff]
      %v509 = vld [vmem:[%s475 + $0x90] sm:$0xff]
      %v510 = vld [vmem:[%s475 + $0x98] sm:$0xff]
      %v511 = vld [vmem:[%s475 + $0xa0] sm:$0xff]
      %v512 = vld [vmem:[%s475 + $0xa8] sm:$0xff]
      %v513 = vld [vmem:[%s475 + $0xb0] sm:$0xff]
      %v514 = vld [vmem:[%s475 + $0xb8] sm:$0xff]
      %v515 = vld [vmem:[%s475 + $0xc0] sm:$0xff]
      %v516 = vld [vmem:[%s475 + $0xc8] sm:$0xff]
      %v517 = vld [vmem:[%s475 + $0xd0] sm:$0xff]
      %v518 = vld [vmem:[%s475 + $0xd8] sm:$0xff]
      %v519 = vld [vmem:[%s475 + $0xe0] sm:$0xff]
      %v520 = vld [vmem:[%s475 + $0xe8] sm:$0xff]
      %v521 = vld [vmem:[%s475 + $0xf0] sm:$0xff]
      %v522 = vld [vmem:[%s475 + $0xf8] sm:$0xff]
      %v523 = vld [vmem:[%s475 + $0x100] sm:$0xff]
      %v524 = vld [vmem:[%s475 + $0x108] sm:$0xff]
      %v525 = vld [vmem:[%s475 + $0x110] sm:$0xff]
      %v526 = vld [vmem:[%s475 + $0x118] sm:$0xff]
      %v527 = vld [vmem:[%s475 + $0x120] sm:$0xff]
      %v528 = vld [vmem:[%s475 + $0x128] sm:$0xff]
      %v529 = vld [vmem:[%s475 + $0x130] sm:$0xff]
      %v530 = vld [vmem:[%s475 + $0x138] sm:$0xff]
      %v531 = vld [vmem:[%s475 + $0x140] sm:$0xff]
      %v532 = vld [vmem:[%s475 + $0x148] sm:$0xff]
      %v533 = vld [vmem:[%s475 + $0x150] sm:$0xff]
      %v534 = vld [vmem:[%s475 + $0x158] sm:$0xff]
      %v535 = vld [vmem:[%s475 + $0x160] sm:$0xff]
      %v536 = vld [vmem:[%s475 + $0x168] sm:$0xff]
      %v537 = vld [vmem:[%s475 + $0x170] sm:$0xff]
      %v538 = vld [vmem:[%s475 + $0x178] sm:$0xff]
      %v539 = vld [vmem:[%s475 + $0x180] sm:$0xff]
      %v540 = vld [vmem:[%s475 + $0x188] sm:$0xff]
      %v541 = vld [vmem:[%s475 + $0x190] sm:$0xff]
      %v542 = vld [vmem:[%s475 + $0x198] sm:$0xff]
      %v543 = vld [vmem:[%s475 + $0x1a0] sm:$0xff]
      %v544 = vld [vmem:[%s475 + $0x1a8] sm:$0xff]
      %v545 = vld [vmem:[%s475 + $0x1b0] sm:$0xff]
      %v546 = vld [vmem:[%s475 + $0x1b8] sm:$0xff]
      %v547 = vld [vmem:[%s475 + $0x1c0] sm:$0xff]
      %v548 = vld [vmem:[%s475 + $0x1c8] sm:$0xff]
      %v549 = vld [vmem:[%s475 + $0x1d0] sm:$0xff]
      %v550 = vld [vmem:[%s475 + $0x1d8] sm:$0xff]
      %v551 = vld [vmem:[%s475 + $0x1e0] sm:$0xff]
      %v552 = vld [vmem:[%s475 + $0x1e8] sm:$0xff]
      %v553 = vld [vmem:[%s475 + $0x1f0] sm:$0xff]
      %v554 = vld [vmem:[%s475 + $0x1f8] sm:$0xff]
      %v555 = vld [vmem:[%s475 + $0x200] sm:$0xff]
      %v556 = vld [vmem:[%s475 + $0x208] sm:$0xff]
      %v557 = vld [vmem:[%s475 + $0x210] sm:$0xff]
      %v558 = vld [vmem:[%s475 + $0x218] sm:$0xff]
      %v559 = vld [vmem:[%s475 + $0x220] sm:$0xff]
      %v560 = vld [vmem:[%s475 + $0x228] sm:$0xff]
      %v561 = vld [vmem:[%s475 + $0x230] sm:$0xff]
      %v562 = vld [vmem:[%s475 + $0x238] sm:$0xff]
      %v563 = vld [vmem:[%s475 + $0x240] sm:$0xff]
      %v564 = vld [vmem:[%s475 + $0x248] sm:$0xff]
      %v565 = vld [vmem:[%s475 + $0x250] sm:$0xff]
      %v566 = vld [vmem:[%s475 + $0x258] sm:$0xff]
      %v567 = vld [vmem:[%s475 + $0x260] sm:$0xff]
      %v568 = vld [vmem:[%s475 + $0x268] sm:$0xff]
      %v569 = vld [vmem:[%s475 + $0x270] sm:$0xff]
      %v570 = vld [vmem:[%s475 + $0x278] sm:$0xff]
      %v571 = vld [vmem:[%s475 + $0x280] sm:$0xff]
      %v572 = vld [vmem:[%s475 + $0x288] sm:$0xff]
      %v573 = vld [vmem:[%s475 + $0x290] sm:$0xff]
      %v574 = vld [vmem:[%s475 + $0x298] sm:$0xff]
      %v575 = vld [vmem:[%s475 + $0x2a0] sm:$0xff]
      %v576 = vld [vmem:[%s475 + $0x2a8] sm:$0xff]
      %v577 = vld [vmem:[%s475 + $0x2b0] sm:$0xff]
      %v578 = vld [vmem:[%s475 + $0x2b8] sm:$0xff]
      %v579 = vld [vmem:[%s475 + $0x2c0] sm:$0xff]
      %v580 = vld [vmem:[%s475 + $0x2c8] sm:$0xff]
      %v581 = vld [vmem:[%s475 + $0x2d0] sm:$0xff]
      %v582 = vld [vmem:[%s475 + $0x2d8] sm:$0xff]
      %v583 = vld [vmem:[%s475 + $0x2e0] sm:$0xff]
      %v584 = vld [vmem:[%s475 + $0x2e8] sm:$0xff]
      %v585 = vld [vmem:[%s475 + $0x2f0] sm:$0xff]
      %v586 = vld [vmem:[%s475 + $0x2f8] sm:$0xff]
      %v587 = vld [vmem:[%s475 + $0x300] sm:$0xff]
      %v588 = vld [vmem:[%s475 + $0x308] sm:$0xff]
      %v589 = vld [vmem:[%s475 + $0x310] sm:$0xff]
      %v590 = vld [vmem:[%s475 + $0x318] sm:$0xff]
      %v591 = vld [vmem:[%s475 + $0x320] sm:$0xff]
      %v592 = vld [vmem:[%s475 + $0x328] sm:$0xff]
      %v593 = vld [vmem:[%s475 + $0x330] sm:$0xff]
      %v594 = vld [vmem:[%s475 + $0x338] sm:$0xff]
      %v595 = vld [vmem:[%s475 + $0x340] sm:$0xff]
      %v596 = vld [vmem:[%s475 + $0x348] sm:$0xff]
      %v597 = vld [vmem:[%s475 + $0x350] sm:$0xff]
      %v598 = vld [vmem:[%s475 + $0x358] sm:$0xff]
      %v599 = vld [vmem:[%s475 + $0x360] sm:$0xff]
      %v600 = vld [vmem:[%s475 + $0x368] sm:$0xff]
      %v601 = vld [vmem:[%s475 + $0x370] sm:$0xff]
      %v602 = vld [vmem:[%s475 + $0x378] sm:$0xff]
      %v603 = vld [vmem:[%s475 + $0x380] sm:$0xff]
      %v604 = vld [vmem:[%s475 + $0x388] sm:$0xff]
      %v605 = vld [vmem:[%s475 + $0x390] sm:$0xff]
      %v606 = vld [vmem:[%s475 + $0x398] sm:$0xff]
      %v607 = vld [vmem:[%s475 + $0x3a0] sm:$0xff]
      %v608 = vld [vmem:[%s475 + $0x3a8] sm:$0xff]
      %v609 = vld [vmem:[%s475 + $0x3b0] sm:$0xff]
      %v610 = vld [vmem:[%s475 + $0x3b8] sm:$0xff]
      %v611 = vld [vmem:[%s475 + $0x3c0] sm:$0xff]
      %v612 = vld [vmem:[%s475 + $0x3c8] sm:$0xff]
      %v613 = vld [vmem:[%s475 + $0x3d0] sm:$0xff]
      %v614 = vld [vmem:[%s475 + $0x3d8] sm:$0xff]
      %v615 = vld [vmem:[%s475 + $0x3e0] sm:$0xff]
      %v616 = vld [vmem:[%s475 + $0x3e8] sm:$0xff]
      %v617 = vld [vmem:[%s475 + $0x3f0] sm:$0xff]
      %v618 = vld [vmem:[%s475 + $0x3f8] sm:$0xff]
      %v619 = vld [vmem:[%s475 + $0x400] sm:$0xff]
      %v620 = vld [vmem:[%s475 + $0x408] sm:$0xff]
      %v621 = vld [vmem:[%s475 + $0x410] sm:$0xff]
      %v622 = vld [vmem:[%s475 + $0x418] sm:$0xff]
      %v623 = vld [vmem:[%s475 + $0x420] sm:$0xff]
      %v624 = vld [vmem:[%s475 + $0x428] sm:$0xff]
      %v625 = vld [vmem:[%s475 + $0x430] sm:$0xff]
      %v626 = vld [vmem:[%s475 + $0x438] sm:$0xff]
      %v627 = vld [vmem:[%s475 + $0x440] sm:$0xff]
      %v628 = vld [vmem:[%s475 + $0x448] sm:$0xff]
      %v629 = vld [vmem:[%s475 + $0x450] sm:$0xff]
      %v630 = vld [vmem:[%s475 + $0x458] sm:$0xff]
      %v631 = vld [vmem:[%s475 + $0x460] sm:$0xff]
      %v632 = vld [vmem:[%s475 + $0x468] sm:$0xff]
      %v633 = vld [vmem:[%s475 + $0x470] sm:$0xff]
      %v634 = vld [vmem:[%s475 + $0x478] sm:$0xff]
      %v635 = vld [vmem:[%s475 + $0x480] sm:$0xff]
      %v636 = vld [vmem:[%s475 + $0x488] sm:$0xff]
      %v637 = vld [vmem:[%s475 + $0x490] sm:$0xff]
      %v638 = vld [vmem:[%s475 + $0x498] sm:$0xff]
      %v639 = vld [vmem:[%s475 + $0x4a0] sm:$0xff]
      %v640 = vld [vmem:[%s475 + $0x4a8] sm:$0xff]
      %v641 = vld [vmem:[%s475 + $0x4b0] sm:$0xff]
      %v642 = vld [vmem:[%s475 + $0x4b8] sm:$0xff]
      %v643 = vld [vmem:[%s475 + $0x4c0] sm:$0xff]
      %v644 = vld [vmem:[%s475 + $0x4c8] sm:$0xff]
      %v645 = vld [vmem:[%s475 + $0x4d0] sm:$0xff]
      %v646 = vld [vmem:[%s475 + $0x4d8] sm:$0xff]
      %v647 = vld [vmem:[%s475 + $0x4e0] sm:$0xff]
      %v648 = vld [vmem:[%s475 + $0x4e8] sm:$0xff]
      %v649 = vld [vmem:[%s475 + $0x4f0] sm:$0xff]
      %v650 = vld [vmem:[%s475 + $0x4f8] sm:$0xff]
      %v651 = vld [vmem:[%s475 + $0x500] sm:$0xff]
      %v652 = vld [vmem:[%s475 + $0x508] sm:$0xff]
      %v653 = vld [vmem:[%s475 + $0x510] sm:$0xff]
      %v654 = vld [vmem:[%s475 + $0x518] sm:$0xff]
      %v655 = vld [vmem:[%s475 + $0x520] sm:$0xff]
      %v656 = vld [vmem:[%s475 + $0x528] sm:$0xff]
      %v657 = vld [vmem:[%s475 + $0x530] sm:$0xff]
      %v658 = vld [vmem:[%s475 + $0x538] sm:$0xff]
      %v659 = vld [vmem:[%s475 + $0x540] sm:$0xff]
      %v660 = vld [vmem:[%s475 + $0x548] sm:$0xff]
      %v661 = vld [vmem:[%s475 + $0x550] sm:$0xff]
      %v662 = vld [vmem:[%s475 + $0x558] sm:$0xff]
      %v663 = vld [vmem:[%s475 + $0x560] sm:$0xff]
      %v664 = vld [vmem:[%s475 + $0x568] sm:$0xff]
      %v665 = vld [vmem:[%s475 + $0x570] sm:$0xff]
      %v666 = vld [vmem:[%s475 + $0x578] sm:$0xff]
      %v667 = vld [vmem:[%s475 + $0x580] sm:$0xff]
      %v668 = vld [vmem:[%s475 + $0x588] sm:$0xff]
      %v669 = vld [vmem:[%s475 + $0x590] sm:$0xff]
      %v670 = vld [vmem:[%s475 + $0x598] sm:$0xff]
      %v671 = vld [vmem:[%s475 + $0x5a0] sm:$0xff]
      %v672 = vld [vmem:[%s475 + $0x5a8] sm:$0xff]
      %v673 = vld [vmem:[%s475 + $0x5b0] sm:$0xff]
      %v674 = vld [vmem:[%s475 + $0x5b8] sm:$0xff]
      %v675 = vld [vmem:[%s475 + $0x5c0] sm:$0xff]
      %v676 = vld [vmem:[%s475 + $0x5c8] sm:$0xff]
      %v677 = vld [vmem:[%s475 + $0x5d0] sm:$0xff]
      %v678 = vld [vmem:[%s475 + $0x5d8] sm:$0xff]
      %v679 = vld [vmem:[%s475 + $0x5e0] sm:$0xff]
      %v680 = vld [vmem:[%s475 + $0x5e8] sm:$0xff]
      %v681 = vld [vmem:[%s475 + $0x5f0] sm:$0xff]
      %v682 = vld [vmem:[%s475 + $0x5f8] sm:$0xff]
      %v683 = vld [vmem:[%s475 + $0x600] sm:$0xff]
      %v684 = vld [vmem:[%s475 + $0x608] sm:$0xff]
      %v685 = vld [vmem:[%s475 + $0x610] sm:$0xff]
      %v686 = vld [vmem:[%s475 + $0x618] sm:$0xff]
      %v687 = vld [vmem:[%s475 + $0x620] sm:$0xff]
      %v688 = vld [vmem:[%s475 + $0x628] sm:$0xff]
      %v689 = vld [vmem:[%s475 + $0x630] sm:$0xff]
      %v690 = vld [vmem:[%s475 + $0x638] sm:$0xff]
      %v691 = vld [vmem:[%s475 + $0x640] sm:$0xff]
      %v692 = vld [vmem:[%s475 + $0x648] sm:$0xff]
      %v693 = vld [vmem:[%s475 + $0x650] sm:$0xff]
      %v694 = vld [vmem:[%s475 + $0x658] sm:$0xff]
      %v695 = vld [vmem:[%s475 + $0x660] sm:$0xff]
      %v696 = vld [vmem:[%s475 + $0x668] sm:$0xff]
      %v697 = vld [vmem:[%s475 + $0x670] sm:$0xff]
      %v698 = vld [vmem:[%s475 + $0x678] sm:$0xff]
      %v699 = vld [vmem:[%s475 + $0x680] sm:$0xff]
      %v700 = vld [vmem:[%s475 + $0x688] sm:$0xff]
      %v701 = vld [vmem:[%s475 + $0x690] sm:$0xff]
      %v702 = vld [vmem:[%s475 + $0x698] sm:$0xff]
      %v703 = vld [vmem:[%s475 + $0x6a0] sm:$0xff]
      %v704 = vld [vmem:[%s475 + $0x6a8] sm:$0xff]
      %v705 = vld [vmem:[%s475 + $0x6b0] sm:$0xff]
      %v706 = vld [vmem:[%s475 + $0x6b8] sm:$0xff]
      %v707 = vld [vmem:[%s475 + $0x6c0] sm:$0xff]
      %v708 = vld [vmem:[%s475 + $0x6c8] sm:$0xff]
      %v709 = vld [vmem:[%s475 + $0x6d0] sm:$0xff]
      %v710 = vld [vmem:[%s475 + $0x6d8] sm:$0xff]
      %v711 = vld [vmem:[%s475 + $0x6e0] sm:$0xff]
      %v712 = vld [vmem:[%s475 + $0x6e8] sm:$0xff]
      %v713 = vld [vmem:[%s475 + $0x6f0] sm:$0xff]
      %v714 = vld [vmem:[%s475 + $0x6f8] sm:$0xff]
      %v715 = vld [vmem:[%s475 + $0x700] sm:$0xff]
      %v716 = vld [vmem:[%s475 + $0x708] sm:$0xff]
      %v717 = vld [vmem:[%s475 + $0x710] sm:$0xff]
      %v718 = vld [vmem:[%s475 + $0x718] sm:$0xff]
      %v719 = vld [vmem:[%s475 + $0x720] sm:$0xff]
      %v720 = vld [vmem:[%s475 + $0x728] sm:$0xff]
      %v721 = vld [vmem:[%s475 + $0x730] sm:$0xff]
      %v722 = vld [vmem:[%s475 + $0x738] sm:$0xff]
      %v723 = vld [vmem:[%s475 + $0x740] sm:$0xff]
      %v724 = vld [vmem:[%s475 + $0x748] sm:$0xff]
      %v725 = vld [vmem:[%s475 + $0x750] sm:$0xff]
      %v726 = vld [vmem:[%s475 + $0x758] sm:$0xff]
      %v727 = vld [vmem:[%s475 + $0x760] sm:$0xff]
      %v728 = vld [vmem:[%s475 + $0x768] sm:$0xff]
      %v729 = vld [vmem:[%s475 + $0x770] sm:$0xff]
      %v730 = vld [vmem:[%s475 + $0x778] sm:$0xff]
      %v731 = vld [vmem:[%s475 + $0x780] sm:$0xff]
      %v732 = vld [vmem:[%s475 + $0x788] sm:$0xff]
      %v733 = vld [vmem:[%s475 + $0x790] sm:$0xff]
      %v734 = vld [vmem:[%s475 + $0x798] sm:$0xff]
      %v735 = vld [vmem:[%s475 + $0x7a0] sm:$0xff]
      %v736 = vld [vmem:[%s475 + $0x7a8] sm:$0xff]
      %v737 = vld [vmem:[%s475 + $0x7b0] sm:$0xff]
      %v738 = vld [vmem:[%s475 + $0x7b8] sm:$0xff]
      %v739 = vld [vmem:[%s475 + $0x7c0] sm:$0xff]
      %v740 = vld [vmem:[%s475 + $0x7c8] sm:$0xff]
      %v741 = vld [vmem:[%s475 + $0x7d0] sm:$0xff]
      %v742 = vld [vmem:[%s475 + $0x7d8] sm:$0xff]
      %v743 = vld [vmem:[%s475 + $0x7e0] sm:$0xff]
      %v744 = vld [vmem:[%s475 + $0x7e8] sm:$0xff]
      %v745 = vld [vmem:[%s475 + $0x7f0] sm:$0xff]
      %v746 = vld [vmem:[%s475 + $0x7f8] sm:$0xff]
      %v747 = vld [vmem:[%s475 + $0x800] sm:$0xff]
      %v748 = vld [vmem:[%s475 + $0x808] sm:$0xff]
      %v749 = vld [vmem:[%s475 + $0x810] sm:$0xff]
      %v750 = vld [vmem:[%s475 + $0x818] sm:$0xff]
      %v751 = vld [vmem:[%s475 + $0x820] sm:$0xff]
      %v752 = vld [vmem:[%s475 + $0x828] sm:$0xff]
      %v753 = vld [vmem:[%s475 + $0x830] sm:$0xff]
      %v754 = vld [vmem:[%s475 + $0x838] sm:$0xff]
      %v755 = vld [vmem:[%s475 + $0x840] sm:$0xff]
      %v756 = vld [vmem:[%s475 + $0x848] sm:$0xff]
      %v757 = vld [vmem:[%s475 + $0x850] sm:$0xff]
      %v758 = vld [vmem:[%s475 + $0x858] sm:$0xff]
      %v759 = vld [vmem:[%s475 + $0x860] sm:$0xff]
      %v760 = vld [vmem:[%s475 + $0x868] sm:$0xff]
      %v761 = vld [vmem:[%s475 + $0x870] sm:$0xff]
      %v762 = vld [vmem:[%s475 + $0x878] sm:$0xff]
      %v763 = vld [vmem:[%s475 + $0x880] sm:$0xff]
      %v764 = vld [vmem:[%s475 + $0x888] sm:$0xff]
      %v765 = vld [vmem:[%s475 + $0x890] sm:$0xff]
      %v766 = vld [vmem:[%s475 + $0x898] sm:$0xff]
      %v767 = vld [vmem:[%s475 + $0x8a0] sm:$0xff]
      %v768 = vld [vmem:[%s475 + $0x8a8] sm:$0xff]
      %v769 = vld [vmem:[%s475 + $0x8b0] sm:$0xff]
      %v770 = vld [vmem:[%s475 + $0x8b8] sm:$0xff]
      %v771 = vld [vmem:[%s475 + $0x8c0] sm:$0xff]
      %v772 = vld [vmem:[%s475 + $0x8c8] sm:$0xff]
      %v773 = vld [vmem:[%s475 + $0x8d0] sm:$0xff]
      %v774 = vld [vmem:[%s475 + $0x8d8] sm:$0xff]
      %v775 = vld [vmem:[%s475 + $0x8e0] sm:$0xff]
      %v776 = vld [vmem:[%s475 + $0x8e8] sm:$0xff]
      %v777 = vld [vmem:[%s475 + $0x8f0] sm:$0xff]
      %v778 = vld [vmem:[%s475 + $0x8f8] sm:$0xff]
      %v779 = vld [vmem:[%s475 + $0x900] sm:$0xff]
      %v780 = vld [vmem:[%s475 + $0x908] sm:$0xff]
      %v781 = vld [vmem:[%s475 + $0x910] sm:$0xff]
      %v782 = vld [vmem:[%s475 + $0x918] sm:$0xff]
      %v783 = vld [vmem:[%s475 + $0x920] sm:$0xff]
      %v784 = vld [vmem:[%s475 + $0x928] sm:$0xff]
      %v785 = vld [vmem:[%s475 + $0x930] sm:$0xff]
      %v786 = vld [vmem:[%s475 + $0x938] sm:$0xff]
      %v787 = vld [vmem:[%s475 + $0x940] sm:$0xff]
      %v788 = vld [vmem:[%s475 + $0x948] sm:$0xff]
      %v789 = vld [vmem:[%s475 + $0x950] sm:$0xff]
      %v790 = vld [vmem:[%s475 + $0x958] sm:$0xff]
      %v791 = vld [vmem:[%s475 + $0x960] sm:$0xff]
      %v792 = vld [vmem:[%s475 + $0x968] sm:$0xff]
      %v793 = vld [vmem:[%s475 + $0x970] sm:$0xff]
      %v794 = vld [vmem:[%s475 + $0x978] sm:$0xff]
      %v795 = vld [vmem:[%s475 + $0x980] sm:$0xff]
      %v796 = vld [vmem:[%s475 + $0x988] sm:$0xff]
      %v797 = vld [vmem:[%s475 + $0x990] sm:$0xff]
      %v798 = vld [vmem:[%s475 + $0x998] sm:$0xff]
      %v799 = vld [vmem:[%s475 + $0x9a0] sm:$0xff]
      %v800 = vld [vmem:[%s475 + $0x9a8] sm:$0xff]
      %v801 = vld [vmem:[%s475 + $0x9b0] sm:$0xff]
      %v802 = vld [vmem:[%s475 + $0x9b8] sm:$0xff]
      %v803 = vld [vmem:[%s475 + $0x9c0] sm:$0xff]
      %v804 = vld [vmem:[%s475 + $0x9c8] sm:$0xff]
      %v805 = vld [vmem:[%s475 + $0x9d0] sm:$0xff]
      %v806 = vld [vmem:[%s475 + $0x9d8] sm:$0xff]
      %v807 = vld [vmem:[%s475 + $0x9e0] sm:$0xff]
      %v808 = vld [vmem:[%s475 + $0x9e8] sm:$0xff]
      %v809 = vld [vmem:[%s475 + $0x9f0] sm:$0xff]
      %v810 = vld [vmem:[%s475 + $0x9f8] sm:$0xff]
      %v811 = vld [vmem:[%s475 + $0xa00] sm:$0xff]
      %v812 = vld [vmem:[%s475 + $0xa08] sm:$0xff]
      %v813 = vld [vmem:[%s475 + $0xa10] sm:$0xff]
      %v814 = vld [vmem:[%s475 + $0xa18] sm:$0xff]
      %v815 = vld [vmem:[%s475 + $0xa20] sm:$0xff]
      %v816 = vld [vmem:[%s475 + $0xa28] sm:$0xff]
      %v817 = vld [vmem:[%s475 + $0xa30] sm:$0xff]
      %v818 = vld [vmem:[%s475 + $0xa38] sm:$0xff]
      %v819 = vld [vmem:[%s475 + $0xa40] sm:$0xff]
      %v820 = vld [vmem:[%s475 + $0xa48] sm:$0xff]
      %v821 = vld [vmem:[%s475 + $0xa50] sm:$0xff]
      %v822 = vld [vmem:[%s475 + $0xa58] sm:$0xff]
      %v823 = vld [vmem:[%s475 + $0xa60] sm:$0xff]
      %v824 = vld [vmem:[%s475 + $0xa68] sm:$0xff]
      %v825 = vld [vmem:[%s475 + $0xa70] sm:$0xff]
      %v826 = vld [vmem:[%s475 + $0xa78] sm:$0xff]
      %v827 = vld [vmem:[%s475 + $0xa80] sm:$0xff]
      %v828 = vld [vmem:[%s475 + $0xa88] sm:$0xff]
      %v829 = vld [vmem:[%s475 + $0xa90] sm:$0xff]
      %v830 = vld [vmem:[%s475 + $0xa98] sm:$0xff]
      %v831 = vld [vmem:[%s475 + $0xaa0] sm:$0xff]
      %v832 = vld [vmem:[%s475 + $0xaa8] sm:$0xff]
      %v833 = vld [vmem:[%s475 + $0xab0] sm:$0xff]
      %v834 = vld [vmem:[%s475 + $0xab8] sm:$0xff]
      %v835 = vld [vmem:[%s475 + $0xac0] sm:$0xff]
      %v836 = vld [vmem:[%s475 + $0xac8] sm:$0xff]
      %v837 = vld [vmem:[%s475 + $0xad0] sm:$0xff]
      %v838 = vld [vmem:[%s475 + $0xad8] sm:$0xff]
      %v839 = vld [vmem:[%s475 + $0xae0] sm:$0xff]
      %v840 = vld [vmem:[%s475 + $0xae8] sm:$0xff]
      %v841 = vld [vmem:[%s475 + $0xaf0] sm:$0xff]
      %v842 = vld [vmem:[%s475 + $0xaf8] sm:$0xff]
      %v843 = vld [vmem:[%s475 + $0xb00] sm:$0xff]
      %v844 = vld [vmem:[%s475 + $0xb08] sm:$0xff]
      %v845 = vld [vmem:[%s475 + $0xb10] sm:$0xff]
      %v846 = vld [vmem:[%s475 + $0xb18] sm:$0xff]
      %v847 = vld [vmem:[%s475 + $0xb20] sm:$0xff]
      %v848 = vld [vmem:[%s475 + $0xb28] sm:$0xff]
      %v849 = vld [vmem:[%s475 + $0xb30] sm:$0xff]
      %v850 = vld [vmem:[%s475 + $0xb38] sm:$0xff]
      %v851 = vld [vmem:[%s475 + $0xb40] sm:$0xff]
      %v852 = vld [vmem:[%s475 + $0xb48] sm:$0xff]
      %v853 = vld [vmem:[%s475 + $0xb50] sm:$0xff]
      %v854 = vld [vmem:[%s475 + $0xb58] sm:$0xff]
      %v855 = vld [vmem:[%s475 + $0xb60] sm:$0xff]
      %v856 = vld [vmem:[%s475 + $0xb68] sm:$0xff]
      %v857 = vld [vmem:[%s475 + $0xb70] sm:$0xff]
      %v858 = vld [vmem:[%s475 + $0xb78] sm:$0xff]
      %v859 = vld [vmem:[%s475 + $0xb80] sm:$0xff]
      %v860 = vld [vmem:[%s475 + $0xb88] sm:$0xff]
      %v861 = vld [vmem:[%s475 + $0xb90] sm:$0xff]
      %v862 = vld [vmem:[%s475 + $0xb98] sm:$0xff]
      %v863 = vld [vmem:[%s475 + $0xba0] sm:$0xff]
      %v864 = vld [vmem:[%s475 + $0xba8] sm:$0xff]
      %v865 = vld [vmem:[%s475 + $0xbb0] sm:$0xff]
      %v866 = vld [vmem:[%s475 + $0xbb8] sm:$0xff]
      %v867 = vld [vmem:[%s475 + $0xbc0] sm:$0xff]
      %v868 = vld [vmem:[%s475 + $0xbc8] sm:$0xff]
      %v869 = vld [vmem:[%s475 + $0xbd0] sm:$0xff]
      %v870 = vld [vmem:[%s475 + $0xbd8] sm:$0xff]
      %v871 = vld [vmem:[%s475 + $0xbe0] sm:$0xff]
      %v872 = vld [vmem:[%s475 + $0xbe8] sm:$0xff]
      %v873 = vld [vmem:[%s475 + $0xbf0] sm:$0xff]
      %v874 = vld [vmem:[%s475 + $0xbf8] sm:$0xff]
      %v875 = vld [vmem:[%s475 + $0xc00] sm:$0xff]
      %v876 = vld [vmem:[%s475 + $0xc08] sm:$0xff]
      %v877 = vld [vmem:[%s475 + $0xc10] sm:$0xff]
      %v878 = vld [vmem:[%s475 + $0xc18] sm:$0xff]
      %v879 = vld [vmem:[%s475 + $0xc20] sm:$0xff]
      %v880 = vld [vmem:[%s475 + $0xc28] sm:$0xff]
      %v881 = vld [vmem:[%s475 + $0xc30] sm:$0xff]
      %v882 = vld [vmem:[%s475 + $0xc38] sm:$0xff]
      %v883 = vld [vmem:[%s475 + $0xc40] sm:$0xff]
      %v884 = vld [vmem:[%s475 + $0xc48] sm:$0xff]
      %v885 = vld [vmem:[%s475 + $0xc50] sm:$0xff]
      %v886 = vld [vmem:[%s475 + $0xc58] sm:$0xff]
      %v887 = vld [vmem:[%s475 + $0xc60] sm:$0xff]
      %v888 = vld [vmem:[%s475 + $0xc68] sm:$0xff]
      %v889 = vld [vmem:[%s475 + $0xc70] sm:$0xff]
      %v890 = vld [vmem:[%s475 + $0xc78] sm:$0xff]
      %v891 = vld [vmem:[%s475 + $0xc80] sm:$0xff]
      %v892 = vld [vmem:[%s475 + $0xc88] sm:$0xff]
      %v893 = vld [vmem:[%s475 + $0xc90] sm:$0xff]
      %v894 = vld [vmem:[%s475 + $0xc98] sm:$0xff]
      %v895 = vld [vmem:[%s475 + $0xca0] sm:$0xff]
      %v896 = vld [vmem:[%s475 + $0xca8] sm:$0xff]
      %v897 = vld [vmem:[%s475 + $0xcb0] sm:$0xff]
      %v898 = vld [vmem:[%s475 + $0xcb8] sm:$0xff]
      %v899 = vld [vmem:[%s475 + $0xcc0] sm:$0xff]
      %v900 = vld [vmem:[%s475 + $0xcc8] sm:$0xff]
      %v901 = vld [vmem:[%s475 + $0xcd0] sm:$0xff]
      %v902 = vld [vmem:[%s475 + $0xcd8] sm:$0xff]
      %v903 = vld [vmem:[%s475 + $0xce0] sm:$0xff]
      %v904 = vld [vmem:[%s475 + $0xce8] sm:$0xff]
      %v905 = vld [vmem:[%s475 + $0xcf0] sm:$0xff]
      %v906 = vld [vmem:[%s475 + $0xcf8] sm:$0xff]
      %v907 = vld [vmem:[%s475 + $0xd00] sm:$0xff]
      %v908 = vld [vmem:[%s475 + $0xd08] sm:$0xff]
      %v909 = vld [vmem:[%s475 + $0xd10] sm:$0xff]
      %v910 = vld [vmem:[%s475 + $0xd18] sm:$0xff]
      %v911 = vld [vmem:[%s475 + $0xd20] sm:$0xff]
      %v912 = vld [vmem:[%s475 + $0xd28] sm:$0xff]
      %v913 = vld [vmem:[%s475 + $0xd30] sm:$0xff]
      %v914 = vld [vmem:[%s475 + $0xd38] sm:$0xff]
      %v915 = vld [vmem:[%s475 + $0xd40] sm:$0xff]
      %v916 = vld [vmem:[%s475 + $0xd48] sm:$0xff]
      %v917 = vld [vmem:[%s475 + $0xd50] sm:$0xff]
      %v918 = vld [vmem:[%s475 + $0xd58] sm:$0xff]
      %v919 = vld [vmem:[%s475 + $0xd60] sm:$0xff]
      %v920 = vld [vmem:[%s475 + $0xd68] sm:$0xff]
      %v921 = vld [vmem:[%s475 + $0xd70] sm:$0xff]
      %v922 = vld [vmem:[%s475 + $0xd78] sm:$0xff]
      %v923 = vld [vmem:[%s475 + $0xd80] sm:$0xff]
      %v924 = vld [vmem:[%s475 + $0xd88] sm:$0xff]
      %v925 = vld [vmem:[%s475 + $0xd90] sm:$0xff]
      %v926 = vld [vmem:[%s475 + $0xd98] sm:$0xff]
      %v927 = vld [vmem:[%s475 + $0xda0] sm:$0xff]
      %v928 = vld [vmem:[%s475 + $0xda8] sm:$0xff]
      %v929 = vld [vmem:[%s475 + $0xdb0] sm:$0xff]
      %v930 = vld [vmem:[%s475 + $0xdb8] sm:$0xff]
      %v931 = vld [vmem:[%s475 + $0xdc0] sm:$0xff]
      %v932 = vld [vmem:[%s475 + $0xdc8] sm:$0xff]
      %v933 = vld [vmem:[%s475 + $0xdd0] sm:$0xff]
      %v934 = vld [vmem:[%s475 + $0xdd8] sm:$0xff]
      %v935 = vld [vmem:[%s475 + $0xde0] sm:$0xff]
      %v936 = vld [vmem:[%s475 + $0xde8] sm:$0xff]
      %v937 = vld [vmem:[%s475 + $0xdf0] sm:$0xff]
      %v938 = vld [vmem:[%s475 + $0xdf8] sm:$0xff]
      %v939 = vpack.c.bf16 %v498, %v491
      %v940 = vpack.c.bf16 %v499, %v492
      %v941 = vpack.c.bf16 %v500, %v493
      %v942 = vpack.c.bf16 %v501, %v494
      %v943 = vpack.c.bf16 %v502, %v495
      %v944 = vpack.c.bf16 %v503, %v496
      %v945 = vpack.c.bf16 %v504, %v497
      %v946 = vpack.c.bf16 %v512, %v505
      %v947 = vpack.c.bf16 %v513, %v506
      %v948 = vpack.c.bf16 %v514, %v507
      %v949 = vpack.c.bf16 %v515, %v508
      %v950 = vpack.c.bf16 %v516, %v509
      %v951 = vpack.c.bf16 %v517, %v510
      %v952 = vpack.c.bf16 %v518, %v511
      %v953 = vpack.c.bf16 %v526, %v519
      %v954 = vpack.c.bf16 %v527, %v520
      %v955 = vpack.c.bf16 %v528, %v521
      %v956 = vpack.c.bf16 %v529, %v522
      %v957 = vpack.c.bf16 %v530, %v523
      %v958 = vpack.c.bf16 %v531, %v524
      %v959 = vpack.c.bf16 %v532, %v525
      %v960 = vpack.c.bf16 %v540, %v533
      %v961 = vpack.c.bf16 %v541, %v534
      %v962 = vpack.c.bf16 %v542, %v535
      %v963 = vpack.c.bf16 %v543, %v536
      %v964 = vpack.c.bf16 %v544, %v537
      %v965 = vpack.c.bf16 %v545, %v538
      %v966 = vpack.c.bf16 %v546, %v539
      %v967 = vpack.c.bf16 %v554, %v547
      %v968 = vpack.c.bf16 %v555, %v548
      %v969 = vpack.c.bf16 %v556, %v549
      %v970 = vpack.c.bf16 %v557, %v550
      %v971 = vpack.c.bf16 %v558, %v551
      %v972 = vpack.c.bf16 %v559, %v552
      %v973 = vpack.c.bf16 %v560, %v553
      %v974 = vpack.c.bf16 %v568, %v561
      %v975 = vpack.c.bf16 %v569, %v562
      %v976 = vpack.c.bf16 %v570, %v563
      %v977 = vpack.c.bf16 %v571, %v564
      %v978 = vpack.c.bf16 %v572, %v565
      %v979 = vpack.c.bf16 %v573, %v566
      %v980 = vpack.c.bf16 %v574, %v567
      %v981 = vpack.c.bf16 %v582, %v575
      %v982 = vpack.c.bf16 %v583, %v576
      %v983 = vpack.c.bf16 %v584, %v577
      %v984 = vpack.c.bf16 %v585, %v578
      %v985 = vpack.c.bf16 %v586, %v579
      %v986 = vpack.c.bf16 %v587, %v580
      %v987 = vpack.c.bf16 %v588, %v581
      %v988 = vpack.c.bf16 %v596, %v589
      %v989 = vpack.c.bf16 %v597, %v590
      %v990 = vpack.c.bf16 %v598, %v591
      %v991 = vpack.c.bf16 %v599, %v592
      %v992 = vpack.c.bf16 %v600, %v593
      %v993 = vpack.c.bf16 %v601, %v594
      %v994 = vpack.c.bf16 %v602, %v595
      %v995 = vpack.c.bf16 %v610, %v603
      %v996 = vpack.c.bf16 %v611, %v604
      %v997 = vpack.c.bf16 %v612, %v605
      %v998 = vpack.c.bf16 %v613, %v606
      %v999 = vpack.c.bf16 %v614, %v607
      %v1000 = vpack.c.bf16 %v615, %v608
      %v1001 = vpack.c.bf16 %v616, %v609
      %v1002 = vpack.c.bf16 %v624, %v617
      %v1003 = vpack.c.bf16 %v625, %v618
      %v1004 = vpack.c.bf16 %v626, %v619
      %v1005 = vpack.c.bf16 %v627, %v620
      %v1006 = vpack.c.bf16 %v628, %v621
      %v1007 = vpack.c.bf16 %v629, %v622
      %v1008 = vpack.c.bf16 %v630, %v623
      %v1009 = vpack.c.bf16 %v638, %v631
      %v1010 = vpack.c.bf16 %v639, %v632
      %v1011 = vpack.c.bf16 %v640, %v633
      %v1012 = vpack.c.bf16 %v641, %v634
      %v1013 = vpack.c.bf16 %v642, %v635
      %v1014 = vpack.c.bf16 %v643, %v636
      %v1015 = vpack.c.bf16 %v644, %v637
      %v1016 = vpack.c.bf16 %v652, %v645
      %v1017 = vpack.c.bf16 %v653, %v646
      %v1018 = vpack.c.bf16 %v654, %v647
      %v1019 = vpack.c.bf16 %v655, %v648
      %v1020 = vpack.c.bf16 %v656, %v649
      %v1021 = vpack.c.bf16 %v657, %v650
      %v1022 = vpack.c.bf16 %v658, %v651
      %v1023 = vpack.c.bf16 %v666, %v659
      %v1024 = vpack.c.bf16 %v667, %v660
      %v1025 = vpack.c.bf16 %v668, %v661
      %v1026 = vpack.c.bf16 %v669, %v662
      %v1027 = vpack.c.bf16 %v670, %v663
      %v1028 = vpack.c.bf16 %v671, %v664
      %v1029 = vpack.c.bf16 %v672, %v665
      %v1030 = vpack.c.bf16 %v680, %v673
      %v1031 = vpack.c.bf16 %v681, %v674
      %v1032 = vpack.c.bf16 %v682, %v675
      %v1033 = vpack.c.bf16 %v683, %v676
      %v1034 = vpack.c.bf16 %v684, %v677
      %v1035 = vpack.c.bf16 %v685, %v678
      %v1036 = vpack.c.bf16 %v686, %v679
      %v1037 = vpack.c.bf16 %v694, %v687
      %v1038 = vpack.c.bf16 %v695, %v688
      %v1039 = vpack.c.bf16 %v696, %v689
      %v1040 = vpack.c.bf16 %v697, %v690
      %v1041 = vpack.c.bf16 %v698, %v691
      %v1042 = vpack.c.bf16 %v699, %v692
      %v1043 = vpack.c.bf16 %v700, %v693
      %v1044 = vpack.c.bf16 %v708, %v701
      %v1045 = vpack.c.bf16 %v709, %v702
      %v1046 = vpack.c.bf16 %v710, %v703
      %v1047 = vpack.c.bf16 %v711, %v704
      %v1048 = vpack.c.bf16 %v712, %v705
      %v1049 = vpack.c.bf16 %v713, %v706
      %v1050 = vpack.c.bf16 %v714, %v707
      %v1051 = vpack.c.bf16 %v722, %v715
      %v1052 = vpack.c.bf16 %v723, %v716
      %v1053 = vpack.c.bf16 %v724, %v717
      %v1054 = vpack.c.bf16 %v725, %v718
      %v1055 = vpack.c.bf16 %v726, %v719
      %v1056 = vpack.c.bf16 %v727, %v720
      %v1057 = vpack.c.bf16 %v728, %v721
      %v1058 = vpack.c.bf16 %v736, %v729
      %v1059 = vpack.c.bf16 %v737, %v730
      %v1060 = vpack.c.bf16 %v738, %v731
      %v1061 = vpack.c.bf16 %v739, %v732
      %v1062 = vpack.c.bf16 %v740, %v733
      %v1063 = vpack.c.bf16 %v741, %v734
      %v1064 = vpack.c.bf16 %v742, %v735
      %v1065 = vpack.c.bf16 %v750, %v743
      %v1066 = vpack.c.bf16 %v751, %v744
      %v1067 = vpack.c.bf16 %v752, %v745
      %v1068 = vpack.c.bf16 %v753, %v746
      %v1069 = vpack.c.bf16 %v754, %v747
      %v1070 = vpack.c.bf16 %v755, %v748
      %v1071 = vpack.c.bf16 %v756, %v749
      %v1072 = vpack.c.bf16 %v764, %v757
      %v1073 = vpack.c.bf16 %v765, %v758
      %v1074 = vpack.c.bf16 %v766, %v759
      %v1075 = vpack.c.bf16 %v767, %v760
      %v1076 = vpack.c.bf16 %v768, %v761
      %v1077 = vpack.c.bf16 %v769, %v762
      %v1078 = vpack.c.bf16 %v770, %v763
      %v1079 = vpack.c.bf16 %v778, %v771
      %v1080 = vpack.c.bf16 %v779, %v772
      %v1081 = vpack.c.bf16 %v780, %v773
      %v1082 = vpack.c.bf16 %v781, %v774
      %v1083 = vpack.c.bf16 %v782, %v775
      %v1084 = vpack.c.bf16 %v783, %v776
      %v1085 = vpack.c.bf16 %v784, %v777
      %v1086 = vpack.c.bf16 %v792, %v785
      %v1087 = vpack.c.bf16 %v793, %v786
      %v1088 = vpack.c.bf16 %v794, %v787
      %v1089 = vpack.c.bf16 %v795, %v788
      %v1090 = vpack.c.bf16 %v796, %v789
      %v1091 = vpack.c.bf16 %v797, %v790
      %v1092 = vpack.c.bf16 %v798, %v791
      %v1093 = vpack.c.bf16 %v806, %v799
      %v1094 = vpack.c.bf16 %v807, %v800
      %v1095 = vpack.c.bf16 %v808, %v801
      %v1096 = vpack.c.bf16 %v809, %v802
      %v1097 = vpack.c.bf16 %v810, %v803
      %v1098 = vpack.c.bf16 %v811, %v804
      %v1099 = vpack.c.bf16 %v812, %v805
      %v1100 = vpack.c.bf16 %v820, %v813
      %v1101 = vpack.c.bf16 %v821, %v814
      %v1102 = vpack.c.bf16 %v822, %v815
      %v1103 = vpack.c.bf16 %v823, %v816
      %v1104 = vpack.c.bf16 %v824, %v817
      %v1105 = vpack.c.bf16 %v825, %v818
      %v1106 = vpack.c.bf16 %v826, %v819
      %v1107 = vpack.c.bf16 %v834, %v827
      %v1108 = vpack.c.bf16 %v835, %v828
      %v1109 = vpack.c.bf16 %v836, %v829
      %v1110 = vpack.c.bf16 %v837, %v830
      %v1111 = vpack.c.bf16 %v838, %v831
      %v1112 = vpack.c.bf16 %v839, %v832
      %v1113 = vpack.c.bf16 %v840, %v833
      %v1114 = vpack.c.bf16 %v848, %v841
      %v1115 = vpack.c.bf16 %v849, %v842
      %v1116 = vpack.c.bf16 %v850, %v843
      %v1117 = vpack.c.bf16 %v851, %v844
      %v1118 = vpack.c.bf16 %v852, %v845
      %v1119 = vpack.c.bf16 %v853, %v846
      %v1120 = vpack.c.bf16 %v854, %v847
      %v1121 = vpack.c.bf16 %v862, %v855
      %v1122 = vpack.c.bf16 %v863, %v856
      %v1123 = vpack.c.bf16 %v864, %v857
      %v1124 = vpack.c.bf16 %v865, %v858
      %v1125 = vpack.c.bf16 %v866, %v859
      %v1126 = vpack.c.bf16 %v867, %v860
      %v1127 = vpack.c.bf16 %v868, %v861
      %v1128 = vpack.c.bf16 %v876, %v869
      %v1129 = vpack.c.bf16 %v877, %v870
      %v1130 = vpack.c.bf16 %v878, %v871
      %v1131 = vpack.c.bf16 %v879, %v872
      %v1132 = vpack.c.bf16 %v880, %v873
      %v1133 = vpack.c.bf16 %v881, %v874
      %v1134 = vpack.c.bf16 %v882, %v875
      %v1135 = vpack.c.bf16 %v890, %v883
      %v1136 = vpack.c.bf16 %v891, %v884
      %v1137 = vpack.c.bf16 %v892, %v885
      %v1138 = vpack.c.bf16 %v893, %v886
      %v1139 = vpack.c.bf16 %v894, %v887
      %v1140 = vpack.c.bf16 %v895, %v888
      %v1141 = vpack.c.bf16 %v896, %v889
      %v1142 = vpack.c.bf16 %v904, %v897
      %v1143 = vpack.c.bf16 %v905, %v898
      %v1144 = vpack.c.bf16 %v906, %v899
      %v1145 = vpack.c.bf16 %v907, %v900
      %v1146 = vpack.c.bf16 %v908, %v901
      %v1147 = vpack.c.bf16 %v909, %v902
      %v1148 = vpack.c.bf16 %v910, %v903
      %v1149 = vpack.c.bf16 %v918, %v911
      %v1150 = vpack.c.bf16 %v919, %v912
      %v1151 = vpack.c.bf16 %v920, %v913
      %v1152 = vpack.c.bf16 %v921, %v914
      %v1153 = vpack.c.bf16 %v922, %v915
      %v1154 = vpack.c.bf16 %v923, %v916
      %v1155 = vpack.c.bf16 %v924, %v917
      %v1156 = vpack.c.bf16 %v932, %v925
      %v1157 = vpack.c.bf16 %v933, %v926
      %v1158 = vpack.c.bf16 %v934, %v927
      %v1159 = vpack.c.bf16 %v935, %v928
      %v1160 = vpack.c.bf16 %v936, %v929
      %v1161 = vpack.c.bf16 %v937, %v930
      %v1162 = vpack.c.bf16 %v938, %v931
      %v1163 = vld [vmem:[%s1] sm:$0xf]
      %v1164 = vld [vmem:[%s1 + $0x4] sm:$0xf]
      %v1165 = vld [vmem:[%s1 + $0x8] sm:$0xf]
      %v1166 = vld [vmem:[%s1 + $0xc] sm:$0xf]
      %v1167 = vld [vmem:[%s1 + $0x10] sm:$0xf]
      %v1168 = vld [vmem:[%s1 + $0x14] sm:$0xf]
      %v1169 = vld [vmem:[%s1 + $0x18] sm:$0xf]
      %v1170 = vld [vmem:[%s1 + $0x1c] sm:$0xf]
      %v1171 = vld [vmem:[%s1 + $0x20] sm:$0xf]
      %v1172 = vld [vmem:[%s1 + $0x24] sm:$0xf]
      %v1173 = vld [vmem:[%s1 + $0x28] sm:$0xf]
      %v1174 = vld [vmem:[%s1 + $0x2c] sm:$0xf]
      %v1175 = vld [vmem:[%s1 + $0x30] sm:$0xf]
      %v1176 = vld [vmem:[%s1 + $0x34] sm:$0xf]
      %v1177 = vld [vmem:[%s1 + $0x38] sm:$0xf]
      %v1178 = vld [vmem:[%s1 + $0x3c] sm:$0xf]
      %v1179 = vld [vmem:[%s1 + $0x40] sm:$0xf]
      %v1180 = vld [vmem:[%s1 + $0x44] sm:$0xf]
      %v1181 = vld [vmem:[%s1 + $0x48] sm:$0xf]
      %v1182 = vld [vmem:[%s1 + $0x4c] sm:$0xf]
      %v1183 = vld [vmem:[%s1 + $0x50] sm:$0xf]
      %v1184 = vld [vmem:[%s1 + $0x54] sm:$0xf]
      %v1185 = vld [vmem:[%s1 + $0x58] sm:$0xf]
      %v1186 = vld [vmem:[%s1 + $0x5c] sm:$0xf]
      %v1187 = vld [vmem:[%s1 + $0x60] sm:$0xf]
      %v1188 = vld [vmem:[%s1 + $0x64] sm:$0xf]
      %v1189 = vld [vmem:[%s1 + $0x68] sm:$0xf]
      %v1190 = vld [vmem:[%s1 + $0x6c] sm:$0xf]
      %v1191 = vld [vmem:[%s1 + $0x70] sm:$0xf]
      %v1192 = vld [vmem:[%s1 + $0x74] sm:$0xf]
      %v1193 = vld [vmem:[%s1 + $0x78] sm:$0xf]
      %v1194 = vld [vmem:[%s1 + $0x7c] sm:$0xf]
      %v1195 = vld [vmem:[%s1 + $0x80] sm:$0xf]
      %v1196 = vld [vmem:[%s1 + $0x84] sm:$0xf]
      %v1197 = vld [vmem:[%s1 + $0x88] sm:$0xf]
      %v1198 = vld [vmem:[%s1 + $0x8c] sm:$0xf]
      %v1199 = vld [vmem:[%s1 + $0x90] sm:$0xf]
      %v1200 = vld [vmem:[%s1 + $0x94] sm:$0xf]
      %v1201 = vld [vmem:[%s1 + $0x98] sm:$0xf]
      %v1202 = vld [vmem:[%s1 + $0x9c] sm:$0xf]
      %v1203 = vld [vmem:[%s1 + $0xa0] sm:$0xf]
      %v1204 = vld [vmem:[%s1 + $0xa4] sm:$0xf]
      %v1205 = vld [vmem:[%s1 + $0xa8] sm:$0xf]
      %v1206 = vld [vmem:[%s1 + $0xac] sm:$0xf]
      %v1207 = vld [vmem:[%s1 + $0xb0] sm:$0xf]
      %v1208 = vld [vmem:[%s1 + $0xb4] sm:$0xf]
      %v1209 = vld [vmem:[%s1 + $0xb8] sm:$0xf]
      %v1210 = vld [vmem:[%s1 + $0xbc] sm:$0xf]
      %v1211 = vld [vmem:[%s1 + $0xc0] sm:$0xf]
      %v1212 = vld [vmem:[%s1 + $0xc4] sm:$0xf]
      %v1213 = vld [vmem:[%s1 + $0xc8] sm:$0xf]
      %v1214 = vld [vmem:[%s1 + $0xcc] sm:$0xf]
      %v1215 = vld [vmem:[%s1 + $0xd0] sm:$0xf]
      %v1216 = vld [vmem:[%s1 + $0xd4] sm:$0xf]
      %v1217 = vld [vmem:[%s1 + $0xd8] sm:$0xf]
      %v1218 = vld [vmem:[%s1 + $0xdc] sm:$0xf]
      %v1219 = vld [vmem:[%s1 + $0xe0] sm:$0xf]
      %v1220 = vld [vmem:[%s1 + $0xe4] sm:$0xf]
      %v1221 = vld [vmem:[%s1 + $0xe8] sm:$0xf]
      %v1222 = vld [vmem:[%s1 + $0xec] sm:$0xf]
      %v1223 = vld [vmem:[%s1 + $0xf0] sm:$0xf]
      %v1224 = vld [vmem:[%s1 + $0xf4] sm:$0xf]
      %v1225 = vld [vmem:[%s1 + $0xf8] sm:$0xf]
      %v1226 = vld [vmem:[%s1 + $0xfc] sm:$0xf]
      %v1227 = vld [vmem:[%s1 + $0x100] sm:$0xf]
      %v1228 = vld [vmem:[%s1 + $0x104] sm:$0xf]
      %v1229 = vld [vmem:[%s1 + $0x108] sm:$0xf]
      %v1230 = vld [vmem:[%s1 + $0x10c] sm:$0xf]
      %v1231 = vld [vmem:[%s1 + $0x110] sm:$0xf]
      %v1232 = vld [vmem:[%s1 + $0x114] sm:$0xf]
      %v1233 = vld [vmem:[%s1 + $0x118] sm:$0xf]
      %v1234 = vld [vmem:[%s1 + $0x11c] sm:$0xf]
      %v1235 = vld [vmem:[%s1 + $0x120] sm:$0xf]
      %v1236 = vld [vmem:[%s1 + $0x124] sm:$0xf]
      %v1237 = vld [vmem:[%s1 + $0x128] sm:$0xf]
      %v1238 = vld [vmem:[%s1 + $0x12c] sm:$0xf]
      %v1239 = vld [vmem:[%s1 + $0x130] sm:$0xf]
      %v1240 = vld [vmem:[%s1 + $0x134] sm:$0xf]
      %v1241 = vld [vmem:[%s1 + $0x138] sm:$0xf]
      %v1242 = vld [vmem:[%s1 + $0x13c] sm:$0xf]
      %v1243 = vld [vmem:[%s1 + $0x140] sm:$0xf]
      %v1244 = vld [vmem:[%s1 + $0x144] sm:$0xf]
      %v1245 = vld [vmem:[%s1 + $0x148] sm:$0xf]
      %v1246 = vld [vmem:[%s1 + $0x14c] sm:$0xf]
      %v1247 = vld [vmem:[%s1 + $0x150] sm:$0xf]
      %v1248 = vld [vmem:[%s1 + $0x154] sm:$0xf]
      %v1249 = vld [vmem:[%s1 + $0x158] sm:$0xf]
      %v1250 = vld [vmem:[%s1 + $0x15c] sm:$0xf]
      %v1251 = vld [vmem:[%s1 + $0x160] sm:$0xf]
      %v1252 = vld [vmem:[%s1 + $0x164] sm:$0xf]
      %v1253 = vld [vmem:[%s1 + $0x168] sm:$0xf]
      %v1254 = vld [vmem:[%s1 + $0x16c] sm:$0xf]
      %v1255 = vld [vmem:[%s1 + $0x170] sm:$0xf]
      %v1256 = vld [vmem:[%s1 + $0x174] sm:$0xf]
      %v1257 = vld [vmem:[%s1 + $0x178] sm:$0xf]
      %v1258 = vld [vmem:[%s1 + $0x17c] sm:$0xf]
      %v1259 = vld [vmem:[%s1 + $0x180] sm:$0xf]
      %v1260 = vld [vmem:[%s1 + $0x184] sm:$0xf]
      %v1261 = vld [vmem:[%s2] sm:$0x1]
      %v1263 = vlaneseq
      %v1264 = vshrl.u32 %v1263, 7
      %v1265 = vsub.s32 0, %v1264
      %v1266 = vrot.slane %v1261, %v1265
      %v1366 = vunpack.c.l.b16 %v1163
      %v1367 = vunpack.c.l.b16 %v1164
      %v1368 = vunpack.c.l.b16 %v1165
      %v1369 = vunpack.c.l.b16 %v1166
      %v1370 = vunpack.c.l.b16 %v1167
      %v1371 = vunpack.c.l.b16 %v1168
      %v1372 = vunpack.c.l.b16 %v1169
      %v1373 = vunpack.c.l.b16 %v1170
      %v1374 = vunpack.c.l.b16 %v1171
      %v1375 = vunpack.c.l.b16 %v1172
      %v1376 = vunpack.c.l.b16 %v1173
      %v1377 = vunpack.c.l.b16 %v1174
      %v1378 = vunpack.c.l.b16 %v1175
      %v1379 = vunpack.c.l.b16 %v1176
      %v1380 = vunpack.c.l.b16 %v1177
      %v1381 = vunpack.c.l.b16 %v1178
      %v1382 = vunpack.c.l.b16 %v1179
      %v1383 = vunpack.c.l.b16 %v1180
      %v1384 = vunpack.c.l.b16 %v1181
      %v1385 = vunpack.c.l.b16 %v1182
      %v1386 = vunpack.c.l.b16 %v1183
      %v1387 = vunpack.c.l.b16 %v1184
      %v1388 = vunpack.c.l.b16 %v1185
      %v1389 = vunpack.c.l.b16 %v1186
      %v1390 = vunpack.c.l.b16 %v1187
      %v1391 = vunpack.c.l.b16 %v1188
      %v1392 = vunpack.c.l.b16 %v1189
      %v1393 = vunpack.c.l.b16 %v1190
      %v1394 = vunpack.c.l.b16 %v1191
      %v1395 = vunpack.c.l.b16 %v1192
      %v1396 = vunpack.c.l.b16 %v1193
      %v1397 = vunpack.c.l.b16 %v1194
      %v1398 = vunpack.c.l.b16 %v1195
      %v1399 = vunpack.c.l.b16 %v1196
      %v1400 = vunpack.c.l.b16 %v1197
      %v1401 = vunpack.c.l.b16 %v1198
      %v1402 = vunpack.c.l.b16 %v1199
      %v1403 = vunpack.c.l.b16 %v1200
      %v1404 = vunpack.c.l.b16 %v1201
      %v1405 = vunpack.c.l.b16 %v1202
      %v1406 = vunpack.c.l.b16 %v1203
      %v1407 = vunpack.c.l.b16 %v1204
      %v1408 = vunpack.c.l.b16 %v1205
      %v1409 = vunpack.c.l.b16 %v1206
      %v1410 = vunpack.c.l.b16 %v1207
      %v1411 = vunpack.c.l.b16 %v1208
      %v1412 = vunpack.c.l.b16 %v1209
      %v1413 = vunpack.c.l.b16 %v1210
      %v1414 = vunpack.c.l.b16 %v1211
      %v1415 = vunpack.c.l.b16 %v1212
      %v1416 = vunpack.c.l.b16 %v1213
      %v1417 = vunpack.c.l.b16 %v1214
      %v1418 = vunpack.c.l.b16 %v1215
      %v1419 = vunpack.c.l.b16 %v1216
      %v1420 = vunpack.c.l.b16 %v1217
      %v1421 = vunpack.c.l.b16 %v1218
      %v1422 = vunpack.c.l.b16 %v1219
      %v1423 = vunpack.c.l.b16 %v1220
      %v1424 = vunpack.c.l.b16 %v1221
      %v1425 = vunpack.c.l.b16 %v1222
      %v1426 = vunpack.c.l.b16 %v1223
      %v1427 = vunpack.c.l.b16 %v1224
      %v1428 = vunpack.c.l.b16 %v1225
      %v1429 = vunpack.c.l.b16 %v1226
      %v1430 = vunpack.c.l.b16 %v1227
      %v1431 = vunpack.c.l.b16 %v1228
      %v1432 = vunpack.c.l.b16 %v1229
      %v1433 = vunpack.c.l.b16 %v1230
      %v1434 = vunpack.c.l.b16 %v1231
      %v1435 = vunpack.c.l.b16 %v1232
      %v1436 = vunpack.c.l.b16 %v1233
      %v1437 = vunpack.c.l.b16 %v1234
      %v1438 = vunpack.c.l.b16 %v1235
      %v1439 = vunpack.c.l.b16 %v1236
      %v1440 = vunpack.c.l.b16 %v1237
      %v1441 = vunpack.c.l.b16 %v1238
      %v1442 = vunpack.c.l.b16 %v1239
      %v1443 = vunpack.c.l.b16 %v1240
      %v1444 = vunpack.c.l.b16 %v1241
      %v1445 = vunpack.c.l.b16 %v1242
      %v1446 = vunpack.c.l.b16 %v1243
      %v1447 = vunpack.c.l.b16 %v1244
      %v1448 = vunpack.c.l.b16 %v1245
      %v1449 = vunpack.c.l.b16 %v1246
      %v1450 = vunpack.c.l.b16 %v1247
      %v1451 = vunpack.c.l.b16 %v1248
      %v1452 = vunpack.c.l.b16 %v1249
      %v1453 = vunpack.c.l.b16 %v1250
      %v1454 = vunpack.c.l.b16 %v1251
      %v1455 = vunpack.c.l.b16 %v1252
      %v1456 = vunpack.c.l.b16 %v1253
      %v1457 = vunpack.c.l.b16 %v1254
      %v1458 = vunpack.c.l.b16 %v1255
      %v1459 = vunpack.c.l.b16 %v1256
      %v1460 = vunpack.c.l.b16 %v1257
      %v1461 = vunpack.c.l.b16 %v1258
      %v1462 = vunpack.c.l.b16 %v1259
      %v1463 = vunpack.c.l.b16 %v1260
      %v1464 = vpack.c.b16 %v1367, %v1366
      %v1465 = vpack.c.b16 %v1369, %v1368
      %v1466 = vpack.c.b16 %v1371, %v1370
      %v1467 = vpack.c.b16 %v1373, %v1372
      %v1468 = vpack.c.b16 %v1375, %v1374
      %v1469 = vpack.c.b16 %v1377, %v1376
      %v1470 = vpack.c.b16 %v1379, %v1378
      %v1471 = vpack.c.b16 %v1381, %v1380
      %v1472 = vpack.c.b16 %v1383, %v1382
      %v1473 = vpack.c.b16 %v1385, %v1384
      %v1474 = vpack.c.b16 %v1387, %v1386
      %v1475 = vpack.c.b16 %v1389, %v1388
      %v1476 = vpack.c.b16 %v1391, %v1390
      %v1477 = vpack.c.b16 %v1393, %v1392
      %v1478 = vpack.c.b16 %v1395, %v1394
      %v1479 = vpack.c.b16 %v1397, %v1396
      %v1480 = vpack.c.b16 %v1399, %v1398
      %v1481 = vpack.c.b16 %v1401, %v1400
      %v1482 = vpack.c.b16 %v1403, %v1402
      %v1483 = vpack.c.b16 %v1405, %v1404
      %v1484 = vpack.c.b16 %v1407, %v1406
      %v1485 = vpack.c.b16 %v1409, %v1408
      %v1486 = vpack.c.b16 %v1411, %v1410
      %v1487 = vpack.c.b16 %v1413, %v1412
      %v1488 = vpack.c.b16 %v1415, %v1414
      %v1489 = vpack.c.b16 %v1417, %v1416
      %v1490 = vpack.c.b16 %v1419, %v1418
      %v1491 = vpack.c.b16 %v1421, %v1420
      %v1492 = vpack.c.b16 %v1423, %v1422
      %v1493 = vpack.c.b16 %v1425, %v1424
      %v1494 = vpack.c.b16 %v1427, %v1426
      %v1495 = vpack.c.b16 %v1429, %v1428
      %v1496 = vpack.c.b16 %v1431, %v1430
      %v1497 = vpack.c.b16 %v1433, %v1432
      %v1498 = vpack.c.b16 %v1435, %v1434
      %v1499 = vpack.c.b16 %v1437, %v1436
      %v1500 = vpack.c.b16 %v1439, %v1438
      %v1501 = vpack.c.b16 %v1441, %v1440
      %v1502 = vpack.c.b16 %v1443, %v1442
      %v1503 = vpack.c.b16 %v1445, %v1444
      %v1504 = vpack.c.b16 %v1447, %v1446
      %v1505 = vpack.c.b16 %v1449, %v1448
      %v1506 = vpack.c.b16 %v1451, %v1450
      %v1507 = vpack.c.b16 %v1453, %v1452
      %v1508 = vpack.c.b16 %v1455, %v1454
      %v1509 = vpack.c.b16 %v1457, %v1456
      %v1510 = vpack.c.b16 %v1459, %v1458
      %v1511 = vpack.c.b16 %v1461, %v1460
      %v1512 = vpack.c.b16 %v1463, %v1462
      %vm1562 = vcmask 130048
      %v1564 = vsel %vm1562, %v945, 0
      %v1567 = vsel %vm1562, %v952, 0
      %v1570 = vsel %vm1562, %v959, 0
      %v1573 = vsel %vm1562, %v966, 0
      %v1576 = vsel %vm1562, %v973, 0
      %v1579 = vsel %vm1562, %v980, 0
      %v1582 = vsel %vm1562, %v987, 0
      %v1585 = vsel %vm1562, %v994, 0
      %v1588 = vsel %vm1562, %v1001, 0
      %v1591 = vsel %vm1562, %v1008, 0
      %v1594 = vsel %vm1562, %v1015, 0
      %v1597 = vsel %vm1562, %v1022, 0
      %v1600 = vsel %vm1562, %v1029, 0
      %v1603 = vsel %vm1562, %v1036, 0
      %v1606 = vsel %vm1562, %v1043, 0
      %v1609 = vsel %vm1562, %v1050, 0
      %v1612 = vsel %vm1562, %v1057, 0
      %v1615 = vsel %vm1562, %v1064, 0
      %v1618 = vsel %vm1562, %v1071, 0
      %v1621 = vsel %vm1562, %v1078, 0
      %v1624 = vsel %vm1562, %v1085, 0
      %v1627 = vsel %vm1562, %v1092, 0
      %v1630 = vsel %vm1562, %v1099, 0
      %v1633 = vsel %vm1562, %v1106, 0
      %v1636 = vsel %vm1562, %v1113, 0
      %v1639 = vsel %vm1562, %v1120, 0
      %v1642 = vsel %vm1562, %v1127, 0
      %v1645 = vsel %vm1562, %v1134, 0
      %v1648 = vsel %vm1562, %v1141, 0
      %v1651 = vsel %vm1562, %v1148, 0
      %v1654 = vsel %vm1562, %v1155, 0
      %v1657 = vsel %vm1562, %v1162, 0
      %1659 = vmatprep.subr.bf16.mxu0 0
      %1660 = vmatpush1.bf16.msra.mxu0 %v1471
      %1661 = vmatprep.subr.bf16.mxu0 0
      %1662 = vmatpush1.bf16.msra.mxu0 %v1470
      %1663 = vmatprep.subr.bf16.mxu0 0
      %1664 = vmatpush1.bf16.msra.mxu0 %v1469
      %1665 = vmatprep.subr.bf16.mxu0 0
      %1666 = vmatpush1.bf16.msra.mxu0 %v1468
      %1667 = vmatprep.subr.bf16.mxu0 0
      %1668 = vmatpush1.bf16.msra.mxu0 %v1467
      %1669 = vmatprep.subr.bf16.mxu0 0
      %1670 = vmatpush1.bf16.msra.mxu0 %v1466
      %1671 = vmatprep.subr.bf16.mxu0 0
      %1672 = vmatpush1.bf16.msra.mxu0 %v1465
      %1673 = vmatprep.subr.bf16.mxu0 0
      %1674 = vmatpush1.bf16.msra.mxu0 %v1464
      %1675 = vmatprep.subr.bf16.mxu0 0
      %1676 = vmatpush2.bf16.msra.mxu0 %v1479
      %1677 = vmatprep.subr.bf16.mxu0 0
      %1678 = vmatpush2.bf16.msra.mxu0 %v1478
      %1679 = vmatprep.subr.bf16.mxu0 0
      %1680 = vmatpush2.bf16.msra.mxu0 %v1477
      %1681 = vmatprep.subr.bf16.mxu0 0
      %1682 = vmatpush2.bf16.msra.mxu0 %v1476
      %1683 = vmatprep.subr.bf16.mxu0 0
      %1684 = vmatpush2.bf16.msra.mxu0 %v1475
      %1685 = vmatprep.subr.bf16.mxu0 0
      %1686 = vmatpush2.bf16.msra.mxu0 %v1474
      %1687 = vmatprep.subr.bf16.mxu0 0
      %1688 = vmatpush2.bf16.msra.mxu0 %v1473
      %1689 = vmatprep.subr.bf16.mxu0 0
      %1690 = vmatpush2.bf16.msra.mxu0 %v1472
      %1691 = vmatprep.mubr.bf16.mxu0 %v940
      %1692 = vmatmul.mubr.bf16.gmra.mxu0 %v939
      %v1693 = vpop.f32.mrf.mxu0
      %v1694 = vadd.f32 %v1266, %v1693
      %v1695 = vpop.f32.mrf.mxu0
      %v1696 = vpop.f32.mrf.mxu0
      %v1697 = vadd.f32 %v1266, %v1696
      %v1698 = vpop.f32.mrf.mxu0
      %1699 = vmatprep.mubr.bf16.mxu0 %v947
      %1700 = vmatmul.mubr.bf16.gmra.mxu0 %v946
      %v1701 = vpop.f32.mrf.mxu0
      %v1702 = vadd.f32 %v1266, %v1701
      %v1703 = vpop.f32.mrf.mxu0
      %v1704 = vpop.f32.mrf.mxu0
      %v1705 = vadd.f32 %v1266, %v1704
      %v1706 = vpop.f32.mrf.mxu0
      %1707 = vmatprep.mubr.bf16.mxu0 %v954
      %1708 = vmatmul.mubr.bf16.gmra.mxu0 %v953
      %v1709 = vpop.f32.mrf.mxu0
      %v1710 = vadd.f32 %v1266, %v1709
      %v1711 = vpop.f32.mrf.mxu0
      %v1712 = vpop.f32.mrf.mxu0
      %v1713 = vadd.f32 %v1266, %v1712
      %v1714 = vpop.f32.mrf.mxu0
      %1715 = vmatprep.mubr.bf16.mxu0 %v961
      %1716 = vmatmul.mubr.bf16.gmra.mxu0 %v960
      %v1717 = vpop.f32.mrf.mxu0
      %v1718 = vadd.f32 %v1266, %v1717
      %v1719 = vpop.f32.mrf.mxu0
      %v1720 = vpop.f32.mrf.mxu0
      %v1721 = vadd.f32 %v1266, %v1720
      %v1722 = vpop.f32.mrf.mxu0
      %1723 = vmatprep.mubr.bf16.mxu0 %v968
      %1724 = vmatmul.mubr.bf16.gmra.mxu0 %v967
      %v1725 = vpop.f32.mrf.mxu0
      %v1726 = vadd.f32 %v1266, %v1725
      %v1727 = vpop.f32.mrf.mxu0
      %v1728 = vpop.f32.mrf.mxu0
      %v1729 = vadd.f32 %v1266, %v1728
      %v1730 = vpop.f32.mrf.mxu0
      %1731 = vmatprep.mubr.bf16.mxu0 %v975
      %1732 = vmatmul.mubr.bf16.gmra.mxu0 %v974
      %v1733 = vpop.f32.mrf.mxu0
      %v1734 = vadd.f32 %v1266, %v1733
      %v1735 = vpop.f32.mrf.mxu0
      %v1736 = vpop.f32.mrf.mxu0
      %v1737 = vadd.f32 %v1266, %v1736
      %v1738 = vpop.f32.mrf.mxu0
      %1739 = vmatprep.mubr.bf16.mxu0 %v982
      %1740 = vmatmul.mubr.bf16.gmra.mxu0 %v981
      %v1741 = vpop.f32.mrf.mxu0
      %v1742 = vadd.f32 %v1266, %v1741
      %v1743 = vpop.f32.mrf.mxu0
      %v1744 = vpop.f32.mrf.mxu0
      %v1745 = vadd.f32 %v1266, %v1744
      %v1746 = vpop.f32.mrf.mxu0
      %1747 = vmatprep.mubr.bf16.mxu0 %v989
      %1748 = vmatmul.mubr.bf16.gmra.mxu0 %v988
      %v1749 = vpop.f32.mrf.mxu0
      %v1750 = vadd.f32 %v1266, %v1749
      %v1751 = vpop.f32.mrf.mxu0
      %v1752 = vpop.f32.mrf.mxu0
      %v1753 = vadd.f32 %v1266, %v1752
      %v1754 = vpop.f32.mrf.mxu0
      %1755 = vmatprep.mubr.bf16.mxu0 %v996
      %1756 = vmatmul.mubr.bf16.gmra.mxu0 %v995
      %v1757 = vpop.f32.mrf.mxu0
      %v1758 = vadd.f32 %v1266, %v1757
      %v1759 = vpop.f32.mrf.mxu0
      %v1760 = vpop.f32.mrf.mxu0
      %v1761 = vadd.f32 %v1266, %v1760
      %v1762 = vpop.f32.mrf.mxu0
      %1763 = vmatprep.mubr.bf16.mxu0 %v1003
      %1764 = vmatmul.mubr.bf16.gmra.mxu0 %v1002
      %v1765 = vpop.f32.mrf.mxu0
      %v1766 = vadd.f32 %v1266, %v1765
      %v1767 = vpop.f32.mrf.mxu0
      %v1768 = vpop.f32.mrf.mxu0
      %v1769 = vadd.f32 %v1266, %v1768
      %v1770 = vpop.f32.mrf.mxu0
      %1771 = vmatprep.mubr.bf16.mxu0 %v1010
      %1772 = vmatmul.mubr.bf16.gmra.mxu0 %v1009
      %v1773 = vpop.f32.mrf.mxu0
      %v1774 = vadd.f32 %v1266, %v1773
      %v1775 = vpop.f32.mrf.mxu0
      %v1776 = vpop.f32.mrf.mxu0
      %v1777 = vadd.f32 %v1266, %v1776
      %v1778 = vpop.f32.mrf.mxu0
      %1779 = vmatprep.mubr.bf16.mxu0 %v1017
      %1780 = vmatmul.mubr.bf16.gmra.mxu0 %v1016
      %v1781 = vpop.f32.mrf.mxu0
      %v1782 = vadd.f32 %v1266, %v1781
      %v1783 = vpop.f32.mrf.mxu0
      %v1784 = vpop.f32.mrf.mxu0
      %v1785 = vadd.f32 %v1266, %v1784
      %v1786 = vpop.f32.mrf.mxu0
      %1787 = vmatprep.mubr.bf16.mxu0 %v1024
      %1788 = vmatmul.mubr.bf16.gmra.mxu0 %v1023
      %v1789 = vpop.f32.mrf.mxu0
      %v1790 = vadd.f32 %v1266, %v1789
      %v1791 = vpop.f32.mrf.mxu0
      %v1792 = vpop.f32.mrf.mxu0
      %v1793 = vadd.f32 %v1266, %v1792
      %v1794 = vpop.f32.mrf.mxu0
      %1795 = vmatprep.mubr.bf16.mxu0 %v1031
      %1796 = vmatmul.mubr.bf16.gmra.mxu0 %v1030
      %v1797 = vpop.f32.mrf.mxu0
      %v1798 = vadd.f32 %v1266, %v1797
      %v1799 = vpop.f32.mrf.mxu0
      %v1800 = vpop.f32.mrf.mxu0
      %v1801 = vadd.f32 %v1266, %v1800
      %v1802 = vpop.f32.mrf.mxu0
      %1803 = vmatprep.mubr.bf16.mxu0 %v1038
      %1804 = vmatmul.mubr.bf16.gmra.mxu0 %v1037
      %v1805 = vpop.f32.mrf.mxu0
      %v1806 = vadd.f32 %v1266, %v1805
      %v1807 = vpop.f32.mrf.mxu0
      %v1808 = vpop.f32.mrf.mxu0
      %v1809 = vadd.f32 %v1266, %v1808
      %v1810 = vpop.f32.mrf.mxu0
      %1811 = vmatprep.mubr.bf16.mxu0 %v1045
      %1812 = vmatmul.mubr.bf16.gmra.mxu0 %v1044
      %v1813 = vpop.f32.mrf.mxu0
      %v1814 = vadd.f32 %v1266, %v1813
      %v1815 = vpop.f32.mrf.mxu0
      %v1816 = vpop.f32.mrf.mxu0
      %v1817 = vadd.f32 %v1266, %v1816
      %v1818 = vpop.f32.mrf.mxu0
      %1819 = vmatprep.mubr.bf16.mxu0 %v1052
      %1820 = vmatmul.mubr.bf16.gmra.mxu0 %v1051
      %v1821 = vpop.f32.mrf.mxu0
      %v1822 = vadd.f32 %v1266, %v1821
      %v1823 = vpop.f32.mrf.mxu0
      %v1824 = vpop.f32.mrf.mxu0
      %v1825 = vadd.f32 %v1266, %v1824
      %v1826 = vpop.f32.mrf.mxu0
      %1827 = vmatprep.mubr.bf16.mxu0 %v1059
      %1828 = vmatmul.mubr.bf16.gmra.mxu0 %v1058
      %v1829 = vpop.f32.mrf.mxu0
      %v1830 = vadd.f32 %v1266, %v1829
      %v1831 = vpop.f32.mrf.mxu0
      %v1832 = vpop.f32.mrf.mxu0
      %v1833 = vadd.f32 %v1266, %v1832
      %v1834 = vpop.f32.mrf.mxu0
      %1835 = vmatprep.mubr.bf16.mxu0 %v1066
      %1836 = vmatmul.mubr.bf16.gmra.mxu0 %v1065
      %v1837 = vpop.f32.mrf.mxu0
      %v1838 = vadd.f32 %v1266, %v1837
      %v1839 = vpop.f32.mrf.mxu0
      %v1840 = vpop.f32.mrf.mxu0
      %v1841 = vadd.f32 %v1266, %v1840
      %v1842 = vpop.f32.mrf.mxu0
      %1843 = vmatprep.mubr.bf16.mxu0 %v1073
      %1844 = vmatmul.mubr.bf16.gmra.mxu0 %v1072
      %v1845 = vpop.f32.mrf.mxu0
      %v1846 = vadd.f32 %v1266, %v1845
      %v1847 = vpop.f32.mrf.mxu0
      %v1848 = vpop.f32.mrf.mxu0
      %v1849 = vadd.f32 %v1266, %v1848
      %v1850 = vpop.f32.mrf.mxu0
      %1851 = vmatprep.mubr.bf16.mxu0 %v1080
      %1852 = vmatmul.mubr.bf16.gmra.mxu0 %v1079
      %v1853 = vpop.f32.mrf.mxu0
      %v1854 = vadd.f32 %v1266, %v1853
      %v1855 = vpop.f32.mrf.mxu0
      %v1856 = vpop.f32.mrf.mxu0
      %v1857 = vadd.f32 %v1266, %v1856
      %v1858 = vpop.f32.mrf.mxu0
      %1859 = vmatprep.mubr.bf16.mxu0 %v1087
      %1860 = vmatmul.mubr.bf16.gmra.mxu0 %v1086
      %v1861 = vpop.f32.mrf.mxu0
      %v1862 = vadd.f32 %v1266, %v1861
      %v1863 = vpop.f32.mrf.mxu0
      %v1864 = vpop.f32.mrf.mxu0
      %v1865 = vadd.f32 %v1266, %v1864
      %v1866 = vpop.f32.mrf.mxu0
      %1867 = vmatprep.mubr.bf16.mxu0 %v1094
      %1868 = vmatmul.mubr.bf16.gmra.mxu0 %v1093
      %v1869 = vpop.f32.mrf.mxu0
      %v1870 = vadd.f32 %v1266, %v1869
      %v1871 = vpop.f32.mrf.mxu0
      %v1872 = vpop.f32.mrf.mxu0
      %v1873 = vadd.f32 %v1266, %v1872
      %v1874 = vpop.f32.mrf.mxu0
      %1875 = vmatprep.mubr.bf16.mxu0 %v1101
      %1876 = vmatmul.mubr.bf16.gmra.mxu0 %v1100
      %v1877 = vpop.f32.mrf.mxu0
      %v1878 = vadd.f32 %v1266, %v1877
      %v1879 = vpop.f32.mrf.mxu0
      %v1880 = vpop.f32.mrf.mxu0
      %v1881 = vadd.f32 %v1266, %v1880
      %v1882 = vpop.f32.mrf.mxu0
      %1883 = vmatprep.mubr.bf16.mxu0 %v1108
      %1884 = vmatmul.mubr.bf16.gmra.mxu0 %v1107
      %v1885 = vpop.f32.mrf.mxu0
      %v1886 = vadd.f32 %v1266, %v1885
      %v1887 = vpop.f32.mrf.mxu0
      %v1888 = vpop.f32.mrf.mxu0
      %v1889 = vadd.f32 %v1266, %v1888
      %v1890 = vpop.f32.mrf.mxu0
      %1891 = vmatprep.mubr.bf16.mxu0 %v1115
      %1892 = vmatmul.mubr.bf16.gmra.mxu0 %v1114
      %v1893 = vpop.f32.mrf.mxu0
      %v1894 = vadd.f32 %v1266, %v1893
      %v1895 = vpop.f32.mrf.mxu0
      %v1896 = vpop.f32.mrf.mxu0
      %v1897 = vadd.f32 %v1266, %v1896
      %v1898 = vpop.f32.mrf.mxu0
      %1899 = vmatprep.mubr.bf16.mxu0 %v1122
      %1900 = vmatmul.mubr.bf16.gmra.mxu0 %v1121
      %v1901 = vpop.f32.mrf.mxu0
      %v1902 = vadd.f32 %v1266, %v1901
      %v1903 = vpop.f32.mrf.mxu0
      %v1904 = vpop.f32.mrf.mxu0
      %v1905 = vadd.f32 %v1266, %v1904
      %v1906 = vpop.f32.mrf.mxu0
      %1907 = vmatprep.mubr.bf16.mxu0 %v1129
      %1908 = vmatmul.mubr.bf16.gmra.mxu0 %v1128
      %v1909 = vpop.f32.mrf.mxu0
      %v1910 = vadd.f32 %v1266, %v1909
      %v1911 = vpop.f32.mrf.mxu0
      %v1912 = vpop.f32.mrf.mxu0
      %v1913 = vadd.f32 %v1266, %v1912
      %v1914 = vpop.f32.mrf.mxu0
      %1915 = vmatprep.mubr.bf16.mxu0 %v1136
      %1916 = vmatmul.mubr.bf16.gmra.mxu0 %v1135
      %v1917 = vpop.f32.mrf.mxu0
      %v1918 = vadd.f32 %v1266, %v1917
      %v1919 = vpop.f32.mrf.mxu0
      %v1920 = vpop.f32.mrf.mxu0
      %v1921 = vadd.f32 %v1266, %v1920
      %v1922 = vpop.f32.mrf.mxu0
      %1923 = vmatprep.mubr.bf16.mxu0 %v1143
      %1924 = vmatmul.mubr.bf16.gmra.mxu0 %v1142
      %v1925 = vpop.f32.mrf.mxu0
      %v1926 = vadd.f32 %v1266, %v1925
      %v1927 = vpop.f32.mrf.mxu0
      %v1928 = vpop.f32.mrf.mxu0
      %v1929 = vadd.f32 %v1266, %v1928
      %v1930 = vpop.f32.mrf.mxu0
      %1931 = vmatprep.mubr.bf16.mxu0 %v1150
      %1932 = vmatmul.mubr.bf16.gmra.mxu0 %v1149
      %v1933 = vpop.f32.mrf.mxu0
      %v1934 = vadd.f32 %v1266, %v1933
      %v1935 = vpop.f32.mrf.mxu0
      %v1936 = vpop.f32.mrf.mxu0
      %v1937 = vadd.f32 %v1266, %v1936
      %v1938 = vpop.f32.mrf.mxu0
      %1939 = vmatprep.mubr.bf16.mxu0 %v1157
      %1940 = vmatmul.mubr.bf16.gmra.mxu0 %v1156
      %v1941 = vpop.f32.mrf.mxu0
      %v1942 = vadd.f32 %v1266, %v1941
      %v1943 = vpop.f32.mrf.mxu0
      %v1944 = vpop.f32.mrf.mxu0
      %v1945 = vadd.f32 %v1266, %v1944
      %v1946 = vpop.f32.mrf.mxu0
      %1947 = vdwg.mxu0
      %1948 = vmatprep.subr.bf16.mxu0 0
      %1949 = vmatpush1.bf16.msra.mxu0 %v1487
      %1950 = vmatprep.subr.bf16.mxu0 0
      %1951 = vmatpush1.bf16.msra.mxu0 %v1486
      %1952 = vmatprep.subr.bf16.mxu0 0
      %1953 = vmatpush1.bf16.msra.mxu0 %v1485
      %1954 = vmatprep.subr.bf16.mxu0 0
      %1955 = vmatpush1.bf16.msra.mxu0 %v1484
      %1956 = vmatprep.subr.bf16.mxu0 0
      %1957 = vmatpush1.bf16.msra.mxu0 %v1483
      %1958 = vmatprep.subr.bf16.mxu0 0
      %1959 = vmatpush1.bf16.msra.mxu0 %v1482
      %1960 = vmatprep.subr.bf16.mxu0 0
      %1961 = vmatpush1.bf16.msra.mxu0 %v1481
      %1962 = vmatprep.subr.bf16.mxu0 0
      %1963 = vmatpush1.bf16.msra.mxu0 %v1480
      %1964 = vmatprep.subr.bf16.mxu0 0
      %1965 = vmatpush2.bf16.msra.mxu0 %v1495
      %1966 = vmatprep.subr.bf16.mxu0 0
      %1967 = vmatpush2.bf16.msra.mxu0 %v1494
      %1968 = vmatprep.subr.bf16.mxu0 0
      %1969 = vmatpush2.bf16.msra.mxu0 %v1493
      %1970 = vmatprep.subr.bf16.mxu0 0
      %1971 = vmatpush2.bf16.msra.mxu0 %v1492
      %1972 = vmatprep.subr.bf16.mxu0 0
      %1973 = vmatpush2.bf16.msra.mxu0 %v1491
      %1974 = vmatprep.subr.bf16.mxu0 0
      %1975 = vmatpush2.bf16.msra.mxu0 %v1490
      %1976 = vmatprep.subr.bf16.mxu0 0
      %1977 = vmatpush2.bf16.msra.mxu0 %v1489
      %1978 = vmatprep.subr.bf16.mxu0 0
      %1979 = vmatpush2.bf16.msra.mxu0 %v1488
      %1980 = vmatprep.mubr.bf16.mxu0 %v942
      %1981 = vmatmul.mubr.bf16.gmra.mxu0 %v941
      %v1982 = vpop.f32.mrf.mxu0
      %v1983 = vadd.f32 %v1694, %v1982
      %v1984 = vpop.f32.mrf.mxu0
      %v1985 = vpop.f32.mrf.mxu0
      %v1986 = vadd.f32 %v1697, %v1985
      %v1987 = vpop.f32.mrf.mxu0
      %1988 = vmatprep.mubr.bf16.mxu0 %v949
      %1989 = vmatmul.mubr.bf16.gmra.mxu0 %v948
      %v1990 = vpop.f32.mrf.mxu0
      %v1991 = vadd.f32 %v1702, %v1990
      %v1992 = vpop.f32.mrf.mxu0
      %v1993 = vpop.f32.mrf.mxu0
      %v1994 = vadd.f32 %v1705, %v1993
      %v1995 = vpop.f32.mrf.mxu0
      %1996 = vmatprep.mubr.bf16.mxu0 %v956
      %1997 = vmatmul.mubr.bf16.gmra.mxu0 %v955
      %v1998 = vpop.f32.mrf.mxu0
      %v1999 = vadd.f32 %v1710, %v1998
      %v2000 = vpop.f32.mrf.mxu0
      %v2001 = vpop.f32.mrf.mxu0
      %v2002 = vadd.f32 %v1713, %v2001
      %v2003 = vpop.f32.mrf.mxu0
      %2004 = vmatprep.mubr.bf16.mxu0 %v963
      %2005 = vmatmul.mubr.bf16.gmra.mxu0 %v962
      %v2006 = vpop.f32.mrf.mxu0
      %v2007 = vadd.f32 %v1718, %v2006
      %v2008 = vpop.f32.mrf.mxu0
      %v2009 = vpop.f32.mrf.mxu0
      %v2010 = vadd.f32 %v1721, %v2009
      %v2011 = vpop.f32.mrf.mxu0
      %2012 = vmatprep.mubr.bf16.mxu0 %v970
      %2013 = vmatmul.mubr.bf16.gmra.mxu0 %v969
      %v2014 = vpop.f32.mrf.mxu0
      %v2015 = vadd.f32 %v1726, %v2014
      %v2016 = vpop.f32.mrf.mxu0
      %v2017 = vpop.f32.mrf.mxu0
      %v2018 = vadd.f32 %v1729, %v2017
      %v2019 = vpop.f32.mrf.mxu0
      %2020 = vmatprep.mubr.bf16.mxu0 %v977
      %2021 = vmatmul.mubr.bf16.gmra.mxu0 %v976
      %v2022 = vpop.f32.mrf.mxu0
      %v2023 = vadd.f32 %v1734, %v2022
      %v2024 = vpop.f32.mrf.mxu0
      %v2025 = vpop.f32.mrf.mxu0
      %v2026 = vadd.f32 %v1737, %v2025
      %v2027 = vpop.f32.mrf.mxu0
      %2028 = vmatprep.mubr.bf16.mxu0 %v984
      %2029 = vmatmul.mubr.bf16.gmra.mxu0 %v983
      %v2030 = vpop.f32.mrf.mxu0
      %v2031 = vadd.f32 %v1742, %v2030
      %v2032 = vpop.f32.mrf.mxu0
      %v2033 = vpop.f32.mrf.mxu0
      %v2034 = vadd.f32 %v1745, %v2033
      %v2035 = vpop.f32.mrf.mxu0
      %2036 = vmatprep.mubr.bf16.mxu0 %v991
      %2037 = vmatmul.mubr.bf16.gmra.mxu0 %v990
      %v2038 = vpop.f32.mrf.mxu0
      %v2039 = vadd.f32 %v1750, %v2038
      %v2040 = vpop.f32.mrf.mxu0
      %v2041 = vpop.f32.mrf.mxu0
      %v2042 = vadd.f32 %v1753, %v2041
      %v2043 = vpop.f32.mrf.mxu0
      %2044 = vmatprep.mubr.bf16.mxu0 %v998
      %2045 = vmatmul.mubr.bf16.gmra.mxu0 %v997
      %v2046 = vpop.f32.mrf.mxu0
      %v2047 = vadd.f32 %v1758, %v2046
      %v2048 = vpop.f32.mrf.mxu0
      %v2049 = vpop.f32.mrf.mxu0
      %v2050 = vadd.f32 %v1761, %v2049
      %v2051 = vpop.f32.mrf.mxu0
      %2052 = vmatprep.mubr.bf16.mxu0 %v1005
      %2053 = vmatmul.mubr.bf16.gmra.mxu0 %v1004
      %v2054 = vpop.f32.mrf.mxu0
      %v2055 = vadd.f32 %v1766, %v2054
      %v2056 = vpop.f32.mrf.mxu0
      %v2057 = vpop.f32.mrf.mxu0
      %v2058 = vadd.f32 %v1769, %v2057
      %v2059 = vpop.f32.mrf.mxu0
      %2060 = vmatprep.mubr.bf16.mxu0 %v1012
      %2061 = vmatmul.mubr.bf16.gmra.mxu0 %v1011
      %v2062 = vpop.f32.mrf.mxu0
      %v2063 = vadd.f32 %v1774, %v2062
      %v2064 = vpop.f32.mrf.mxu0
      %v2065 = vpop.f32.mrf.mxu0
      %v2066 = vadd.f32 %v1777, %v2065
      %v2067 = vpop.f32.mrf.mxu0
      %2068 = vmatprep.mubr.bf16.mxu0 %v1019
      %2069 = vmatmul.mubr.bf16.gmra.mxu0 %v1018
      %v2070 = vpop.f32.mrf.mxu0
      %v2071 = vadd.f32 %v1782, %v2070
      %v2072 = vpop.f32.mrf.mxu0
      %v2073 = vpop.f32.mrf.mxu0
      %v2074 = vadd.f32 %v1785, %v2073
      %v2075 = vpop.f32.mrf.mxu0
      %2076 = vmatprep.mubr.bf16.mxu0 %v1026
      %2077 = vmatmul.mubr.bf16.gmra.mxu0 %v1025
      %v2078 = vpop.f32.mrf.mxu0
      %v2079 = vadd.f32 %v1790, %v2078
      %v2080 = vpop.f32.mrf.mxu0
      %v2081 = vpop.f32.mrf.mxu0
      %v2082 = vadd.f32 %v1793, %v2081
      %v2083 = vpop.f32.mrf.mxu0
      %2084 = vmatprep.mubr.bf16.mxu0 %v1033
      %2085 = vmatmul.mubr.bf16.gmra.mxu0 %v1032
      %v2086 = vpop.f32.mrf.mxu0
      %v2087 = vadd.f32 %v1798, %v2086
      %v2088 = vpop.f32.mrf.mxu0
      %v2089 = vpop.f32.mrf.mxu0
      %v2090 = vadd.f32 %v1801, %v2089
      %v2091 = vpop.f32.mrf.mxu0
      %2092 = vmatprep.mubr.bf16.mxu0 %v1040
      %2093 = vmatmul.mubr.bf16.gmra.mxu0 %v1039
      %v2094 = vpop.f32.mrf.mxu0
      %v2095 = vadd.f32 %v1806, %v2094
      %v2096 = vpop.f32.mrf.mxu0
      %v2097 = vpop.f32.mrf.mxu0
      %v2098 = vadd.f32 %v1809, %v2097
      %v2099 = vpop.f32.mrf.mxu0
      %2100 = vmatprep.mubr.bf16.mxu0 %v1047
      %2101 = vmatmul.mubr.bf16.gmra.mxu0 %v1046
      %v2102 = vpop.f32.mrf.mxu0
      %v2103 = vadd.f32 %v1814, %v2102
      %v2104 = vpop.f32.mrf.mxu0
      %v2105 = vpop.f32.mrf.mxu0
      %v2106 = vadd.f32 %v1817, %v2105
      %v2107 = vpop.f32.mrf.mxu0
      %2108 = vmatprep.mubr.bf16.mxu0 %v1054
      %2109 = vmatmul.mubr.bf16.gmra.mxu0 %v1053
      %v2110 = vpop.f32.mrf.mxu0
      %v2111 = vadd.f32 %v1822, %v2110
      %v2112 = vpop.f32.mrf.mxu0
      %v2113 = vpop.f32.mrf.mxu0
      %v2114 = vadd.f32 %v1825, %v2113
      %v2115 = vpop.f32.mrf.mxu0
      %2116 = vmatprep.mubr.bf16.mxu0 %v1061
      %2117 = vmatmul.mubr.bf16.gmra.mxu0 %v1060
      %v2118 = vpop.f32.mrf.mxu0
      %v2119 = vadd.f32 %v1830, %v2118
      %v2120 = vpop.f32.mrf.mxu0
      %v2121 = vpop.f32.mrf.mxu0
      %v2122 = vadd.f32 %v1833, %v2121
      %v2123 = vpop.f32.mrf.mxu0
      %2124 = vmatprep.mubr.bf16.mxu0 %v1068
      %2125 = vmatmul.mubr.bf16.gmra.mxu0 %v1067
      %v2126 = vpop.f32.mrf.mxu0
      %v2127 = vadd.f32 %v1838, %v2126
      %v2128 = vpop.f32.mrf.mxu0
      %v2129 = vpop.f32.mrf.mxu0
      %v2130 = vadd.f32 %v1841, %v2129
      %v2131 = vpop.f32.mrf.mxu0
      %2132 = vmatprep.mubr.bf16.mxu0 %v1075
      %2133 = vmatmul.mubr.bf16.gmra.mxu0 %v1074
      %v2134 = vpop.f32.mrf.mxu0
      %v2135 = vadd.f32 %v1846, %v2134
      %v2136 = vpop.f32.mrf.mxu0
      %v2137 = vpop.f32.mrf.mxu0
      %v2138 = vadd.f32 %v1849, %v2137
      %v2139 = vpop.f32.mrf.mxu0
      %2140 = vmatprep.mubr.bf16.mxu0 %v1082
      %2141 = vmatmul.mubr.bf16.gmra.mxu0 %v1081
      %v2142 = vpop.f32.mrf.mxu0
      %v2143 = vadd.f32 %v1854, %v2142
      %v2144 = vpop.f32.mrf.mxu0
      %v2145 = vpop.f32.mrf.mxu0
      %v2146 = vadd.f32 %v1857, %v2145
      %v2147 = vpop.f32.mrf.mxu0
      %2148 = vmatprep.mubr.bf16.mxu0 %v1089
      %2149 = vmatmul.mubr.bf16.gmra.mxu0 %v1088
      %v2150 = vpop.f32.mrf.mxu0
      %v2151 = vadd.f32 %v1862, %v2150
      %v2152 = vpop.f32.mrf.mxu0
      %v2153 = vpop.f32.mrf.mxu0
      %v2154 = vadd.f32 %v1865, %v2153
      %v2155 = vpop.f32.mrf.mxu0
      %2156 = vmatprep.mubr.bf16.mxu0 %v1096
      %2157 = vmatmul.mubr.bf16.gmra.mxu0 %v1095
      %v2158 = vpop.f32.mrf.mxu0
      %v2159 = vadd.f32 %v1870, %v2158
      %v2160 = vpop.f32.mrf.mxu0
      %v2161 = vpop.f32.mrf.mxu0
      %v2162 = vadd.f32 %v1873, %v2161
      %v2163 = vpop.f32.mrf.mxu0
      %2164 = vmatprep.mubr.bf16.mxu0 %v1103
      %2165 = vmatmul.mubr.bf16.gmra.mxu0 %v1102
      %v2166 = vpop.f32.mrf.mxu0
      %v2167 = vadd.f32 %v1878, %v2166
      %v2168 = vpop.f32.mrf.mxu0
      %v2169 = vpop.f32.mrf.mxu0
      %v2170 = vadd.f32 %v1881, %v2169
      %v2171 = vpop.f32.mrf.mxu0
      %2172 = vmatprep.mubr.bf16.mxu0 %v1110
      %2173 = vmatmul.mubr.bf16.gmra.mxu0 %v1109
      %v2174 = vpop.f32.mrf.mxu0
      %v2175 = vadd.f32 %v1886, %v2174
      %v2176 = vpop.f32.mrf.mxu0
      %v2177 = vpop.f32.mrf.mxu0
      %v2178 = vadd.f32 %v1889, %v2177
      %v2179 = vpop.f32.mrf.mxu0
      %2180 = vmatprep.mubr.bf16.mxu0 %v1117
      %2181 = vmatmul.mubr.bf16.gmra.mxu0 %v1116
      %v2182 = vpop.f32.mrf.mxu0
      %v2183 = vadd.f32 %v1894, %v2182
      %v2184 = vpop.f32.mrf.mxu0
      %v2185 = vpop.f32.mrf.mxu0
      %v2186 = vadd.f32 %v1897, %v2185
      %v2187 = vpop.f32.mrf.mxu0
      %2188 = vmatprep.mubr.bf16.mxu0 %v1124
      %2189 = vmatmul.mubr.bf16.gmra.mxu0 %v1123
      %v2190 = vpop.f32.mrf.mxu0
      %v2191 = vadd.f32 %v1902, %v2190
      %v2192 = vpop.f32.mrf.mxu0
      %v2193 = vpop.f32.mrf.mxu0
      %v2194 = vadd.f32 %v1905, %v2193
      %v2195 = vpop.f32.mrf.mxu0
      %2196 = vmatprep.mubr.bf16.mxu0 %v1131
      %2197 = vmatmul.mubr.bf16.gmra.mxu0 %v1130
      %v2198 = vpop.f32.mrf.mxu0
      %v2199 = vadd.f32 %v1910, %v2198
      %v2200 = vpop.f32.mrf.mxu0
      %v2201 = vpop.f32.mrf.mxu0
      %v2202 = vadd.f32 %v1913, %v2201
      %v2203 = vpop.f32.mrf.mxu0
      %2204 = vmatprep.mubr.bf16.mxu0 %v1138
      %2205 = vmatmul.mubr.bf16.gmra.mxu0 %v1137
      %v2206 = vpop.f32.mrf.mxu0
      %v2207 = vadd.f32 %v1918, %v2206
      %v2208 = vpop.f32.mrf.mxu0
      %v2209 = vpop.f32.mrf.mxu0
      %v2210 = vadd.f32 %v1921, %v2209
      %v2211 = vpop.f32.mrf.mxu0
      %2212 = vmatprep.mubr.bf16.mxu0 %v1145
      %2213 = vmatmul.mubr.bf16.gmra.mxu0 %v1144
      %v2214 = vpop.f32.mrf.mxu0
      %v2215 = vadd.f32 %v1926, %v2214
      %v2216 = vpop.f32.mrf.mxu0
      %v2217 = vpop.f32.mrf.mxu0
      %v2218 = vadd.f32 %v1929, %v2217
      %v2219 = vpop.f32.mrf.mxu0
      %2220 = vmatprep.mubr.bf16.mxu0 %v1152
      %2221 = vmatmul.mubr.bf16.gmra.mxu0 %v1151
      %v2222 = vpop.f32.mrf.mxu0
      %v2223 = vadd.f32 %v1934, %v2222
      %v2224 = vpop.f32.mrf.mxu0
      %v2225 = vpop.f32.mrf.mxu0
      %v2226 = vadd.f32 %v1937, %v2225
      %v2227 = vpop.f32.mrf.mxu0
      %2228 = vmatprep.mubr.bf16.mxu0 %v1159
      %2229 = vmatmul.mubr.bf16.gmra.mxu0 %v1158
      %v2230 = vpop.f32.mrf.mxu0
      %v2231 = vadd.f32 %v1942, %v2230
      %v2232 = vpop.f32.mrf.mxu0
      %v2233 = vpop.f32.mrf.mxu0
      %v2234 = vadd.f32 %v1945, %v2233
      %v2235 = vpop.f32.mrf.mxu0
      %2236 = vdwg.mxu0
      %2237 = vmatprep.subr.bf16.mxu0 0
      %2238 = vmatpush1.bf16.msra.mxu0 %v1503
      %2239 = vmatprep.subr.bf16.mxu0 0
      %2240 = vmatpush1.bf16.msra.mxu0 %v1502
      %2241 = vmatprep.subr.bf16.mxu0 0
      %2242 = vmatpush1.bf16.msra.mxu0 %v1501
      %2243 = vmatprep.subr.bf16.mxu0 0
      %2244 = vmatpush1.bf16.msra.mxu0 %v1500
      %2245 = vmatprep.subr.bf16.mxu0 0
      %2246 = vmatpush1.bf16.msra.mxu0 %v1499
      %2247 = vmatprep.subr.bf16.mxu0 0
      %2248 = vmatpush1.bf16.msra.mxu0 %v1498
      %2249 = vmatprep.subr.bf16.mxu0 0
      %2250 = vmatpush1.bf16.msra.mxu0 %v1497
      %2251 = vmatprep.subr.bf16.mxu0 0
      %2252 = vmatpush1.bf16.msra.mxu0 %v1496
      %2253 = vmatprep.subr.bf16.mxu0 0
      %2254 = vmatpush2.bf16.msra.mxu0 %v1511
      %2255 = vmatprep.subr.bf16.mxu0 0
      %2256 = vmatpush2.bf16.msra.mxu0 %v1510
      %2257 = vmatprep.subr.bf16.mxu0 0
      %2258 = vmatpush2.bf16.msra.mxu0 %v1509
      %2259 = vmatprep.subr.bf16.mxu0 0
      %2260 = vmatpush2.bf16.msra.mxu0 %v1508
      %2261 = vmatprep.subr.bf16.mxu0 0
      %2262 = vmatpush2.bf16.msra.mxu0 %v1507
      %2263 = vmatprep.subr.bf16.mxu0 0
      %2264 = vmatpush2.bf16.msra.mxu0 %v1506
      %2265 = vmatprep.subr.bf16.mxu0 0
      %2266 = vmatpush2.bf16.msra.mxu0 %v1505
      %2267 = vmatprep.subr.bf16.mxu0 0
      %2268 = vmatpush2.bf16.msra.mxu0 %v1504
      %2269 = vmatprep.mubr.bf16.mxu0 %v944
      %2270 = vmatmul.mubr.bf16.gmra.mxu0 %v943
      %v2271 = vpop.f32.mrf.mxu0
      %v2272 = vadd.f32 %v1983, %v2271
      %v2273 = vpop.f32.mrf.mxu0
      %v2274 = vpop.f32.mrf.mxu0
      %v2275 = vadd.f32 %v1986, %v2274
      %v2276 = vpop.f32.mrf.mxu0
      %2277 = vmatprep.mubr.bf16.mxu0 %v951
      %2278 = vmatmul.mubr.bf16.gmra.mxu0 %v950
      %v2279 = vpop.f32.mrf.mxu0
      %v2280 = vadd.f32 %v1991, %v2279
      %v2281 = vpop.f32.mrf.mxu0
      %v2282 = vpop.f32.mrf.mxu0
      %v2283 = vadd.f32 %v1994, %v2282
      %v2284 = vpop.f32.mrf.mxu0
      %2285 = vmatprep.mubr.bf16.mxu0 %v958
      %2286 = vmatmul.mubr.bf16.gmra.mxu0 %v957
      %v2287 = vpop.f32.mrf.mxu0
      %v2288 = vadd.f32 %v1999, %v2287
      %v2289 = vpop.f32.mrf.mxu0
      %v2290 = vpop.f32.mrf.mxu0
      %v2291 = vadd.f32 %v2002, %v2290
      %v2292 = vpop.f32.mrf.mxu0
      %2293 = vmatprep.mubr.bf16.mxu0 %v965
      %2294 = vmatmul.mubr.bf16.gmra.mxu0 %v964
      %v2295 = vpop.f32.mrf.mxu0
      %v2296 = vadd.f32 %v2007, %v2295
      %v2297 = vpop.f32.mrf.mxu0
      %v2298 = vpop.f32.mrf.mxu0
      %v2299 = vadd.f32 %v2010, %v2298
      %v2300 = vpop.f32.mrf.mxu0
      %2301 = vmatprep.mubr.bf16.mxu0 %v972
      %2302 = vmatmul.mubr.bf16.gmra.mxu0 %v971
      %v2303 = vpop.f32.mrf.mxu0
      %v2304 = vadd.f32 %v2015, %v2303
      %v2305 = vpop.f32.mrf.mxu0
      %v2306 = vpop.f32.mrf.mxu0
      %v2307 = vadd.f32 %v2018, %v2306
      %v2308 = vpop.f32.mrf.mxu0
      %2309 = vmatprep.mubr.bf16.mxu0 %v979
      %2310 = vmatmul.mubr.bf16.gmra.mxu0 %v978
      %v2311 = vpop.f32.mrf.mxu0
      %v2312 = vadd.f32 %v2023, %v2311
      %v2313 = vpop.f32.mrf.mxu0
      %v2314 = vpop.f32.mrf.mxu0
      %v2315 = vadd.f32 %v2026, %v2314
      %v2316 = vpop.f32.mrf.mxu0
      %2317 = vmatprep.mubr.bf16.mxu0 %v986
      %2318 = vmatmul.mubr.bf16.gmra.mxu0 %v985
      %v2319 = vpop.f32.mrf.mxu0
      %v2320 = vadd.f32 %v2031, %v2319
      %v2321 = vpop.f32.mrf.mxu0
      %v2322 = vpop.f32.mrf.mxu0
      %v2323 = vadd.f32 %v2034, %v2322
      %v2324 = vpop.f32.mrf.mxu0
      %2325 = vmatprep.mubr.bf16.mxu0 %v993
      %2326 = vmatmul.mubr.bf16.gmra.mxu0 %v992
      %v2327 = vpop.f32.mrf.mxu0
      %v2328 = vadd.f32 %v2039, %v2327
      %v2329 = vpop.f32.mrf.mxu0
      %v2330 = vpop.f32.mrf.mxu0
      %v2331 = vadd.f32 %v2042, %v2330
      %v2332 = vpop.f32.mrf.mxu0
      %2333 = vmatprep.mubr.bf16.mxu0 %v1000
      %2334 = vmatmul.mubr.bf16.gmra.mxu0 %v999
      %v2335 = vpop.f32.mrf.mxu0
      %v2336 = vadd.f32 %v2047, %v2335
      %v2337 = vpop.f32.mrf.mxu0
      %v2338 = vpop.f32.mrf.mxu0
      %v2339 = vadd.f32 %v2050, %v2338
      %v2340 = vpop.f32.mrf.mxu0
      %2341 = vmatprep.mubr.bf16.mxu0 %v1007
      %2342 = vmatmul.mubr.bf16.gmra.mxu0 %v1006
      %v2343 = vpop.f32.mrf.mxu0
      %v2344 = vadd.f32 %v2055, %v2343
      %v2345 = vpop.f32.mrf.mxu0
      %v2346 = vpop.f32.mrf.mxu0
      %v2347 = vadd.f32 %v2058, %v2346
      %v2348 = vpop.f32.mrf.mxu0
      %2349 = vmatprep.mubr.bf16.mxu0 %v1014
      %2350 = vmatmul.mubr.bf16.gmra.mxu0 %v1013
      %v2351 = vpop.f32.mrf.mxu0
      %v2352 = vadd.f32 %v2063, %v2351
      %v2353 = vpop.f32.mrf.mxu0
      %v2354 = vpop.f32.mrf.mxu0
      %v2355 = vadd.f32 %v2066, %v2354
      %v2356 = vpop.f32.mrf.mxu0
      %2357 = vmatprep.mubr.bf16.mxu0 %v1021
      %2358 = vmatmul.mubr.bf16.gmra.mxu0 %v1020
      %v2359 = vpop.f32.mrf.mxu0
      %v2360 = vadd.f32 %v2071, %v2359
      %v2361 = vpop.f32.mrf.mxu0
      %v2362 = vpop.f32.mrf.mxu0
      %v2363 = vadd.f32 %v2074, %v2362
      %v2364 = vpop.f32.mrf.mxu0
      %2365 = vmatprep.mubr.bf16.mxu0 %v1028
      %2366 = vmatmul.mubr.bf16.gmra.mxu0 %v1027
      %v2367 = vpop.f32.mrf.mxu0
      %v2368 = vadd.f32 %v2079, %v2367
      %v2369 = vpop.f32.mrf.mxu0
      %v2370 = vpop.f32.mrf.mxu0
      %v2371 = vadd.f32 %v2082, %v2370
      %v2372 = vpop.f32.mrf.mxu0
      %2373 = vmatprep.mubr.bf16.mxu0 %v1035
      %2374 = vmatmul.mubr.bf16.gmra.mxu0 %v1034
      %v2375 = vpop.f32.mrf.mxu0
      %v2376 = vadd.f32 %v2087, %v2375
      %v2377 = vpop.f32.mrf.mxu0
      %v2378 = vpop.f32.mrf.mxu0
      %v2379 = vadd.f32 %v2090, %v2378
      %v2380 = vpop.f32.mrf.mxu0
      %2381 = vmatprep.mubr.bf16.mxu0 %v1042
      %2382 = vmatmul.mubr.bf16.gmra.mxu0 %v1041
      %v2383 = vpop.f32.mrf.mxu0
      %v2384 = vadd.f32 %v2095, %v2383
      %v2385 = vpop.f32.mrf.mxu0
      %v2386 = vpop.f32.mrf.mxu0
      %v2387 = vadd.f32 %v2098, %v2386
      %v2388 = vpop.f32.mrf.mxu0
      %2389 = vmatprep.mubr.bf16.mxu0 %v1049
      %2390 = vmatmul.mubr.bf16.gmra.mxu0 %v1048
      %v2391 = vpop.f32.mrf.mxu0
      %v2392 = vadd.f32 %v2103, %v2391
      %v2393 = vpop.f32.mrf.mxu0
      %v2394 = vpop.f32.mrf.mxu0
      %v2395 = vadd.f32 %v2106, %v2394
      %v2396 = vpop.f32.mrf.mxu0
      %2397 = vmatprep.mubr.bf16.mxu0 %v1056
      %2398 = vmatmul.mubr.bf16.gmra.mxu0 %v1055
      %v2399 = vpop.f32.mrf.mxu0
      %v2400 = vadd.f32 %v2111, %v2399
      %v2401 = vpop.f32.mrf.mxu0
      %v2402 = vpop.f32.mrf.mxu0
      %v2403 = vadd.f32 %v2114, %v2402
      %v2404 = vpop.f32.mrf.mxu0
      %2405 = vmatprep.mubr.bf16.mxu0 %v1063
      %2406 = vmatmul.mubr.bf16.gmra.mxu0 %v1062
      %v2407 = vpop.f32.mrf.mxu0
      %v2408 = vadd.f32 %v2119, %v2407
      %v2409 = vpop.f32.mrf.mxu0
      %v2410 = vpop.f32.mrf.mxu0
      %v2411 = vadd.f32 %v2122, %v2410
      %v2412 = vpop.f32.mrf.mxu0
      %2413 = vmatprep.mubr.bf16.mxu0 %v1070
      %2414 = vmatmul.mubr.bf16.gmra.mxu0 %v1069
      %v2415 = vpop.f32.mrf.mxu0
      %v2416 = vadd.f32 %v2127, %v2415
      %v2417 = vpop.f32.mrf.mxu0
      %v2418 = vpop.f32.mrf.mxu0
      %v2419 = vadd.f32 %v2130, %v2418
      %v2420 = vpop.f32.mrf.mxu0
      %2421 = vmatprep.mubr.bf16.mxu0 %v1077
      %2422 = vmatmul.mubr.bf16.gmra.mxu0 %v1076
      %v2423 = vpop.f32.mrf.mxu0
      %v2424 = vadd.f32 %v2135, %v2423
      %v2425 = vpop.f32.mrf.mxu0
      %v2426 = vpop.f32.mrf.mxu0
      %v2427 = vadd.f32 %v2138, %v2426
      %v2428 = vpop.f32.mrf.mxu0
      %2429 = vmatprep.mubr.bf16.mxu0 %v1084
      %2430 = vmatmul.mubr.bf16.gmra.mxu0 %v1083
      %v2431 = vpop.f32.mrf.mxu0
      %v2432 = vadd.f32 %v2143, %v2431
      %v2433 = vpop.f32.mrf.mxu0
      %v2434 = vpop.f32.mrf.mxu0
      %v2435 = vadd.f32 %v2146, %v2434
      %v2436 = vpop.f32.mrf.mxu0
      %2437 = vmatprep.mubr.bf16.mxu0 %v1091
      %2438 = vmatmul.mubr.bf16.gmra.mxu0 %v1090
      %v2439 = vpop.f32.mrf.mxu0
      %v2440 = vadd.f32 %v2151, %v2439
      %v2441 = vpop.f32.mrf.mxu0
      %v2442 = vpop.f32.mrf.mxu0
      %v2443 = vadd.f32 %v2154, %v2442
      %v2444 = vpop.f32.mrf.mxu0
      %2445 = vmatprep.mubr.bf16.mxu0 %v1098
      %2446 = vmatmul.mubr.bf16.gmra.mxu0 %v1097
      %v2447 = vpop.f32.mrf.mxu0
      %v2448 = vadd.f32 %v2159, %v2447
      %v2449 = vpop.f32.mrf.mxu0
      %v2450 = vpop.f32.mrf.mxu0
      %v2451 = vadd.f32 %v2162, %v2450
      %v2452 = vpop.f32.mrf.mxu0
      %2453 = vmatprep.mubr.bf16.mxu0 %v1105
      %2454 = vmatmul.mubr.bf16.gmra.mxu0 %v1104
      %v2455 = vpop.f32.mrf.mxu0
      %v2456 = vadd.f32 %v2167, %v2455
      %v2457 = vpop.f32.mrf.mxu0
      %v2458 = vpop.f32.mrf.mxu0
      %v2459 = vadd.f32 %v2170, %v2458
      %v2460 = vpop.f32.mrf.mxu0
      %2461 = vmatprep.mubr.bf16.mxu0 %v1112
      %2462 = vmatmul.mubr.bf16.gmra.mxu0 %v1111
      %v2463 = vpop.f32.mrf.mxu0
      %v2464 = vadd.f32 %v2175, %v2463
      %v2465 = vpop.f32.mrf.mxu0
      %v2466 = vpop.f32.mrf.mxu0
      %v2467 = vadd.f32 %v2178, %v2466
      %v2468 = vpop.f32.mrf.mxu0
      %2469 = vmatprep.mubr.bf16.mxu0 %v1119
      %2470 = vmatmul.mubr.bf16.gmra.mxu0 %v1118
      %v2471 = vpop.f32.mrf.mxu0
      %v2472 = vadd.f32 %v2183, %v2471
      %v2473 = vpop.f32.mrf.mxu0
      %v2474 = vpop.f32.mrf.mxu0
      %v2475 = vadd.f32 %v2186, %v2474
      %v2476 = vpop.f32.mrf.mxu0
      %2477 = vmatprep.mubr.bf16.mxu0 %v1126
      %2478 = vmatmul.mubr.bf16.gmra.mxu0 %v1125
      %v2479 = vpop.f32.mrf.mxu0
      %v2480 = vadd.f32 %v2191, %v2479
      %v2481 = vpop.f32.mrf.mxu0
      %v2482 = vpop.f32.mrf.mxu0
      %v2483 = vadd.f32 %v2194, %v2482
      %v2484 = vpop.f32.mrf.mxu0
      %2485 = vmatprep.mubr.bf16.mxu0 %v1133
      %2486 = vmatmul.mubr.bf16.gmra.mxu0 %v1132
      %v2487 = vpop.f32.mrf.mxu0
      %v2488 = vadd.f32 %v2199, %v2487
      %v2489 = vpop.f32.mrf.mxu0
      %v2490 = vpop.f32.mrf.mxu0
      %v2491 = vadd.f32 %v2202, %v2490
      %v2492 = vpop.f32.mrf.mxu0
      %2493 = vmatprep.mubr.bf16.mxu0 %v1140
      %2494 = vmatmul.mubr.bf16.gmra.mxu0 %v1139
      %v2495 = vpop.f32.mrf.mxu0
      %v2496 = vadd.f32 %v2207, %v2495
      %v2497 = vpop.f32.mrf.mxu0
      %v2498 = vpop.f32.mrf.mxu0
      %v2499 = vadd.f32 %v2210, %v2498
      %v2500 = vpop.f32.mrf.mxu0
      %2501 = vmatprep.mubr.bf16.mxu0 %v1147
      %2502 = vmatmul.mubr.bf16.gmra.mxu0 %v1146
      %v2503 = vpop.f32.mrf.mxu0
      %v2504 = vadd.f32 %v2215, %v2503
      %v2505 = vpop.f32.mrf.mxu0
      %v2506 = vpop.f32.mrf.mxu0
      %v2507 = vadd.f32 %v2218, %v2506
      %v2508 = vpop.f32.mrf.mxu0
      %2509 = vmatprep.mubr.bf16.mxu0 %v1154
      %2510 = vmatmul.mubr.bf16.gmra.mxu0 %v1153
      %v2511 = vpop.f32.mrf.mxu0
      %v2512 = vadd.f32 %v2223, %v2511
      %v2513 = vpop.f32.mrf.mxu0
      %v2514 = vpop.f32.mrf.mxu0
      %v2515 = vadd.f32 %v2226, %v2514
      %v2516 = vpop.f32.mrf.mxu0
      %2517 = vmatprep.mubr.bf16.mxu0 %v1161
      %2518 = vmatmul.mubr.bf16.gmra.mxu0 %v1160
      %v2519 = vpop.f32.mrf.mxu0
      %v2520 = vadd.f32 %v2231, %v2519
      %v2521 = vpop.f32.mrf.mxu0
      %v2522 = vpop.f32.mrf.mxu0
      %v2523 = vadd.f32 %v2234, %v2522
      %v2524 = vpop.f32.mrf.mxu0
      %2525 = vdwg.mxu0
      %2526 = vmatprep.subr.bf16.mxu0 0
      %2527 = vmatpush1.bf16.msra.mxu0 0
      %2528 = vmatprep.subr.bf16.mxu0 0
      %2529 = vmatpush1.bf16.msra.mxu0 0
      %2530 = vmatprep.subr.bf16.mxu0 0
      %2531 = vmatpush1.bf16.msra.mxu0 0
      %2532 = vmatprep.subr.bf16.mxu0 0
      %2533 = vmatpush1.bf16.msra.mxu0 0
      %2534 = vmatprep.subr.bf16.mxu0 0
      %2535 = vmatpush1.bf16.msra.mxu0 0
      %2536 = vmatprep.subr.bf16.mxu0 0
      %2537 = vmatpush1.bf16.msra.mxu0 0
      %2538 = vmatprep.subr.bf16.mxu0 0
      %2539 = vmatpush1.bf16.msra.mxu0 0
      %2540 = vmatprep.subr.bf16.mxu0 0
      %2541 = vmatpush1.bf16.msra.mxu0 %v1512
      %2542 = vmatprep.subr.bf16.mxu0 0
      %2543 = vmatpush2.bf16.msra.mxu0 0
      %2544 = vmatprep.subr.bf16.mxu0 0
      %2545 = vmatpush2.bf16.msra.mxu0 0
      %2546 = vmatprep.subr.bf16.mxu0 0
      %2547 = vmatpush2.bf16.msra.mxu0 0
      %2548 = vmatprep.subr.bf16.mxu0 0
      %2549 = vmatpush2.bf16.msra.mxu0 0
      %2550 = vmatprep.subr.bf16.mxu0 0
      %2551 = vmatpush2.bf16.msra.mxu0 0
      %2552 = vmatprep.subr.bf16.mxu0 0
      %2553 = vmatpush2.bf16.msra.mxu0 0
      %2554 = vmatprep.subr.bf16.mxu0 0
      %2555 = vmatpush2.bf16.msra.mxu0 0
      %2556 = vmatprep.subr.bf16.mxu0 0
      %2557 = vmatpush2.bf16.msra.mxu0 0
      %2558 = vmatprep.mubr.bf16.mxu0 0
      %2559 = vmatmul.mubr.bf16.gmra.mxu0 %v1564
      %v2560 = vpop.f32.mrf.mxu0
      %v2561 = vadd.f32 %v2272, %v2560
      %v2562 = vpop.f32.mrf.mxu0
      %v2563 = vpop.f32.mrf.mxu0
      %v2564 = vadd.f32 %v2275, %v2563
      %v2565 = vpop.f32.mrf.mxu0
      %2566 = vmatprep.mubr.bf16.mxu0 0
      %2567 = vmatmul.mubr.bf16.gmra.mxu0 %v1567
      %v2568 = vpop.f32.mrf.mxu0
      %v2569 = vadd.f32 %v2280, %v2568
      %v2570 = vpop.f32.mrf.mxu0
      %v2571 = vpop.f32.mrf.mxu0
      %v2572 = vadd.f32 %v2283, %v2571
      %v2573 = vpop.f32.mrf.mxu0
      %2574 = vmatprep.mubr.bf16.mxu0 0
      %2575 = vmatmul.mubr.bf16.gmra.mxu0 %v1570
      %v2576 = vpop.f32.mrf.mxu0
      %v2577 = vadd.f32 %v2288, %v2576
      %v2578 = vpop.f32.mrf.mxu0
      %v2579 = vpop.f32.mrf.mxu0
      %v2580 = vadd.f32 %v2291, %v2579
      %v2581 = vpop.f32.mrf.mxu0
      %2582 = vmatprep.mubr.bf16.mxu0 0
      %2583 = vmatmul.mubr.bf16.gmra.mxu0 %v1573
      %v2584 = vpop.f32.mrf.mxu0
      %v2585 = vadd.f32 %v2296, %v2584
      %v2586 = vpop.f32.mrf.mxu0
      %v2587 = vpop.f32.mrf.mxu0
      %v2588 = vadd.f32 %v2299, %v2587
      %v2589 = vpop.f32.mrf.mxu0
      %2590 = vmatprep.mubr.bf16.mxu0 0
      %2591 = vmatmul.mubr.bf16.gmra.mxu0 %v1576
      %v2592 = vpop.f32.mrf.mxu0
      %v2593 = vadd.f32 %v2304, %v2592
      %v2594 = vpop.f32.mrf.mxu0
      %v2595 = vpop.f32.mrf.mxu0
      %v2596 = vadd.f32 %v2307, %v2595
      %v2597 = vpop.f32.mrf.mxu0
      %2598 = vmatprep.mubr.bf16.mxu0 0
      %2599 = vmatmul.mubr.bf16.gmra.mxu0 %v1579
      %v2600 = vpop.f32.mrf.mxu0
      %v2601 = vadd.f32 %v2312, %v2600
      %v2602 = vpop.f32.mrf.mxu0
      %v2603 = vpop.f32.mrf.mxu0
      %v2604 = vadd.f32 %v2315, %v2603
      %v2605 = vpop.f32.mrf.mxu0
      %2606 = vmatprep.mubr.bf16.mxu0 0
      %2607 = vmatmul.mubr.bf16.gmra.mxu0 %v1582
      %v2608 = vpop.f32.mrf.mxu0
      %v2609 = vadd.f32 %v2320, %v2608
      %v2610 = vpop.f32.mrf.mxu0
      %v2611 = vpop.f32.mrf.mxu0
      %v2612 = vadd.f32 %v2323, %v2611
      %v2613 = vpop.f32.mrf.mxu0
      %2614 = vmatprep.mubr.bf16.mxu0 0
      %2615 = vmatmul.mubr.bf16.gmra.mxu0 %v1585
      %v2616 = vpop.f32.mrf.mxu0
      %v2617 = vadd.f32 %v2328, %v2616
      %v2618 = vpop.f32.mrf.mxu0
      %v2619 = vpop.f32.mrf.mxu0
      %v2620 = vadd.f32 %v2331, %v2619
      %v2621 = vpop.f32.mrf.mxu0
      %2622 = vmatprep.mubr.bf16.mxu0 0
      %2623 = vmatmul.mubr.bf16.gmra.mxu0 %v1588
      %v2624 = vpop.f32.mrf.mxu0
      %v2625 = vadd.f32 %v2336, %v2624
      %v2626 = vpop.f32.mrf.mxu0
      %v2627 = vpop.f32.mrf.mxu0
      %v2628 = vadd.f32 %v2339, %v2627
      %v2629 = vpop.f32.mrf.mxu0
      %2630 = vmatprep.mubr.bf16.mxu0 0
      %2631 = vmatmul.mubr.bf16.gmra.mxu0 %v1591
      %v2632 = vpop.f32.mrf.mxu0
      %v2633 = vadd.f32 %v2344, %v2632
      %v2634 = vpop.f32.mrf.mxu0
      %v2635 = vpop.f32.mrf.mxu0
      %v2636 = vadd.f32 %v2347, %v2635
      %v2637 = vpop.f32.mrf.mxu0
      %2638 = vmatprep.mubr.bf16.mxu0 0
      %2639 = vmatmul.mubr.bf16.gmra.mxu0 %v1594
      %v2640 = vpop.f32.mrf.mxu0
      %v2641 = vadd.f32 %v2352, %v2640
      %v2642 = vpop.f32.mrf.mxu0
      %v2643 = vpop.f32.mrf.mxu0
      %v2644 = vadd.f32 %v2355, %v2643
      %v2645 = vpop.f32.mrf.mxu0
      %2646 = vmatprep.mubr.bf16.mxu0 0
      %2647 = vmatmul.mubr.bf16.gmra.mxu0 %v1597
      %v2648 = vpop.f32.mrf.mxu0
      %v2649 = vadd.f32 %v2360, %v2648
      %v2650 = vpop.f32.mrf.mxu0
      %v2651 = vpop.f32.mrf.mxu0
      %v2652 = vadd.f32 %v2363, %v2651
      %v2653 = vpop.f32.mrf.mxu0
      %2654 = vmatprep.mubr.bf16.mxu0 0
      %2655 = vmatmul.mubr.bf16.gmra.mxu0 %v1600
      %v2656 = vpop.f32.mrf.mxu0
      %v2657 = vadd.f32 %v2368, %v2656
      %v2658 = vpop.f32.mrf.mxu0
      %v2659 = vpop.f32.mrf.mxu0
      %v2660 = vadd.f32 %v2371, %v2659
      %v2661 = vpop.f32.mrf.mxu0
      %2662 = vmatprep.mubr.bf16.mxu0 0
      %2663 = vmatmul.mubr.bf16.gmra.mxu0 %v1603
      %v2664 = vpop.f32.mrf.mxu0
      %v2665 = vadd.f32 %v2376, %v2664
      %v2666 = vpop.f32.mrf.mxu0
      %v2667 = vpop.f32.mrf.mxu0
      %v2668 = vadd.f32 %v2379, %v2667
      %v2669 = vpop.f32.mrf.mxu0
      %2670 = vmatprep.mubr.bf16.mxu0 0
      %2671 = vmatmul.mubr.bf16.gmra.mxu0 %v1606
      %v2672 = vpop.f32.mrf.mxu0
      %v2673 = vadd.f32 %v2384, %v2672
      %v2674 = vpop.f32.mrf.mxu0
      %v2675 = vpop.f32.mrf.mxu0
      %v2676 = vadd.f32 %v2387, %v2675
      %v2677 = vpop.f32.mrf.mxu0
      %2678 = vmatprep.mubr.bf16.mxu0 0
      %2679 = vmatmul.mubr.bf16.gmra.mxu0 %v1609
      %v2680 = vpop.f32.mrf.mxu0
      %v2681 = vadd.f32 %v2392, %v2680
      %v2682 = vpop.f32.mrf.mxu0
      %v2683 = vpop.f32.mrf.mxu0
      %v2684 = vadd.f32 %v2395, %v2683
      %v2685 = vpop.f32.mrf.mxu0
      %2686 = vmatprep.mubr.bf16.mxu0 0
      %2687 = vmatmul.mubr.bf16.gmra.mxu0 %v1612
      %v2688 = vpop.f32.mrf.mxu0
      %v2689 = vadd.f32 %v2400, %v2688
      %v2690 = vpop.f32.mrf.mxu0
      %v2691 = vpop.f32.mrf.mxu0
      %v2692 = vadd.f32 %v2403, %v2691
      %v2693 = vpop.f32.mrf.mxu0
      %2694 = vmatprep.mubr.bf16.mxu0 0
      %2695 = vmatmul.mubr.bf16.gmra.mxu0 %v1615
      %v2696 = vpop.f32.mrf.mxu0
      %v2697 = vadd.f32 %v2408, %v2696
      %v2698 = vpop.f32.mrf.mxu0
      %v2699 = vpop.f32.mrf.mxu0
      %v2700 = vadd.f32 %v2411, %v2699
      %v2701 = vpop.f32.mrf.mxu0
      %2702 = vmatprep.mubr.bf16.mxu0 0
      %2703 = vmatmul.mubr.bf16.gmra.mxu0 %v1618
      %v2704 = vpop.f32.mrf.mxu0
      %v2705 = vadd.f32 %v2416, %v2704
      %v2706 = vpop.f32.mrf.mxu0
      %v2707 = vpop.f32.mrf.mxu0
      %v2708 = vadd.f32 %v2419, %v2707
      %v2709 = vpop.f32.mrf.mxu0
      %2710 = vmatprep.mubr.bf16.mxu0 0
      %2711 = vmatmul.mubr.bf16.gmra.mxu0 %v1621
      %v2712 = vpop.f32.mrf.mxu0
      %v2713 = vadd.f32 %v2424, %v2712
      %v2714 = vpop.f32.mrf.mxu0
      %v2715 = vpop.f32.mrf.mxu0
      %v2716 = vadd.f32 %v2427, %v2715
      %v2717 = vpop.f32.mrf.mxu0
      %2718 = vmatprep.mubr.bf16.mxu0 0
      %2719 = vmatmul.mubr.bf16.gmra.mxu0 %v1624
      %v2720 = vpop.f32.mrf.mxu0
      %v2721 = vadd.f32 %v2432, %v2720
      %v2722 = vpop.f32.mrf.mxu0
      %v2723 = vpop.f32.mrf.mxu0
      %v2724 = vadd.f32 %v2435, %v2723
      %v2725 = vpop.f32.mrf.mxu0
      %2726 = vmatprep.mubr.bf16.mxu0 0
      %2727 = vmatmul.mubr.bf16.gmra.mxu0 %v1627
      %v2728 = vpop.f32.mrf.mxu0
      %v2729 = vadd.f32 %v2440, %v2728
      %v2730 = vpop.f32.mrf.mxu0
      %v2731 = vpop.f32.mrf.mxu0
      %v2732 = vadd.f32 %v2443, %v2731
      %v2733 = vpop.f32.mrf.mxu0
      %2734 = vmatprep.mubr.bf16.mxu0 0
      %2735 = vmatmul.mubr.bf16.gmra.mxu0 %v1630
      %v2736 = vpop.f32.mrf.mxu0
      %v2737 = vadd.f32 %v2448, %v2736
      %v2738 = vpop.f32.mrf.mxu0
      %v2739 = vpop.f32.mrf.mxu0
      %v2740 = vadd.f32 %v2451, %v2739
      %v2741 = vpop.f32.mrf.mxu0
      %2742 = vmatprep.mubr.bf16.mxu0 0
      %2743 = vmatmul.mubr.bf16.gmra.mxu0 %v1633
      %v2744 = vpop.f32.mrf.mxu0
      %v2745 = vadd.f32 %v2456, %v2744
      %v2746 = vpop.f32.mrf.mxu0
      %v2747 = vpop.f32.mrf.mxu0
      %v2748 = vadd.f32 %v2459, %v2747
      %v2749 = vpop.f32.mrf.mxu0
      %2750 = vmatprep.mubr.bf16.mxu0 0
      %2751 = vmatmul.mubr.bf16.gmra.mxu0 %v1636
      %v2752 = vpop.f32.mrf.mxu0
      %v2753 = vadd.f32 %v2464, %v2752
      %v2754 = vpop.f32.mrf.mxu0
      %v2755 = vpop.f32.mrf.mxu0
      %v2756 = vadd.f32 %v2467, %v2755
      %v2757 = vpop.f32.mrf.mxu0
      %2758 = vmatprep.mubr.bf16.mxu0 0
      %2759 = vmatmul.mubr.bf16.gmra.mxu0 %v1639
      %v2760 = vpop.f32.mrf.mxu0
      %v2761 = vadd.f32 %v2472, %v2760
      %v2762 = vpop.f32.mrf.mxu0
      %v2763 = vpop.f32.mrf.mxu0
      %v2764 = vadd.f32 %v2475, %v2763
      %v2765 = vpop.f32.mrf.mxu0
      %2766 = vmatprep.mubr.bf16.mxu0 0
      %2767 = vmatmul.mubr.bf16.gmra.mxu0 %v1642
      %v2768 = vpop.f32.mrf.mxu0
      %v2769 = vadd.f32 %v2480, %v2768
      %v2770 = vpop.f32.mrf.mxu0
      %v2771 = vpop.f32.mrf.mxu0
      %v2772 = vadd.f32 %v2483, %v2771
      %v2773 = vpop.f32.mrf.mxu0
      %2774 = vmatprep.mubr.bf16.mxu0 0
      %2775 = vmatmul.mubr.bf16.gmra.mxu0 %v1645
      %v2776 = vpop.f32.mrf.mxu0
      %v2777 = vadd.f32 %v2488, %v2776
      %v2778 = vpop.f32.mrf.mxu0
      %v2779 = vpop.f32.mrf.mxu0
      %v2780 = vadd.f32 %v2491, %v2779
      %v2781 = vpop.f32.mrf.mxu0
      %2782 = vmatprep.mubr.bf16.mxu0 0
      %2783 = vmatmul.mubr.bf16.gmra.mxu0 %v1648
      %v2784 = vpop.f32.mrf.mxu0
      %v2785 = vadd.f32 %v2496, %v2784
      %v2786 = vpop.f32.mrf.mxu0
      %v2787 = vpop.f32.mrf.mxu0
      %v2788 = vadd.f32 %v2499, %v2787
      %v2789 = vpop.f32.mrf.mxu0
      %2790 = vmatprep.mubr.bf16.mxu0 0
      %2791 = vmatmul.mubr.bf16.gmra.mxu0 %v1651
      %v2792 = vpop.f32.mrf.mxu0
      %v2793 = vadd.f32 %v2504, %v2792
      %v2794 = vpop.f32.mrf.mxu0
      %v2795 = vpop.f32.mrf.mxu0
      %v2796 = vadd.f32 %v2507, %v2795
      %v2797 = vpop.f32.mrf.mxu0
      %2798 = vmatprep.mubr.bf16.mxu0 0
      %2799 = vmatmul.mubr.bf16.gmra.mxu0 %v1654
      %v2800 = vpop.f32.mrf.mxu0
      %v2801 = vadd.f32 %v2512, %v2800
      %v2802 = vpop.f32.mrf.mxu0
      %v2803 = vpop.f32.mrf.mxu0
      %v2804 = vadd.f32 %v2515, %v2803
      %v2805 = vpop.f32.mrf.mxu0
      %2806 = vmatprep.mubr.bf16.mxu0 0
      %2807 = vmatmul.mubr.bf16.gmra.mxu0 %v1657
      %v2808 = vpop.f32.mrf.mxu0
      %v2809 = vadd.f32 %v2520, %v2808
      %v2810 = vpop.f32.mrf.mxu0
      %v2811 = vpop.f32.mrf.mxu0
      %v2812 = vadd.f32 %v2523, %v2811
      %v2813 = vpop.f32.mrf.mxu0
      %2814 = vdwg.mxu0
      %v2815 = vmax.f32 %v2561, 0.0
      %v2816 = vmax.f32 %v2564, 0.0
      %v2817 = vmax.f32 %v2569, 0.0
      %v2818 = vmax.f32 %v2572, 0.0
      %v2819 = vmax.f32 %v2577, 0.0
      %v2820 = vmax.f32 %v2580, 0.0
      %v2821 = vmax.f32 %v2585, 0.0
      %v2822 = vmax.f32 %v2588, 0.0
      %v2823 = vmax.f32 %v2593, 0.0
      %v2824 = vmax.f32 %v2596, 0.0
      %v2825 = vmax.f32 %v2601, 0.0
      %v2826 = vmax.f32 %v2604, 0.0
      %v2827 = vmax.f32 %v2609, 0.0
      %v2828 = vmax.f32 %v2612, 0.0
      %v2829 = vmax.f32 %v2617, 0.0
      %v2830 = vmax.f32 %v2620, 0.0
      %v2831 = vmax.f32 %v2625, 0.0
      %v2832 = vmax.f32 %v2628, 0.0
      %v2833 = vmax.f32 %v2633, 0.0
      %v2834 = vmax.f32 %v2636, 0.0
      %v2835 = vmax.f32 %v2641, 0.0
      %v2836 = vmax.f32 %v2644, 0.0
      %v2837 = vmax.f32 %v2649, 0.0
      %v2838 = vmax.f32 %v2652, 0.0
      %v2839 = vmax.f32 %v2657, 0.0
      %v2840 = vmax.f32 %v2660, 0.0
      %v2841 = vmax.f32 %v2665, 0.0
      %v2842 = vmax.f32 %v2668, 0.0
      %v2843 = vmax.f32 %v2673, 0.0
      %v2844 = vmax.f32 %v2676, 0.0
      %v2845 = vmax.f32 %v2681, 0.0
      %v2846 = vmax.f32 %v2684, 0.0
      %v2847 = vmax.f32 %v2689, 0.0
      %v2848 = vmax.f32 %v2692, 0.0
      %v2849 = vmax.f32 %v2697, 0.0
      %v2850 = vmax.f32 %v2700, 0.0
      %v2851 = vmax.f32 %v2705, 0.0
      %v2852 = vmax.f32 %v2708, 0.0
      %v2853 = vmax.f32 %v2713, 0.0
      %v2854 = vmax.f32 %v2716, 0.0
      %v2855 = vmax.f32 %v2721, 0.0
      %v2856 = vmax.f32 %v2724, 0.0
      %v2857 = vmax.f32 %v2729, 0.0
      %v2858 = vmax.f32 %v2732, 0.0
      %v2859 = vmax.f32 %v2737, 0.0
      %v2860 = vmax.f32 %v2740, 0.0
      %v2861 = vmax.f32 %v2745, 0.0
      %v2862 = vmax.f32 %v2748, 0.0
      %v2863 = vmax.f32 %v2753, 0.0
      %v2864 = vmax.f32 %v2756, 0.0
      %v2865 = vmax.f32 %v2761, 0.0
      %v2866 = vmax.f32 %v2764, 0.0
      %v2867 = vmax.f32 %v2769, 0.0
      %v2868 = vmax.f32 %v2772, 0.0
      %v2869 = vmax.f32 %v2777, 0.0
      %v2870 = vmax.f32 %v2780, 0.0
      %v2871 = vmax.f32 %v2785, 0.0
      %v2872 = vmax.f32 %v2788, 0.0
      %v2873 = vmax.f32 %v2793, 0.0
      %v2874 = vmax.f32 %v2796, 0.0
      %v2875 = vmax.f32 %v2801, 0.0
      %v2876 = vmax.f32 %v2804, 0.0
      %v2877 = vmax.f32 %v2809, 0.0
      %v2878 = vmax.f32 %v2812, 0.0
      %v2879 = vpack.c.bf16 %v2816, %v2815
      %v2880 = vpack.c.bf16 %v2818, %v2817
      %v2881 = vpack.c.bf16 %v2820, %v2819
      %v2882 = vpack.c.bf16 %v2822, %v2821
      %v2883 = vpack.c.bf16 %v2824, %v2823
      %v2884 = vpack.c.bf16 %v2826, %v2825
      %v2885 = vpack.c.bf16 %v2828, %v2827
      %v2886 = vpack.c.bf16 %v2830, %v2829
      %v2887 = vpack.c.bf16 %v2832, %v2831
      %v2888 = vpack.c.bf16 %v2834, %v2833
      %v2889 = vpack.c.bf16 %v2836, %v2835
      %v2890 = vpack.c.bf16 %v2838, %v2837
      %v2891 = vpack.c.bf16 %v2840, %v2839
      %v2892 = vpack.c.bf16 %v2842, %v2841
      %v2893 = vpack.c.bf16 %v2844, %v2843
      %v2894 = vpack.c.bf16 %v2846, %v2845
      %v2895 = vpack.c.bf16 %v2848, %v2847
      %v2896 = vpack.c.bf16 %v2850, %v2849
      %v2897 = vpack.c.bf16 %v2852, %v2851
      %v2898 = vpack.c.bf16 %v2854, %v2853
      %v2899 = vpack.c.bf16 %v2856, %v2855
      %v2900 = vpack.c.bf16 %v2858, %v2857
      %v2901 = vpack.c.bf16 %v2860, %v2859
      %v2902 = vpack.c.bf16 %v2862, %v2861
      %v2903 = vpack.c.bf16 %v2864, %v2863
      %v2904 = vpack.c.bf16 %v2866, %v2865
      %v2905 = vpack.c.bf16 %v2868, %v2867
      %v2906 = vpack.c.bf16 %v2870, %v2869
      %v2907 = vpack.c.bf16 %v2872, %v2871
      %v2908 = vpack.c.bf16 %v2874, %v2873
      %v2909 = vpack.c.bf16 %v2876, %v2875
      %v2910 = vpack.c.bf16 %v2878, %v2877
      %v2911 = vld [vmem:[%s3] sm:$0xf]
      %v2912 = vld [vmem:[%s3 + $0x4] sm:$0xf]
      %v2913 = vld [vmem:[%s3 + $0x8] sm:$0xf]
      %v2914 = vld [vmem:[%s3 + $0xc] sm:$0xf]
      %v2915 = vld [vmem:[%s3 + $0x10] sm:$0xf]
      %v2916 = vld [vmem:[%s3 + $0x14] sm:$0xf]
      %v2917 = vld [vmem:[%s3 + $0x18] sm:$0xf]
      %v2918 = vld [vmem:[%s3 + $0x1c] sm:$0xf]
      %v2919 = vld [vmem:[%s3 + $0x20] sm:$0xf]
      %v2920 = vld [vmem:[%s3 + $0x24] sm:$0xf]
      %v2921 = vld [vmem:[%s3 + $0x28] sm:$0xf]
      %v2922 = vld [vmem:[%s3 + $0x2c] sm:$0xf]
      %v2923 = vld [vmem:[%s3 + $0x30] sm:$0xf]
      %v2924 = vld [vmem:[%s3 + $0x34] sm:$0xf]
      %v2925 = vld [vmem:[%s3 + $0x38] sm:$0xf]
      %v2926 = vld [vmem:[%s3 + $0x3c] sm:$0xf]
      %v2927 = vld [vmem:[%s4] sm:$0x1]
      %v2929 = vlaneseq
      %v2930 = vshrl.u32 %v2929, 7
      %v2931 = vsub.s32 0, %v2930
      %v2932 = vrot.slane %v2927, %v2931
      %v2950 = vunpack.c.l.b16 %v2911
      %v2951 = vunpack.c.l.b16 %v2912
      %v2952 = vunpack.c.l.b16 %v2913
      %v2953 = vunpack.c.l.b16 %v2914
      %v2954 = vunpack.c.l.b16 %v2915
      %v2955 = vunpack.c.l.b16 %v2916
      %v2956 = vunpack.c.l.b16 %v2917
      %v2957 = vunpack.c.l.b16 %v2918
      %v2958 = vunpack.c.l.b16 %v2919
      %v2959 = vunpack.c.l.b16 %v2920
      %v2960 = vunpack.c.l.b16 %v2921
      %v2961 = vunpack.c.l.b16 %v2922
      %v2962 = vunpack.c.l.b16 %v2923
      %v2963 = vunpack.c.l.b16 %v2924
      %v2964 = vunpack.c.l.b16 %v2925
      %v2965 = vunpack.c.l.b16 %v2926
      %v2966 = vpack.c.b16 %v2951, %v2950
      %v2967 = vpack.c.b16 %v2953, %v2952
      %v2968 = vpack.c.b16 %v2955, %v2954
      %v2969 = vpack.c.b16 %v2957, %v2956
      %v2970 = vpack.c.b16 %v2959, %v2958
      %v2971 = vpack.c.b16 %v2961, %v2960
      %v2972 = vpack.c.b16 %v2963, %v2962
      %v2973 = vpack.c.b16 %v2965, %v2964
      %2982 = vmatprep.subr.bf16.mxu0 0
      %2983 = vmatpush1.bf16.msra.mxu0 %v2973
      %2984 = vmatprep.subr.bf16.mxu0 0
      %2985 = vmatpush1.bf16.msra.mxu0 %v2972
      %2986 = vmatprep.subr.bf16.mxu0 0
      %2987 = vmatpush1.bf16.msra.mxu0 %v2971
      %2988 = vmatprep.subr.bf16.mxu0 0
      %2989 = vmatpush1.bf16.msra.mxu0 %v2970
      %2990 = vmatprep.subr.bf16.mxu0 0
      %2991 = vmatpush1.bf16.msra.mxu0 %v2969
      %2992 = vmatprep.subr.bf16.mxu0 0
      %2993 = vmatpush1.bf16.msra.mxu0 %v2968
      %2994 = vmatprep.subr.bf16.mxu0 0
      %2995 = vmatpush1.bf16.msra.mxu0 %v2967
      %2996 = vmatprep.subr.bf16.mxu0 0
      %2997 = vmatpush1.bf16.msra.mxu0 %v2966
      %2998 = vmatprep.subr.bf16.mxu0 0
      %2999 = vmatpush2.bf16.msra.mxu0 0
      %3000 = vmatprep.subr.bf16.mxu0 0
      %3001 = vmatpush2.bf16.msra.mxu0 0
      %3002 = vmatprep.subr.bf16.mxu0 0
      %3003 = vmatpush2.bf16.msra.mxu0 0
      %3004 = vmatprep.subr.bf16.mxu0 0
      %3005 = vmatpush2.bf16.msra.mxu0 0
      %3006 = vmatprep.subr.bf16.mxu0 0
      %3007 = vmatpush2.bf16.msra.mxu0 0
      %3008 = vmatprep.subr.bf16.mxu0 0
      %3009 = vmatpush2.bf16.msra.mxu0 0
      %3010 = vmatprep.subr.bf16.mxu0 0
      %3011 = vmatpush2.bf16.msra.mxu0 0
      %3012 = vmatprep.subr.bf16.mxu0 0
      %3013 = vmatpush2.bf16.msra.mxu0 0
      %3014 = vmatprep.mubr.bf16.mxu0 0
      %3015 = vmatmul.mubr.bf16.gmra.mxu0 %v2879
      %v3016 = vpop.f32.mrf.mxu0
      %v3017 = vadd.f32 %v2932, %v3016
      %v3018 = vpop.f32.mrf.mxu0
      %v3019 = vpop.f32.mrf.mxu0
      %v3020 = vadd.f32 %v2932, %v3019
      %v3021 = vpop.f32.mrf.mxu0
      %3022 = vmatprep.mubr.bf16.mxu0 0
      %3023 = vmatmul.mubr.bf16.gmra.mxu0 %v2880
      %v3024 = vpop.f32.mrf.mxu0
      %v3025 = vadd.f32 %v2932, %v3024
      %v3026 = vpop.f32.mrf.mxu0
      %v3027 = vpop.f32.mrf.mxu0
      %v3028 = vadd.f32 %v2932, %v3027
      %v3029 = vpop.f32.mrf.mxu0
      %3030 = vmatprep.mubr.bf16.mxu0 0
      %3031 = vmatmul.mubr.bf16.gmra.mxu0 %v2881
      %v3032 = vpop.f32.mrf.mxu0
      %v3033 = vadd.f32 %v2932, %v3032
      %v3034 = vpop.f32.mrf.mxu0
      %v3035 = vpop.f32.mrf.mxu0
      %v3036 = vadd.f32 %v2932, %v3035
      %v3037 = vpop.f32.mrf.mxu0
      %3038 = vmatprep.mubr.bf16.mxu0 0
      %3039 = vmatmul.mubr.bf16.gmra.mxu0 %v2882
      %v3040 = vpop.f32.mrf.mxu0
      %v3041 = vadd.f32 %v2932, %v3040
      %v3042 = vpop.f32.mrf.mxu0
      %v3043 = vpop.f32.mrf.mxu0
      %v3044 = vadd.f32 %v2932, %v3043
      %v3045 = vpop.f32.mrf.mxu0
      %3046 = vmatprep.mubr.bf16.mxu0 0
      %3047 = vmatmul.mubr.bf16.gmra.mxu0 %v2883
      %v3048 = vpop.f32.mrf.mxu0
      %v3049 = vadd.f32 %v2932, %v3048
      %v3050 = vpop.f32.mrf.mxu0
      %v3051 = vpop.f32.mrf.mxu0
      %v3052 = vadd.f32 %v2932, %v3051
      %v3053 = vpop.f32.mrf.mxu0
      %3054 = vmatprep.mubr.bf16.mxu0 0
      %3055 = vmatmul.mubr.bf16.gmra.mxu0 %v2884
      %v3056 = vpop.f32.mrf.mxu0
      %v3057 = vadd.f32 %v2932, %v3056
      %v3058 = vpop.f32.mrf.mxu0
      %v3059 = vpop.f32.mrf.mxu0
      %v3060 = vadd.f32 %v2932, %v3059
      %v3061 = vpop.f32.mrf.mxu0
      %3062 = vmatprep.mubr.bf16.mxu0 0
      %3063 = vmatmul.mubr.bf16.gmra.mxu0 %v2885
      %v3064 = vpop.f32.mrf.mxu0
      %v3065 = vadd.f32 %v2932, %v3064
      %v3066 = vpop.f32.mrf.mxu0
      %v3067 = vpop.f32.mrf.mxu0
      %v3068 = vadd.f32 %v2932, %v3067
      %v3069 = vpop.f32.mrf.mxu0
      %3070 = vmatprep.mubr.bf16.mxu0 0
      %3071 = vmatmul.mubr.bf16.gmra.mxu0 %v2886
      %v3072 = vpop.f32.mrf.mxu0
      %v3073 = vadd.f32 %v2932, %v3072
      %v3074 = vpop.f32.mrf.mxu0
      %v3075 = vpop.f32.mrf.mxu0
      %v3076 = vadd.f32 %v2932, %v3075
      %v3077 = vpop.f32.mrf.mxu0
      %3078 = vmatprep.mubr.bf16.mxu0 0
      %3079 = vmatmul.mubr.bf16.gmra.mxu0 %v2887
      %v3080 = vpop.f32.mrf.mxu0
      %v3081 = vadd.f32 %v2932, %v3080
      %v3082 = vpop.f32.mrf.mxu0
      %v3083 = vpop.f32.mrf.mxu0
      %v3084 = vadd.f32 %v2932, %v3083
      %v3085 = vpop.f32.mrf.mxu0
      %3086 = vmatprep.mubr.bf16.mxu0 0
      %3087 = vmatmul.mubr.bf16.gmra.mxu0 %v2888
      %v3088 = vpop.f32.mrf.mxu0
      %v3089 = vadd.f32 %v2932, %v3088
      %v3090 = vpop.f32.mrf.mxu0
      %v3091 = vpop.f32.mrf.mxu0
      %v3092 = vadd.f32 %v2932, %v3091
      %v3093 = vpop.f32.mrf.mxu0
      %3094 = vmatprep.mubr.bf16.mxu0 0
      %3095 = vmatmul.mubr.bf16.gmra.mxu0 %v2889
      %v3096 = vpop.f32.mrf.mxu0
      %v3097 = vadd.f32 %v2932, %v3096
      %v3098 = vpop.f32.mrf.mxu0
      %v3099 = vpop.f32.mrf.mxu0
      %v3100 = vadd.f32 %v2932, %v3099
      %v3101 = vpop.f32.mrf.mxu0
      %3102 = vmatprep.mubr.bf16.mxu0 0
      %3103 = vmatmul.mubr.bf16.gmra.mxu0 %v2890
      %v3104 = vpop.f32.mrf.mxu0
      %v3105 = vadd.f32 %v2932, %v3104
      %v3106 = vpop.f32.mrf.mxu0
      %v3107 = vpop.f32.mrf.mxu0
      %v3108 = vadd.f32 %v2932, %v3107
      %v3109 = vpop.f32.mrf.mxu0
      %3110 = vmatprep.mubr.bf16.mxu0 0
      %3111 = vmatmul.mubr.bf16.gmra.mxu0 %v2891
      %v3112 = vpop.f32.mrf.mxu0
      %v3113 = vadd.f32 %v2932, %v3112
      %v3114 = vpop.f32.mrf.mxu0
      %v3115 = vpop.f32.mrf.mxu0
      %v3116 = vadd.f32 %v2932, %v3115
      %v3117 = vpop.f32.mrf.mxu0
      %3118 = vmatprep.mubr.bf16.mxu0 0
      %3119 = vmatmul.mubr.bf16.gmra.mxu0 %v2892
      %v3120 = vpop.f32.mrf.mxu0
      %v3121 = vadd.f32 %v2932, %v3120
      %v3122 = vpop.f32.mrf.mxu0
      %v3123 = vpop.f32.mrf.mxu0
      %v3124 = vadd.f32 %v2932, %v3123
      %v3125 = vpop.f32.mrf.mxu0
      %3126 = vmatprep.mubr.bf16.mxu0 0
      %3127 = vmatmul.mubr.bf16.gmra.mxu0 %v2893
      %v3128 = vpop.f32.mrf.mxu0
      %v3129 = vadd.f32 %v2932, %v3128
      %v3130 = vpop.f32.mrf.mxu0
      %v3131 = vpop.f32.mrf.mxu0
      %v3132 = vadd.f32 %v2932, %v3131
      %v3133 = vpop.f32.mrf.mxu0
      %3134 = vmatprep.mubr.bf16.mxu0 0
      %3135 = vmatmul.mubr.bf16.gmra.mxu0 %v2894
      %v3136 = vpop.f32.mrf.mxu0
      %v3137 = vadd.f32 %v2932, %v3136
      %v3138 = vpop.f32.mrf.mxu0
      %v3139 = vpop.f32.mrf.mxu0
      %v3140 = vadd.f32 %v2932, %v3139
      %v3141 = vpop.f32.mrf.mxu0
      %3142 = vmatprep.mubr.bf16.mxu0 0
      %3143 = vmatmul.mubr.bf16.gmra.mxu0 %v2895
      %v3144 = vpop.f32.mrf.mxu0
      %v3145 = vadd.f32 %v2932, %v3144
      %v3146 = vpop.f32.mrf.mxu0
      %v3147 = vpop.f32.mrf.mxu0
      %v3148 = vadd.f32 %v2932, %v3147
      %v3149 = vpop.f32.mrf.mxu0
      %3150 = vmatprep.mubr.bf16.mxu0 0
      %3151 = vmatmul.mubr.bf16.gmra.mxu0 %v2896
      %v3152 = vpop.f32.mrf.mxu0
      %v3153 = vadd.f32 %v2932, %v3152
      %v3154 = vpop.f32.mrf.mxu0
      %v3155 = vpop.f32.mrf.mxu0
      %v3156 = vadd.f32 %v2932, %v3155
      %v3157 = vpop.f32.mrf.mxu0
      %3158 = vmatprep.mubr.bf16.mxu0 0
      %3159 = vmatmul.mubr.bf16.gmra.mxu0 %v2897
      %v3160 = vpop.f32.mrf.mxu0
      %v3161 = vadd.f32 %v2932, %v3160
      %v3162 = vpop.f32.mrf.mxu0
      %v3163 = vpop.f32.mrf.mxu0
      %v3164 = vadd.f32 %v2932, %v3163
      %v3165 = vpop.f32.mrf.mxu0
      %3166 = vmatprep.mubr.bf16.mxu0 0
      %3167 = vmatmul.mubr.bf16.gmra.mxu0 %v2898
      %v3168 = vpop.f32.mrf.mxu0
      %v3169 = vadd.f32 %v2932, %v3168
      %v3170 = vpop.f32.mrf.mxu0
      %v3171 = vpop.f32.mrf.mxu0
      %v3172 = vadd.f32 %v2932, %v3171
      %v3173 = vpop.f32.mrf.mxu0
      %3174 = vmatprep.mubr.bf16.mxu0 0
      %3175 = vmatmul.mubr.bf16.gmra.mxu0 %v2899
      %v3176 = vpop.f32.mrf.mxu0
      %v3177 = vadd.f32 %v2932, %v3176
      %v3178 = vpop.f32.mrf.mxu0
      %v3179 = vpop.f32.mrf.mxu0
      %v3180 = vadd.f32 %v2932, %v3179
      %v3181 = vpop.f32.mrf.mxu0
      %3182 = vmatprep.mubr.bf16.mxu0 0
      %3183 = vmatmul.mubr.bf16.gmra.mxu0 %v2900
      %v3184 = vpop.f32.mrf.mxu0
      %v3185 = vadd.f32 %v2932, %v3184
      %v3186 = vpop.f32.mrf.mxu0
      %v3187 = vpop.f32.mrf.mxu0
      %v3188 = vadd.f32 %v2932, %v3187
      %v3189 = vpop.f32.mrf.mxu0
      %3190 = vmatprep.mubr.bf16.mxu0 0
      %3191 = vmatmul.mubr.bf16.gmra.mxu0 %v2901
      %v3192 = vpop.f32.mrf.mxu0
      %v3193 = vadd.f32 %v2932, %v3192
      %v3194 = vpop.f32.mrf.mxu0
      %v3195 = vpop.f32.mrf.mxu0
      %v3196 = vadd.f32 %v2932, %v3195
      %v3197 = vpop.f32.mrf.mxu0
      %3198 = vmatprep.mubr.bf16.mxu0 0
      %3199 = vmatmul.mubr.bf16.gmra.mxu0 %v2902
      %v3200 = vpop.f32.mrf.mxu0
      %v3201 = vadd.f32 %v2932, %v3200
      %v3202 = vpop.f32.mrf.mxu0
      %v3203 = vpop.f32.mrf.mxu0
      %v3204 = vadd.f32 %v2932, %v3203
      %v3205 = vpop.f32.mrf.mxu0
      %3206 = vmatprep.mubr.bf16.mxu0 0
      %3207 = vmatmul.mubr.bf16.gmra.mxu0 %v2903
      %v3208 = vpop.f32.mrf.mxu0
      %v3209 = vadd.f32 %v2932, %v3208
      %v3210 = vpop.f32.mrf.mxu0
      %v3211 = vpop.f32.mrf.mxu0
      %v3212 = vadd.f32 %v2932, %v3211
      %v3213 = vpop.f32.mrf.mxu0
      %3214 = vmatprep.mubr.bf16.mxu0 0
      %3215 = vmatmul.mubr.bf16.gmra.mxu0 %v2904
      %v3216 = vpop.f32.mrf.mxu0
      %v3217 = vadd.f32 %v2932, %v3216
      %v3218 = vpop.f32.mrf.mxu0
      %v3219 = vpop.f32.mrf.mxu0
      %v3220 = vadd.f32 %v2932, %v3219
      %v3221 = vpop.f32.mrf.mxu0
      %3222 = vmatprep.mubr.bf16.mxu0 0
      %3223 = vmatmul.mubr.bf16.gmra.mxu0 %v2905
      %v3224 = vpop.f32.mrf.mxu0
      %v3225 = vadd.f32 %v2932, %v3224
      %v3226 = vpop.f32.mrf.mxu0
      %v3227 = vpop.f32.mrf.mxu0
      %v3228 = vadd.f32 %v2932, %v3227
      %v3229 = vpop.f32.mrf.mxu0
      %3230 = vmatprep.mubr.bf16.mxu0 0
      %3231 = vmatmul.mubr.bf16.gmra.mxu0 %v2906
      %v3232 = vpop.f32.mrf.mxu0
      %v3233 = vadd.f32 %v2932, %v3232
      %v3234 = vpop.f32.mrf.mxu0
      %v3235 = vpop.f32.mrf.mxu0
      %v3236 = vadd.f32 %v2932, %v3235
      %v3237 = vpop.f32.mrf.mxu0
      %3238 = vmatprep.mubr.bf16.mxu0 0
      %3239 = vmatmul.mubr.bf16.gmra.mxu0 %v2907
      %v3240 = vpop.f32.mrf.mxu0
      %v3241 = vadd.f32 %v2932, %v3240
      %v3242 = vpop.f32.mrf.mxu0
      %v3243 = vpop.f32.mrf.mxu0
      %v3244 = vadd.f32 %v2932, %v3243
      %v3245 = vpop.f32.mrf.mxu0
      %3246 = vmatprep.mubr.bf16.mxu0 0
      %3247 = vmatmul.mubr.bf16.gmra.mxu0 %v2908
      %v3248 = vpop.f32.mrf.mxu0
      %v3249 = vadd.f32 %v2932, %v3248
      %v3250 = vpop.f32.mrf.mxu0
      %v3251 = vpop.f32.mrf.mxu0
      %v3252 = vadd.f32 %v2932, %v3251
      %v3253 = vpop.f32.mrf.mxu0
      %3254 = vmatprep.mubr.bf16.mxu0 0
      %3255 = vmatmul.mubr.bf16.gmra.mxu0 %v2909
      %v3256 = vpop.f32.mrf.mxu0
      %v3257 = vadd.f32 %v2932, %v3256
      %v3258 = vpop.f32.mrf.mxu0
      %v3259 = vpop.f32.mrf.mxu0
      %v3260 = vadd.f32 %v2932, %v3259
      %v3261 = vpop.f32.mrf.mxu0
      %3262 = vmatprep.mubr.bf16.mxu0 0
      %3263 = vmatmul.mubr.bf16.gmra.mxu0 %v2910
      %v3264 = vpop.f32.mrf.mxu0
      %v3265 = vadd.f32 %v2932, %v3264
      %v3266 = vpop.f32.mrf.mxu0
      %v3267 = vpop.f32.mrf.mxu0
      %v3268 = vadd.f32 %v2932, %v3267
      %v3269 = vpop.f32.mrf.mxu0
      %3270 = vdwg.mxu0
      %v3271 = vmax.f32 %v3017, 0.0
      %v3272 = vmax.f32 %v3020, 0.0
      %v3273 = vmax.f32 %v3025, 0.0
      %v3274 = vmax.f32 %v3028, 0.0
      %v3275 = vmax.f32 %v3033, 0.0
      %v3276 = vmax.f32 %v3036, 0.0
      %v3277 = vmax.f32 %v3041, 0.0
      %v3278 = vmax.f32 %v3044, 0.0
      %v3279 = vmax.f32 %v3049, 0.0
      %v3280 = vmax.f32 %v3052, 0.0
      %v3281 = vmax.f32 %v3057, 0.0
      %v3282 = vmax.f32 %v3060, 0.0
      %v3283 = vmax.f32 %v3065, 0.0
      %v3284 = vmax.f32 %v3068, 0.0
      %v3285 = vmax.f32 %v3073, 0.0
      %v3286 = vmax.f32 %v3076, 0.0
      %v3287 = vmax.f32 %v3081, 0.0
      %v3288 = vmax.f32 %v3084, 0.0
      %v3289 = vmax.f32 %v3089, 0.0
      %v3290 = vmax.f32 %v3092, 0.0
      %v3291 = vmax.f32 %v3097, 0.0
      %v3292 = vmax.f32 %v3100, 0.0
      %v3293 = vmax.f32 %v3105, 0.0
      %v3294 = vmax.f32 %v3108, 0.0
      %v3295 = vmax.f32 %v3113, 0.0
      %v3296 = vmax.f32 %v3116, 0.0
      %v3297 = vmax.f32 %v3121, 0.0
      %v3298 = vmax.f32 %v3124, 0.0
      %v3299 = vmax.f32 %v3129, 0.0
      %v3300 = vmax.f32 %v3132, 0.0
      %v3301 = vmax.f32 %v3137, 0.0
      %v3302 = vmax.f32 %v3140, 0.0
      %v3303 = vmax.f32 %v3145, 0.0
      %v3304 = vmax.f32 %v3148, 0.0
      %v3305 = vmax.f32 %v3153, 0.0
      %v3306 = vmax.f32 %v3156, 0.0
      %v3307 = vmax.f32 %v3161, 0.0
      %v3308 = vmax.f32 %v3164, 0.0
      %v3309 = vmax.f32 %v3169, 0.0
      %v3310 = vmax.f32 %v3172, 0.0
      %v3311 = vmax.f32 %v3177, 0.0
      %v3312 = vmax.f32 %v3180, 0.0
      %v3313 = vmax.f32 %v3185, 0.0
      %v3314 = vmax.f32 %v3188, 0.0
      %v3315 = vmax.f32 %v3193, 0.0
      %v3316 = vmax.f32 %v3196, 0.0
      %v3317 = vmax.f32 %v3201, 0.0
      %v3318 = vmax.f32 %v3204, 0.0
      %v3319 = vmax.f32 %v3209, 0.0
      %v3320 = vmax.f32 %v3212, 0.0
      %v3321 = vmax.f32 %v3217, 0.0
      %v3322 = vmax.f32 %v3220, 0.0
      %v3323 = vmax.f32 %v3225, 0.0
      %v3324 = vmax.f32 %v3228, 0.0
      %v3325 = vmax.f32 %v3233, 0.0
      %v3326 = vmax.f32 %v3236, 0.0
      %v3327 = vmax.f32 %v3241, 0.0
      %v3328 = vmax.f32 %v3244, 0.0
      %v3329 = vmax.f32 %v3249, 0.0
      %v3330 = vmax.f32 %v3252, 0.0
      %v3331 = vmax.f32 %v3257, 0.0
      %v3332 = vmax.f32 %v3260, 0.0
      %v3333 = vmax.f32 %v3265, 0.0
      %v3334 = vmax.f32 %v3268, 0.0
      %v3335 = vpack.c.bf16 %v3272, %v3271
      %v3336 = vpack.c.bf16 %v3274, %v3273
      %v3337 = vpack.c.bf16 %v3276, %v3275
      %v3338 = vpack.c.bf16 %v3278, %v3277
      %v3339 = vpack.c.bf16 %v3280, %v3279
      %v3340 = vpack.c.bf16 %v3282, %v3281
      %v3341 = vpack.c.bf16 %v3284, %v3283
      %v3342 = vpack.c.bf16 %v3286, %v3285
      %v3343 = vpack.c.bf16 %v3288, %v3287
      %v3344 = vpack.c.bf16 %v3290, %v3289
      %v3345 = vpack.c.bf16 %v3292, %v3291
      %v3346 = vpack.c.bf16 %v3294, %v3293
      %v3347 = vpack.c.bf16 %v3296, %v3295
      %v3348 = vpack.c.bf16 %v3298, %v3297
      %v3349 = vpack.c.bf16 %v3300, %v3299
      %v3350 = vpack.c.bf16 %v3302, %v3301
      %v3351 = vpack.c.bf16 %v3304, %v3303
      %v3352 = vpack.c.bf16 %v3306, %v3305
      %v3353 = vpack.c.bf16 %v3308, %v3307
      %v3354 = vpack.c.bf16 %v3310, %v3309
      %v3355 = vpack.c.bf16 %v3312, %v3311
      %v3356 = vpack.c.bf16 %v3314, %v3313
      %v3357 = vpack.c.bf16 %v3316, %v3315
      %v3358 = vpack.c.bf16 %v3318, %v3317
      %v3359 = vpack.c.bf16 %v3320, %v3319
      %v3360 = vpack.c.bf16 %v3322, %v3321
      %v3361 = vpack.c.bf16 %v3324, %v3323
      %v3362 = vpack.c.bf16 %v3326, %v3325
      %v3363 = vpack.c.bf16 %v3328, %v3327
      %v3364 = vpack.c.bf16 %v3330, %v3329
      %v3365 = vpack.c.bf16 %v3332, %v3331
      %v3366 = vpack.c.bf16 %v3334, %v3333
      %v3367 = vld [vmem:[%s5] sm:$0xf]
      %v3368 = vld [vmem:[%s5 + $0x4] sm:$0xf]
      %v3369 = vld [vmem:[%s5 + $0x8] sm:$0xf]
      %v3370 = vld [vmem:[%s5 + $0xc] sm:$0xf]
      %v3371 = vld [vmem:[%s5 + $0x10] sm:$0xf]
      %v3372 = vld [vmem:[%s5 + $0x14] sm:$0xf]
      %v3373 = vld [vmem:[%s5 + $0x18] sm:$0xf]
      %v3374 = vld [vmem:[%s5 + $0x1c] sm:$0xf]
      %v3375 = vld [vmem:[%s6] sm:$0x1]
      %v3377 = vlaneseq
      %v3378 = vshrl.u32 %v3377, 7
      %v3379 = vsub.s32 0, %v3378
      %v3380 = vrot.slane %v3375, %v3379
      %v3390 = vunpack.c.l.b16 %v3367
      %v3391 = vunpack.c.l.b16 %v3368
      %v3392 = vunpack.c.l.b16 %v3369
      %v3393 = vunpack.c.l.b16 %v3370
      %v3394 = vunpack.c.l.b16 %v3371
      %v3395 = vunpack.c.l.b16 %v3372
      %v3396 = vunpack.c.l.b16 %v3373
      %v3397 = vunpack.c.l.b16 %v3374
      %v3398 = vpack.c.b16 %v3391, %v3390
      %v3399 = vpack.c.b16 %v3393, %v3392
      %v3400 = vpack.c.b16 %v3395, %v3394
      %v3401 = vpack.c.b16 %v3397, %v3396
      %vm3406 = vcmask 523264
      %v3408 = vsel %vm3406, %v3335, 0
      %v3411 = vsel %vm3406, %v3336, 0
      %v3414 = vsel %vm3406, %v3337, 0
      %v3417 = vsel %vm3406, %v3338, 0
      %v3420 = vsel %vm3406, %v3339, 0
      %v3423 = vsel %vm3406, %v3340, 0
      %v3426 = vsel %vm3406, %v3341, 0
      %v3429 = vsel %vm3406, %v3342, 0
      %v3432 = vsel %vm3406, %v3343, 0
      %v3435 = vsel %vm3406, %v3344, 0
      %v3438 = vsel %vm3406, %v3345, 0
      %v3441 = vsel %vm3406, %v3346, 0
      %v3444 = vsel %vm3406, %v3347, 0
      %v3447 = vsel %vm3406, %v3348, 0
      %v3450 = vsel %vm3406, %v3349, 0
      %v3453 = vsel %vm3406, %v3350, 0
      %v3456 = vsel %vm3406, %v3351, 0
      %v3459 = vsel %vm3406, %v3352, 0
      %v3462 = vsel %vm3406, %v3353, 0
      %v3465 = vsel %vm3406, %v3354, 0
      %v3468 = vsel %vm3406, %v3355, 0
      %v3471 = vsel %vm3406, %v3356, 0
      %v3474 = vsel %vm3406, %v3357, 0
      %v3477 = vsel %vm3406, %v3358, 0
      %v3480 = vsel %vm3406, %v3359, 0
      %v3483 = vsel %vm3406, %v3360, 0
      %v3486 = vsel %vm3406, %v3361, 0
      %v3489 = vsel %vm3406, %v3362, 0
      %v3492 = vsel %vm3406, %v3363, 0
      %v3495 = vsel %vm3406, %v3364, 0
      %v3498 = vsel %vm3406, %v3365, 0
      %v3501 = vsel %vm3406, %v3366, 0
      %3503 = vmatprep.subr.bf16.mxu0 0
      %3504 = vmatpush1.bf16.msra.mxu0 0
      %3505 = vmatprep.subr.bf16.mxu0 0
      %3506 = vmatpush1.bf16.msra.mxu0 0
      %3507 = vmatprep.subr.bf16.mxu0 0
      %3508 = vmatpush1.bf16.msra.mxu0 0
      %3509 = vmatprep.subr.bf16.mxu0 0
      %3510 = vmatpush1.bf16.msra.mxu0 0
      %3511 = vmatprep.subr.bf16.mxu0 0
      %3512 = vmatpush1.bf16.msra.mxu0 %v3401
      %3513 = vmatprep.subr.bf16.mxu0 0
      %3514 = vmatpush1.bf16.msra.mxu0 %v3400
      %3515 = vmatprep.subr.bf16.mxu0 0
      %3516 = vmatpush1.bf16.msra.mxu0 %v3399
      %3517 = vmatprep.subr.bf16.mxu0 0
      %3518 = vmatpush1.bf16.msra.mxu0 %v3398
      %3519 = vmatprep.subr.bf16.mxu0 0
      %3520 = vmatpush2.bf16.msra.mxu0 0
      %3521 = vmatprep.subr.bf16.mxu0 0
      %3522 = vmatpush2.bf16.msra.mxu0 0
      %3523 = vmatprep.subr.bf16.mxu0 0
      %3524 = vmatpush2.bf16.msra.mxu0 0
      %3525 = vmatprep.subr.bf16.mxu0 0
      %3526 = vmatpush2.bf16.msra.mxu0 0
      %3527 = vmatprep.subr.bf16.mxu0 0
      %3528 = vmatpush2.bf16.msra.mxu0 0
      %3529 = vmatprep.subr.bf16.mxu0 0
      %3530 = vmatpush2.bf16.msra.mxu0 0
      %3531 = vmatprep.subr.bf16.mxu0 0
      %3532 = vmatpush2.bf16.msra.mxu0 0
      %3533 = vmatprep.subr.bf16.mxu0 0
      %3534 = vmatpush2.bf16.msra.mxu0 0
      %3535 = vmatprep.mubr.bf16.mxu0 0
      %3536 = vmatmul.mubr.bf16.gmra.mxu0 %v3408
      %v3537 = vpop.f32.mrf.mxu0
      %v3538 = vadd.f32 %v3380, %v3537
      %v3539 = vpop.f32.mrf.mxu0
      %v3540 = vpop.f32.mrf.mxu0
      %v3541 = vadd.f32 %v3380, %v3540
      %v3542 = vpop.f32.mrf.mxu0
      %3543 = vmatprep.mubr.bf16.mxu0 0
      %3544 = vmatmul.mubr.bf16.gmra.mxu0 %v3411
      %v3545 = vpop.f32.mrf.mxu0
      %v3546 = vadd.f32 %v3380, %v3545
      %v3547 = vpop.f32.mrf.mxu0
      %v3548 = vpop.f32.mrf.mxu0
      %v3549 = vadd.f32 %v3380, %v3548
      %v3550 = vpop.f32.mrf.mxu0
      %3551 = vmatprep.mubr.bf16.mxu0 0
      %3552 = vmatmul.mubr.bf16.gmra.mxu0 %v3414
      %v3553 = vpop.f32.mrf.mxu0
      %v3554 = vadd.f32 %v3380, %v3553
      %v3555 = vpop.f32.mrf.mxu0
      %v3556 = vpop.f32.mrf.mxu0
      %v3557 = vadd.f32 %v3380, %v3556
      %v3558 = vpop.f32.mrf.mxu0
      %3559 = vmatprep.mubr.bf16.mxu0 0
      %3560 = vmatmul.mubr.bf16.gmra.mxu0 %v3417
      %v3561 = vpop.f32.mrf.mxu0
      %v3562 = vadd.f32 %v3380, %v3561
      %v3563 = vpop.f32.mrf.mxu0
      %v3564 = vpop.f32.mrf.mxu0
      %v3565 = vadd.f32 %v3380, %v3564
      %v3566 = vpop.f32.mrf.mxu0
      %3567 = vmatprep.mubr.bf16.mxu0 0
      %3568 = vmatmul.mubr.bf16.gmra.mxu0 %v3420
      %v3569 = vpop.f32.mrf.mxu0
      %v3570 = vadd.f32 %v3380, %v3569
      %v3571 = vpop.f32.mrf.mxu0
      %v3572 = vpop.f32.mrf.mxu0
      %v3573 = vadd.f32 %v3380, %v3572
      %v3574 = vpop.f32.mrf.mxu0
      %3575 = vmatprep.mubr.bf16.mxu0 0
      %3576 = vmatmul.mubr.bf16.gmra.mxu0 %v3423
      %v3577 = vpop.f32.mrf.mxu0
      %v3578 = vadd.f32 %v3380, %v3577
      %v3579 = vpop.f32.mrf.mxu0
      %v3580 = vpop.f32.mrf.mxu0
      %v3581 = vadd.f32 %v3380, %v3580
      %v3582 = vpop.f32.mrf.mxu0
      %3583 = vmatprep.mubr.bf16.mxu0 0
      %3584 = vmatmul.mubr.bf16.gmra.mxu0 %v3426
      %v3585 = vpop.f32.mrf.mxu0
      %v3586 = vadd.f32 %v3380, %v3585
      %v3587 = vpop.f32.mrf.mxu0
      %v3588 = vpop.f32.mrf.mxu0
      %v3589 = vadd.f32 %v3380, %v3588
      %v3590 = vpop.f32.mrf.mxu0
      %3591 = vmatprep.mubr.bf16.mxu0 0
      %3592 = vmatmul.mubr.bf16.gmra.mxu0 %v3429
      %v3593 = vpop.f32.mrf.mxu0
      %v3594 = vadd.f32 %v3380, %v3593
      %v3595 = vpop.f32.mrf.mxu0
      %v3596 = vpop.f32.mrf.mxu0
      %v3597 = vadd.f32 %v3380, %v3596
      %v3598 = vpop.f32.mrf.mxu0
      %3599 = vmatprep.mubr.bf16.mxu0 0
      %3600 = vmatmul.mubr.bf16.gmra.mxu0 %v3432
      %v3601 = vpop.f32.mrf.mxu0
      %v3602 = vadd.f32 %v3380, %v3601
      %v3603 = vpop.f32.mrf.mxu0
      %v3604 = vpop.f32.mrf.mxu0
      %v3605 = vadd.f32 %v3380, %v3604
      %v3606 = vpop.f32.mrf.mxu0
      %3607 = vmatprep.mubr.bf16.mxu0 0
      %3608 = vmatmul.mubr.bf16.gmra.mxu0 %v3435
      %v3609 = vpop.f32.mrf.mxu0
      %v3610 = vadd.f32 %v3380, %v3609
      %v3611 = vpop.f32.mrf.mxu0
      %v3612 = vpop.f32.mrf.mxu0
      %v3613 = vadd.f32 %v3380, %v3612
      %v3614 = vpop.f32.mrf.mxu0
      %3615 = vmatprep.mubr.bf16.mxu0 0
      %3616 = vmatmul.mubr.bf16.gmra.mxu0 %v3438
      %v3617 = vpop.f32.mrf.mxu0
      %v3618 = vadd.f32 %v3380, %v3617
      %v3619 = vpop.f32.mrf.mxu0
      %v3620 = vpop.f32.mrf.mxu0
      %v3621 = vadd.f32 %v3380, %v3620
      %v3622 = vpop.f32.mrf.mxu0
      %3623 = vmatprep.mubr.bf16.mxu0 0
      %3624 = vmatmul.mubr.bf16.gmra.mxu0 %v3441
      %v3625 = vpop.f32.mrf.mxu0
      %v3626 = vadd.f32 %v3380, %v3625
      %v3627 = vpop.f32.mrf.mxu0
      %v3628 = vpop.f32.mrf.mxu0
      %v3629 = vadd.f32 %v3380, %v3628
      %v3630 = vpop.f32.mrf.mxu0
      %3631 = vmatprep.mubr.bf16.mxu0 0
      %3632 = vmatmul.mubr.bf16.gmra.mxu0 %v3444
      %v3633 = vpop.f32.mrf.mxu0
      %v3634 = vadd.f32 %v3380, %v3633
      %v3635 = vpop.f32.mrf.mxu0
      %v3636 = vpop.f32.mrf.mxu0
      %v3637 = vadd.f32 %v3380, %v3636
      %v3638 = vpop.f32.mrf.mxu0
      %3639 = vmatprep.mubr.bf16.mxu0 0
      %3640 = vmatmul.mubr.bf16.gmra.mxu0 %v3447
      %v3641 = vpop.f32.mrf.mxu0
      %v3642 = vadd.f32 %v3380, %v3641
      %v3643 = vpop.f32.mrf.mxu0
      %v3644 = vpop.f32.mrf.mxu0
      %v3645 = vadd.f32 %v3380, %v3644
      %v3646 = vpop.f32.mrf.mxu0
      %3647 = vmatprep.mubr.bf16.mxu0 0
      %3648 = vmatmul.mubr.bf16.gmra.mxu0 %v3450
      %v3649 = vpop.f32.mrf.mxu0
      %v3650 = vadd.f32 %v3380, %v3649
      %v3651 = vpop.f32.mrf.mxu0
      %v3652 = vpop.f32.mrf.mxu0
      %v3653 = vadd.f32 %v3380, %v3652
      %v3654 = vpop.f32.mrf.mxu0
      %3655 = vmatprep.mubr.bf16.mxu0 0
      %3656 = vmatmul.mubr.bf16.gmra.mxu0 %v3453
      %v3657 = vpop.f32.mrf.mxu0
      %v3658 = vadd.f32 %v3380, %v3657
      %v3659 = vpop.f32.mrf.mxu0
      %v3660 = vpop.f32.mrf.mxu0
      %v3661 = vadd.f32 %v3380, %v3660
      %v3662 = vpop.f32.mrf.mxu0
      %3663 = vmatprep.mubr.bf16.mxu0 0
      %3664 = vmatmul.mubr.bf16.gmra.mxu0 %v3456
      %v3665 = vpop.f32.mrf.mxu0
      %v3666 = vadd.f32 %v3380, %v3665
      %v3667 = vpop.f32.mrf.mxu0
      %v3668 = vpop.f32.mrf.mxu0
      %v3669 = vadd.f32 %v3380, %v3668
      %v3670 = vpop.f32.mrf.mxu0
      %3671 = vmatprep.mubr.bf16.mxu0 0
      %3672 = vmatmul.mubr.bf16.gmra.mxu0 %v3459
      %v3673 = vpop.f32.mrf.mxu0
      %v3674 = vadd.f32 %v3380, %v3673
      %v3675 = vpop.f32.mrf.mxu0
      %v3676 = vpop.f32.mrf.mxu0
      %v3677 = vadd.f32 %v3380, %v3676
      %v3678 = vpop.f32.mrf.mxu0
      %3679 = vmatprep.mubr.bf16.mxu0 0
      %3680 = vmatmul.mubr.bf16.gmra.mxu0 %v3462
      %v3681 = vpop.f32.mrf.mxu0
      %v3682 = vadd.f32 %v3380, %v3681
      %v3683 = vpop.f32.mrf.mxu0
      %v3684 = vpop.f32.mrf.mxu0
      %v3685 = vadd.f32 %v3380, %v3684
      %v3686 = vpop.f32.mrf.mxu0
      %3687 = vmatprep.mubr.bf16.mxu0 0
      %3688 = vmatmul.mubr.bf16.gmra.mxu0 %v3465
      %v3689 = vpop.f32.mrf.mxu0
      %v3690 = vadd.f32 %v3380, %v3689
      %v3691 = vpop.f32.mrf.mxu0
      %v3692 = vpop.f32.mrf.mxu0
      %v3693 = vadd.f32 %v3380, %v3692
      %v3694 = vpop.f32.mrf.mxu0
      %3695 = vmatprep.mubr.bf16.mxu0 0
      %3696 = vmatmul.mubr.bf16.gmra.mxu0 %v3468
      %v3697 = vpop.f32.mrf.mxu0
      %v3698 = vadd.f32 %v3380, %v3697
      %v3699 = vpop.f32.mrf.mxu0
      %v3700 = vpop.f32.mrf.mxu0
      %v3701 = vadd.f32 %v3380, %v3700
      %v3702 = vpop.f32.mrf.mxu0
      %3703 = vmatprep.mubr.bf16.mxu0 0
      %3704 = vmatmul.mubr.bf16.gmra.mxu0 %v3471
      %v3705 = vpop.f32.mrf.mxu0
      %v3706 = vadd.f32 %v3380, %v3705
      %v3707 = vpop.f32.mrf.mxu0
      %v3708 = vpop.f32.mrf.mxu0
      %v3709 = vadd.f32 %v3380, %v3708
      %v3710 = vpop.f32.mrf.mxu0
      %3711 = vmatprep.mubr.bf16.mxu0 0
      %3712 = vmatmul.mubr.bf16.gmra.mxu0 %v3474
      %v3713 = vpop.f32.mrf.mxu0
      %v3714 = vadd.f32 %v3380, %v3713
      %v3715 = vpop.f32.mrf.mxu0
      %v3716 = vpop.f32.mrf.mxu0
      %v3717 = vadd.f32 %v3380, %v3716
      %v3718 = vpop.f32.mrf.mxu0
      %3719 = vmatprep.mubr.bf16.mxu0 0
      %3720 = vmatmul.mubr.bf16.gmra.mxu0 %v3477
      %v3721 = vpop.f32.mrf.mxu0
      %v3722 = vadd.f32 %v3380, %v3721
      %v3723 = vpop.f32.mrf.mxu0
      %v3724 = vpop.f32.mrf.mxu0
      %v3725 = vadd.f32 %v3380, %v3724
      %v3726 = vpop.f32.mrf.mxu0
      %3727 = vmatprep.mubr.bf16.mxu0 0
      %3728 = vmatmul.mubr.bf16.gmra.mxu0 %v3480
      %v3729 = vpop.f32.mrf.mxu0
      %v3730 = vadd.f32 %v3380, %v3729
      %v3731 = vpop.f32.mrf.mxu0
      %v3732 = vpop.f32.mrf.mxu0
      %v3733 = vadd.f32 %v3380, %v3732
      %v3734 = vpop.f32.mrf.mxu0
      %3735 = vmatprep.mubr.bf16.mxu0 0
      %3736 = vmatmul.mubr.bf16.gmra.mxu0 %v3483
      %v3737 = vpop.f32.mrf.mxu0
      %v3738 = vadd.f32 %v3380, %v3737
      %v3739 = vpop.f32.mrf.mxu0
      %v3740 = vpop.f32.mrf.mxu0
      %v3741 = vadd.f32 %v3380, %v3740
      %v3742 = vpop.f32.mrf.mxu0
      %3743 = vmatprep.mubr.bf16.mxu0 0
      %3744 = vmatmul.mubr.bf16.gmra.mxu0 %v3486
      %v3745 = vpop.f32.mrf.mxu0
      %v3746 = vadd.f32 %v3380, %v3745
      %v3747 = vpop.f32.mrf.mxu0
      %v3748 = vpop.f32.mrf.mxu0
      %v3749 = vadd.f32 %v3380, %v3748
      %v3750 = vpop.f32.mrf.mxu0
      %3751 = vmatprep.mubr.bf16.mxu0 0
      %3752 = vmatmul.mubr.bf16.gmra.mxu0 %v3489
      %v3753 = vpop.f32.mrf.mxu0
      %v3754 = vadd.f32 %v3380, %v3753
      %v3755 = vpop.f32.mrf.mxu0
      %v3756 = vpop.f32.mrf.mxu0
      %v3757 = vadd.f32 %v3380, %v3756
      %v3758 = vpop.f32.mrf.mxu0
      %3759 = vmatprep.mubr.bf16.mxu0 0
      %3760 = vmatmul.mubr.bf16.gmra.mxu0 %v3492
      %v3761 = vpop.f32.mrf.mxu0
      %v3762 = vadd.f32 %v3380, %v3761
      %v3763 = vpop.f32.mrf.mxu0
      %v3764 = vpop.f32.mrf.mxu0
      %v3765 = vadd.f32 %v3380, %v3764
      %v3766 = vpop.f32.mrf.mxu0
      %3767 = vmatprep.mubr.bf16.mxu0 0
      %3768 = vmatmul.mubr.bf16.gmra.mxu0 %v3495
      %v3769 = vpop.f32.mrf.mxu0
      %v3770 = vadd.f32 %v3380, %v3769
      %v3771 = vpop.f32.mrf.mxu0
      %v3772 = vpop.f32.mrf.mxu0
      %v3773 = vadd.f32 %v3380, %v3772
      %v3774 = vpop.f32.mrf.mxu0
      %3775 = vmatprep.mubr.bf16.mxu0 0
      %3776 = vmatmul.mubr.bf16.gmra.mxu0 %v3498
      %v3777 = vpop.f32.mrf.mxu0
      %v3778 = vadd.f32 %v3380, %v3777
      %v3779 = vpop.f32.mrf.mxu0
      %v3780 = vpop.f32.mrf.mxu0
      %v3781 = vadd.f32 %v3380, %v3780
      %v3782 = vpop.f32.mrf.mxu0
      %3783 = vmatprep.mubr.bf16.mxu0 0
      %3784 = vmatmul.mubr.bf16.gmra.mxu0 %v3501
      %v3785 = vpop.f32.mrf.mxu0
      %v3786 = vadd.f32 %v3380, %v3785
      %v3787 = vpop.f32.mrf.mxu0
      %v3788 = vpop.f32.mrf.mxu0
      %v3789 = vadd.f32 %v3380, %v3788
      %v3790 = vpop.f32.mrf.mxu0
      %3791 = vdwg.mxu0
      %vm3792 = vcmask 261120
      %3793 = vst.msk [vmem:[%s481] sm:$0xff] %vm3792, %v3538
      %3794 = vst.msk [vmem:[%s481 + $0x8] sm:$0xff] %vm3792, %v3541
      %3795 = vst.msk [vmem:[%s481 + $0x10] sm:$0xff] %vm3792, %v3546
      %3796 = vst.msk [vmem:[%s481 + $0x18] sm:$0xff] %vm3792, %v3549
      %3797 = vst.msk [vmem:[%s481 + $0x20] sm:$0xff] %vm3792, %v3554
      %3798 = vst.msk [vmem:[%s481 + $0x28] sm:$0xff] %vm3792, %v3557
      %3799 = vst.msk [vmem:[%s481 + $0x30] sm:$0xff] %vm3792, %v3562
      %3800 = vst.msk [vmem:[%s481 + $0x38] sm:$0xff] %vm3792, %v3565
      %3801 = vst.msk [vmem:[%s481 + $0x40] sm:$0xff] %vm3792, %v3570
      %3802 = vst.msk [vmem:[%s481 + $0x48] sm:$0xff] %vm3792, %v3573
      %3803 = vst.msk [vmem:[%s481 + $0x50] sm:$0xff] %vm3792, %v3578
      %3804 = vst.msk [vmem:[%s481 + $0x58] sm:$0xff] %vm3792, %v3581
      %3805 = vst.msk [vmem:[%s481 + $0x60] sm:$0xff] %vm3792, %v3586
      %3806 = vst.msk [vmem:[%s481 + $0x68] sm:$0xff] %vm3792, %v3589
      %3807 = vst.msk [vmem:[%s481 + $0x70] sm:$0xff] %vm3792, %v3594
      %3808 = vst.msk [vmem:[%s481 + $0x78] sm:$0xff] %vm3792, %v3597
      %3809 = vst.msk [vmem:[%s481 + $0x80] sm:$0xff] %vm3792, %v3602
      %3810 = vst.msk [vmem:[%s481 + $0x88] sm:$0xff] %vm3792, %v3605
      %3811 = vst.msk [vmem:[%s481 + $0x90] sm:$0xff] %vm3792, %v3610
      %3812 = vst.msk [vmem:[%s481 + $0x98] sm:$0xff] %vm3792, %v3613
      %3813 = vst.msk [vmem:[%s481 + $0xa0] sm:$0xff] %vm3792, %v3618
      %3814 = vst.msk [vmem:[%s481 + $0xa8] sm:$0xff] %vm3792, %v3621
      %3815 = vst.msk [vmem:[%s481 + $0xb0] sm:$0xff] %vm3792, %v3626
      %3816 = vst.msk [vmem:[%s481 + $0xb8] sm:$0xff] %vm3792, %v3629
      %3817 = vst.msk [vmem:[%s481 + $0xc0] sm:$0xff] %vm3792, %v3634
      %3818 = vst.msk [vmem:[%s481 + $0xc8] sm:$0xff] %vm3792, %v3637
      %3819 = vst.msk [vmem:[%s481 + $0xd0] sm:$0xff] %vm3792, %v3642
      %3820 = vst.msk [vmem:[%s481 + $0xd8] sm:$0xff] %vm3792, %v3645
      %3821 = vst.msk [vmem:[%s481 + $0xe0] sm:$0xff] %vm3792, %v3650
      %3822 = vst.msk [vmem:[%s481 + $0xe8] sm:$0xff] %vm3792, %v3653
      %3823 = vst.msk [vmem:[%s481 + $0xf0] sm:$0xff] %vm3792, %v3658
      %3824 = vst.msk [vmem:[%s481 + $0xf8] sm:$0xff] %vm3792, %v3661
      %3825 = vst.msk [vmem:[%s481 + $0x100] sm:$0xff] %vm3792, %v3666
      %3826 = vst.msk [vmem:[%s481 + $0x108] sm:$0xff] %vm3792, %v3669
      %3827 = vst.msk [vmem:[%s481 + $0x110] sm:$0xff] %vm3792, %v3674
      %3828 = vst.msk [vmem:[%s481 + $0x118] sm:$0xff] %vm3792, %v3677
      %3829 = vst.msk [vmem:[%s481 + $0x120] sm:$0xff] %vm3792, %v3682
      %3830 = vst.msk [vmem:[%s481 + $0x128] sm:$0xff] %vm3792, %v3685
      %3831 = vst.msk [vmem:[%s481 + $0x130] sm:$0xff] %vm3792, %v3690
      %3832 = vst.msk [vmem:[%s481 + $0x138] sm:$0xff] %vm3792, %v3693
      %3833 = vst.msk [vmem:[%s481 + $0x140] sm:$0xff] %vm3792, %v3698
      %3834 = vst.msk [vmem:[%s481 + $0x148] sm:$0xff] %vm3792, %v3701
      %3835 = vst.msk [vmem:[%s481 + $0x150] sm:$0xff] %vm3792, %v3706
      %3836 = vst.msk [vmem:[%s481 + $0x158] sm:$0xff] %vm3792, %v3709
      %3837 = vst.msk [vmem:[%s481 + $0x160] sm:$0xff] %vm3792, %v3714
      %3838 = vst.msk [vmem:[%s481 + $0x168] sm:$0xff] %vm3792, %v3717
      %3839 = vst.msk [vmem:[%s481 + $0x170] sm:$0xff] %vm3792, %v3722
      %3840 = vst.msk [vmem:[%s481 + $0x178] sm:$0xff] %vm3792, %v3725
      %3841 = vst.msk [vmem:[%s481 + $0x180] sm:$0xff] %vm3792, %v3730
      %3842 = vst.msk [vmem:[%s481 + $0x188] sm:$0xff] %vm3792, %v3733
      %3843 = vst.msk [vmem:[%s481 + $0x190] sm:$0xff] %vm3792, %v3738
      %3844 = vst.msk [vmem:[%s481 + $0x198] sm:$0xff] %vm3792, %v3741
      %3845 = vst.msk [vmem:[%s481 + $0x1a0] sm:$0xff] %vm3792, %v3746
      %3846 = vst.msk [vmem:[%s481 + $0x1a8] sm:$0xff] %vm3792, %v3749
      %3847 = vst.msk [vmem:[%s481 + $0x1b0] sm:$0xff] %vm3792, %v3754
      %3848 = vst.msk [vmem:[%s481 + $0x1b8] sm:$0xff] %vm3792, %v3757
      %3849 = vst.msk [vmem:[%s481 + $0x1c0] sm:$0xff] %vm3792, %v3762
      %3850 = vst.msk [vmem:[%s481 + $0x1c8] sm:$0xff] %vm3792, %v3765
      %3851 = vst.msk [vmem:[%s481 + $0x1d0] sm:$0xff] %vm3792, %v3770
      %3852 = vst.msk [vmem:[%s481 + $0x1d8] sm:$0xff] %vm3792, %v3773
      %3853 = vst.msk [vmem:[%s481 + $0x1e0] sm:$0xff] %vm3792, %v3778
      %3854 = vst.msk [vmem:[%s481 + $0x1e8] sm:$0xff] %vm3792, %v3781
      %3855 = vst.msk [vmem:[%s481 + $0x1f0] sm:$0xff] %vm3792, %v3786
      %3856 = vst.msk [vmem:[%s481 + $0x1f8] sm:$0xff] %vm3792, %v3789
      %v3857 = vpack.c.bf16 %v3541, %v3538
      %v3858 = vpack.c.bf16 %v3549, %v3546
      %v3859 = vpack.c.bf16 %v3557, %v3554
      %v3860 = vpack.c.bf16 %v3565, %v3562
      %v3861 = vpack.c.bf16 %v3573, %v3570
      %v3862 = vpack.c.bf16 %v3581, %v3578
      %v3863 = vpack.c.bf16 %v3589, %v3586
      %v3864 = vpack.c.bf16 %v3597, %v3594
      %v3865 = vpack.c.bf16 %v3605, %v3602
      %v3866 = vpack.c.bf16 %v3613, %v3610
      %v3867 = vpack.c.bf16 %v3621, %v3618
      %v3868 = vpack.c.bf16 %v3629, %v3626
      %v3869 = vpack.c.bf16 %v3637, %v3634
      %v3870 = vpack.c.bf16 %v3645, %v3642
      %v3871 = vpack.c.bf16 %v3653, %v3650
      %v3872 = vpack.c.bf16 %v3661, %v3658
      %v3873 = vpack.c.bf16 %v3669, %v3666
      %v3874 = vpack.c.bf16 %v3677, %v3674
      %v3875 = vpack.c.bf16 %v3685, %v3682
      %v3876 = vpack.c.bf16 %v3693, %v3690
      %v3877 = vpack.c.bf16 %v3701, %v3698
      %v3878 = vpack.c.bf16 %v3709, %v3706
      %v3879 = vpack.c.bf16 %v3717, %v3714
      %v3880 = vpack.c.bf16 %v3725, %v3722
      %v3881 = vpack.c.bf16 %v3733, %v3730
      %v3882 = vpack.c.bf16 %v3741, %v3738
      %v3883 = vpack.c.bf16 %v3749, %v3746
      %v3884 = vpack.c.bf16 %v3757, %v3754
      %v3885 = vpack.c.bf16 %v3765, %v3762
      %v3886 = vpack.c.bf16 %v3773, %v3770
      %v3887 = vpack.c.bf16 %v3781, %v3778
      %v3888 = vpack.c.bf16 %v3789, %v3786
      %v3889 = vld [vmem:[%s7] sm:$0xf]
      %v3890 = vld [vmem:[%s7 + $0x4] sm:$0xf]
      %v3891 = vld [vmem:[%s7 + $0x8] sm:$0xf]
      %v3892 = vld [vmem:[%s7 + $0xc] sm:$0xf]
      %v3893 = vld [vmem:[%s8] sm:$0x1]
      %v3895 = vlaneseq
      %v3896 = vshrl.u32 %v3895, 7
      %v3897 = vsub.s32 0, %v3896
      %v3898 = vrot.slane %v3893, %v3897
      %v3904 = vunpack.c.l.b16 %v3889
      %v3905 = vunpack.c.l.b16 %v3890
      %v3906 = vunpack.c.l.b16 %v3891
      %v3907 = vunpack.c.l.b16 %v3892
      %v3908 = vpack.c.b16 %v3905, %v3904
      %v3909 = vpack.c.b16 %v3907, %v3906
      %v3913 = vsel %vm3792, %v3857, 0
      %v3916 = vsel %vm3792, %v3858, 0
      %v3919 = vsel %vm3792, %v3859, 0
      %v3922 = vsel %vm3792, %v3860, 0
      %v3925 = vsel %vm3792, %v3861, 0
      %v3928 = vsel %vm3792, %v3862, 0
      %v3931 = vsel %vm3792, %v3863, 0
      %v3934 = vsel %vm3792, %v3864, 0
      %v3937 = vsel %vm3792, %v3865, 0
      %v3940 = vsel %vm3792, %v3866, 0
      %v3943 = vsel %vm3792, %v3867, 0
      %v3946 = vsel %vm3792, %v3868, 0
      %v3949 = vsel %vm3792, %v3869, 0
      %v3952 = vsel %vm3792, %v3870, 0
      %v3955 = vsel %vm3792, %v3871, 0
      %v3958 = vsel %vm3792, %v3872, 0
      %v3961 = vsel %vm3792, %v3873, 0
      %v3964 = vsel %vm3792, %v3874, 0
      %v3967 = vsel %vm3792, %v3875, 0
      %v3970 = vsel %vm3792, %v3876, 0
      %v3973 = vsel %vm3792, %v3877, 0
      %v3976 = vsel %vm3792, %v3878, 0
      %v3979 = vsel %vm3792, %v3879, 0
      %v3982 = vsel %vm3792, %v3880, 0
      %v3985 = vsel %vm3792, %v3881, 0
      %v3988 = vsel %vm3792, %v3882, 0
      %v3991 = vsel %vm3792, %v3883, 0
      %v3994 = vsel %vm3792, %v3884, 0
      %v3997 = vsel %vm3792, %v3885, 0
      %v4000 = vsel %vm3792, %v3886, 0
      %v4003 = vsel %vm3792, %v3887, 0
      %v4006 = vsel %vm3792, %v3888, 0
      %4008 = vmatprep.subr.bf16.mxu0 0
      %4009 = vmatpush1.bf16.msra.mxu0 0
      %4010 = vmatprep.subr.bf16.mxu0 0
      %4011 = vmatpush1.bf16.msra.mxu0 0
      %4012 = vmatprep.subr.bf16.mxu0 0
      %4013 = vmatpush1.bf16.msra.mxu0 0
      %4014 = vmatprep.subr.bf16.mxu0 0
      %4015 = vmatpush1.bf16.msra.mxu0 0
      %4016 = vmatprep.subr.bf16.mxu0 0
      %4017 = vmatpush1.bf16.msra.mxu0 0
      %4018 = vmatprep.subr.bf16.mxu0 0
      %4019 = vmatpush1.bf16.msra.mxu0 0
      %4020 = vmatprep.subr.bf16.mxu0 0
      %4021 = vmatpush1.bf16.msra.mxu0 %v3909
      %4022 = vmatprep.subr.bf16.mxu0 0
      %4023 = vmatpush1.bf16.msra.mxu0 %v3908
      %4024 = vmatprep.subr.bf16.mxu0 0
      %4025 = vmatpush2.bf16.msra.mxu0 0
      %4026 = vmatprep.subr.bf16.mxu0 0
      %4027 = vmatpush2.bf16.msra.mxu0 0
      %4028 = vmatprep.subr.bf16.mxu0 0
      %4029 = vmatpush2.bf16.msra.mxu0 0
      %4030 = vmatprep.subr.bf16.mxu0 0
      %4031 = vmatpush2.bf16.msra.mxu0 0
      %4032 = vmatprep.subr.bf16.mxu0 0
      %4033 = vmatpush2.bf16.msra.mxu0 0
      %4034 = vmatprep.subr.bf16.mxu0 0
      %4035 = vmatpush2.bf16.msra.mxu0 0
      %4036 = vmatprep.subr.bf16.mxu0 0
      %4037 = vmatpush2.bf16.msra.mxu0 0
      %4038 = vmatprep.subr.bf16.mxu0 0
      %4039 = vmatpush2.bf16.msra.mxu0 0
      %4040 = vmatprep.mubr.bf16.mxu0 0
      %4041 = vmatmul.mubr.bf16.gmra.mxu0 %v3913
      %v4042 = vpop.f32.mrf.mxu0
      %v4043 = vadd.f32 %v3898, %v4042
      %v4044 = vpop.f32.mrf.mxu0
      %v4045 = vpop.f32.mrf.mxu0
      %v4046 = vadd.f32 %v3898, %v4045
      %v4047 = vpop.f32.mrf.mxu0
      %4048 = vmatprep.mubr.bf16.mxu0 0
      %4049 = vmatmul.mubr.bf16.gmra.mxu0 %v3916
      %v4050 = vpop.f32.mrf.mxu0
      %v4051 = vadd.f32 %v3898, %v4050
      %v4052 = vpop.f32.mrf.mxu0
      %v4053 = vpop.f32.mrf.mxu0
      %v4054 = vadd.f32 %v3898, %v4053
      %v4055 = vpop.f32.mrf.mxu0
      %4056 = vmatprep.mubr.bf16.mxu0 0
      %4057 = vmatmul.mubr.bf16.gmra.mxu0 %v3919
      %v4058 = vpop.f32.mrf.mxu0
      %v4059 = vadd.f32 %v3898, %v4058
      %v4060 = vpop.f32.mrf.mxu0
      %v4061 = vpop.f32.mrf.mxu0
      %v4062 = vadd.f32 %v3898, %v4061
      %v4063 = vpop.f32.mrf.mxu0
      %4064 = vmatprep.mubr.bf16.mxu0 0
      %4065 = vmatmul.mubr.bf16.gmra.mxu0 %v3922
      %v4066 = vpop.f32.mrf.mxu0
      %v4067 = vadd.f32 %v3898, %v4066
      %v4068 = vpop.f32.mrf.mxu0
      %v4069 = vpop.f32.mrf.mxu0
      %v4070 = vadd.f32 %v3898, %v4069
      %v4071 = vpop.f32.mrf.mxu0
      %4072 = vmatprep.mubr.bf16.mxu0 0
      %4073 = vmatmul.mubr.bf16.gmra.mxu0 %v3925
      %v4074 = vpop.f32.mrf.mxu0
      %v4075 = vadd.f32 %v3898, %v4074
      %v4076 = vpop.f32.mrf.mxu0
      %v4077 = vpop.f32.mrf.mxu0
      %v4078 = vadd.f32 %v3898, %v4077
      %v4079 = vpop.f32.mrf.mxu0
      %4080 = vmatprep.mubr.bf16.mxu0 0
      %4081 = vmatmul.mubr.bf16.gmra.mxu0 %v3928
      %v4082 = vpop.f32.mrf.mxu0
      %v4083 = vadd.f32 %v3898, %v4082
      %v4084 = vpop.f32.mrf.mxu0
      %v4085 = vpop.f32.mrf.mxu0
      %v4086 = vadd.f32 %v3898, %v4085
      %v4087 = vpop.f32.mrf.mxu0
      %4088 = vmatprep.mubr.bf16.mxu0 0
      %4089 = vmatmul.mubr.bf16.gmra.mxu0 %v3931
      %v4090 = vpop.f32.mrf.mxu0
      %v4091 = vadd.f32 %v3898, %v4090
      %v4092 = vpop.f32.mrf.mxu0
      %v4093 = vpop.f32.mrf.mxu0
      %v4094 = vadd.f32 %v3898, %v4093
      %v4095 = vpop.f32.mrf.mxu0
      %4096 = vmatprep.mubr.bf16.mxu0 0
      %4097 = vmatmul.mubr.bf16.gmra.mxu0 %v3934
      %v4098 = vpop.f32.mrf.mxu0
      %v4099 = vadd.f32 %v3898, %v4098
      %v4100 = vpop.f32.mrf.mxu0
      %v4101 = vpop.f32.mrf.mxu0
      %v4102 = vadd.f32 %v3898, %v4101
      %v4103 = vpop.f32.mrf.mxu0
      %4104 = vmatprep.mubr.bf16.mxu0 0
      %4105 = vmatmul.mubr.bf16.gmra.mxu0 %v3937
      %v4106 = vpop.f32.mrf.mxu0
      %v4107 = vadd.f32 %v3898, %v4106
      %v4108 = vpop.f32.mrf.mxu0
      %v4109 = vpop.f32.mrf.mxu0
      %v4110 = vadd.f32 %v3898, %v4109
      %v4111 = vpop.f32.mrf.mxu0
      %4112 = vmatprep.mubr.bf16.mxu0 0
      %4113 = vmatmul.mubr.bf16.gmra.mxu0 %v3940
      %v4114 = vpop.f32.mrf.mxu0
      %v4115 = vadd.f32 %v3898, %v4114
      %v4116 = vpop.f32.mrf.mxu0
      %v4117 = vpop.f32.mrf.mxu0
      %v4118 = vadd.f32 %v3898, %v4117
      %v4119 = vpop.f32.mrf.mxu0
      %4120 = vmatprep.mubr.bf16.mxu0 0
      %4121 = vmatmul.mubr.bf16.gmra.mxu0 %v3943
      %v4122 = vpop.f32.mrf.mxu0
      %v4123 = vadd.f32 %v3898, %v4122
      %v4124 = vpop.f32.mrf.mxu0
      %v4125 = vpop.f32.mrf.mxu0
      %v4126 = vadd.f32 %v3898, %v4125
      %v4127 = vpop.f32.mrf.mxu0
      %4128 = vmatprep.mubr.bf16.mxu0 0
      %4129 = vmatmul.mubr.bf16.gmra.mxu0 %v3946
      %v4130 = vpop.f32.mrf.mxu0
      %v4131 = vadd.f32 %v3898, %v4130
      %v4132 = vpop.f32.mrf.mxu0
      %v4133 = vpop.f32.mrf.mxu0
      %v4134 = vadd.f32 %v3898, %v4133
      %v4135 = vpop.f32.mrf.mxu0
      %4136 = vmatprep.mubr.bf16.mxu0 0
      %4137 = vmatmul.mubr.bf16.gmra.mxu0 %v3949
      %v4138 = vpop.f32.mrf.mxu0
      %v4139 = vadd.f32 %v3898, %v4138
      %v4140 = vpop.f32.mrf.mxu0
      %v4141 = vpop.f32.mrf.mxu0
      %v4142 = vadd.f32 %v3898, %v4141
      %v4143 = vpop.f32.mrf.mxu0
      %4144 = vmatprep.mubr.bf16.mxu0 0
      %4145 = vmatmul.mubr.bf16.gmra.mxu0 %v3952
      %v4146 = vpop.f32.mrf.mxu0
      %v4147 = vadd.f32 %v3898, %v4146
      %v4148 = vpop.f32.mrf.mxu0
      %v4149 = vpop.f32.mrf.mxu0
      %v4150 = vadd.f32 %v3898, %v4149
      %v4151 = vpop.f32.mrf.mxu0
      %4152 = vmatprep.mubr.bf16.mxu0 0
      %4153 = vmatmul.mubr.bf16.gmra.mxu0 %v3955
      %v4154 = vpop.f32.mrf.mxu0
      %v4155 = vadd.f32 %v3898, %v4154
      %v4156 = vpop.f32.mrf.mxu0
      %v4157 = vpop.f32.mrf.mxu0
      %v4158 = vadd.f32 %v3898, %v4157
      %v4159 = vpop.f32.mrf.mxu0
      %4160 = vmatprep.mubr.bf16.mxu0 0
      %4161 = vmatmul.mubr.bf16.gmra.mxu0 %v3958
      %v4162 = vpop.f32.mrf.mxu0
      %v4163 = vadd.f32 %v3898, %v4162
      %v4164 = vpop.f32.mrf.mxu0
      %v4165 = vpop.f32.mrf.mxu0
      %v4166 = vadd.f32 %v3898, %v4165
      %v4167 = vpop.f32.mrf.mxu0
      %4168 = vmatprep.mubr.bf16.mxu0 0
      %4169 = vmatmul.mubr.bf16.gmra.mxu0 %v3961
      %v4170 = vpop.f32.mrf.mxu0
      %v4171 = vadd.f32 %v3898, %v4170
      %v4172 = vpop.f32.mrf.mxu0
      %v4173 = vpop.f32.mrf.mxu0
      %v4174 = vadd.f32 %v3898, %v4173
      %v4175 = vpop.f32.mrf.mxu0
      %4176 = vmatprep.mubr.bf16.mxu0 0
      %4177 = vmatmul.mubr.bf16.gmra.mxu0 %v3964
      %v4178 = vpop.f32.mrf.mxu0
      %v4179 = vadd.f32 %v3898, %v4178
      %v4180 = vpop.f32.mrf.mxu0
      %v4181 = vpop.f32.mrf.mxu0
      %v4182 = vadd.f32 %v3898, %v4181
      %v4183 = vpop.f32.mrf.mxu0
      %4184 = vmatprep.mubr.bf16.mxu0 0
      %4185 = vmatmul.mubr.bf16.gmra.mxu0 %v3967
      %v4186 = vpop.f32.mrf.mxu0
      %v4187 = vadd.f32 %v3898, %v4186
      %v4188 = vpop.f32.mrf.mxu0
      %v4189 = vpop.f32.mrf.mxu0
      %v4190 = vadd.f32 %v3898, %v4189
      %v4191 = vpop.f32.mrf.mxu0
      %4192 = vmatprep.mubr.bf16.mxu0 0
      %4193 = vmatmul.mubr.bf16.gmra.mxu0 %v3970
      %v4194 = vpop.f32.mrf.mxu0
      %v4195 = vadd.f32 %v3898, %v4194
      %v4196 = vpop.f32.mrf.mxu0
      %v4197 = vpop.f32.mrf.mxu0
      %v4198 = vadd.f32 %v3898, %v4197
      %v4199 = vpop.f32.mrf.mxu0
      %4200 = vmatprep.mubr.bf16.mxu0 0
      %4201 = vmatmul.mubr.bf16.gmra.mxu0 %v3973
      %v4202 = vpop.f32.mrf.mxu0
      %v4203 = vadd.f32 %v3898, %v4202
      %v4204 = vpop.f32.mrf.mxu0
      %v4205 = vpop.f32.mrf.mxu0
      %v4206 = vadd.f32 %v3898, %v4205
      %v4207 = vpop.f32.mrf.mxu0
      %4208 = vmatprep.mubr.bf16.mxu0 0
      %4209 = vmatmul.mubr.bf16.gmra.mxu0 %v3976
      %v4210 = vpop.f32.mrf.mxu0
      %v4211 = vadd.f32 %v3898, %v4210
      %v4212 = vpop.f32.mrf.mxu0
      %v4213 = vpop.f32.mrf.mxu0
      %v4214 = vadd.f32 %v3898, %v4213
      %v4215 = vpop.f32.mrf.mxu0
      %4216 = vmatprep.mubr.bf16.mxu0 0
      %4217 = vmatmul.mubr.bf16.gmra.mxu0 %v3979
      %v4218 = vpop.f32.mrf.mxu0
      %v4219 = vadd.f32 %v3898, %v4218
      %v4220 = vpop.f32.mrf.mxu0
      %v4221 = vpop.f32.mrf.mxu0
      %v4222 = vadd.f32 %v3898, %v4221
      %v4223 = vpop.f32.mrf.mxu0
      %4224 = vmatprep.mubr.bf16.mxu0 0
      %4225 = vmatmul.mubr.bf16.gmra.mxu0 %v3982
      %v4226 = vpop.f32.mrf.mxu0
      %v4227 = vadd.f32 %v3898, %v4226
      %v4228 = vpop.f32.mrf.mxu0
      %v4229 = vpop.f32.mrf.mxu0
      %v4230 = vadd.f32 %v3898, %v4229
      %v4231 = vpop.f32.mrf.mxu0
      %4232 = vmatprep.mubr.bf16.mxu0 0
      %4233 = vmatmul.mubr.bf16.gmra.mxu0 %v3985
      %v4234 = vpop.f32.mrf.mxu0
      %v4235 = vadd.f32 %v3898, %v4234
      %v4236 = vpop.f32.mrf.mxu0
      %v4237 = vpop.f32.mrf.mxu0
      %v4238 = vadd.f32 %v3898, %v4237
      %v4239 = vpop.f32.mrf.mxu0
      %4240 = vmatprep.mubr.bf16.mxu0 0
      %4241 = vmatmul.mubr.bf16.gmra.mxu0 %v3988
      %v4242 = vpop.f32.mrf.mxu0
      %v4243 = vadd.f32 %v3898, %v4242
      %v4244 = vpop.f32.mrf.mxu0
      %v4245 = vpop.f32.mrf.mxu0
      %v4246 = vadd.f32 %v3898, %v4245
      %v4247 = vpop.f32.mrf.mxu0
      %4248 = vmatprep.mubr.bf16.mxu0 0
      %4249 = vmatmul.mubr.bf16.gmra.mxu0 %v3991
      %v4250 = vpop.f32.mrf.mxu0
      %v4251 = vadd.f32 %v3898, %v4250
      %v4252 = vpop.f32.mrf.mxu0
      %v4253 = vpop.f32.mrf.mxu0
      %v4254 = vadd.f32 %v3898, %v4253
      %v4255 = vpop.f32.mrf.mxu0
      %4256 = vmatprep.mubr.bf16.mxu0 0
      %4257 = vmatmul.mubr.bf16.gmra.mxu0 %v3994
      %v4258 = vpop.f32.mrf.mxu0
      %v4259 = vadd.f32 %v3898, %v4258
      %v4260 = vpop.f32.mrf.mxu0
      %v4261 = vpop.f32.mrf.mxu0
      %v4262 = vadd.f32 %v3898, %v4261
      %v4263 = vpop.f32.mrf.mxu0
      %4264 = vmatprep.mubr.bf16.mxu0 0
      %4265 = vmatmul.mubr.bf16.gmra.mxu0 %v3997
      %v4266 = vpop.f32.mrf.mxu0
      %v4267 = vadd.f32 %v3898, %v4266
      %v4268 = vpop.f32.mrf.mxu0
      %v4269 = vpop.f32.mrf.mxu0
      %v4270 = vadd.f32 %v3898, %v4269
      %v4271 = vpop.f32.mrf.mxu0
      %4272 = vmatprep.mubr.bf16.mxu0 0
      %4273 = vmatmul.mubr.bf16.gmra.mxu0 %v4000
      %v4274 = vpop.f32.mrf.mxu0
      %v4275 = vadd.f32 %v3898, %v4274
      %v4276 = vpop.f32.mrf.mxu0
      %v4277 = vpop.f32.mrf.mxu0
      %v4278 = vadd.f32 %v3898, %v4277
      %v4279 = vpop.f32.mrf.mxu0
      %4280 = vmatprep.mubr.bf16.mxu0 0
      %4281 = vmatmul.mubr.bf16.gmra.mxu0 %v4003
      %v4282 = vpop.f32.mrf.mxu0
      %v4283 = vadd.f32 %v3898, %v4282
      %v4284 = vpop.f32.mrf.mxu0
      %v4285 = vpop.f32.mrf.mxu0
      %v4286 = vadd.f32 %v3898, %v4285
      %v4287 = vpop.f32.mrf.mxu0
      %4288 = vmatprep.mubr.bf16.mxu0 0
      %4289 = vmatmul.mubr.bf16.gmra.mxu0 %v4006
      %v4290 = vpop.f32.mrf.mxu0
      %v4291 = vadd.f32 %v3898, %v4290
      %v4292 = vpop.f32.mrf.mxu0
      %v4293 = vpop.f32.mrf.mxu0
      %v4294 = vadd.f32 %v3898, %v4293
      %v4295 = vpop.f32.mrf.mxu0
      %4296 = vdwg.mxu0
      %v4297 = vmax.f32 %v4043, 0.0
      %v4298 = vmax.f32 %v4046, 0.0
      %v4299 = vmax.f32 %v4051, 0.0
      %v4300 = vmax.f32 %v4054, 0.0
      %v4301 = vmax.f32 %v4059, 0.0
      %v4302 = vmax.f32 %v4062, 0.0
      %v4303 = vmax.f32 %v4067, 0.0
      %v4304 = vmax.f32 %v4070, 0.0
      %v4305 = vmax.f32 %v4075, 0.0
      %v4306 = vmax.f32 %v4078, 0.0
      %v4307 = vmax.f32 %v4083, 0.0
      %v4308 = vmax.f32 %v4086, 0.0
      %v4309 = vmax.f32 %v4091, 0.0
      %v4310 = vmax.f32 %v4094, 0.0
      %v4311 = vmax.f32 %v4099, 0.0
      %v4312 = vmax.f32 %v4102, 0.0
      %v4313 = vmax.f32 %v4107, 0.0
      %v4314 = vmax.f32 %v4110, 0.0
      %v4315 = vmax.f32 %v4115, 0.0
      %v4316 = vmax.f32 %v4118, 0.0
      %v4317 = vmax.f32 %v4123, 0.0
      %v4318 = vmax.f32 %v4126, 0.0
      %v4319 = vmax.f32 %v4131, 0.0
      %v4320 = vmax.f32 %v4134, 0.0
      %v4321 = vmax.f32 %v4139, 0.0
      %v4322 = vmax.f32 %v4142, 0.0
      %v4323 = vmax.f32 %v4147, 0.0
      %v4324 = vmax.f32 %v4150, 0.0
      %v4325 = vmax.f32 %v4155, 0.0
      %v4326 = vmax.f32 %v4158, 0.0
      %v4327 = vmax.f32 %v4163, 0.0
      %v4328 = vmax.f32 %v4166, 0.0
      %v4329 = vmax.f32 %v4171, 0.0
      %v4330 = vmax.f32 %v4174, 0.0
      %v4331 = vmax.f32 %v4179, 0.0
      %v4332 = vmax.f32 %v4182, 0.0
      %v4333 = vmax.f32 %v4187, 0.0
      %v4334 = vmax.f32 %v4190, 0.0
      %v4335 = vmax.f32 %v4195, 0.0
      %v4336 = vmax.f32 %v4198, 0.0
      %v4337 = vmax.f32 %v4203, 0.0
      %v4338 = vmax.f32 %v4206, 0.0
      %v4339 = vmax.f32 %v4211, 0.0
      %v4340 = vmax.f32 %v4214, 0.0
      %v4341 = vmax.f32 %v4219, 0.0
      %v4342 = vmax.f32 %v4222, 0.0
      %v4343 = vmax.f32 %v4227, 0.0
      %v4344 = vmax.f32 %v4230, 0.0
      %v4345 = vmax.f32 %v4235, 0.0
      %v4346 = vmax.f32 %v4238, 0.0
      %v4347 = vmax.f32 %v4243, 0.0
      %v4348 = vmax.f32 %v4246, 0.0
      %v4349 = vmax.f32 %v4251, 0.0
      %v4350 = vmax.f32 %v4254, 0.0
      %v4351 = vmax.f32 %v4259, 0.0
      %v4352 = vmax.f32 %v4262, 0.0
      %v4353 = vmax.f32 %v4267, 0.0
      %v4354 = vmax.f32 %v4270, 0.0
      %v4355 = vmax.f32 %v4275, 0.0
      %v4356 = vmax.f32 %v4278, 0.0
      %v4357 = vmax.f32 %v4283, 0.0
      %v4358 = vmax.f32 %v4286, 0.0
      %v4359 = vmax.f32 %v4291, 0.0
      %v4360 = vmax.f32 %v4294, 0.0
      %v4361 = vpack.c.bf16 %v4298, %v4297
      %v4362 = vpack.c.bf16 %v4300, %v4299
      %v4363 = vpack.c.bf16 %v4302, %v4301
      %v4364 = vpack.c.bf16 %v4304, %v4303
      %v4365 = vpack.c.bf16 %v4306, %v4305
      %v4366 = vpack.c.bf16 %v4308, %v4307
      %v4367 = vpack.c.bf16 %v4310, %v4309
      %v4368 = vpack.c.bf16 %v4312, %v4311
      %v4369 = vpack.c.bf16 %v4314, %v4313
      %v4370 = vpack.c.bf16 %v4316, %v4315
      %v4371 = vpack.c.bf16 %v4318, %v4317
      %v4372 = vpack.c.bf16 %v4320, %v4319
      %v4373 = vpack.c.bf16 %v4322, %v4321
      %v4374 = vpack.c.bf16 %v4324, %v4323
      %v4375 = vpack.c.bf16 %v4326, %v4325
      %v4376 = vpack.c.bf16 %v4328, %v4327
      %v4377 = vpack.c.bf16 %v4330, %v4329
      %v4378 = vpack.c.bf16 %v4332, %v4331
      %v4379 = vpack.c.bf16 %v4334, %v4333
      %v4380 = vpack.c.bf16 %v4336, %v4335
      %v4381 = vpack.c.bf16 %v4338, %v4337
      %v4382 = vpack.c.bf16 %v4340, %v4339
      %v4383 = vpack.c.bf16 %v4342, %v4341
      %v4384 = vpack.c.bf16 %v4344, %v4343
      %v4385 = vpack.c.bf16 %v4346, %v4345
      %v4386 = vpack.c.bf16 %v4348, %v4347
      %v4387 = vpack.c.bf16 %v4350, %v4349
      %v4388 = vpack.c.bf16 %v4352, %v4351
      %v4389 = vpack.c.bf16 %v4354, %v4353
      %v4390 = vpack.c.bf16 %v4356, %v4355
      %v4391 = vpack.c.bf16 %v4358, %v4357
      %v4392 = vpack.c.bf16 %v4360, %v4359
      %v4393 = vld [vmem:[%s9] sm:$0xf]
      %v4394 = vld [vmem:[%s9 + $0x4] sm:$0xf]
      %v4395 = vld [vmem:[%s9 + $0x8] sm:$0xf]
      %v4396 = vld [vmem:[%s9 + $0xc] sm:$0xf]
      %v4397 = vld [vmem:[%s9 + $0x10] sm:$0xf]
      %v4398 = vld [vmem:[%s9 + $0x14] sm:$0xf]
      %v4399 = vld [vmem:[%s9 + $0x18] sm:$0xf]
      %v4400 = vld [vmem:[%s9 + $0x1c] sm:$0xf]
      %v4401 = vld [vmem:[%s10] sm:$0x1]
      %v4403 = vlaneseq
      %v4404 = vshrl.u32 %v4403, 7
      %v4405 = vsub.s32 0, %v4404
      %v4406 = vrot.slane %v4401, %v4405
      %v4416 = vunpack.c.l.b16 %v4393
      %v4417 = vunpack.c.l.b16 %v4394
      %v4418 = vunpack.c.l.b16 %v4395
      %v4419 = vunpack.c.l.b16 %v4396
      %v4420 = vunpack.c.l.b16 %v4397
      %v4421 = vunpack.c.l.b16 %v4398
      %v4422 = vunpack.c.l.b16 %v4399
      %v4423 = vunpack.c.l.b16 %v4400
      %v4424 = vpack.c.b16 %v4417, %v4416
      %v4425 = vpack.c.b16 %v4419, %v4418
      %v4426 = vpack.c.b16 %v4421, %v4420
      %v4427 = vpack.c.b16 %v4423, %v4422
      %v4433 = vsel %vm3406, %v4361, 0
      %v4436 = vsel %vm3406, %v4362, 0
      %v4439 = vsel %vm3406, %v4363, 0
      %v4442 = vsel %vm3406, %v4364, 0
      %v4445 = vsel %vm3406, %v4365, 0
      %v4448 = vsel %vm3406, %v4366, 0
      %v4451 = vsel %vm3406, %v4367, 0
      %v4454 = vsel %vm3406, %v4368, 0
      %v4457 = vsel %vm3406, %v4369, 0
      %v4460 = vsel %vm3406, %v4370, 0
      %v4463 = vsel %vm3406, %v4371, 0
      %v4466 = vsel %vm3406, %v4372, 0
      %v4469 = vsel %vm3406, %v4373, 0
      %v4472 = vsel %vm3406, %v4374, 0
      %v4475 = vsel %vm3406, %v4375, 0
      %v4478 = vsel %vm3406, %v4376, 0
      %v4481 = vsel %vm3406, %v4377, 0
      %v4484 = vsel %vm3406, %v4378, 0
      %v4487 = vsel %vm3406, %v4379, 0
      %v4490 = vsel %vm3406, %v4380, 0
      %v4493 = vsel %vm3406, %v4381, 0
      %v4496 = vsel %vm3406, %v4382, 0
      %v4499 = vsel %vm3406, %v4383, 0
      %v4502 = vsel %vm3406, %v4384, 0
      %v4505 = vsel %vm3406, %v4385, 0
      %v4508 = vsel %vm3406, %v4386, 0
      %v4511 = vsel %vm3406, %v4387, 0
      %v4514 = vsel %vm3406, %v4388, 0
      %v4517 = vsel %vm3406, %v4389, 0
      %v4520 = vsel %vm3406, %v4390, 0
      %v4523 = vsel %vm3406, %v4391, 0
      %v4526 = vsel %vm3406, %v4392, 0
      %4528 = vmatprep.subr.bf16.mxu0 0
      %4529 = vmatpush1.bf16.msra.mxu0 0
      %4530 = vmatprep.subr.bf16.mxu0 0
      %4531 = vmatpush1.bf16.msra.mxu0 0
      %4532 = vmatprep.subr.bf16.mxu0 0
      %4533 = vmatpush1.bf16.msra.mxu0 0
      %4534 = vmatprep.subr.bf16.mxu0 0
      %4535 = vmatpush1.bf16.msra.mxu0 0
      %4536 = vmatprep.subr.bf16.mxu0 0
      %4537 = vmatpush1.bf16.msra.mxu0 %v4427
      %4538 = vmatprep.subr.bf16.mxu0 0
      %4539 = vmatpush1.bf16.msra.mxu0 %v4426
      %4540 = vmatprep.subr.bf16.mxu0 0
      %4541 = vmatpush1.bf16.msra.mxu0 %v4425
      %4542 = vmatprep.subr.bf16.mxu0 0
      %4543 = vmatpush1.bf16.msra.mxu0 %v4424
      %4544 = vmatprep.subr.bf16.mxu0 0
      %4545 = vmatpush2.bf16.msra.mxu0 0
      %4546 = vmatprep.subr.bf16.mxu0 0
      %4547 = vmatpush2.bf16.msra.mxu0 0
      %4548 = vmatprep.subr.bf16.mxu0 0
      %4549 = vmatpush2.bf16.msra.mxu0 0
      %4550 = vmatprep.subr.bf16.mxu0 0
      %4551 = vmatpush2.bf16.msra.mxu0 0
      %4552 = vmatprep.subr.bf16.mxu0 0
      %4553 = vmatpush2.bf16.msra.mxu0 0
      %4554 = vmatprep.subr.bf16.mxu0 0
      %4555 = vmatpush2.bf16.msra.mxu0 0
      %4556 = vmatprep.subr.bf16.mxu0 0
      %4557 = vmatpush2.bf16.msra.mxu0 0
      %4558 = vmatprep.subr.bf16.mxu0 0
      %4559 = vmatpush2.bf16.msra.mxu0 0
      %4560 = vmatprep.mubr.bf16.mxu0 0
      %4561 = vmatmul.mubr.bf16.gmra.mxu0 %v4433
      %v4562 = vpop.f32.mrf.mxu0
      %v4563 = vadd.f32 %v4406, %v4562
      %v4564 = vpop.f32.mrf.mxu0
      %v4565 = vpop.f32.mrf.mxu0
      %v4566 = vadd.f32 %v4406, %v4565
      %v4567 = vpop.f32.mrf.mxu0
      %4568 = vmatprep.mubr.bf16.mxu0 0
      %4569 = vmatmul.mubr.bf16.gmra.mxu0 %v4436
      %v4570 = vpop.f32.mrf.mxu0
      %v4571 = vadd.f32 %v4406, %v4570
      %v4572 = vpop.f32.mrf.mxu0
      %v4573 = vpop.f32.mrf.mxu0
      %v4574 = vadd.f32 %v4406, %v4573
      %v4575 = vpop.f32.mrf.mxu0
      %4576 = vmatprep.mubr.bf16.mxu0 0
      %4577 = vmatmul.mubr.bf16.gmra.mxu0 %v4439
      %v4578 = vpop.f32.mrf.mxu0
      %v4579 = vadd.f32 %v4406, %v4578
      %v4580 = vpop.f32.mrf.mxu0
      %v4581 = vpop.f32.mrf.mxu0
      %v4582 = vadd.f32 %v4406, %v4581
      %v4583 = vpop.f32.mrf.mxu0
      %4584 = vmatprep.mubr.bf16.mxu0 0
      %4585 = vmatmul.mubr.bf16.gmra.mxu0 %v4442
      %v4586 = vpop.f32.mrf.mxu0
      %v4587 = vadd.f32 %v4406, %v4586
      %v4588 = vpop.f32.mrf.mxu0
      %v4589 = vpop.f32.mrf.mxu0
      %v4590 = vadd.f32 %v4406, %v4589
      %v4591 = vpop.f32.mrf.mxu0
      %4592 = vmatprep.mubr.bf16.mxu0 0
      %4593 = vmatmul.mubr.bf16.gmra.mxu0 %v4445
      %v4594 = vpop.f32.mrf.mxu0
      %v4595 = vadd.f32 %v4406, %v4594
      %v4596 = vpop.f32.mrf.mxu0
      %v4597 = vpop.f32.mrf.mxu0
      %v4598 = vadd.f32 %v4406, %v4597
      %v4599 = vpop.f32.mrf.mxu0
      %4600 = vmatprep.mubr.bf16.mxu0 0
      %4601 = vmatmul.mubr.bf16.gmra.mxu0 %v4448
      %v4602 = vpop.f32.mrf.mxu0
      %v4603 = vadd.f32 %v4406, %v4602
      %v4604 = vpop.f32.mrf.mxu0
      %v4605 = vpop.f32.mrf.mxu0
      %v4606 = vadd.f32 %v4406, %v4605
      %v4607 = vpop.f32.mrf.mxu0
      %4608 = vmatprep.mubr.bf16.mxu0 0
      %4609 = vmatmul.mubr.bf16.gmra.mxu0 %v4451
      %v4610 = vpop.f32.mrf.mxu0
      %v4611 = vadd.f32 %v4406, %v4610
      %v4612 = vpop.f32.mrf.mxu0
      %v4613 = vpop.f32.mrf.mxu0
      %v4614 = vadd.f32 %v4406, %v4613
      %v4615 = vpop.f32.mrf.mxu0
      %4616 = vmatprep.mubr.bf16.mxu0 0
      %4617 = vmatmul.mubr.bf16.gmra.mxu0 %v4454
      %v4618 = vpop.f32.mrf.mxu0
      %v4619 = vadd.f32 %v4406, %v4618
      %v4620 = vpop.f32.mrf.mxu0
      %v4621 = vpop.f32.mrf.mxu0
      %v4622 = vadd.f32 %v4406, %v4621
      %v4623 = vpop.f32.mrf.mxu0
      %4624 = vmatprep.mubr.bf16.mxu0 0
      %4625 = vmatmul.mubr.bf16.gmra.mxu0 %v4457
      %v4626 = vpop.f32.mrf.mxu0
      %v4627 = vadd.f32 %v4406, %v4626
      %v4628 = vpop.f32.mrf.mxu0
      %v4629 = vpop.f32.mrf.mxu0
      %v4630 = vadd.f32 %v4406, %v4629
      %v4631 = vpop.f32.mrf.mxu0
      %4632 = vmatprep.mubr.bf16.mxu0 0
      %4633 = vmatmul.mubr.bf16.gmra.mxu0 %v4460
      %v4634 = vpop.f32.mrf.mxu0
      %v4635 = vadd.f32 %v4406, %v4634
      %v4636 = vpop.f32.mrf.mxu0
      %v4637 = vpop.f32.mrf.mxu0
      %v4638 = vadd.f32 %v4406, %v4637
      %v4639 = vpop.f32.mrf.mxu0
      %4640 = vmatprep.mubr.bf16.mxu0 0
      %4641 = vmatmul.mubr.bf16.gmra.mxu0 %v4463
      %v4642 = vpop.f32.mrf.mxu0
      %v4643 = vadd.f32 %v4406, %v4642
      %v4644 = vpop.f32.mrf.mxu0
      %v4645 = vpop.f32.mrf.mxu0
      %v4646 = vadd.f32 %v4406, %v4645
      %v4647 = vpop.f32.mrf.mxu0
      %4648 = vmatprep.mubr.bf16.mxu0 0
      %4649 = vmatmul.mubr.bf16.gmra.mxu0 %v4466
      %v4650 = vpop.f32.mrf.mxu0
      %v4651 = vadd.f32 %v4406, %v4650
      %v4652 = vpop.f32.mrf.mxu0
      %v4653 = vpop.f32.mrf.mxu0
      %v4654 = vadd.f32 %v4406, %v4653
      %v4655 = vpop.f32.mrf.mxu0
      %4656 = vmatprep.mubr.bf16.mxu0 0
      %4657 = vmatmul.mubr.bf16.gmra.mxu0 %v4469
      %v4658 = vpop.f32.mrf.mxu0
      %v4659 = vadd.f32 %v4406, %v4658
      %v4660 = vpop.f32.mrf.mxu0
      %v4661 = vpop.f32.mrf.mxu0
      %v4662 = vadd.f32 %v4406, %v4661
      %v4663 = vpop.f32.mrf.mxu0
      %4664 = vmatprep.mubr.bf16.mxu0 0
      %4665 = vmatmul.mubr.bf16.gmra.mxu0 %v4472
      %v4666 = vpop.f32.mrf.mxu0
      %v4667 = vadd.f32 %v4406, %v4666
      %v4668 = vpop.f32.mrf.mxu0
      %v4669 = vpop.f32.mrf.mxu0
      %v4670 = vadd.f32 %v4406, %v4669
      %v4671 = vpop.f32.mrf.mxu0
      %4672 = vmatprep.mubr.bf16.mxu0 0
      %4673 = vmatmul.mubr.bf16.gmra.mxu0 %v4475
      %v4674 = vpop.f32.mrf.mxu0
      %v4675 = vadd.f32 %v4406, %v4674
      %v4676 = vpop.f32.mrf.mxu0
      %v4677 = vpop.f32.mrf.mxu0
      %v4678 = vadd.f32 %v4406, %v4677
      %v4679 = vpop.f32.mrf.mxu0
      %4680 = vmatprep.mubr.bf16.mxu0 0
      %4681 = vmatmul.mubr.bf16.gmra.mxu0 %v4478
      %v4682 = vpop.f32.mrf.mxu0
      %v4683 = vadd.f32 %v4406, %v4682
      %v4684 = vpop.f32.mrf.mxu0
      %v4685 = vpop.f32.mrf.mxu0
      %v4686 = vadd.f32 %v4406, %v4685
      %v4687 = vpop.f32.mrf.mxu0
      %4688 = vmatprep.mubr.bf16.mxu0 0
      %4689 = vmatmul.mubr.bf16.gmra.mxu0 %v4481
      %v4690 = vpop.f32.mrf.mxu0
      %v4691 = vadd.f32 %v4406, %v4690
      %v4692 = vpop.f32.mrf.mxu0
      %v4693 = vpop.f32.mrf.mxu0
      %v4694 = vadd.f32 %v4406, %v4693
      %v4695 = vpop.f32.mrf.mxu0
      %4696 = vmatprep.mubr.bf16.mxu0 0
      %4697 = vmatmul.mubr.bf16.gmra.mxu0 %v4484
      %v4698 = vpop.f32.mrf.mxu0
      %v4699 = vadd.f32 %v4406, %v4698
      %v4700 = vpop.f32.mrf.mxu0
      %v4701 = vpop.f32.mrf.mxu0
      %v4702 = vadd.f32 %v4406, %v4701
      %v4703 = vpop.f32.mrf.mxu0
      %4704 = vmatprep.mubr.bf16.mxu0 0
      %4705 = vmatmul.mubr.bf16.gmra.mxu0 %v4487
      %v4706 = vpop.f32.mrf.mxu0
      %v4707 = vadd.f32 %v4406, %v4706
      %v4708 = vpop.f32.mrf.mxu0
      %v4709 = vpop.f32.mrf.mxu0
      %v4710 = vadd.f32 %v4406, %v4709
      %v4711 = vpop.f32.mrf.mxu0
      %4712 = vmatprep.mubr.bf16.mxu0 0
      %4713 = vmatmul.mubr.bf16.gmra.mxu0 %v4490
      %v4714 = vpop.f32.mrf.mxu0
      %v4715 = vadd.f32 %v4406, %v4714
      %v4716 = vpop.f32.mrf.mxu0
      %v4717 = vpop.f32.mrf.mxu0
      %v4718 = vadd.f32 %v4406, %v4717
      %v4719 = vpop.f32.mrf.mxu0
      %4720 = vmatprep.mubr.bf16.mxu0 0
      %4721 = vmatmul.mubr.bf16.gmra.mxu0 %v4493
      %v4722 = vpop.f32.mrf.mxu0
      %v4723 = vadd.f32 %v4406, %v4722
      %v4724 = vpop.f32.mrf.mxu0
      %v4725 = vpop.f32.mrf.mxu0
      %v4726 = vadd.f32 %v4406, %v4725
      %v4727 = vpop.f32.mrf.mxu0
      %4728 = vmatprep.mubr.bf16.mxu0 0
      %4729 = vmatmul.mubr.bf16.gmra.mxu0 %v4496
      %v4730 = vpop.f32.mrf.mxu0
      %v4731 = vadd.f32 %v4406, %v4730
      %v4732 = vpop.f32.mrf.mxu0
      %v4733 = vpop.f32.mrf.mxu0
      %v4734 = vadd.f32 %v4406, %v4733
      %v4735 = vpop.f32.mrf.mxu0
      %4736 = vmatprep.mubr.bf16.mxu0 0
      %4737 = vmatmul.mubr.bf16.gmra.mxu0 %v4499
      %v4738 = vpop.f32.mrf.mxu0
      %v4739 = vadd.f32 %v4406, %v4738
      %v4740 = vpop.f32.mrf.mxu0
      %v4741 = vpop.f32.mrf.mxu0
      %v4742 = vadd.f32 %v4406, %v4741
      %v4743 = vpop.f32.mrf.mxu0
      %4744 = vmatprep.mubr.bf16.mxu0 0
      %4745 = vmatmul.mubr.bf16.gmra.mxu0 %v4502
      %v4746 = vpop.f32.mrf.mxu0
      %v4747 = vadd.f32 %v4406, %v4746
      %v4748 = vpop.f32.mrf.mxu0
      %v4749 = vpop.f32.mrf.mxu0
      %v4750 = vadd.f32 %v4406, %v4749
      %v4751 = vpop.f32.mrf.mxu0
      %4752 = vmatprep.mubr.bf16.mxu0 0
      %4753 = vmatmul.mubr.bf16.gmra.mxu0 %v4505
      %v4754 = vpop.f32.mrf.mxu0
      %v4755 = vadd.f32 %v4406, %v4754
      %v4756 = vpop.f32.mrf.mxu0
      %v4757 = vpop.f32.mrf.mxu0
      %v4758 = vadd.f32 %v4406, %v4757
      %v4759 = vpop.f32.mrf.mxu0
      %4760 = vmatprep.mubr.bf16.mxu0 0
      %4761 = vmatmul.mubr.bf16.gmra.mxu0 %v4508
      %v4762 = vpop.f32.mrf.mxu0
      %v4763 = vadd.f32 %v4406, %v4762
      %v4764 = vpop.f32.mrf.mxu0
      %v4765 = vpop.f32.mrf.mxu0
      %v4766 = vadd.f32 %v4406, %v4765
      %v4767 = vpop.f32.mrf.mxu0
      %4768 = vmatprep.mubr.bf16.mxu0 0
      %4769 = vmatmul.mubr.bf16.gmra.mxu0 %v4511
      %v4770 = vpop.f32.mrf.mxu0
      %v4771 = vadd.f32 %v4406, %v4770
      %v4772 = vpop.f32.mrf.mxu0
      %v4773 = vpop.f32.mrf.mxu0
      %v4774 = vadd.f32 %v4406, %v4773
      %v4775 = vpop.f32.mrf.mxu0
      %4776 = vmatprep.mubr.bf16.mxu0 0
      %4777 = vmatmul.mubr.bf16.gmra.mxu0 %v4514
      %v4778 = vpop.f32.mrf.mxu0
      %v4779 = vadd.f32 %v4406, %v4778
      %v4780 = vpop.f32.mrf.mxu0
      %v4781 = vpop.f32.mrf.mxu0
      %v4782 = vadd.f32 %v4406, %v4781
      %v4783 = vpop.f32.mrf.mxu0
      %4784 = vmatprep.mubr.bf16.mxu0 0
      %4785 = vmatmul.mubr.bf16.gmra.mxu0 %v4517
      %v4786 = vpop.f32.mrf.mxu0
      %v4787 = vadd.f32 %v4406, %v4786
      %v4788 = vpop.f32.mrf.mxu0
      %v4789 = vpop.f32.mrf.mxu0
      %v4790 = vadd.f32 %v4406, %v4789
      %v4791 = vpop.f32.mrf.mxu0
      %4792 = vmatprep.mubr.bf16.mxu0 0
      %4793 = vmatmul.mubr.bf16.gmra.mxu0 %v4520
      %v4794 = vpop.f32.mrf.mxu0
      %v4795 = vadd.f32 %v4406, %v4794
      %v4796 = vpop.f32.mrf.mxu0
      %v4797 = vpop.f32.mrf.mxu0
      %v4798 = vadd.f32 %v4406, %v4797
      %v4799 = vpop.f32.mrf.mxu0
      %4800 = vmatprep.mubr.bf16.mxu0 0
      %4801 = vmatmul.mubr.bf16.gmra.mxu0 %v4523
      %v4802 = vpop.f32.mrf.mxu0
      %v4803 = vadd.f32 %v4406, %v4802
      %v4804 = vpop.f32.mrf.mxu0
      %v4805 = vpop.f32.mrf.mxu0
      %v4806 = vadd.f32 %v4406, %v4805
      %v4807 = vpop.f32.mrf.mxu0
      %4808 = vmatprep.mubr.bf16.mxu0 0
      %4809 = vmatmul.mubr.bf16.gmra.mxu0 %v4526
      %v4810 = vpop.f32.mrf.mxu0
      %v4811 = vadd.f32 %v4406, %v4810
      %v4812 = vpop.f32.mrf.mxu0
      %v4813 = vpop.f32.mrf.mxu0
      %v4814 = vadd.f32 %v4406, %v4813
      %v4815 = vpop.f32.mrf.mxu0
      %4816 = vdwg.mxu0
      %v4817 = vmax.f32 %v4563, 0.0
      %v4818 = vmax.f32 %v4566, 0.0
      %v4819 = vmax.f32 %v4571, 0.0
      %v4820 = vmax.f32 %v4574, 0.0
      %v4821 = vmax.f32 %v4579, 0.0
      %v4822 = vmax.f32 %v4582, 0.0
      %v4823 = vmax.f32 %v4587, 0.0
      %v4824 = vmax.f32 %v4590, 0.0
      %v4825 = vmax.f32 %v4595, 0.0
      %v4826 = vmax.f32 %v4598, 0.0
      %v4827 = vmax.f32 %v4603, 0.0
      %v4828 = vmax.f32 %v4606, 0.0
      %v4829 = vmax.f32 %v4611, 0.0
      %v4830 = vmax.f32 %v4614, 0.0
      %v4831 = vmax.f32 %v4619, 0.0
      %v4832 = vmax.f32 %v4622, 0.0
      %v4833 = vmax.f32 %v4627, 0.0
      %v4834 = vmax.f32 %v4630, 0.0
      %v4835 = vmax.f32 %v4635, 0.0
      %v4836 = vmax.f32 %v4638, 0.0
      %v4837 = vmax.f32 %v4643, 0.0
      %v4838 = vmax.f32 %v4646, 0.0
      %v4839 = vmax.f32 %v4651, 0.0
      %v4840 = vmax.f32 %v4654, 0.0
      %v4841 = vmax.f32 %v4659, 0.0
      %v4842 = vmax.f32 %v4662, 0.0
      %v4843 = vmax.f32 %v4667, 0.0
      %v4844 = vmax.f32 %v4670, 0.0
      %v4845 = vmax.f32 %v4675, 0.0
      %v4846 = vmax.f32 %v4678, 0.0
      %v4847 = vmax.f32 %v4683, 0.0
      %v4848 = vmax.f32 %v4686, 0.0
      %v4849 = vmax.f32 %v4691, 0.0
      %v4850 = vmax.f32 %v4694, 0.0
      %v4851 = vmax.f32 %v4699, 0.0
      %v4852 = vmax.f32 %v4702, 0.0
      %v4853 = vmax.f32 %v4707, 0.0
      %v4854 = vmax.f32 %v4710, 0.0
      %v4855 = vmax.f32 %v4715, 0.0
      %v4856 = vmax.f32 %v4718, 0.0
      %v4857 = vmax.f32 %v4723, 0.0
      %v4858 = vmax.f32 %v4726, 0.0
      %v4859 = vmax.f32 %v4731, 0.0
      %v4860 = vmax.f32 %v4734, 0.0
      %v4861 = vmax.f32 %v4739, 0.0
      %v4862 = vmax.f32 %v4742, 0.0
      %v4863 = vmax.f32 %v4747, 0.0
      %v4864 = vmax.f32 %v4750, 0.0
      %v4865 = vmax.f32 %v4755, 0.0
      %v4866 = vmax.f32 %v4758, 0.0
      %v4867 = vmax.f32 %v4763, 0.0
      %v4868 = vmax.f32 %v4766, 0.0
      %v4869 = vmax.f32 %v4771, 0.0
      %v4870 = vmax.f32 %v4774, 0.0
      %v4871 = vmax.f32 %v4779, 0.0
      %v4872 = vmax.f32 %v4782, 0.0
      %v4873 = vmax.f32 %v4787, 0.0
      %v4874 = vmax.f32 %v4790, 0.0
      %v4875 = vmax.f32 %v4795, 0.0
      %v4876 = vmax.f32 %v4798, 0.0
      %v4877 = vmax.f32 %v4803, 0.0
      %v4878 = vmax.f32 %v4806, 0.0
      %v4879 = vmax.f32 %v4811, 0.0
      %v4880 = vmax.f32 %v4814, 0.0
      %v4881 = vpack.c.bf16 %v4818, %v4817
      %v4882 = vpack.c.bf16 %v4820, %v4819
      %v4883 = vpack.c.bf16 %v4822, %v4821
      %v4884 = vpack.c.bf16 %v4824, %v4823
      %v4885 = vpack.c.bf16 %v4826, %v4825
      %v4886 = vpack.c.bf16 %v4828, %v4827
      %v4887 = vpack.c.bf16 %v4830, %v4829
      %v4888 = vpack.c.bf16 %v4832, %v4831
      %v4889 = vpack.c.bf16 %v4834, %v4833
      %v4890 = vpack.c.bf16 %v4836, %v4835
      %v4891 = vpack.c.bf16 %v4838, %v4837
      %v4892 = vpack.c.bf16 %v4840, %v4839
      %v4893 = vpack.c.bf16 %v4842, %v4841
      %v4894 = vpack.c.bf16 %v4844, %v4843
      %v4895 = vpack.c.bf16 %v4846, %v4845
      %v4896 = vpack.c.bf16 %v4848, %v4847
      %v4897 = vpack.c.bf16 %v4850, %v4849
      %v4898 = vpack.c.bf16 %v4852, %v4851
      %v4899 = vpack.c.bf16 %v4854, %v4853
      %v4900 = vpack.c.bf16 %v4856, %v4855
      %v4901 = vpack.c.bf16 %v4858, %v4857
      %v4902 = vpack.c.bf16 %v4860, %v4859
      %v4903 = vpack.c.bf16 %v4862, %v4861
      %v4904 = vpack.c.bf16 %v4864, %v4863
      %v4905 = vpack.c.bf16 %v4866, %v4865
      %v4906 = vpack.c.bf16 %v4868, %v4867
      %v4907 = vpack.c.bf16 %v4870, %v4869
      %v4908 = vpack.c.bf16 %v4872, %v4871
      %v4909 = vpack.c.bf16 %v4874, %v4873
      %v4910 = vpack.c.bf16 %v4876, %v4875
      %v4911 = vpack.c.bf16 %v4878, %v4877
      %v4912 = vpack.c.bf16 %v4880, %v4879
      %v4913 = vld [vmem:[%s11] sm:$0xff]
      %v4914 = vld [vmem:[%s11 + $0x8] sm:$0xff]
      %v4915 = vld [vmem:[%s11 + $0x10] sm:$0xff]
      %v4916 = vld [vmem:[%s11 + $0x18] sm:$0xf]
      %v4917 = vld [vmem:[%s11 + $0x1c] sm:$0xff]
      %v4918 = vld [vmem:[%s11 + $0x24] sm:$0xff]
      %v4919 = vld [vmem:[%s11 + $0x2c] sm:$0xff]
      %v4920 = vld [vmem:[%s11 + $0x34] sm:$0xf]
      %v4921 = vld [vmem:[%s11 + $0x38] sm:$0xff]
      %v4922 = vld [vmem:[%s11 + $0x40] sm:$0xff]
      %v4923 = vld [vmem:[%s11 + $0x48] sm:$0xff]
      %v4924 = vld [vmem:[%s11 + $0x50] sm:$0xf]
      %v4925 = vld [vmem:[%s11 + $0x54] sm:$0xff]
      %v4926 = vld [vmem:[%s11 + $0x5c] sm:$0xff]
      %v4927 = vld [vmem:[%s11 + $0x64] sm:$0xff]
      %v4928 = vld [vmem:[%s11 + $0x6c] sm:$0xf]
      %v4929 = vld [vmem:[%s11 + $0x70] sm:$0xff]
      %v4930 = vld [vmem:[%s11 + $0x78] sm:$0xff]
      %v4931 = vld [vmem:[%s11 + $0x80] sm:$0xff]
      %v4932 = vld [vmem:[%s11 + $0x88] sm:$0xf]
      %v4933 = vld [vmem:[%s11 + $0x8c] sm:$0xff]
      %v4934 = vld [vmem:[%s11 + $0x94] sm:$0xff]
      %v4935 = vld [vmem:[%s11 + $0x9c] sm:$0xff]
      %v4936 = vld [vmem:[%s11 + $0xa4] sm:$0xf]
      %v4937 = vld [vmem:[%s11 + $0xa8] sm:$0xff]
      %v4938 = vld [vmem:[%s11 + $0xb0] sm:$0xff]
      %v4939 = vld [vmem:[%s11 + $0xb8] sm:$0xff]
      %v4940 = vld [vmem:[%s11 + $0xc0] sm:$0xf]
      %v4941 = vld [vmem:[%s11 + $0xc4] sm:$0xff]
      %v4942 = vld [vmem:[%s11 + $0xcc] sm:$0xff]
      %v4943 = vld [vmem:[%s11 + $0xd4] sm:$0xff]
      %v4944 = vld [vmem:[%s11 + $0xdc] sm:$0xf]
      %v4945 = vld [vmem:[%s11 + $0xe0] sm:$0xff]
      %v4946 = vld [vmem:[%s11 + $0xe8] sm:$0xff]
      %v4947 = vld [vmem:[%s11 + $0xf0] sm:$0xff]
      %v4948 = vld [vmem:[%s11 + $0xf8] sm:$0xf]
      %v4949 = vld [vmem:[%s11 + $0xfc] sm:$0xff]
      %v4950 = vld [vmem:[%s11 + $0x104] sm:$0xff]
      %v4951 = vld [vmem:[%s11 + $0x10c] sm:$0xff]
      %v4952 = vld [vmem:[%s11 + $0x114] sm:$0xf]
      %v4953 = vld [vmem:[%s11 + $0x118] sm:$0xff]
      %v4954 = vld [vmem:[%s11 + $0x120] sm:$0xff]
      %v4955 = vld [vmem:[%s11 + $0x128] sm:$0xff]
      %v4956 = vld [vmem:[%s11 + $0x130] sm:$0xf]
      %v4957 = vld [vmem:[%s11 + $0x134] sm:$0xff]
      %v4958 = vld [vmem:[%s11 + $0x13c] sm:$0xff]
      %v4959 = vld [vmem:[%s11 + $0x144] sm:$0xff]
      %v4960 = vld [vmem:[%s11 + $0x14c] sm:$0xf]
      %v4961 = vld [vmem:[%s11 + $0x150] sm:$0xff]
      %v4962 = vld [vmem:[%s11 + $0x158] sm:$0xff]
      %v4963 = vld [vmem:[%s11 + $0x160] sm:$0xff]
      %v4964 = vld [vmem:[%s11 + $0x168] sm:$0xf]
      %v4965 = vld [vmem:[%s11 + $0x16c] sm:$0xff]
      %v4966 = vld [vmem:[%s11 + $0x174] sm:$0xff]
      %v4967 = vld [vmem:[%s11 + $0x17c] sm:$0xff]
      %v4968 = vld [vmem:[%s11 + $0x184] sm:$0xf]
      %v4969 = vld [vmem:[%s11 + $0x188] sm:$0xff]
      %v4970 = vld [vmem:[%s11 + $0x190] sm:$0xff]
      %v4971 = vld [vmem:[%s11 + $0x198] sm:$0xff]
      %v4972 = vld [vmem:[%s11 + $0x1a0] sm:$0xf]
      %v4973 = vld [vmem:[%s11 + $0x1a4] sm:$0xff]
      %v4974 = vld [vmem:[%s11 + $0x1ac] sm:$0xff]
      %v4975 = vld [vmem:[%s11 + $0x1b4] sm:$0xff]
      %v4976 = vld [vmem:[%s11 + $0x1bc] sm:$0xf]
      %v4977 = vld [vmem:[%s12] sm:$0x7f]
      %v4979 = vlaneseq
      %v4980 = vshrl.u32 %v4979, 7
      %v4981 = vsub.s32 0, %v4980
      %v4982 = vrot.slane %v4977, %v4981
      %v4983 = vlaneseq
      %v4984 = vshrl.u32 %v4983, 7
      %v4985 = vsub.s32 1, %v4984
      %v4986 = vrot.slane %v4977, %v4985
      %v4987 = vlaneseq
      %v4988 = vshrl.u32 %v4987, 7
      %v4989 = vsub.s32 2, %v4988
      %v4990 = vrot.slane %v4977, %v4989
      %v4991 = vlaneseq
      %v4992 = vshrl.u32 %v4991, 7
      %v4993 = vsub.s32 3, %v4992
      %v4994 = vrot.slane %v4977, %v4993
      %v4995 = vlaneseq
      %v4996 = vshrl.u32 %v4995, 7
      %v4997 = vsub.s32 4, %v4996
      %v4998 = vrot.slane %v4977, %v4997
      %v4999 = vlaneseq
      %v5000 = vshrl.u32 %v4999, 7
      %v5001 = vsub.s32 5, %v5000
      %v5002 = vrot.slane %v4977, %v5001
      %v5003 = vlaneseq
      %v5004 = vshrl.u32 %v5003, 7
      %v5005 = vsub.s32 6, %v5004
      %v5006 = vrot.slane %v4977, %v5005
      %v5078 = vunpack.c.l.b16 %v4913
      %v5079 = vunpack.c.h.b16 %v4913
      %v5080 = vunpack.c.l.b16 %v4914
      %v5081 = vunpack.c.h.b16 %v4914
      %v5082 = vunpack.c.l.b16 %v4915
      %v5083 = vunpack.c.h.b16 %v4915
      %v5084 = vunpack.c.l.b16 %v4916
      %v5085 = vunpack.c.l.b16 %v4917
      %v5086 = vunpack.c.h.b16 %v4917
      %v5087 = vunpack.c.l.b16 %v4918
      %v5088 = vunpack.c.h.b16 %v4918
      %v5089 = vunpack.c.l.b16 %v4919
      %v5090 = vunpack.c.h.b16 %v4919
      %v5091 = vunpack.c.l.b16 %v4920
      %v5092 = vunpack.c.l.b16 %v4921
      %v5093 = vunpack.c.h.b16 %v4921
      %v5094 = vunpack.c.l.b16 %v4922
      %v5095 = vunpack.c.h.b16 %v4922
      %v5096 = vunpack.c.l.b16 %v4923
      %v5097 = vunpack.c.h.b16 %v4923
      %v5098 = vunpack.c.l.b16 %v4924
      %v5099 = vunpack.c.l.b16 %v4925
      %v5100 = vunpack.c.h.b16 %v4925
      %v5101 = vunpack.c.l.b16 %v4926
      %v5102 = vunpack.c.h.b16 %v4926
      %v5103 = vunpack.c.l.b16 %v4927
      %v5104 = vunpack.c.h.b16 %v4927
      %v5105 = vunpack.c.l.b16 %v4928
      %v5106 = vunpack.c.l.b16 %v4929
      %v5107 = vunpack.c.h.b16 %v4929
      %v5108 = vunpack.c.l.b16 %v4930
      %v5109 = vunpack.c.h.b16 %v4930
      %v5110 = vunpack.c.l.b16 %v4931
      %v5111 = vunpack.c.h.b16 %v4931
      %v5112 = vunpack.c.l.b16 %v4932
      %v5113 = vunpack.c.l.b16 %v4933
      %v5114 = vunpack.c.h.b16 %v4933
      %v5115 = vunpack.c.l.b16 %v4934
      %v5116 = vunpack.c.h.b16 %v4934
      %v5117 = vunpack.c.l.b16 %v4935
      %v5118 = vunpack.c.h.b16 %v4935
      %v5119 = vunpack.c.l.b16 %v4936
      %v5120 = vunpack.c.l.b16 %v4937
      %v5121 = vunpack.c.h.b16 %v4937
      %v5122 = vunpack.c.l.b16 %v4938
      %v5123 = vunpack.c.h.b16 %v4938
      %v5124 = vunpack.c.l.b16 %v4939
      %v5125 = vunpack.c.h.b16 %v4939
      %v5126 = vunpack.c.l.b16 %v4940
      %v5127 = vunpack.c.l.b16 %v4941
      %v5128 = vunpack.c.h.b16 %v4941
      %v5129 = vunpack.c.l.b16 %v4942
      %v5130 = vunpack.c.h.b16 %v4942
      %v5131 = vunpack.c.l.b16 %v4943
      %v5132 = vunpack.c.h.b16 %v4943
      %v5133 = vunpack.c.l.b16 %v4944
      %v5134 = vunpack.c.l.b16 %v4945
      %v5135 = vunpack.c.h.b16 %v4945
      %v5136 = vunpack.c.l.b16 %v4946
      %v5137 = vunpack.c.h.b16 %v4946
      %v5138 = vunpack.c.l.b16 %v4947
      %v5139 = vunpack.c.h.b16 %v4947
      %v5140 = vunpack.c.l.b16 %v4948
      %v5141 = vunpack.c.l.b16 %v4949
      %v5142 = vunpack.c.h.b16 %v4949
      %v5143 = vunpack.c.l.b16 %v4950
      %v5144 = vunpack.c.h.b16 %v4950
      %v5145 = vunpack.c.l.b16 %v4951
      %v5146 = vunpack.c.h.b16 %v4951
      %v5147 = vunpack.c.l.b16 %v4952
      %v5148 = vunpack.c.l.b16 %v4953
      %v5149 = vunpack.c.h.b16 %v4953
      %v5150 = vunpack.c.l.b16 %v4954
      %v5151 = vunpack.c.h.b16 %v4954
      %v5152 = vunpack.c.l.b16 %v4955
      %v5153 = vunpack.c.h.b16 %v4955
      %v5154 = vunpack.c.l.b16 %v4956
      %v5155 = vunpack.c.l.b16 %v4957
      %v5156 = vunpack.c.h.b16 %v4957
      %v5157 = vunpack.c.l.b16 %v4958
      %v5158 = vunpack.c.h.b16 %v4958
      %v5159 = vunpack.c.l.b16 %v4959
      %v5160 = vunpack.c.h.b16 %v4959
      %v5161 = vunpack.c.l.b16 %v4960
      %v5162 = vunpack.c.l.b16 %v4961
      %v5163 = vunpack.c.h.b16 %v4961
      %v5164 = vunpack.c.l.b16 %v4962
      %v5165 = vunpack.c.h.b16 %v4962
      %v5166 = vunpack.c.l.b16 %v4963
      %v5167 = vunpack.c.h.b16 %v4963
      %v5168 = vunpack.c.l.b16 %v4964
      %v5169 = vunpack.c.l.b16 %v4965
      %v5170 = vunpack.c.h.b16 %v4965
      %v5171 = vunpack.c.l.b16 %v4966
      %v5172 = vunpack.c.h.b16 %v4966
      %v5173 = vunpack.c.l.b16 %v4967
      %v5174 = vunpack.c.h.b16 %v4967
      %v5175 = vunpack.c.l.b16 %v4968
      %v5176 = vunpack.c.l.b16 %v4969
      %v5177 = vunpack.c.h.b16 %v4969
      %v5178 = vunpack.c.l.b16 %v4970
      %v5179 = vunpack.c.h.b16 %v4970
      %v5180 = vunpack.c.l.b16 %v4971
      %v5181 = vunpack.c.h.b16 %v4971
      %v5182 = vunpack.c.l.b16 %v4972
      %v5183 = vunpack.c.l.b16 %v4973
      %v5184 = vunpack.c.h.b16 %v4973
      %v5185 = vunpack.c.l.b16 %v4974
      %v5186 = vunpack.c.h.b16 %v4974
      %v5187 = vunpack.c.l.b16 %v4975
      %v5188 = vunpack.c.h.b16 %v4975
      %v5189 = vunpack.c.l.b16 %v4976
      %v5190 = vpack.c.b16 %v5085, %v5078
      %v5191 = vpack.c.b16 %v5086, %v5079
      %v5192 = vpack.c.b16 %v5087, %v5080
      %v5193 = vpack.c.b16 %v5088, %v5081
      %v5194 = vpack.c.b16 %v5089, %v5082
      %v5195 = vpack.c.b16 %v5090, %v5083
      %v5196 = vpack.c.b16 %v5091, %v5084
      %v5197 = vpack.c.b16 %v5099, %v5092
      %v5198 = vpack.c.b16 %v5100, %v5093
      %v5199 = vpack.c.b16 %v5101, %v5094
      %v5200 = vpack.c.b16 %v5102, %v5095
      %v5201 = vpack.c.b16 %v5103, %v5096
      %v5202 = vpack.c.b16 %v5104, %v5097
      %v5203 = vpack.c.b16 %v5105, %v5098
      %v5204 = vpack.c.b16 %v5113, %v5106
      %v5205 = vpack.c.b16 %v5114, %v5107
      %v5206 = vpack.c.b16 %v5115, %v5108
      %v5207 = vpack.c.b16 %v5116, %v5109
      %v5208 = vpack.c.b16 %v5117, %v5110
      %v5209 = vpack.c.b16 %v5118, %v5111
      %v5210 = vpack.c.b16 %v5119, %v5112
      %v5211 = vpack.c.b16 %v5127, %v5120
      %v5212 = vpack.c.b16 %v5128, %v5121
      %v5213 = vpack.c.b16 %v5129, %v5122
      %v5214 = vpack.c.b16 %v5130, %v5123
      %v5215 = vpack.c.b16 %v5131, %v5124
      %v5216 = vpack.c.b16 %v5132, %v5125
      %v5217 = vpack.c.b16 %v5133, %v5126
      %v5218 = vpack.c.b16 %v5141, %v5134
      %v5219 = vpack.c.b16 %v5142, %v5135
      %v5220 = vpack.c.b16 %v5143, %v5136
      %v5221 = vpack.c.b16 %v5144, %v5137
      %v5222 = vpack.c.b16 %v5145, %v5138
      %v5223 = vpack.c.b16 %v5146, %v5139
      %v5224 = vpack.c.b16 %v5147, %v5140
      %v5225 = vpack.c.b16 %v5155, %v5148
      %v5226 = vpack.c.b16 %v5156, %v5149
      %v5227 = vpack.c.b16 %v5157, %v5150
      %v5228 = vpack.c.b16 %v5158, %v5151
      %v5229 = vpack.c.b16 %v5159, %v5152
      %v5230 = vpack.c.b16 %v5160, %v5153
      %v5231 = vpack.c.b16 %v5161, %v5154
      %v5232 = vpack.c.b16 %v5169, %v5162
      %v5233 = vpack.c.b16 %v5170, %v5163
      %v5234 = vpack.c.b16 %v5171, %v5164
      %v5235 = vpack.c.b16 %v5172, %v5165
      %v5236 = vpack.c.b16 %v5173, %v5166
      %v5237 = vpack.c.b16 %v5174, %v5167
      %v5238 = vpack.c.b16 %v5175, %v5168
      %v5239 = vpack.c.b16 %v5183, %v5176
      %v5240 = vpack.c.b16 %v5184, %v5177
      %v5241 = vpack.c.b16 %v5185, %v5178
      %v5242 = vpack.c.b16 %v5186, %v5179
      %v5243 = vpack.c.b16 %v5187, %v5180
      %v5244 = vpack.c.b16 %v5188, %v5181
      %v5245 = vpack.c.b16 %v5189, %v5182
      %5302 = vmatprep.subr.bf16.mxu0 %v5240
      %5303 = vmatpush1.bf16.msra.mxu0 %v5239
      %5304 = vmatprep.subr.bf16.mxu0 %v5233
      %5305 = vmatpush1.bf16.msra.mxu0 %v5232
      %5306 = vmatprep.subr.bf16.mxu0 %v5226
      %5307 = vmatpush1.bf16.msra.mxu0 %v5225
      %5308 = vmatprep.subr.bf16.mxu0 %v5219
      %5309 = vmatpush1.bf16.msra.mxu0 %v5218
      %5310 = vmatprep.subr.bf16.mxu0 %v5212
      %5311 = vmatpush1.bf16.msra.mxu0 %v5211
      %5312 = vmatprep.subr.bf16.mxu0 %v5205
      %5313 = vmatpush1.bf16.msra.mxu0 %v5204
      %5314 = vmatprep.subr.bf16.mxu0 %v5198
      %5315 = vmatpush1.bf16.msra.mxu0 %v5197
      %5316 = vmatprep.subr.bf16.mxu0 %v5191
      %5317 = vmatpush1.bf16.msra.mxu0 %v5190
      %5318 = vmatprep.subr.bf16.mxu0 0
      %5319 = vmatpush2.bf16.msra.mxu0 0
      %5320 = vmatprep.subr.bf16.mxu0 0
      %5321 = vmatpush2.bf16.msra.mxu0 0
      %5322 = vmatprep.subr.bf16.mxu0 0
      %5323 = vmatpush2.bf16.msra.mxu0 0
      %5324 = vmatprep.subr.bf16.mxu0 0
      %5325 = vmatpush2.bf16.msra.mxu0 0
      %5326 = vmatprep.subr.bf16.mxu0 0
      %5327 = vmatpush2.bf16.msra.mxu0 0
      %5328 = vmatprep.subr.bf16.mxu0 0
      %5329 = vmatpush2.bf16.msra.mxu0 0
      %5330 = vmatprep.subr.bf16.mxu0 0
      %5331 = vmatpush2.bf16.msra.mxu0 0
      %5332 = vmatprep.subr.bf16.mxu0 0
      %5333 = vmatpush2.bf16.msra.mxu0 0
      %5334 = vmatprep.mubr.bf16.mxu0 0
      %5335 = vmatmul.mubr.bf16.gmra.mxu0 %v4881
      %v5336 = vpop.f32.mrf.mxu0
      %v5337 = vadd.f32 %v4982, %v5336
      %v5338 = vpop.f32.mrf.mxu0
      %v5339 = vadd.f32 %v4986, %v5338
      %v5340 = vpop.f32.mrf.mxu0
      %v5341 = vadd.f32 %v4982, %v5340
      %v5342 = vpop.f32.mrf.mxu0
      %v5343 = vadd.f32 %v4986, %v5342
      %5344 = vmatprep.mubr.bf16.mxu0 0
      %5345 = vmatmul.mubr.bf16.gmra.mxu0 %v4882
      %v5346 = vpop.f32.mrf.mxu0
      %v5347 = vadd.f32 %v4982, %v5346
      %v5348 = vpop.f32.mrf.mxu0
      %v5349 = vadd.f32 %v4986, %v5348
      %v5350 = vpop.f32.mrf.mxu0
      %v5351 = vadd.f32 %v4982, %v5350
      %v5352 = vpop.f32.mrf.mxu0
      %v5353 = vadd.f32 %v4986, %v5352
      %5354 = vmatprep.mubr.bf16.mxu0 0
      %5355 = vmatmul.mubr.bf16.gmra.mxu0 %v4883
      %v5356 = vpop.f32.mrf.mxu0
      %v5357 = vadd.f32 %v4982, %v5356
      %v5358 = vpop.f32.mrf.mxu0
      %v5359 = vadd.f32 %v4986, %v5358
      %v5360 = vpop.f32.mrf.mxu0
      %v5361 = vadd.f32 %v4982, %v5360
      %v5362 = vpop.f32.mrf.mxu0
      %v5363 = vadd.f32 %v4986, %v5362
      %5364 = vmatprep.mubr.bf16.mxu0 0
      %5365 = vmatmul.mubr.bf16.gmra.mxu0 %v4884
      %v5366 = vpop.f32.mrf.mxu0
      %v5367 = vadd.f32 %v4982, %v5366
      %v5368 = vpop.f32.mrf.mxu0
      %v5369 = vadd.f32 %v4986, %v5368
      %v5370 = vpop.f32.mrf.mxu0
      %v5371 = vadd.f32 %v4982, %v5370
      %v5372 = vpop.f32.mrf.mxu0
      %v5373 = vadd.f32 %v4986, %v5372
      %5374 = vmatprep.mubr.bf16.mxu0 0
      %5375 = vmatmul.mubr.bf16.gmra.mxu0 %v4885
      %v5376 = vpop.f32.mrf.mxu0
      %v5377 = vadd.f32 %v4982, %v5376
      %v5378 = vpop.f32.mrf.mxu0
      %v5379 = vadd.f32 %v4986, %v5378
      %v5380 = vpop.f32.mrf.mxu0
      %v5381 = vadd.f32 %v4982, %v5380
      %v5382 = vpop.f32.mrf.mxu0
      %v5383 = vadd.f32 %v4986, %v5382
      %5384 = vmatprep.mubr.bf16.mxu0 0
      %5385 = vmatmul.mubr.bf16.gmra.mxu0 %v4886
      %v5386 = vpop.f32.mrf.mxu0
      %v5387 = vadd.f32 %v4982, %v5386
      %v5388 = vpop.f32.mrf.mxu0
      %v5389 = vadd.f32 %v4986, %v5388
      %v5390 = vpop.f32.mrf.mxu0
      %v5391 = vadd.f32 %v4982, %v5390
      %v5392 = vpop.f32.mrf.mxu0
      %v5393 = vadd.f32 %v4986, %v5392
      %5394 = vmatprep.mubr.bf16.mxu0 0
      %5395 = vmatmul.mubr.bf16.gmra.mxu0 %v4887
      %v5396 = vpop.f32.mrf.mxu0
      %v5397 = vadd.f32 %v4982, %v5396
      %v5398 = vpop.f32.mrf.mxu0
      %v5399 = vadd.f32 %v4986, %v5398
      %v5400 = vpop.f32.mrf.mxu0
      %v5401 = vadd.f32 %v4982, %v5400
      %v5402 = vpop.f32.mrf.mxu0
      %v5403 = vadd.f32 %v4986, %v5402
      %5404 = vmatprep.mubr.bf16.mxu0 0
      %5405 = vmatmul.mubr.bf16.gmra.mxu0 %v4888
      %v5406 = vpop.f32.mrf.mxu0
      %v5407 = vadd.f32 %v4982, %v5406
      %v5408 = vpop.f32.mrf.mxu0
      %v5409 = vadd.f32 %v4986, %v5408
      %v5410 = vpop.f32.mrf.mxu0
      %v5411 = vadd.f32 %v4982, %v5410
      %v5412 = vpop.f32.mrf.mxu0
      %v5413 = vadd.f32 %v4986, %v5412
      %5414 = vmatprep.mubr.bf16.mxu0 0
      %5415 = vmatmul.mubr.bf16.gmra.mxu0 %v4889
      %v5416 = vpop.f32.mrf.mxu0
      %v5417 = vadd.f32 %v4982, %v5416
      %v5418 = vpop.f32.mrf.mxu0
      %v5419 = vadd.f32 %v4986, %v5418
      %v5420 = vpop.f32.mrf.mxu0
      %v5421 = vadd.f32 %v4982, %v5420
      %v5422 = vpop.f32.mrf.mxu0
      %v5423 = vadd.f32 %v4986, %v5422
      %5424 = vmatprep.mubr.bf16.mxu0 0
      %5425 = vmatmul.mubr.bf16.gmra.mxu0 %v4890
      %v5426 = vpop.f32.mrf.mxu0
      %v5427 = vadd.f32 %v4982, %v5426
      %v5428 = vpop.f32.mrf.mxu0
      %v5429 = vadd.f32 %v4986, %v5428
      %v5430 = vpop.f32.mrf.mxu0
      %v5431 = vadd.f32 %v4982, %v5430
      %v5432 = vpop.f32.mrf.mxu0
      %v5433 = vadd.f32 %v4986, %v5432
      %5434 = vmatprep.mubr.bf16.mxu0 0
      %5435 = vmatmul.mubr.bf16.gmra.mxu0 %v4891
      %v5436 = vpop.f32.mrf.mxu0
      %v5437 = vadd.f32 %v4982, %v5436
      %v5438 = vpop.f32.mrf.mxu0
      %v5439 = vadd.f32 %v4986, %v5438
      %v5440 = vpop.f32.mrf.mxu0
      %v5441 = vadd.f32 %v4982, %v5440
      %v5442 = vpop.f32.mrf.mxu0
      %v5443 = vadd.f32 %v4986, %v5442
      %5444 = vmatprep.mubr.bf16.mxu0 0
      %5445 = vmatmul.mubr.bf16.gmra.mxu0 %v4892
      %v5446 = vpop.f32.mrf.mxu0
      %v5447 = vadd.f32 %v4982, %v5446
      %v5448 = vpop.f32.mrf.mxu0
      %v5449 = vadd.f32 %v4986, %v5448
      %v5450 = vpop.f32.mrf.mxu0
      %v5451 = vadd.f32 %v4982, %v5450
      %v5452 = vpop.f32.mrf.mxu0
      %v5453 = vadd.f32 %v4986, %v5452
      %5454 = vmatprep.mubr.bf16.mxu0 0
      %5455 = vmatmul.mubr.bf16.gmra.mxu0 %v4893
      %v5456 = vpop.f32.mrf.mxu0
      %v5457 = vadd.f32 %v4982, %v5456
      %v5458 = vpop.f32.mrf.mxu0
      %v5459 = vadd.f32 %v4986, %v5458
      %v5460 = vpop.f32.mrf.mxu0
      %v5461 = vadd.f32 %v4982, %v5460
      %v5462 = vpop.f32.mrf.mxu0
      %v5463 = vadd.f32 %v4986, %v5462
      %5464 = vmatprep.mubr.bf16.mxu0 0
      %5465 = vmatmul.mubr.bf16.gmra.mxu0 %v4894
      %v5466 = vpop.f32.mrf.mxu0
      %v5467 = vadd.f32 %v4982, %v5466
      %v5468 = vpop.f32.mrf.mxu0
      %v5469 = vadd.f32 %v4986, %v5468
      %v5470 = vpop.f32.mrf.mxu0
      %v5471 = vadd.f32 %v4982, %v5470
      %v5472 = vpop.f32.mrf.mxu0
      %v5473 = vadd.f32 %v4986, %v5472
      %5474 = vmatprep.mubr.bf16.mxu0 0
      %5475 = vmatmul.mubr.bf16.gmra.mxu0 %v4895
      %v5476 = vpop.f32.mrf.mxu0
      %v5477 = vadd.f32 %v4982, %v5476
      %v5478 = vpop.f32.mrf.mxu0
      %v5479 = vadd.f32 %v4986, %v5478
      %v5480 = vpop.f32.mrf.mxu0
      %v5481 = vadd.f32 %v4982, %v5480
      %v5482 = vpop.f32.mrf.mxu0
      %v5483 = vadd.f32 %v4986, %v5482
      %5484 = vmatprep.mubr.bf16.mxu0 0
      %5485 = vmatmul.mubr.bf16.gmra.mxu0 %v4896
      %v5486 = vpop.f32.mrf.mxu0
      %v5487 = vadd.f32 %v4982, %v5486
      %v5488 = vpop.f32.mrf.mxu0
      %v5489 = vadd.f32 %v4986, %v5488
      %v5490 = vpop.f32.mrf.mxu0
      %v5491 = vadd.f32 %v4982, %v5490
      %v5492 = vpop.f32.mrf.mxu0
      %v5493 = vadd.f32 %v4986, %v5492
      %5494 = vmatprep.mubr.bf16.mxu0 0
      %5495 = vmatmul.mubr.bf16.gmra.mxu0 %v4897
      %v5496 = vpop.f32.mrf.mxu0
      %v5497 = vadd.f32 %v4982, %v5496
      %v5498 = vpop.f32.mrf.mxu0
      %v5499 = vadd.f32 %v4986, %v5498
      %v5500 = vpop.f32.mrf.mxu0
      %v5501 = vadd.f32 %v4982, %v5500
      %v5502 = vpop.f32.mrf.mxu0
      %v5503 = vadd.f32 %v4986, %v5502
      %5504 = vmatprep.mubr.bf16.mxu0 0
      %5505 = vmatmul.mubr.bf16.gmra.mxu0 %v4898
      %v5506 = vpop.f32.mrf.mxu0
      %v5507 = vadd.f32 %v4982, %v5506
      %v5508 = vpop.f32.mrf.mxu0
      %v5509 = vadd.f32 %v4986, %v5508
      %v5510 = vpop.f32.mrf.mxu0
      %v5511 = vadd.f32 %v4982, %v5510
      %v5512 = vpop.f32.mrf.mxu0
      %v5513 = vadd.f32 %v4986, %v5512
      %5514 = vmatprep.mubr.bf16.mxu0 0
      %5515 = vmatmul.mubr.bf16.gmra.mxu0 %v4899
      %v5516 = vpop.f32.mrf.mxu0
      %v5517 = vadd.f32 %v4982, %v5516
      %v5518 = vpop.f32.mrf.mxu0
      %v5519 = vadd.f32 %v4986, %v5518
      %v5520 = vpop.f32.mrf.mxu0
      %v5521 = vadd.f32 %v4982, %v5520
      %v5522 = vpop.f32.mrf.mxu0
      %v5523 = vadd.f32 %v4986, %v5522
      %5524 = vmatprep.mubr.bf16.mxu0 0
      %5525 = vmatmul.mubr.bf16.gmra.mxu0 %v4900
      %v5526 = vpop.f32.mrf.mxu0
      %v5527 = vadd.f32 %v4982, %v5526
      %v5528 = vpop.f32.mrf.mxu0
      %v5529 = vadd.f32 %v4986, %v5528
      %v5530 = vpop.f32.mrf.mxu0
      %v5531 = vadd.f32 %v4982, %v5530
      %v5532 = vpop.f32.mrf.mxu0
      %v5533 = vadd.f32 %v4986, %v5532
      %5534 = vmatprep.mubr.bf16.mxu0 0
      %5535 = vmatmul.mubr.bf16.gmra.mxu0 %v4901
      %v5536 = vpop.f32.mrf.mxu0
      %v5537 = vadd.f32 %v4982, %v5536
      %v5538 = vpop.f32.mrf.mxu0
      %v5539 = vadd.f32 %v4986, %v5538
      %v5540 = vpop.f32.mrf.mxu0
      %v5541 = vadd.f32 %v4982, %v5540
      %v5542 = vpop.f32.mrf.mxu0
      %v5543 = vadd.f32 %v4986, %v5542
      %5544 = vmatprep.mubr.bf16.mxu0 0
      %5545 = vmatmul.mubr.bf16.gmra.mxu0 %v4902
      %v5546 = vpop.f32.mrf.mxu0
      %v5547 = vadd.f32 %v4982, %v5546
      %v5548 = vpop.f32.mrf.mxu0
      %v5549 = vadd.f32 %v4986, %v5548
      %v5550 = vpop.f32.mrf.mxu0
      %v5551 = vadd.f32 %v4982, %v5550
      %v5552 = vpop.f32.mrf.mxu0
      %v5553 = vadd.f32 %v4986, %v5552
      %5554 = vmatprep.mubr.bf16.mxu0 0
      %5555 = vmatmul.mubr.bf16.gmra.mxu0 %v4903
      %v5556 = vpop.f32.mrf.mxu0
      %v5557 = vadd.f32 %v4982, %v5556
      %v5558 = vpop.f32.mrf.mxu0
      %v5559 = vadd.f32 %v4986, %v5558
      %v5560 = vpop.f32.mrf.mxu0
      %v5561 = vadd.f32 %v4982, %v5560
      %v5562 = vpop.f32.mrf.mxu0
      %v5563 = vadd.f32 %v4986, %v5562
      %5564 = vmatprep.mubr.bf16.mxu0 0
      %5565 = vmatmul.mubr.bf16.gmra.mxu0 %v4904
      %v5566 = vpop.f32.mrf.mxu0
      %v5567 = vadd.f32 %v4982, %v5566
      %v5568 = vpop.f32.mrf.mxu0
      %v5569 = vadd.f32 %v4986, %v5568
      %v5570 = vpop.f32.mrf.mxu0
      %v5571 = vadd.f32 %v4982, %v5570
      %v5572 = vpop.f32.mrf.mxu0
      %v5573 = vadd.f32 %v4986, %v5572
      %5574 = vmatprep.mubr.bf16.mxu0 0
      %5575 = vmatmul.mubr.bf16.gmra.mxu0 %v4905
      %v5576 = vpop.f32.mrf.mxu0
      %v5577 = vadd.f32 %v4982, %v5576
      %v5578 = vpop.f32.mrf.mxu0
      %v5579 = vadd.f32 %v4986, %v5578
      %v5580 = vpop.f32.mrf.mxu0
      %v5581 = vadd.f32 %v4982, %v5580
      %v5582 = vpop.f32.mrf.mxu0
      %v5583 = vadd.f32 %v4986, %v5582
      %5584 = vmatprep.mubr.bf16.mxu0 0
      %5585 = vmatmul.mubr.bf16.gmra.mxu0 %v4906
      %v5586 = vpop.f32.mrf.mxu0
      %v5587 = vadd.f32 %v4982, %v5586
      %v5588 = vpop.f32.mrf.mxu0
      %v5589 = vadd.f32 %v4986, %v5588
      %v5590 = vpop.f32.mrf.mxu0
      %v5591 = vadd.f32 %v4982, %v5590
      %v5592 = vpop.f32.mrf.mxu0
      %v5593 = vadd.f32 %v4986, %v5592
      %5594 = vmatprep.mubr.bf16.mxu0 0
      %5595 = vmatmul.mubr.bf16.gmra.mxu0 %v4907
      %v5596 = vpop.f32.mrf.mxu0
      %v5597 = vadd.f32 %v4982, %v5596
      %v5598 = vpop.f32.mrf.mxu0
      %v5599 = vadd.f32 %v4986, %v5598
      %v5600 = vpop.f32.mrf.mxu0
      %v5601 = vadd.f32 %v4982, %v5600
      %v5602 = vpop.f32.mrf.mxu0
      %v5603 = vadd.f32 %v4986, %v5602
      %5604 = vmatprep.mubr.bf16.mxu0 0
      %5605 = vmatmul.mubr.bf16.gmra.mxu0 %v4908
      %v5606 = vpop.f32.mrf.mxu0
      %v5607 = vadd.f32 %v4982, %v5606
      %v5608 = vpop.f32.mrf.mxu0
      %v5609 = vadd.f32 %v4986, %v5608
      %v5610 = vpop.f32.mrf.mxu0
      %v5611 = vadd.f32 %v4982, %v5610
      %v5612 = vpop.f32.mrf.mxu0
      %v5613 = vadd.f32 %v4986, %v5612
      %5614 = vmatprep.mubr.bf16.mxu0 0
      %5615 = vmatmul.mubr.bf16.gmra.mxu0 %v4909
      %v5616 = vpop.f32.mrf.mxu0
      %v5617 = vadd.f32 %v4982, %v5616
      %v5618 = vpop.f32.mrf.mxu0
      %v5619 = vadd.f32 %v4986, %v5618
      %v5620 = vpop.f32.mrf.mxu0
      %v5621 = vadd.f32 %v4982, %v5620
      %v5622 = vpop.f32.mrf.mxu0
      %v5623 = vadd.f32 %v4986, %v5622
      %5624 = vmatprep.mubr.bf16.mxu0 0
      %5625 = vmatmul.mubr.bf16.gmra.mxu0 %v4910
      %v5626 = vpop.f32.mrf.mxu0
      %v5627 = vadd.f32 %v4982, %v5626
      %v5628 = vpop.f32.mrf.mxu0
      %v5629 = vadd.f32 %v4986, %v5628
      %v5630 = vpop.f32.mrf.mxu0
      %v5631 = vadd.f32 %v4982, %v5630
      %v5632 = vpop.f32.mrf.mxu0
      %v5633 = vadd.f32 %v4986, %v5632
      %5634 = vmatprep.mubr.bf16.mxu0 0
      %5635 = vmatmul.mubr.bf16.gmra.mxu0 %v4911
      %v5636 = vpop.f32.mrf.mxu0
      %v5637 = vadd.f32 %v4982, %v5636
      %v5638 = vpop.f32.mrf.mxu0
      %v5639 = vadd.f32 %v4986, %v5638
      %v5640 = vpop.f32.mrf.mxu0
      %v5641 = vadd.f32 %v4982, %v5640
      %v5642 = vpop.f32.mrf.mxu0
      %v5643 = vadd.f32 %v4986, %v5642
      %5644 = vmatprep.mubr.bf16.mxu0 0
      %5645 = vmatmul.mubr.bf16.gmra.mxu0 %v4912
      %v5646 = vpop.f32.mrf.mxu0
      %v5647 = vadd.f32 %v4982, %v5646
      %v5648 = vpop.f32.mrf.mxu0
      %v5649 = vadd.f32 %v4986, %v5648
      %v5650 = vpop.f32.mrf.mxu0
      %v5651 = vadd.f32 %v4982, %v5650
      %v5652 = vpop.f32.mrf.mxu0
      %v5653 = vadd.f32 %v4986, %v5652
      %5654 = vdwg.mxu0
      %5655 = vmatprep.subr.bf16.mxu0 %v5242
      %5656 = vmatpush1.bf16.msra.mxu0 %v5241
      %5657 = vmatprep.subr.bf16.mxu0 %v5235
      %5658 = vmatpush1.bf16.msra.mxu0 %v5234
      %5659 = vmatprep.subr.bf16.mxu0 %v5228
      %5660 = vmatpush1.bf16.msra.mxu0 %v5227
      %5661 = vmatprep.subr.bf16.mxu0 %v5221
      %5662 = vmatpush1.bf16.msra.mxu0 %v5220
      %5663 = vmatprep.subr.bf16.mxu0 %v5214
      %5664 = vmatpush1.bf16.msra.mxu0 %v5213
      %5665 = vmatprep.subr.bf16.mxu0 %v5207
      %5666 = vmatpush1.bf16.msra.mxu0 %v5206
      %5667 = vmatprep.subr.bf16.mxu0 %v5200
      %5668 = vmatpush1.bf16.msra.mxu0 %v5199
      %5669 = vmatprep.subr.bf16.mxu0 %v5193
      %5670 = vmatpush1.bf16.msra.mxu0 %v5192
      %5671 = vmatprep.subr.bf16.mxu0 0
      %5672 = vmatpush2.bf16.msra.mxu0 0
      %5673 = vmatprep.subr.bf16.mxu0 0
      %5674 = vmatpush2.bf16.msra.mxu0 0
      %5675 = vmatprep.subr.bf16.mxu0 0
      %5676 = vmatpush2.bf16.msra.mxu0 0
      %5677 = vmatprep.subr.bf16.mxu0 0
      %5678 = vmatpush2.bf16.msra.mxu0 0
      %5679 = vmatprep.subr.bf16.mxu0 0
      %5680 = vmatpush2.bf16.msra.mxu0 0
      %5681 = vmatprep.subr.bf16.mxu0 0
      %5682 = vmatpush2.bf16.msra.mxu0 0
      %5683 = vmatprep.subr.bf16.mxu0 0
      %5684 = vmatpush2.bf16.msra.mxu0 0
      %5685 = vmatprep.subr.bf16.mxu0 0
      %5686 = vmatpush2.bf16.msra.mxu0 0
      %5687 = vmatprep.mubr.bf16.mxu0 0
      %5688 = vmatmul.mubr.bf16.gmra.mxu0 %v4881
      %v5689 = vpop.f32.mrf.mxu0
      %v5690 = vadd.f32 %v4990, %v5689
      %v5691 = vpop.f32.mrf.mxu0
      %v5692 = vadd.f32 %v4994, %v5691
      %v5693 = vpop.f32.mrf.mxu0
      %v5694 = vadd.f32 %v4990, %v5693
      %v5695 = vpop.f32.mrf.mxu0
      %v5696 = vadd.f32 %v4994, %v5695
      %5697 = vmatprep.mubr.bf16.mxu0 0
      %5698 = vmatmul.mubr.bf16.gmra.mxu0 %v4882
      %v5699 = vpop.f32.mrf.mxu0
      %v5700 = vadd.f32 %v4990, %v5699
      %v5701 = vpop.f32.mrf.mxu0
      %v5702 = vadd.f32 %v4994, %v5701
      %v5703 = vpop.f32.mrf.mxu0
      %v5704 = vadd.f32 %v4990, %v5703
      %v5705 = vpop.f32.mrf.mxu0
      %v5706 = vadd.f32 %v4994, %v5705
      %5707 = vmatprep.mubr.bf16.mxu0 0
      %5708 = vmatmul.mubr.bf16.gmra.mxu0 %v4883
      %v5709 = vpop.f32.mrf.mxu0
      %v5710 = vadd.f32 %v4990, %v5709
      %v5711 = vpop.f32.mrf.mxu0
      %v5712 = vadd.f32 %v4994, %v5711
      %v5713 = vpop.f32.mrf.mxu0
      %v5714 = vadd.f32 %v4990, %v5713
      %v5715 = vpop.f32.mrf.mxu0
      %v5716 = vadd.f32 %v4994, %v5715
      %5717 = vmatprep.mubr.bf16.mxu0 0
      %5718 = vmatmul.mubr.bf16.gmra.mxu0 %v4884
      %v5719 = vpop.f32.mrf.mxu0
      %v5720 = vadd.f32 %v4990, %v5719
      %v5721 = vpop.f32.mrf.mxu0
      %v5722 = vadd.f32 %v4994, %v5721
      %v5723 = vpop.f32.mrf.mxu0
      %v5724 = vadd.f32 %v4990, %v5723
      %v5725 = vpop.f32.mrf.mxu0
      %v5726 = vadd.f32 %v4994, %v5725
      %5727 = vmatprep.mubr.bf16.mxu0 0
      %5728 = vmatmul.mubr.bf16.gmra.mxu0 %v4885
      %v5729 = vpop.f32.mrf.mxu0
      %v5730 = vadd.f32 %v4990, %v5729
      %v5731 = vpop.f32.mrf.mxu0
      %v5732 = vadd.f32 %v4994, %v5731
      %v5733 = vpop.f32.mrf.mxu0
      %v5734 = vadd.f32 %v4990, %v5733
      %v5735 = vpop.f32.mrf.mxu0
      %v5736 = vadd.f32 %v4994, %v5735
      %5737 = vmatprep.mubr.bf16.mxu0 0
      %5738 = vmatmul.mubr.bf16.gmra.mxu0 %v4886
      %v5739 = vpop.f32.mrf.mxu0
      %v5740 = vadd.f32 %v4990, %v5739
      %v5741 = vpop.f32.mrf.mxu0
      %v5742 = vadd.f32 %v4994, %v5741
      %v5743 = vpop.f32.mrf.mxu0
      %v5744 = vadd.f32 %v4990, %v5743
      %v5745 = vpop.f32.mrf.mxu0
      %v5746 = vadd.f32 %v4994, %v5745
      %5747 = vmatprep.mubr.bf16.mxu0 0
      %5748 = vmatmul.mubr.bf16.gmra.mxu0 %v4887
      %v5749 = vpop.f32.mrf.mxu0
      %v5750 = vadd.f32 %v4990, %v5749
      %v5751 = vpop.f32.mrf.mxu0
      %v5752 = vadd.f32 %v4994, %v5751
      %v5753 = vpop.f32.mrf.mxu0
      %v5754 = vadd.f32 %v4990, %v5753
      %v5755 = vpop.f32.mrf.mxu0
      %v5756 = vadd.f32 %v4994, %v5755
      %5757 = vmatprep.mubr.bf16.mxu0 0
      %5758 = vmatmul.mubr.bf16.gmra.mxu0 %v4888
      %v5759 = vpop.f32.mrf.mxu0
      %v5760 = vadd.f32 %v4990, %v5759
      %v5761 = vpop.f32.mrf.mxu0
      %v5762 = vadd.f32 %v4994, %v5761
      %v5763 = vpop.f32.mrf.mxu0
      %v5764 = vadd.f32 %v4990, %v5763
      %v5765 = vpop.f32.mrf.mxu0
      %v5766 = vadd.f32 %v4994, %v5765
      %5767 = vmatprep.mubr.bf16.mxu0 0
      %5768 = vmatmul.mubr.bf16.gmra.mxu0 %v4889
      %v5769 = vpop.f32.mrf.mxu0
      %v5770 = vadd.f32 %v4990, %v5769
      %v5771 = vpop.f32.mrf.mxu0
      %v5772 = vadd.f32 %v4994, %v5771
      %v5773 = vpop.f32.mrf.mxu0
      %v5774 = vadd.f32 %v4990, %v5773
      %v5775 = vpop.f32.mrf.mxu0
      %v5776 = vadd.f32 %v4994, %v5775
      %5777 = vmatprep.mubr.bf16.mxu0 0
      %5778 = vmatmul.mubr.bf16.gmra.mxu0 %v4890
      %v5779 = vpop.f32.mrf.mxu0
      %v5780 = vadd.f32 %v4990, %v5779
      %v5781 = vpop.f32.mrf.mxu0
      %v5782 = vadd.f32 %v4994, %v5781
      %v5783 = vpop.f32.mrf.mxu0
      %v5784 = vadd.f32 %v4990, %v5783
      %v5785 = vpop.f32.mrf.mxu0
      %v5786 = vadd.f32 %v4994, %v5785
      %5787 = vmatprep.mubr.bf16.mxu0 0
      %5788 = vmatmul.mubr.bf16.gmra.mxu0 %v4891
      %v5789 = vpop.f32.mrf.mxu0
      %v5790 = vadd.f32 %v4990, %v5789
      %v5791 = vpop.f32.mrf.mxu0
      %v5792 = vadd.f32 %v4994, %v5791
      %v5793 = vpop.f32.mrf.mxu0
      %v5794 = vadd.f32 %v4990, %v5793
      %v5795 = vpop.f32.mrf.mxu0
      %v5796 = vadd.f32 %v4994, %v5795
      %5797 = vmatprep.mubr.bf16.mxu0 0
      %5798 = vmatmul.mubr.bf16.gmra.mxu0 %v4892
      %v5799 = vpop.f32.mrf.mxu0
      %v5800 = vadd.f32 %v4990, %v5799
      %v5801 = vpop.f32.mrf.mxu0
      %v5802 = vadd.f32 %v4994, %v5801
      %v5803 = vpop.f32.mrf.mxu0
      %v5804 = vadd.f32 %v4990, %v5803
      %v5805 = vpop.f32.mrf.mxu0
      %v5806 = vadd.f32 %v4994, %v5805
      %5807 = vmatprep.mubr.bf16.mxu0 0
      %5808 = vmatmul.mubr.bf16.gmra.mxu0 %v4893
      %v5809 = vpop.f32.mrf.mxu0
      %v5810 = vadd.f32 %v4990, %v5809
      %v5811 = vpop.f32.mrf.mxu0
      %v5812 = vadd.f32 %v4994, %v5811
      %v5813 = vpop.f32.mrf.mxu0
      %v5814 = vadd.f32 %v4990, %v5813
      %v5815 = vpop.f32.mrf.mxu0
      %v5816 = vadd.f32 %v4994, %v5815
      %5817 = vmatprep.mubr.bf16.mxu0 0
      %5818 = vmatmul.mubr.bf16.gmra.mxu0 %v4894
      %v5819 = vpop.f32.mrf.mxu0
      %v5820 = vadd.f32 %v4990, %v5819
      %v5821 = vpop.f32.mrf.mxu0
      %v5822 = vadd.f32 %v4994, %v5821
      %v5823 = vpop.f32.mrf.mxu0
      %v5824 = vadd.f32 %v4990, %v5823
      %v5825 = vpop.f32.mrf.mxu0
      %v5826 = vadd.f32 %v4994, %v5825
      %5827 = vmatprep.mubr.bf16.mxu0 0
      %5828 = vmatmul.mubr.bf16.gmra.mxu0 %v4895
      %v5829 = vpop.f32.mrf.mxu0
      %v5830 = vadd.f32 %v4990, %v5829
      %v5831 = vpop.f32.mrf.mxu0
      %v5832 = vadd.f32 %v4994, %v5831
      %v5833 = vpop.f32.mrf.mxu0
      %v5834 = vadd.f32 %v4990, %v5833
      %v5835 = vpop.f32.mrf.mxu0
      %v5836 = vadd.f32 %v4994, %v5835
      %5837 = vmatprep.mubr.bf16.mxu0 0
      %5838 = vmatmul.mubr.bf16.gmra.mxu0 %v4896
      %v5839 = vpop.f32.mrf.mxu0
      %v5840 = vadd.f32 %v4990, %v5839
      %v5841 = vpop.f32.mrf.mxu0
      %v5842 = vadd.f32 %v4994, %v5841
      %v5843 = vpop.f32.mrf.mxu0
      %v5844 = vadd.f32 %v4990, %v5843
      %v5845 = vpop.f32.mrf.mxu0
      %v5846 = vadd.f32 %v4994, %v5845
      %5847 = vmatprep.mubr.bf16.mxu0 0
      %5848 = vmatmul.mubr.bf16.gmra.mxu0 %v4897
      %v5849 = vpop.f32.mrf.mxu0
      %v5850 = vadd.f32 %v4990, %v5849
      %v5851 = vpop.f32.mrf.mxu0
      %v5852 = vadd.f32 %v4994, %v5851
      %v5853 = vpop.f32.mrf.mxu0
      %v5854 = vadd.f32 %v4990, %v5853
      %v5855 = vpop.f32.mrf.mxu0
      %v5856 = vadd.f32 %v4994, %v5855
      %5857 = vmatprep.mubr.bf16.mxu0 0
      %5858 = vmatmul.mubr.bf16.gmra.mxu0 %v4898
      %v5859 = vpop.f32.mrf.mxu0
      %v5860 = vadd.f32 %v4990, %v5859
      %v5861 = vpop.f32.mrf.mxu0
      %v5862 = vadd.f32 %v4994, %v5861
      %v5863 = vpop.f32.mrf.mxu0
      %v5864 = vadd.f32 %v4990, %v5863
      %v5865 = vpop.f32.mrf.mxu0
      %v5866 = vadd.f32 %v4994, %v5865
      %5867 = vmatprep.mubr.bf16.mxu0 0
      %5868 = vmatmul.mubr.bf16.gmra.mxu0 %v4899
      %v5869 = vpop.f32.mrf.mxu0
      %v5870 = vadd.f32 %v4990, %v5869
      %v5871 = vpop.f32.mrf.mxu0
      %v5872 = vadd.f32 %v4994, %v5871
      %v5873 = vpop.f32.mrf.mxu0
      %v5874 = vadd.f32 %v4990, %v5873
      %v5875 = vpop.f32.mrf.mxu0
      %v5876 = vadd.f32 %v4994, %v5875
      %5877 = vmatprep.mubr.bf16.mxu0 0
      %5878 = vmatmul.mubr.bf16.gmra.mxu0 %v4900
      %v5879 = vpop.f32.mrf.mxu0
      %v5880 = vadd.f32 %v4990, %v5879
      %v5881 = vpop.f32.mrf.mxu0
      %v5882 = vadd.f32 %v4994, %v5881
      %v5883 = vpop.f32.mrf.mxu0
      %v5884 = vadd.f32 %v4990, %v5883
      %v5885 = vpop.f32.mrf.mxu0
      %v5886 = vadd.f32 %v4994, %v5885
      %5887 = vmatprep.mubr.bf16.mxu0 0
      %5888 = vmatmul.mubr.bf16.gmra.mxu0 %v4901
      %v5889 = vpop.f32.mrf.mxu0
      %v5890 = vadd.f32 %v4990, %v5889
      %v5891 = vpop.f32.mrf.mxu0
      %v5892 = vadd.f32 %v4994, %v5891
      %v5893 = vpop.f32.mrf.mxu0
      %v5894 = vadd.f32 %v4990, %v5893
      %v5895 = vpop.f32.mrf.mxu0
      %v5896 = vadd.f32 %v4994, %v5895
      %5897 = vmatprep.mubr.bf16.mxu0 0
      %5898 = vmatmul.mubr.bf16.gmra.mxu0 %v4902
      %v5899 = vpop.f32.mrf.mxu0
      %v5900 = vadd.f32 %v4990, %v5899
      %v5901 = vpop.f32.mrf.mxu0
      %v5902 = vadd.f32 %v4994, %v5901
      %v5903 = vpop.f32.mrf.mxu0
      %v5904 = vadd.f32 %v4990, %v5903
      %v5905 = vpop.f32.mrf.mxu0
      %v5906 = vadd.f32 %v4994, %v5905
      %5907 = vmatprep.mubr.bf16.mxu0 0
      %5908 = vmatmul.mubr.bf16.gmra.mxu0 %v4903
      %v5909 = vpop.f32.mrf.mxu0
      %v5910 = vadd.f32 %v4990, %v5909
      %v5911 = vpop.f32.mrf.mxu0
      %v5912 = vadd.f32 %v4994, %v5911
      %v5913 = vpop.f32.mrf.mxu0
      %v5914 = vadd.f32 %v4990, %v5913
      %v5915 = vpop.f32.mrf.mxu0
      %v5916 = vadd.f32 %v4994, %v5915
      %5917 = vmatprep.mubr.bf16.mxu0 0
      %5918 = vmatmul.mubr.bf16.gmra.mxu0 %v4904
      %v5919 = vpop.f32.mrf.mxu0
      %v5920 = vadd.f32 %v4990, %v5919
      %v5921 = vpop.f32.mrf.mxu0
      %v5922 = vadd.f32 %v4994, %v5921
      %v5923 = vpop.f32.mrf.mxu0
      %v5924 = vadd.f32 %v4990, %v5923
      %v5925 = vpop.f32.mrf.mxu0
      %v5926 = vadd.f32 %v4994, %v5925
      %5927 = vmatprep.mubr.bf16.mxu0 0
      %5928 = vmatmul.mubr.bf16.gmra.mxu0 %v4905
      %v5929 = vpop.f32.mrf.mxu0
      %v5930 = vadd.f32 %v4990, %v5929
      %v5931 = vpop.f32.mrf.mxu0
      %v5932 = vadd.f32 %v4994, %v5931
      %v5933 = vpop.f32.mrf.mxu0
      %v5934 = vadd.f32 %v4990, %v5933
      %v5935 = vpop.f32.mrf.mxu0
      %v5936 = vadd.f32 %v4994, %v5935
      %5937 = vmatprep.mubr.bf16.mxu0 0
      %5938 = vmatmul.mubr.bf16.gmra.mxu0 %v4906
      %v5939 = vpop.f32.mrf.mxu0
      %v5940 = vadd.f32 %v4990, %v5939
      %v5941 = vpop.f32.mrf.mxu0
      %v5942 = vadd.f32 %v4994, %v5941
      %v5943 = vpop.f32.mrf.mxu0
      %v5944 = vadd.f32 %v4990, %v5943
      %v5945 = vpop.f32.mrf.mxu0
      %v5946 = vadd.f32 %v4994, %v5945
      %5947 = vmatprep.mubr.bf16.mxu0 0
      %5948 = vmatmul.mubr.bf16.gmra.mxu0 %v4907
      %v5949 = vpop.f32.mrf.mxu0
      %v5950 = vadd.f32 %v4990, %v5949
      %v5951 = vpop.f32.mrf.mxu0
      %v5952 = vadd.f32 %v4994, %v5951
      %v5953 = vpop.f32.mrf.mxu0
      %v5954 = vadd.f32 %v4990, %v5953
      %v5955 = vpop.f32.mrf.mxu0
      %v5956 = vadd.f32 %v4994, %v5955
      %5957 = vmatprep.mubr.bf16.mxu0 0
      %5958 = vmatmul.mubr.bf16.gmra.mxu0 %v4908
      %v5959 = vpop.f32.mrf.mxu0
      %v5960 = vadd.f32 %v4990, %v5959
      %v5961 = vpop.f32.mrf.mxu0
      %v5962 = vadd.f32 %v4994, %v5961
      %v5963 = vpop.f32.mrf.mxu0
      %v5964 = vadd.f32 %v4990, %v5963
      %v5965 = vpop.f32.mrf.mxu0
      %v5966 = vadd.f32 %v4994, %v5965
      %5967 = vmatprep.mubr.bf16.mxu0 0
      %5968 = vmatmul.mubr.bf16.gmra.mxu0 %v4909
      %v5969 = vpop.f32.mrf.mxu0
      %v5970 = vadd.f32 %v4990, %v5969
      %v5971 = vpop.f32.mrf.mxu0
      %v5972 = vadd.f32 %v4994, %v5971
      %v5973 = vpop.f32.mrf.mxu0
      %v5974 = vadd.f32 %v4990, %v5973
      %v5975 = vpop.f32.mrf.mxu0
      %v5976 = vadd.f32 %v4994, %v5975
      %5977 = vmatprep.mubr.bf16.mxu0 0
      %5978 = vmatmul.mubr.bf16.gmra.mxu0 %v4910
      %v5979 = vpop.f32.mrf.mxu0
      %v5980 = vadd.f32 %v4990, %v5979
      %v5981 = vpop.f32.mrf.mxu0
      %v5982 = vadd.f32 %v4994, %v5981
      %v5983 = vpop.f32.mrf.mxu0
      %v5984 = vadd.f32 %v4990, %v5983
      %v5985 = vpop.f32.mrf.mxu0
      %v5986 = vadd.f32 %v4994, %v5985
      %5987 = vmatprep.mubr.bf16.mxu0 0
      %5988 = vmatmul.mubr.bf16.gmra.mxu0 %v4911
      %v5989 = vpop.f32.mrf.mxu0
      %v5990 = vadd.f32 %v4990, %v5989
      %v5991 = vpop.f32.mrf.mxu0
      %v5992 = vadd.f32 %v4994, %v5991
      %v5993 = vpop.f32.mrf.mxu0
      %v5994 = vadd.f32 %v4990, %v5993
      %v5995 = vpop.f32.mrf.mxu0
      %v5996 = vadd.f32 %v4994, %v5995
      %5997 = vmatprep.mubr.bf16.mxu0 0
      %5998 = vmatmul.mubr.bf16.gmra.mxu0 %v4912
      %v5999 = vpop.f32.mrf.mxu0
      %v6000 = vadd.f32 %v4990, %v5999
      %v6001 = vpop.f32.mrf.mxu0
      %v6002 = vadd.f32 %v4994, %v6001
      %v6003 = vpop.f32.mrf.mxu0
      %v6004 = vadd.f32 %v4990, %v6003
      %v6005 = vpop.f32.mrf.mxu0
      %v6006 = vadd.f32 %v4994, %v6005
      %6007 = vdwg.mxu0
      %6008 = vmatprep.subr.bf16.mxu0 %v5244
      %6009 = vmatpush1.bf16.msra.mxu0 %v5243
      %6010 = vmatprep.subr.bf16.mxu0 %v5237
      %6011 = vmatpush1.bf16.msra.mxu0 %v5236
      %6012 = vmatprep.subr.bf16.mxu0 %v5230
      %6013 = vmatpush1.bf16.msra.mxu0 %v5229
      %6014 = vmatprep.subr.bf16.mxu0 %v5223
      %6015 = vmatpush1.bf16.msra.mxu0 %v5222
      %6016 = vmatprep.subr.bf16.mxu0 %v5216
      %6017 = vmatpush1.bf16.msra.mxu0 %v5215
      %6018 = vmatprep.subr.bf16.mxu0 %v5209
      %6019 = vmatpush1.bf16.msra.mxu0 %v5208
      %6020 = vmatprep.subr.bf16.mxu0 %v5202
      %6021 = vmatpush1.bf16.msra.mxu0 %v5201
      %6022 = vmatprep.subr.bf16.mxu0 %v5195
      %6023 = vmatpush1.bf16.msra.mxu0 %v5194
      %6024 = vmatprep.subr.bf16.mxu0 0
      %6025 = vmatpush2.bf16.msra.mxu0 0
      %6026 = vmatprep.subr.bf16.mxu0 0
      %6027 = vmatpush2.bf16.msra.mxu0 0
      %6028 = vmatprep.subr.bf16.mxu0 0
      %6029 = vmatpush2.bf16.msra.mxu0 0
      %6030 = vmatprep.subr.bf16.mxu0 0
      %6031 = vmatpush2.bf16.msra.mxu0 0
      %6032 = vmatprep.subr.bf16.mxu0 0
      %6033 = vmatpush2.bf16.msra.mxu0 0
      %6034 = vmatprep.subr.bf16.mxu0 0
      %6035 = vmatpush2.bf16.msra.mxu0 0
      %6036 = vmatprep.subr.bf16.mxu0 0
      %6037 = vmatpush2.bf16.msra.mxu0 0
      %6038 = vmatprep.subr.bf16.mxu0 0
      %6039 = vmatpush2.bf16.msra.mxu0 0
      %6040 = vmatprep.mubr.bf16.mxu0 0
      %6041 = vmatmul.mubr.bf16.gmra.mxu0 %v4881
      %v6042 = vpop.f32.mrf.mxu0
      %v6043 = vadd.f32 %v4998, %v6042
      %v6044 = vpop.f32.mrf.mxu0
      %v6045 = vadd.f32 %v5002, %v6044
      %v6046 = vpop.f32.mrf.mxu0
      %v6047 = vadd.f32 %v4998, %v6046
      %v6048 = vpop.f32.mrf.mxu0
      %v6049 = vadd.f32 %v5002, %v6048
      %6050 = vmatprep.mubr.bf16.mxu0 0
      %6051 = vmatmul.mubr.bf16.gmra.mxu0 %v4882
      %v6052 = vpop.f32.mrf.mxu0
      %v6053 = vadd.f32 %v4998, %v6052
      %v6054 = vpop.f32.mrf.mxu0
      %v6055 = vadd.f32 %v5002, %v6054
      %v6056 = vpop.f32.mrf.mxu0
      %v6057 = vadd.f32 %v4998, %v6056
      %v6058 = vpop.f32.mrf.mxu0
      %v6059 = vadd.f32 %v5002, %v6058
      %6060 = vmatprep.mubr.bf16.mxu0 0
      %6061 = vmatmul.mubr.bf16.gmra.mxu0 %v4883
      %v6062 = vpop.f32.mrf.mxu0
      %v6063 = vadd.f32 %v4998, %v6062
      %v6064 = vpop.f32.mrf.mxu0
      %v6065 = vadd.f32 %v5002, %v6064
      %v6066 = vpop.f32.mrf.mxu0
      %v6067 = vadd.f32 %v4998, %v6066
      %v6068 = vpop.f32.mrf.mxu0
      %v6069 = vadd.f32 %v5002, %v6068
      %6070 = vmatprep.mubr.bf16.mxu0 0
      %6071 = vmatmul.mubr.bf16.gmra.mxu0 %v4884
      %v6072 = vpop.f32.mrf.mxu0
      %v6073 = vadd.f32 %v4998, %v6072
      %v6074 = vpop.f32.mrf.mxu0
      %v6075 = vadd.f32 %v5002, %v6074
      %v6076 = vpop.f32.mrf.mxu0
      %v6077 = vadd.f32 %v4998, %v6076
      %v6078 = vpop.f32.mrf.mxu0
      %v6079 = vadd.f32 %v5002, %v6078
      %6080 = vmatprep.mubr.bf16.mxu0 0
      %6081 = vmatmul.mubr.bf16.gmra.mxu0 %v4885
      %v6082 = vpop.f32.mrf.mxu0
      %v6083 = vadd.f32 %v4998, %v6082
      %v6084 = vpop.f32.mrf.mxu0
      %v6085 = vadd.f32 %v5002, %v6084
      %v6086 = vpop.f32.mrf.mxu0
      %v6087 = vadd.f32 %v4998, %v6086
      %v6088 = vpop.f32.mrf.mxu0
      %v6089 = vadd.f32 %v5002, %v6088
      %6090 = vmatprep.mubr.bf16.mxu0 0
      %6091 = vmatmul.mubr.bf16.gmra.mxu0 %v4886
      %v6092 = vpop.f32.mrf.mxu0
      %v6093 = vadd.f32 %v4998, %v6092
      %v6094 = vpop.f32.mrf.mxu0
      %v6095 = vadd.f32 %v5002, %v6094
      %v6096 = vpop.f32.mrf.mxu0
      %v6097 = vadd.f32 %v4998, %v6096
      %v6098 = vpop.f32.mrf.mxu0
      %v6099 = vadd.f32 %v5002, %v6098
      %6100 = vmatprep.mubr.bf16.mxu0 0
      %6101 = vmatmul.mubr.bf16.gmra.mxu0 %v4887
      %v6102 = vpop.f32.mrf.mxu0
      %v6103 = vadd.f32 %v4998, %v6102
      %v6104 = vpop.f32.mrf.mxu0
      %v6105 = vadd.f32 %v5002, %v6104
      %v6106 = vpop.f32.mrf.mxu0
      %v6107 = vadd.f32 %v4998, %v6106
      %v6108 = vpop.f32.mrf.mxu0
      %v6109 = vadd.f32 %v5002, %v6108
      %6110 = vmatprep.mubr.bf16.mxu0 0
      %6111 = vmatmul.mubr.bf16.gmra.mxu0 %v4888
      %v6112 = vpop.f32.mrf.mxu0
      %v6113 = vadd.f32 %v4998, %v6112
      %v6114 = vpop.f32.mrf.mxu0
      %v6115 = vadd.f32 %v5002, %v6114
      %v6116 = vpop.f32.mrf.mxu0
      %v6117 = vadd.f32 %v4998, %v6116
      %v6118 = vpop.f32.mrf.mxu0
      %v6119 = vadd.f32 %v5002, %v6118
      %6120 = vmatprep.mubr.bf16.mxu0 0
      %6121 = vmatmul.mubr.bf16.gmra.mxu0 %v4889
      %v6122 = vpop.f32.mrf.mxu0
      %v6123 = vadd.f32 %v4998, %v6122
      %v6124 = vpop.f32.mrf.mxu0
      %v6125 = vadd.f32 %v5002, %v6124
      %v6126 = vpop.f32.mrf.mxu0
      %v6127 = vadd.f32 %v4998, %v6126
      %v6128 = vpop.f32.mrf.mxu0
      %v6129 = vadd.f32 %v5002, %v6128
      %6130 = vmatprep.mubr.bf16.mxu0 0
      %6131 = vmatmul.mubr.bf16.gmra.mxu0 %v4890
      %v6132 = vpop.f32.mrf.mxu0
      %v6133 = vadd.f32 %v4998, %v6132
      %v6134 = vpop.f32.mrf.mxu0
      %v6135 = vadd.f32 %v5002, %v6134
      %v6136 = vpop.f32.mrf.mxu0
      %v6137 = vadd.f32 %v4998, %v6136
      %v6138 = vpop.f32.mrf.mxu0
      %v6139 = vadd.f32 %v5002, %v6138
      %6140 = vmatprep.mubr.bf16.mxu0 0
      %6141 = vmatmul.mubr.bf16.gmra.mxu0 %v4891
      %v6142 = vpop.f32.mrf.mxu0
      %v6143 = vadd.f32 %v4998, %v6142
      %v6144 = vpop.f32.mrf.mxu0
      %v6145 = vadd.f32 %v5002, %v6144
      %v6146 = vpop.f32.mrf.mxu0
      %v6147 = vadd.f32 %v4998, %v6146
      %v6148 = vpop.f32.mrf.mxu0
      %v6149 = vadd.f32 %v5002, %v6148
      %6150 = vmatprep.mubr.bf16.mxu0 0
      %6151 = vmatmul.mubr.bf16.gmra.mxu0 %v4892
      %v6152 = vpop.f32.mrf.mxu0
      %v6153 = vadd.f32 %v4998, %v6152
      %v6154 = vpop.f32.mrf.mxu0
      %v6155 = vadd.f32 %v5002, %v6154
      %v6156 = vpop.f32.mrf.mxu0
      %v6157 = vadd.f32 %v4998, %v6156
      %v6158 = vpop.f32.mrf.mxu0
      %v6159 = vadd.f32 %v5002, %v6158
      %6160 = vmatprep.mubr.bf16.mxu0 0
      %6161 = vmatmul.mubr.bf16.gmra.mxu0 %v4893
      %v6162 = vpop.f32.mrf.mxu0
      %v6163 = vadd.f32 %v4998, %v6162
      %v6164 = vpop.f32.mrf.mxu0
      %v6165 = vadd.f32 %v5002, %v6164
      %v6166 = vpop.f32.mrf.mxu0
      %v6167 = vadd.f32 %v4998, %v6166
      %v6168 = vpop.f32.mrf.mxu0
      %v6169 = vadd.f32 %v5002, %v6168
      %6170 = vmatprep.mubr.bf16.mxu0 0
      %6171 = vmatmul.mubr.bf16.gmra.mxu0 %v4894
      %v6172 = vpop.f32.mrf.mxu0
      %v6173 = vadd.f32 %v4998, %v6172
      %v6174 = vpop.f32.mrf.mxu0
      %v6175 = vadd.f32 %v5002, %v6174
      %v6176 = vpop.f32.mrf.mxu0
      %v6177 = vadd.f32 %v4998, %v6176
      %v6178 = vpop.f32.mrf.mxu0
      %v6179 = vadd.f32 %v5002, %v6178
      %6180 = vmatprep.mubr.bf16.mxu0 0
      %6181 = vmatmul.mubr.bf16.gmra.mxu0 %v4895
      %v6182 = vpop.f32.mrf.mxu0
      %v6183 = vadd.f32 %v4998, %v6182
      %v6184 = vpop.f32.mrf.mxu0
      %v6185 = vadd.f32 %v5002, %v6184
      %v6186 = vpop.f32.mrf.mxu0
      %v6187 = vadd.f32 %v4998, %v6186
      %v6188 = vpop.f32.mrf.mxu0
      %v6189 = vadd.f32 %v5002, %v6188
      %6190 = vmatprep.mubr.bf16.mxu0 0
      %6191 = vmatmul.mubr.bf16.gmra.mxu0 %v4896
      %v6192 = vpop.f32.mrf.mxu0
      %v6193 = vadd.f32 %v4998, %v6192
      %v6194 = vpop.f32.mrf.mxu0
      %v6195 = vadd.f32 %v5002, %v6194
      %v6196 = vpop.f32.mrf.mxu0
      %v6197 = vadd.f32 %v4998, %v6196
      %v6198 = vpop.f32.mrf.mxu0
      %v6199 = vadd.f32 %v5002, %v6198
      %6200 = vmatprep.mubr.bf16.mxu0 0
      %6201 = vmatmul.mubr.bf16.gmra.mxu0 %v4897
      %v6202 = vpop.f32.mrf.mxu0
      %v6203 = vadd.f32 %v4998, %v6202
      %v6204 = vpop.f32.mrf.mxu0
      %v6205 = vadd.f32 %v5002, %v6204
      %v6206 = vpop.f32.mrf.mxu0
      %v6207 = vadd.f32 %v4998, %v6206
      %v6208 = vpop.f32.mrf.mxu0
      %v6209 = vadd.f32 %v5002, %v6208
      %6210 = vmatprep.mubr.bf16.mxu0 0
      %6211 = vmatmul.mubr.bf16.gmra.mxu0 %v4898
      %v6212 = vpop.f32.mrf.mxu0
      %v6213 = vadd.f32 %v4998, %v6212
      %v6214 = vpop.f32.mrf.mxu0
      %v6215 = vadd.f32 %v5002, %v6214
      %v6216 = vpop.f32.mrf.mxu0
      %v6217 = vadd.f32 %v4998, %v6216
      %v6218 = vpop.f32.mrf.mxu0
      %v6219 = vadd.f32 %v5002, %v6218
      %6220 = vmatprep.mubr.bf16.mxu0 0
      %6221 = vmatmul.mubr.bf16.gmra.mxu0 %v4899
      %v6222 = vpop.f32.mrf.mxu0
      %v6223 = vadd.f32 %v4998, %v6222
      %v6224 = vpop.f32.mrf.mxu0
      %v6225 = vadd.f32 %v5002, %v6224
      %v6226 = vpop.f32.mrf.mxu0
      %v6227 = vadd.f32 %v4998, %v6226
      %v6228 = vpop.f32.mrf.mxu0
      %v6229 = vadd.f32 %v5002, %v6228
      %6230 = vmatprep.mubr.bf16.mxu0 0
      %6231 = vmatmul.mubr.bf16.gmra.mxu0 %v4900
      %v6232 = vpop.f32.mrf.mxu0
      %v6233 = vadd.f32 %v4998, %v6232
      %v6234 = vpop.f32.mrf.mxu0
      %v6235 = vadd.f32 %v5002, %v6234
      %v6236 = vpop.f32.mrf.mxu0
      %v6237 = vadd.f32 %v4998, %v6236
      %v6238 = vpop.f32.mrf.mxu0
      %v6239 = vadd.f32 %v5002, %v6238
      %6240 = vmatprep.mubr.bf16.mxu0 0
      %6241 = vmatmul.mubr.bf16.gmra.mxu0 %v4901
      %v6242 = vpop.f32.mrf.mxu0
      %v6243 = vadd.f32 %v4998, %v6242
      %v6244 = vpop.f32.mrf.mxu0
      %v6245 = vadd.f32 %v5002, %v6244
      %v6246 = vpop.f32.mrf.mxu0
      %v6247 = vadd.f32 %v4998, %v6246
      %v6248 = vpop.f32.mrf.mxu0
      %v6249 = vadd.f32 %v5002, %v6248
      %6250 = vmatprep.mubr.bf16.mxu0 0
      %6251 = vmatmul.mubr.bf16.gmra.mxu0 %v4902
      %v6252 = vpop.f32.mrf.mxu0
      %v6253 = vadd.f32 %v4998, %v6252
      %v6254 = vpop.f32.mrf.mxu0
      %v6255 = vadd.f32 %v5002, %v6254
      %v6256 = vpop.f32.mrf.mxu0
      %v6257 = vadd.f32 %v4998, %v6256
      %v6258 = vpop.f32.mrf.mxu0
      %v6259 = vadd.f32 %v5002, %v6258
      %6260 = vmatprep.mubr.bf16.mxu0 0
      %6261 = vmatmul.mubr.bf16.gmra.mxu0 %v4903
      %v6262 = vpop.f32.mrf.mxu0
      %v6263 = vadd.f32 %v4998, %v6262
      %v6264 = vpop.f32.mrf.mxu0
      %v6265 = vadd.f32 %v5002, %v6264
      %v6266 = vpop.f32.mrf.mxu0
      %v6267 = vadd.f32 %v4998, %v6266
      %v6268 = vpop.f32.mrf.mxu0
      %v6269 = vadd.f32 %v5002, %v6268
      %6270 = vmatprep.mubr.bf16.mxu0 0
      %6271 = vmatmul.mubr.bf16.gmra.mxu0 %v4904
      %v6272 = vpop.f32.mrf.mxu0
      %v6273 = vadd.f32 %v4998, %v6272
      %v6274 = vpop.f32.mrf.mxu0
      %v6275 = vadd.f32 %v5002, %v6274
      %v6276 = vpop.f32.mrf.mxu0
      %v6277 = vadd.f32 %v4998, %v6276
      %v6278 = vpop.f32.mrf.mxu0
      %v6279 = vadd.f32 %v5002, %v6278
      %6280 = vmatprep.mubr.bf16.mxu0 0
      %6281 = vmatmul.mubr.bf16.gmra.mxu0 %v4905
      %v6282 = vpop.f32.mrf.mxu0
      %v6283 = vadd.f32 %v4998, %v6282
      %v6284 = vpop.f32.mrf.mxu0
      %v6285 = vadd.f32 %v5002, %v6284
      %v6286 = vpop.f32.mrf.mxu0
      %v6287 = vadd.f32 %v4998, %v6286
      %v6288 = vpop.f32.mrf.mxu0
      %v6289 = vadd.f32 %v5002, %v6288
      %6290 = vmatprep.mubr.bf16.mxu0 0
      %6291 = vmatmul.mubr.bf16.gmra.mxu0 %v4906
      %v6292 = vpop.f32.mrf.mxu0
      %v6293 = vadd.f32 %v4998, %v6292
      %v6294 = vpop.f32.mrf.mxu0
      %v6295 = vadd.f32 %v5002, %v6294
      %v6296 = vpop.f32.mrf.mxu0
      %v6297 = vadd.f32 %v4998, %v6296
      %v6298 = vpop.f32.mrf.mxu0
      %v6299 = vadd.f32 %v5002, %v6298
      %6300 = vmatprep.mubr.bf16.mxu0 0
      %6301 = vmatmul.mubr.bf16.gmra.mxu0 %v4907
      %v6302 = vpop.f32.mrf.mxu0
      %v6303 = vadd.f32 %v4998, %v6302
      %v6304 = vpop.f32.mrf.mxu0
      %v6305 = vadd.f32 %v5002, %v6304
      %v6306 = vpop.f32.mrf.mxu0
      %v6307 = vadd.f32 %v4998, %v6306
      %v6308 = vpop.f32.mrf.mxu0
      %v6309 = vadd.f32 %v5002, %v6308
      %6310 = vmatprep.mubr.bf16.mxu0 0
      %6311 = vmatmul.mubr.bf16.gmra.mxu0 %v4908
      %v6312 = vpop.f32.mrf.mxu0
      %v6313 = vadd.f32 %v4998, %v6312
      %v6314 = vpop.f32.mrf.mxu0
      %v6315 = vadd.f32 %v5002, %v6314
      %v6316 = vpop.f32.mrf.mxu0
      %v6317 = vadd.f32 %v4998, %v6316
      %v6318 = vpop.f32.mrf.mxu0
      %v6319 = vadd.f32 %v5002, %v6318
      %6320 = vmatprep.mubr.bf16.mxu0 0
      %6321 = vmatmul.mubr.bf16.gmra.mxu0 %v4909
      %v6322 = vpop.f32.mrf.mxu0
      %v6323 = vadd.f32 %v4998, %v6322
      %v6324 = vpop.f32.mrf.mxu0
      %v6325 = vadd.f32 %v5002, %v6324
      %v6326 = vpop.f32.mrf.mxu0
      %v6327 = vadd.f32 %v4998, %v6326
      %v6328 = vpop.f32.mrf.mxu0
      %v6329 = vadd.f32 %v5002, %v6328
      %6330 = vmatprep.mubr.bf16.mxu0 0
      %6331 = vmatmul.mubr.bf16.gmra.mxu0 %v4910
      %v6332 = vpop.f32.mrf.mxu0
      %v6333 = vadd.f32 %v4998, %v6332
      %v6334 = vpop.f32.mrf.mxu0
      %v6335 = vadd.f32 %v5002, %v6334
      %v6336 = vpop.f32.mrf.mxu0
      %v6337 = vadd.f32 %v4998, %v6336
      %v6338 = vpop.f32.mrf.mxu0
      %v6339 = vadd.f32 %v5002, %v6338
      %6340 = vmatprep.mubr.bf16.mxu0 0
      %6341 = vmatmul.mubr.bf16.gmra.mxu0 %v4911
      %v6342 = vpop.f32.mrf.mxu0
      %v6343 = vadd.f32 %v4998, %v6342
      %v6344 = vpop.f32.mrf.mxu0
      %v6345 = vadd.f32 %v5002, %v6344
      %v6346 = vpop.f32.mrf.mxu0
      %v6347 = vadd.f32 %v4998, %v6346
      %v6348 = vpop.f32.mrf.mxu0
      %v6349 = vadd.f32 %v5002, %v6348
      %6350 = vmatprep.mubr.bf16.mxu0 0
      %6351 = vmatmul.mubr.bf16.gmra.mxu0 %v4912
      %v6352 = vpop.f32.mrf.mxu0
      %v6353 = vadd.f32 %v4998, %v6352
      %v6354 = vpop.f32.mrf.mxu0
      %v6355 = vadd.f32 %v5002, %v6354
      %v6356 = vpop.f32.mrf.mxu0
      %v6357 = vadd.f32 %v4998, %v6356
      %v6358 = vpop.f32.mrf.mxu0
      %v6359 = vadd.f32 %v5002, %v6358
      %6360 = vdwg.mxu0
      %6361 = vmatprep.subr.bf16.mxu0 0
      %6362 = vmatpush1.bf16.msra.mxu0 %v5245
      %6363 = vmatprep.subr.bf16.mxu0 0
      %6364 = vmatpush1.bf16.msra.mxu0 %v5238
      %6365 = vmatprep.subr.bf16.mxu0 0
      %6366 = vmatpush1.bf16.msra.mxu0 %v5231
      %6367 = vmatprep.subr.bf16.mxu0 0
      %6368 = vmatpush1.bf16.msra.mxu0 %v5224
      %6369 = vmatprep.subr.bf16.mxu0 0
      %6370 = vmatpush1.bf16.msra.mxu0 %v5217
      %6371 = vmatprep.subr.bf16.mxu0 0
      %6372 = vmatpush1.bf16.msra.mxu0 %v5210
      %6373 = vmatprep.subr.bf16.mxu0 0
      %6374 = vmatpush1.bf16.msra.mxu0 %v5203
      %6375 = vmatprep.subr.bf16.mxu0 0
      %6376 = vmatpush1.bf16.msra.mxu0 %v5196
      %6377 = vmatprep.subr.bf16.mxu0 0
      %6378 = vmatpush2.bf16.msra.mxu0 0
      %6379 = vmatprep.subr.bf16.mxu0 0
      %6380 = vmatpush2.bf16.msra.mxu0 0
      %6381 = vmatprep.subr.bf16.mxu0 0
      %6382 = vmatpush2.bf16.msra.mxu0 0
      %6383 = vmatprep.subr.bf16.mxu0 0
      %6384 = vmatpush2.bf16.msra.mxu0 0
      %6385 = vmatprep.subr.bf16.mxu0 0
      %6386 = vmatpush2.bf16.msra.mxu0 0
      %6387 = vmatprep.subr.bf16.mxu0 0
      %6388 = vmatpush2.bf16.msra.mxu0 0
      %6389 = vmatprep.subr.bf16.mxu0 0
      %6390 = vmatpush2.bf16.msra.mxu0 0
      %6391 = vmatprep.subr.bf16.mxu0 0
      %6392 = vmatpush2.bf16.msra.mxu0 0
      %6393 = vmatprep.mubr.bf16.mxu0 0
      %6394 = vmatmul.mubr.bf16.gmra.mxu0 %v4881
      %v6395 = vpop.f32.mrf.mxu0
      %v6396 = vadd.f32 %v5006, %v6395
      %v6397 = vpop.f32.mrf.mxu0
      %v6398 = vpop.f32.mrf.mxu0
      %v6399 = vadd.f32 %v5006, %v6398
      %v6400 = vpop.f32.mrf.mxu0
      %6401 = vmatprep.mubr.bf16.mxu0 0
      %6402 = vmatmul.mubr.bf16.gmra.mxu0 %v4882
      %v6403 = vpop.f32.mrf.mxu0
      %v6404 = vadd.f32 %v5006, %v6403
      %v6405 = vpop.f32.mrf.mxu0
      %v6406 = vpop.f32.mrf.mxu0
      %v6407 = vadd.f32 %v5006, %v6406
      %v6408 = vpop.f32.mrf.mxu0
      %6409 = vmatprep.mubr.bf16.mxu0 0
      %6410 = vmatmul.mubr.bf16.gmra.mxu0 %v4883
      %v6411 = vpop.f32.mrf.mxu0
      %v6412 = vadd.f32 %v5006, %v6411
      %v6413 = vpop.f32.mrf.mxu0
      %v6414 = vpop.f32.mrf.mxu0
      %v6415 = vadd.f32 %v5006, %v6414
      %v6416 = vpop.f32.mrf.mxu0
      %6417 = vmatprep.mubr.bf16.mxu0 0
      %6418 = vmatmul.mubr.bf16.gmra.mxu0 %v4884
      %v6419 = vpop.f32.mrf.mxu0
      %v6420 = vadd.f32 %v5006, %v6419
      %v6421 = vpop.f32.mrf.mxu0
      %v6422 = vpop.f32.mrf.mxu0
      %v6423 = vadd.f32 %v5006, %v6422
      %v6424 = vpop.f32.mrf.mxu0
      %6425 = vmatprep.mubr.bf16.mxu0 0
      %6426 = vmatmul.mubr.bf16.gmra.mxu0 %v4885
      %v6427 = vpop.f32.mrf.mxu0
      %v6428 = vadd.f32 %v5006, %v6427
      %v6429 = vpop.f32.mrf.mxu0
      %v6430 = vpop.f32.mrf.mxu0
      %v6431 = vadd.f32 %v5006, %v6430
      %v6432 = vpop.f32.mrf.mxu0
      %6433 = vmatprep.mubr.bf16.mxu0 0
      %6434 = vmatmul.mubr.bf16.gmra.mxu0 %v4886
      %v6435 = vpop.f32.mrf.mxu0
      %v6436 = vadd.f32 %v5006, %v6435
      %v6437 = vpop.f32.mrf.mxu0
      %v6438 = vpop.f32.mrf.mxu0
      %v6439 = vadd.f32 %v5006, %v6438
      %v6440 = vpop.f32.mrf.mxu0
      %6441 = vmatprep.mubr.bf16.mxu0 0
      %6442 = vmatmul.mubr.bf16.gmra.mxu0 %v4887
      %v6443 = vpop.f32.mrf.mxu0
      %v6444 = vadd.f32 %v5006, %v6443
      %v6445 = vpop.f32.mrf.mxu0
      %v6446 = vpop.f32.mrf.mxu0
      %v6447 = vadd.f32 %v5006, %v6446
      %v6448 = vpop.f32.mrf.mxu0
      %6449 = vmatprep.mubr.bf16.mxu0 0
      %6450 = vmatmul.mubr.bf16.gmra.mxu0 %v4888
      %v6451 = vpop.f32.mrf.mxu0
      %v6452 = vadd.f32 %v5006, %v6451
      %v6453 = vpop.f32.mrf.mxu0
      %v6454 = vpop.f32.mrf.mxu0
      %v6455 = vadd.f32 %v5006, %v6454
      %v6456 = vpop.f32.mrf.mxu0
      %6457 = vmatprep.mubr.bf16.mxu0 0
      %6458 = vmatmul.mubr.bf16.gmra.mxu0 %v4889
      %v6459 = vpop.f32.mrf.mxu0
      %v6460 = vadd.f32 %v5006, %v6459
      %v6461 = vpop.f32.mrf.mxu0
      %v6462 = vpop.f32.mrf.mxu0
      %v6463 = vadd.f32 %v5006, %v6462
      %v6464 = vpop.f32.mrf.mxu0
      %6465 = vmatprep.mubr.bf16.mxu0 0
      %6466 = vmatmul.mubr.bf16.gmra.mxu0 %v4890
      %v6467 = vpop.f32.mrf.mxu0
      %v6468 = vadd.f32 %v5006, %v6467
      %v6469 = vpop.f32.mrf.mxu0
      %v6470 = vpop.f32.mrf.mxu0
      %v6471 = vadd.f32 %v5006, %v6470
      %v6472 = vpop.f32.mrf.mxu0
      %6473 = vmatprep.mubr.bf16.mxu0 0
      %6474 = vmatmul.mubr.bf16.gmra.mxu0 %v4891
      %v6475 = vpop.f32.mrf.mxu0
      %v6476 = vadd.f32 %v5006, %v6475
      %v6477 = vpop.f32.mrf.mxu0
      %v6478 = vpop.f32.mrf.mxu0
      %v6479 = vadd.f32 %v5006, %v6478
      %v6480 = vpop.f32.mrf.mxu0
      %6481 = vmatprep.mubr.bf16.mxu0 0
      %6482 = vmatmul.mubr.bf16.gmra.mxu0 %v4892
      %v6483 = vpop.f32.mrf.mxu0
      %v6484 = vadd.f32 %v5006, %v6483
      %v6485 = vpop.f32.mrf.mxu0
      %v6486 = vpop.f32.mrf.mxu0
      %v6487 = vadd.f32 %v5006, %v6486
      %v6488 = vpop.f32.mrf.mxu0
      %6489 = vmatprep.mubr.bf16.mxu0 0
      %6490 = vmatmul.mubr.bf16.gmra.mxu0 %v4893
      %v6491 = vpop.f32.mrf.mxu0
      %v6492 = vadd.f32 %v5006, %v6491
      %v6493 = vpop.f32.mrf.mxu0
      %v6494 = vpop.f32.mrf.mxu0
      %v6495 = vadd.f32 %v5006, %v6494
      %v6496 = vpop.f32.mrf.mxu0
      %6497 = vmatprep.mubr.bf16.mxu0 0
      %6498 = vmatmul.mubr.bf16.gmra.mxu0 %v4894
      %v6499 = vpop.f32.mrf.mxu0
      %v6500 = vadd.f32 %v5006, %v6499
      %v6501 = vpop.f32.mrf.mxu0
      %v6502 = vpop.f32.mrf.mxu0
      %v6503 = vadd.f32 %v5006, %v6502
      %v6504 = vpop.f32.mrf.mxu0
      %6505 = vmatprep.mubr.bf16.mxu0 0
      %6506 = vmatmul.mubr.bf16.gmra.mxu0 %v4895
      %v6507 = vpop.f32.mrf.mxu0
      %v6508 = vadd.f32 %v5006, %v6507
      %v6509 = vpop.f32.mrf.mxu0
      %v6510 = vpop.f32.mrf.mxu0
      %v6511 = vadd.f32 %v5006, %v6510
      %v6512 = vpop.f32.mrf.mxu0
      %6513 = vmatprep.mubr.bf16.mxu0 0
      %6514 = vmatmul.mubr.bf16.gmra.mxu0 %v4896
      %v6515 = vpop.f32.mrf.mxu0
      %v6516 = vadd.f32 %v5006, %v6515
      %v6517 = vpop.f32.mrf.mxu0
      %v6518 = vpop.f32.mrf.mxu0
      %v6519 = vadd.f32 %v5006, %v6518
      %v6520 = vpop.f32.mrf.mxu0
      %6521 = vmatprep.mubr.bf16.mxu0 0
      %6522 = vmatmul.mubr.bf16.gmra.mxu0 %v4897
      %v6523 = vpop.f32.mrf.mxu0
      %v6524 = vadd.f32 %v5006, %v6523
      %v6525 = vpop.f32.mrf.mxu0
      %v6526 = vpop.f32.mrf.mxu0
      %v6527 = vadd.f32 %v5006, %v6526
      %v6528 = vpop.f32.mrf.mxu0
      %6529 = vmatprep.mubr.bf16.mxu0 0
      %6530 = vmatmul.mubr.bf16.gmra.mxu0 %v4898
      %v6531 = vpop.f32.mrf.mxu0
      %v6532 = vadd.f32 %v5006, %v6531
      %v6533 = vpop.f32.mrf.mxu0
      %v6534 = vpop.f32.mrf.mxu0
      %v6535 = vadd.f32 %v5006, %v6534
      %v6536 = vpop.f32.mrf.mxu0
      %6537 = vmatprep.mubr.bf16.mxu0 0
      %6538 = vmatmul.mubr.bf16.gmra.mxu0 %v4899
      %v6539 = vpop.f32.mrf.mxu0
      %v6540 = vadd.f32 %v5006, %v6539
      %v6541 = vpop.f32.mrf.mxu0
      %v6542 = vpop.f32.mrf.mxu0
      %v6543 = vadd.f32 %v5006, %v6542
      %v6544 = vpop.f32.mrf.mxu0
      %6545 = vmatprep.mubr.bf16.mxu0 0
      %6546 = vmatmul.mubr.bf16.gmra.mxu0 %v4900
      %v6547 = vpop.f32.mrf.mxu0
      %v6548 = vadd.f32 %v5006, %v6547
      %v6549 = vpop.f32.mrf.mxu0
      %v6550 = vpop.f32.mrf.mxu0
      %v6551 = vadd.f32 %v5006, %v6550
      %v6552 = vpop.f32.mrf.mxu0
      %6553 = vmatprep.mubr.bf16.mxu0 0
      %6554 = vmatmul.mubr.bf16.gmra.mxu0 %v4901
      %v6555 = vpop.f32.mrf.mxu0
      %v6556 = vadd.f32 %v5006, %v6555
      %v6557 = vpop.f32.mrf.mxu0
      %v6558 = vpop.f32.mrf.mxu0
      %v6559 = vadd.f32 %v5006, %v6558
      %v6560 = vpop.f32.mrf.mxu0
      %6561 = vmatprep.mubr.bf16.mxu0 0
      %6562 = vmatmul.mubr.bf16.gmra.mxu0 %v4902
      %v6563 = vpop.f32.mrf.mxu0
      %v6564 = vadd.f32 %v5006, %v6563
      %v6565 = vpop.f32.mrf.mxu0
      %v6566 = vpop.f32.mrf.mxu0
      %v6567 = vadd.f32 %v5006, %v6566
      %v6568 = vpop.f32.mrf.mxu0
      %6569 = vmatprep.mubr.bf16.mxu0 0
      %6570 = vmatmul.mubr.bf16.gmra.mxu0 %v4903
      %v6571 = vpop.f32.mrf.mxu0
      %v6572 = vadd.f32 %v5006, %v6571
      %v6573 = vpop.f32.mrf.mxu0
      %v6574 = vpop.f32.mrf.mxu0
      %v6575 = vadd.f32 %v5006, %v6574
      %v6576 = vpop.f32.mrf.mxu0
      %6577 = vmatprep.mubr.bf16.mxu0 0
      %6578 = vmatmul.mubr.bf16.gmra.mxu0 %v4904
      %v6579 = vpop.f32.mrf.mxu0
      %v6580 = vadd.f32 %v5006, %v6579
      %v6581 = vpop.f32.mrf.mxu0
      %v6582 = vpop.f32.mrf.mxu0
      %v6583 = vadd.f32 %v5006, %v6582
      %v6584 = vpop.f32.mrf.mxu0
      %6585 = vmatprep.mubr.bf16.mxu0 0
      %6586 = vmatmul.mubr.bf16.gmra.mxu0 %v4905
      %v6587 = vpop.f32.mrf.mxu0
      %v6588 = vadd.f32 %v5006, %v6587
      %v6589 = vpop.f32.mrf.mxu0
      %v6590 = vpop.f32.mrf.mxu0
      %v6591 = vadd.f32 %v5006, %v6590
      %v6592 = vpop.f32.mrf.mxu0
      %6593 = vmatprep.mubr.bf16.mxu0 0
      %6594 = vmatmul.mubr.bf16.gmra.mxu0 %v4906
      %v6595 = vpop.f32.mrf.mxu0
      %v6596 = vadd.f32 %v5006, %v6595
      %v6597 = vpop.f32.mrf.mxu0
      %v6598 = vpop.f32.mrf.mxu0
      %v6599 = vadd.f32 %v5006, %v6598
      %v6600 = vpop.f32.mrf.mxu0
      %6601 = vmatprep.mubr.bf16.mxu0 0
      %6602 = vmatmul.mubr.bf16.gmra.mxu0 %v4907
      %v6603 = vpop.f32.mrf.mxu0
      %v6604 = vadd.f32 %v5006, %v6603
      %v6605 = vpop.f32.mrf.mxu0
      %v6606 = vpop.f32.mrf.mxu0
      %v6607 = vadd.f32 %v5006, %v6606
      %v6608 = vpop.f32.mrf.mxu0
      %6609 = vmatprep.mubr.bf16.mxu0 0
      %6610 = vmatmul.mubr.bf16.gmra.mxu0 %v4908
      %v6611 = vpop.f32.mrf.mxu0
      %v6612 = vadd.f32 %v5006, %v6611
      %v6613 = vpop.f32.mrf.mxu0
      %v6614 = vpop.f32.mrf.mxu0
      %v6615 = vadd.f32 %v5006, %v6614
      %v6616 = vpop.f32.mrf.mxu0
      %6617 = vmatprep.mubr.bf16.mxu0 0
      %6618 = vmatmul.mubr.bf16.gmra.mxu0 %v4909
      %v6619 = vpop.f32.mrf.mxu0
      %v6620 = vadd.f32 %v5006, %v6619
      %v6621 = vpop.f32.mrf.mxu0
      %v6622 = vpop.f32.mrf.mxu0
      %v6623 = vadd.f32 %v5006, %v6622
      %v6624 = vpop.f32.mrf.mxu0
      %6625 = vmatprep.mubr.bf16.mxu0 0
      %6626 = vmatmul.mubr.bf16.gmra.mxu0 %v4910
      %v6627 = vpop.f32.mrf.mxu0
      %v6628 = vadd.f32 %v5006, %v6627
      %v6629 = vpop.f32.mrf.mxu0
      %v6630 = vpop.f32.mrf.mxu0
      %v6631 = vadd.f32 %v5006, %v6630
      %v6632 = vpop.f32.mrf.mxu0
      %6633 = vmatprep.mubr.bf16.mxu0 0
      %6634 = vmatmul.mubr.bf16.gmra.mxu0 %v4911
      %v6635 = vpop.f32.mrf.mxu0
      %v6636 = vadd.f32 %v5006, %v6635
      %v6637 = vpop.f32.mrf.mxu0
      %v6638 = vpop.f32.mrf.mxu0
      %v6639 = vadd.f32 %v5006, %v6638
      %v6640 = vpop.f32.mrf.mxu0
      %6641 = vmatprep.mubr.bf16.mxu0 0
      %6642 = vmatmul.mubr.bf16.gmra.mxu0 %v4912
      %v6643 = vpop.f32.mrf.mxu0
      %v6644 = vadd.f32 %v5006, %v6643
      %v6645 = vpop.f32.mrf.mxu0
      %v6646 = vpop.f32.mrf.mxu0
      %v6647 = vadd.f32 %v5006, %v6646
      %v6648 = vpop.f32.mrf.mxu0
      %6649 = vdwg.mxu0
      %v6650 = vpack.c.bf16 %v5341, %v5337
      %v6651 = vpack.c.bf16 %v5343, %v5339
      %v6652 = vpack.c.bf16 %v5694, %v5690
      %v6653 = vpack.c.bf16 %v5696, %v5692
      %v6654 = vpack.c.bf16 %v6047, %v6043
      %v6655 = vpack.c.bf16 %v6049, %v6045
      %v6656 = vpack.c.bf16 %v6399, %v6396
      %v6657 = vpack.c.bf16 %v5351, %v5347
      %v6658 = vpack.c.bf16 %v5353, %v5349
      %v6659 = vpack.c.bf16 %v5704, %v5700
      %v6660 = vpack.c.bf16 %v5706, %v5702
      %v6661 = vpack.c.bf16 %v6057, %v6053
      %v6662 = vpack.c.bf16 %v6059, %v6055
      %v6663 = vpack.c.bf16 %v6407, %v6404
      %v6664 = vpack.c.bf16 %v5361, %v5357
      %v6665 = vpack.c.bf16 %v5363, %v5359
      %v6666 = vpack.c.bf16 %v5714, %v5710
      %v6667 = vpack.c.bf16 %v5716, %v5712
      %v6668 = vpack.c.bf16 %v6067, %v6063
      %v6669 = vpack.c.bf16 %v6069, %v6065
      %v6670 = vpack.c.bf16 %v6415, %v6412
      %v6671 = vpack.c.bf16 %v5371, %v5367
      %v6672 = vpack.c.bf16 %v5373, %v5369
      %v6673 = vpack.c.bf16 %v5724, %v5720
      %v6674 = vpack.c.bf16 %v5726, %v5722
      %v6675 = vpack.c.bf16 %v6077, %v6073
      %v6676 = vpack.c.bf16 %v6079, %v6075
      %v6677 = vpack.c.bf16 %v6423, %v6420
      %v6678 = vpack.c.bf16 %v5381, %v5377
      %v6679 = vpack.c.bf16 %v5383, %v5379
      %v6680 = vpack.c.bf16 %v5734, %v5730
      %v6681 = vpack.c.bf16 %v5736, %v5732
      %v6682 = vpack.c.bf16 %v6087, %v6083
      %v6683 = vpack.c.bf16 %v6089, %v6085
      %v6684 = vpack.c.bf16 %v6431, %v6428
      %v6685 = vpack.c.bf16 %v5391, %v5387
      %v6686 = vpack.c.bf16 %v5393, %v5389
      %v6687 = vpack.c.bf16 %v5744, %v5740
      %v6688 = vpack.c.bf16 %v5746, %v5742
      %v6689 = vpack.c.bf16 %v6097, %v6093
      %v6690 = vpack.c.bf16 %v6099, %v6095
      %v6691 = vpack.c.bf16 %v6439, %v6436
      %v6692 = vpack.c.bf16 %v5401, %v5397
      %v6693 = vpack.c.bf16 %v5403, %v5399
      %v6694 = vpack.c.bf16 %v5754, %v5750
      %v6695 = vpack.c.bf16 %v5756, %v5752
      %v6696 = vpack.c.bf16 %v6107, %v6103
      %v6697 = vpack.c.bf16 %v6109, %v6105
      %v6698 = vpack.c.bf16 %v6447, %v6444
      %v6699 = vpack.c.bf16 %v5411, %v5407
      %v6700 = vpack.c.bf16 %v5413, %v5409
      %v6701 = vpack.c.bf16 %v5764, %v5760
      %v6702 = vpack.c.bf16 %v5766, %v5762
      %v6703 = vpack.c.bf16 %v6117, %v6113
      %v6704 = vpack.c.bf16 %v6119, %v6115
      %v6705 = vpack.c.bf16 %v6455, %v6452
      %v6706 = vpack.c.bf16 %v5421, %v5417
      %v6707 = vpack.c.bf16 %v5423, %v5419
      %v6708 = vpack.c.bf16 %v5774, %v5770
      %v6709 = vpack.c.bf16 %v5776, %v5772
      %v6710 = vpack.c.bf16 %v6127, %v6123
      %v6711 = vpack.c.bf16 %v6129, %v6125
      %v6712 = vpack.c.bf16 %v6463, %v6460
      %v6713 = vpack.c.bf16 %v5431, %v5427
      %v6714 = vpack.c.bf16 %v5433, %v5429
      %v6715 = vpack.c.bf16 %v5784, %v5780
      %v6716 = vpack.c.bf16 %v5786, %v5782
      %v6717 = vpack.c.bf16 %v6137, %v6133
      %v6718 = vpack.c.bf16 %v6139, %v6135
      %v6719 = vpack.c.bf16 %v6471, %v6468
      %v6720 = vpack.c.bf16 %v5441, %v5437
      %v6721 = vpack.c.bf16 %v5443, %v5439
      %v6722 = vpack.c.bf16 %v5794, %v5790
      %v6723 = vpack.c.bf16 %v5796, %v5792
      %v6724 = vpack.c.bf16 %v6147, %v6143
      %v6725 = vpack.c.bf16 %v6149, %v6145
      %v6726 = vpack.c.bf16 %v6479, %v6476
      %v6727 = vpack.c.bf16 %v5451, %v5447
      %v6728 = vpack.c.bf16 %v5453, %v5449
      %v6729 = vpack.c.bf16 %v5804, %v5800
      %v6730 = vpack.c.bf16 %v5806, %v5802
      %v6731 = vpack.c.bf16 %v6157, %v6153
      %v6732 = vpack.c.bf16 %v6159, %v6155
      %v6733 = vpack.c.bf16 %v6487, %v6484
      %v6734 = vpack.c.bf16 %v5461, %v5457
      %v6735 = vpack.c.bf16 %v5463, %v5459
      %v6736 = vpack.c.bf16 %v5814, %v5810
      %v6737 = vpack.c.bf16 %v5816, %v5812
      %v6738 = vpack.c.bf16 %v6167, %v6163
      %v6739 = vpack.c.bf16 %v6169, %v6165
      %v6740 = vpack.c.bf16 %v6495, %v6492
      %v6741 = vpack.c.bf16 %v5471, %v5467
      %v6742 = vpack.c.bf16 %v5473, %v5469
      %v6743 = vpack.c.bf16 %v5824, %v5820
      %v6744 = vpack.c.bf16 %v5826, %v5822
      %v6745 = vpack.c.bf16 %v6177, %v6173
      %v6746 = vpack.c.bf16 %v6179, %v6175
      %v6747 = vpack.c.bf16 %v6503, %v6500
      %v6748 = vpack.c.bf16 %v5481, %v5477
      %v6749 = vpack.c.bf16 %v5483, %v5479
      %v6750 = vpack.c.bf16 %v5834, %v5830
      %v6751 = vpack.c.bf16 %v5836, %v5832
      %v6752 = vpack.c.bf16 %v6187, %v6183
      %v6753 = vpack.c.bf16 %v6189, %v6185
      %v6754 = vpack.c.bf16 %v6511, %v6508
      %v6755 = vpack.c.bf16 %v5491, %v5487
      %v6756 = vpack.c.bf16 %v5493, %v5489
      %v6757 = vpack.c.bf16 %v5844, %v5840
      %v6758 = vpack.c.bf16 %v5846, %v5842
      %v6759 = vpack.c.bf16 %v6197, %v6193
      %v6760 = vpack.c.bf16 %v6199, %v6195
      %v6761 = vpack.c.bf16 %v6519, %v6516
      %v6762 = vpack.c.bf16 %v5501, %v5497
      %v6763 = vpack.c.bf16 %v5503, %v5499
      %v6764 = vpack.c.bf16 %v5854, %v5850
      %v6765 = vpack.c.bf16 %v5856, %v5852
      %v6766 = vpack.c.bf16 %v6207, %v6203
      %v6767 = vpack.c.bf16 %v6209, %v6205
      %v6768 = vpack.c.bf16 %v6527, %v6524
      %v6769 = vpack.c.bf16 %v5511, %v5507
      %v6770 = vpack.c.bf16 %v5513, %v5509
      %v6771 = vpack.c.bf16 %v5864, %v5860
      %v6772 = vpack.c.bf16 %v5866, %v5862
      %v6773 = vpack.c.bf16 %v6217, %v6213
      %v6774 = vpack.c.bf16 %v6219, %v6215
      %v6775 = vpack.c.bf16 %v6535, %v6532
      %v6776 = vpack.c.bf16 %v5521, %v5517
      %v6777 = vpack.c.bf16 %v5523, %v5519
      %v6778 = vpack.c.bf16 %v5874, %v5870
      %v6779 = vpack.c.bf16 %v5876, %v5872
      %v6780 = vpack.c.bf16 %v6227, %v6223
      %v6781 = vpack.c.bf16 %v6229, %v6225
      %v6782 = vpack.c.bf16 %v6543, %v6540
      %v6783 = vpack.c.bf16 %v5531, %v5527
      %v6784 = vpack.c.bf16 %v5533, %v5529
      %v6785 = vpack.c.bf16 %v5884, %v5880
      %v6786 = vpack.c.bf16 %v5886, %v5882
      %v6787 = vpack.c.bf16 %v6237, %v6233
      %v6788 = vpack.c.bf16 %v6239, %v6235
      %v6789 = vpack.c.bf16 %v6551, %v6548
      %v6790 = vpack.c.bf16 %v5541, %v5537
      %v6791 = vpack.c.bf16 %v5543, %v5539
      %v6792 = vpack.c.bf16 %v5894, %v5890
      %v6793 = vpack.c.bf16 %v5896, %v5892
      %v6794 = vpack.c.bf16 %v6247, %v6243
      %v6795 = vpack.c.bf16 %v6249, %v6245
      %v6796 = vpack.c.bf16 %v6559, %v6556
      %v6797 = vpack.c.bf16 %v5551, %v5547
      %v6798 = vpack.c.bf16 %v5553, %v5549
      %v6799 = vpack.c.bf16 %v5904, %v5900
      %v6800 = vpack.c.bf16 %v5906, %v5902
      %v6801 = vpack.c.bf16 %v6257, %v6253
      %v6802 = vpack.c.bf16 %v6259, %v6255
      %v6803 = vpack.c.bf16 %v6567, %v6564
      %v6804 = vpack.c.bf16 %v5561, %v5557
      %v6805 = vpack.c.bf16 %v5563, %v5559
      %v6806 = vpack.c.bf16 %v5914, %v5910
      %v6807 = vpack.c.bf16 %v5916, %v5912
      %v6808 = vpack.c.bf16 %v6267, %v6263
      %v6809 = vpack.c.bf16 %v6269, %v6265
      %v6810 = vpack.c.bf16 %v6575, %v6572
      %v6811 = vpack.c.bf16 %v5571, %v5567
      %v6812 = vpack.c.bf16 %v5573, %v5569
      %v6813 = vpack.c.bf16 %v5924, %v5920
      %v6814 = vpack.c.bf16 %v5926, %v5922
      %v6815 = vpack.c.bf16 %v6277, %v6273
      %v6816 = vpack.c.bf16 %v6279, %v6275
      %v6817 = vpack.c.bf16 %v6583, %v6580
      %v6818 = vpack.c.bf16 %v5581, %v5577
      %v6819 = vpack.c.bf16 %v5583, %v5579
      %v6820 = vpack.c.bf16 %v5934, %v5930
      %v6821 = vpack.c.bf16 %v5936, %v5932
      %v6822 = vpack.c.bf16 %v6287, %v6283
      %v6823 = vpack.c.bf16 %v6289, %v6285
      %v6824 = vpack.c.bf16 %v6591, %v6588
      %v6825 = vpack.c.bf16 %v5591, %v5587
      %v6826 = vpack.c.bf16 %v5593, %v5589
      %v6827 = vpack.c.bf16 %v5944, %v5940
      %v6828 = vpack.c.bf16 %v5946, %v5942
      %v6829 = vpack.c.bf16 %v6297, %v6293
      %v6830 = vpack.c.bf16 %v6299, %v6295
      %v6831 = vpack.c.bf16 %v6599, %v6596
      %v6832 = vpack.c.bf16 %v5601, %v5597
      %v6833 = vpack.c.bf16 %v5603, %v5599
      %v6834 = vpack.c.bf16 %v5954, %v5950
      %v6835 = vpack.c.bf16 %v5956, %v5952
      %v6836 = vpack.c.bf16 %v6307, %v6303
      %v6837 = vpack.c.bf16 %v6309, %v6305
      %v6838 = vpack.c.bf16 %v6607, %v6604
      %v6839 = vpack.c.bf16 %v5611, %v5607
      %v6840 = vpack.c.bf16 %v5613, %v5609
      %v6841 = vpack.c.bf16 %v5964, %v5960
      %v6842 = vpack.c.bf16 %v5966, %v5962
      %v6843 = vpack.c.bf16 %v6317, %v6313
      %v6844 = vpack.c.bf16 %v6319, %v6315
      %v6845 = vpack.c.bf16 %v6615, %v6612
      %v6846 = vpack.c.bf16 %v5621, %v5617
      %v6847 = vpack.c.bf16 %v5623, %v5619
      %v6848 = vpack.c.bf16 %v5974, %v5970
      %v6849 = vpack.c.bf16 %v5976, %v5972
      %v6850 = vpack.c.bf16 %v6327, %v6323
      %v6851 = vpack.c.bf16 %v6329, %v6325
      %v6852 = vpack.c.bf16 %v6623, %v6620
      %v6853 = vpack.c.bf16 %v5631, %v5627
      %v6854 = vpack.c.bf16 %v5633, %v5629
      %v6855 = vpack.c.bf16 %v5984, %v5980
      %v6856 = vpack.c.bf16 %v5986, %v5982
      %v6857 = vpack.c.bf16 %v6337, %v6333
      %v6858 = vpack.c.bf16 %v6339, %v6335
      %v6859 = vpack.c.bf16 %v6631, %v6628
      %v6860 = vpack.c.bf16 %v5641, %v5637
      %v6861 = vpack.c.bf16 %v5643, %v5639
      %v6862 = vpack.c.bf16 %v5994, %v5990
      %v6863 = vpack.c.bf16 %v5996, %v5992
      %v6864 = vpack.c.bf16 %v6347, %v6343
      %v6865 = vpack.c.bf16 %v6349, %v6345
      %v6866 = vpack.c.bf16 %v6639, %v6636
      %v6867 = vpack.c.bf16 %v5651, %v5647
      %v6868 = vpack.c.bf16 %v5653, %v5649
      %v6869 = vpack.c.bf16 %v6004, %v6000
      %v6870 = vpack.c.bf16 %v6006, %v6002
      %v6871 = vpack.c.bf16 %v6357, %v6353
      %v6872 = vpack.c.bf16 %v6359, %v6355
      %v6873 = vpack.c.bf16 %v6647, %v6644
      %v7098 = vunpack.c.l.b16 %v6650
      %v7099 = vunpack.c.l.b16 %v6651
      %v7100 = vunpack.c.l.b16 %v6652
      %v7101 = vunpack.c.l.b16 %v6653
      %v7102 = vunpack.c.l.b16 %v6654
      %v7103 = vunpack.c.l.b16 %v6655
      %v7104 = vunpack.c.l.b16 %v6656
      %v7105 = vunpack.c.h.b16 %v6650
      %v7106 = vunpack.c.h.b16 %v6651
      %v7107 = vunpack.c.h.b16 %v6652
      %v7108 = vunpack.c.h.b16 %v6653
      %v7109 = vunpack.c.h.b16 %v6654
      %v7110 = vunpack.c.h.b16 %v6655
      %v7111 = vunpack.c.h.b16 %v6656
      %v7112 = vunpack.c.l.b16 %v6657
      %v7113 = vunpack.c.l.b16 %v6658
      %v7114 = vunpack.c.l.b16 %v6659
      %v7115 = vunpack.c.l.b16 %v6660
      %v7116 = vunpack.c.l.b16 %v6661
      %v7117 = vunpack.c.l.b16 %v6662
      %v7118 = vunpack.c.l.b16 %v6663
      %v7119 = vunpack.c.h.b16 %v6657
      %v7120 = vunpack.c.h.b16 %v6658
      %v7121 = vunpack.c.h.b16 %v6659
      %v7122 = vunpack.c.h.b16 %v6660
      %v7123 = vunpack.c.h.b16 %v6661
      %v7124 = vunpack.c.h.b16 %v6662
      %v7125 = vunpack.c.h.b16 %v6663
      %v7126 = vunpack.c.l.b16 %v6664
      %v7127 = vunpack.c.l.b16 %v6665
      %v7128 = vunpack.c.l.b16 %v6666
      %v7129 = vunpack.c.l.b16 %v6667
      %v7130 = vunpack.c.l.b16 %v6668
      %v7131 = vunpack.c.l.b16 %v6669
      %v7132 = vunpack.c.l.b16 %v6670
      %v7133 = vunpack.c.h.b16 %v6664
      %v7134 = vunpack.c.h.b16 %v6665
      %v7135 = vunpack.c.h.b16 %v6666
      %v7136 = vunpack.c.h.b16 %v6667
      %v7137 = vunpack.c.h.b16 %v6668
      %v7138 = vunpack.c.h.b16 %v6669
      %v7139 = vunpack.c.h.b16 %v6670
      %v7140 = vunpack.c.l.b16 %v6671
      %v7141 = vunpack.c.l.b16 %v6672
      %v7142 = vunpack.c.l.b16 %v6673
      %v7143 = vunpack.c.l.b16 %v6674
      %v7144 = vunpack.c.l.b16 %v6675
      %v7145 = vunpack.c.l.b16 %v6676
      %v7146 = vunpack.c.l.b16 %v6677
      %v7147 = vunpack.c.h.b16 %v6671
      %v7148 = vunpack.c.h.b16 %v6672
      %v7149 = vunpack.c.h.b16 %v6673
      %v7150 = vunpack.c.h.b16 %v6674
      %v7151 = vunpack.c.h.b16 %v6675
      %v7152 = vunpack.c.h.b16 %v6676
      %v7153 = vunpack.c.h.b16 %v6677
      %v7154 = vunpack.c.l.b16 %v6678
      %v7155 = vunpack.c.l.b16 %v6679
      %v7156 = vunpack.c.l.b16 %v6680
      %v7157 = vunpack.c.l.b16 %v6681
      %v7158 = vunpack.c.l.b16 %v6682
      %v7159 = vunpack.c.l.b16 %v6683
      %v7160 = vunpack.c.l.b16 %v6684
      %v7161 = vunpack.c.h.b16 %v6678
      %v7162 = vunpack.c.h.b16 %v6679
      %v7163 = vunpack.c.h.b16 %v6680
      %v7164 = vunpack.c.h.b16 %v6681
      %v7165 = vunpack.c.h.b16 %v6682
      %v7166 = vunpack.c.h.b16 %v6683
      %v7167 = vunpack.c.h.b16 %v6684
      %v7168 = vunpack.c.l.b16 %v6685
      %v7169 = vunpack.c.l.b16 %v6686
      %v7170 = vunpack.c.l.b16 %v6687
      %v7171 = vunpack.c.l.b16 %v6688
      %v7172 = vunpack.c.l.b16 %v6689
      %v7173 = vunpack.c.l.b16 %v6690
      %v7174 = vunpack.c.l.b16 %v6691
      %v7175 = vunpack.c.h.b16 %v6685
      %v7176 = vunpack.c.h.b16 %v6686
      %v7177 = vunpack.c.h.b16 %v6687
      %v7178 = vunpack.c.h.b16 %v6688
      %v7179 = vunpack.c.h.b16 %v6689
      %v7180 = vunpack.c.h.b16 %v6690
      %v7181 = vunpack.c.h.b16 %v6691
      %v7182 = vunpack.c.l.b16 %v6692
      %v7183 = vunpack.c.l.b16 %v6693
      %v7184 = vunpack.c.l.b16 %v6694
      %v7185 = vunpack.c.l.b16 %v6695
      %v7186 = vunpack.c.l.b16 %v6696
      %v7187 = vunpack.c.l.b16 %v6697
      %v7188 = vunpack.c.l.b16 %v6698
      %v7189 = vunpack.c.h.b16 %v6692
      %v7190 = vunpack.c.h.b16 %v6693
      %v7191 = vunpack.c.h.b16 %v6694
      %v7192 = vunpack.c.h.b16 %v6695
      %v7193 = vunpack.c.h.b16 %v6696
      %v7194 = vunpack.c.h.b16 %v6697
      %v7195 = vunpack.c.h.b16 %v6698
      %v7196 = vunpack.c.l.b16 %v6699
      %v7197 = vunpack.c.l.b16 %v6700
      %v7198 = vunpack.c.l.b16 %v6701
      %v7199 = vunpack.c.l.b16 %v6702
      %v7200 = vunpack.c.l.b16 %v6703
      %v7201 = vunpack.c.l.b16 %v6704
      %v7202 = vunpack.c.l.b16 %v6705
      %v7203 = vunpack.c.h.b16 %v6699
      %v7204 = vunpack.c.h.b16 %v6700
      %v7205 = vunpack.c.h.b16 %v6701
      %v7206 = vunpack.c.h.b16 %v6702
      %v7207 = vunpack.c.h.b16 %v6703
      %v7208 = vunpack.c.h.b16 %v6704
      %v7209 = vunpack.c.h.b16 %v6705
      %v7210 = vunpack.c.l.b16 %v6706
      %v7211 = vunpack.c.l.b16 %v6707
      %v7212 = vunpack.c.l.b16 %v6708
      %v7213 = vunpack.c.l.b16 %v6709
      %v7214 = vunpack.c.l.b16 %v6710
      %v7215 = vunpack.c.l.b16 %v6711
      %v7216 = vunpack.c.l.b16 %v6712
      %v7217 = vunpack.c.h.b16 %v6706
      %v7218 = vunpack.c.h.b16 %v6707
      %v7219 = vunpack.c.h.b16 %v6708
      %v7220 = vunpack.c.h.b16 %v6709
      %v7221 = vunpack.c.h.b16 %v6710
      %v7222 = vunpack.c.h.b16 %v6711
      %v7223 = vunpack.c.h.b16 %v6712
      %v7224 = vunpack.c.l.b16 %v6713
      %v7225 = vunpack.c.l.b16 %v6714
      %v7226 = vunpack.c.l.b16 %v6715
      %v7227 = vunpack.c.l.b16 %v6716
      %v7228 = vunpack.c.l.b16 %v6717
      %v7229 = vunpack.c.l.b16 %v6718
      %v7230 = vunpack.c.l.b16 %v6719
      %v7231 = vunpack.c.h.b16 %v6713
      %v7232 = vunpack.c.h.b16 %v6714
      %v7233 = vunpack.c.h.b16 %v6715
      %v7234 = vunpack.c.h.b16 %v6716
      %v7235 = vunpack.c.h.b16 %v6717
      %v7236 = vunpack.c.h.b16 %v6718
      %v7237 = vunpack.c.h.b16 %v6719
      %v7238 = vunpack.c.l.b16 %v6720
      %v7239 = vunpack.c.l.b16 %v6721
      %v7240 = vunpack.c.l.b16 %v6722
      %v7241 = vunpack.c.l.b16 %v6723
      %v7242 = vunpack.c.l.b16 %v6724
      %v7243 = vunpack.c.l.b16 %v6725
      %v7244 = vunpack.c.l.b16 %v6726
      %v7245 = vunpack.c.h.b16 %v6720
      %v7246 = vunpack.c.h.b16 %v6721
      %v7247 = vunpack.c.h.b16 %v6722
      %v7248 = vunpack.c.h.b16 %v6723
      %v7249 = vunpack.c.h.b16 %v6724
      %v7250 = vunpack.c.h.b16 %v6725
      %v7251 = vunpack.c.h.b16 %v6726
      %v7252 = vunpack.c.l.b16 %v6727
      %v7253 = vunpack.c.l.b16 %v6728
      %v7254 = vunpack.c.l.b16 %v6729
      %v7255 = vunpack.c.l.b16 %v6730
      %v7256 = vunpack.c.l.b16 %v6731
      %v7257 = vunpack.c.l.b16 %v6732
      %v7258 = vunpack.c.l.b16 %v6733
      %v7259 = vunpack.c.h.b16 %v6727
      %v7260 = vunpack.c.h.b16 %v6728
      %v7261 = vunpack.c.h.b16 %v6729
      %v7262 = vunpack.c.h.b16 %v6730
      %v7263 = vunpack.c.h.b16 %v6731
      %v7264 = vunpack.c.h.b16 %v6732
      %v7265 = vunpack.c.h.b16 %v6733
      %v7266 = vunpack.c.l.b16 %v6734
      %v7267 = vunpack.c.l.b16 %v6735
      %v7268 = vunpack.c.l.b16 %v6736
      %v7269 = vunpack.c.l.b16 %v6737
      %v7270 = vunpack.c.l.b16 %v6738
      %v7271 = vunpack.c.l.b16 %v6739
      %v7272 = vunpack.c.l.b16 %v6740
      %v7273 = vunpack.c.h.b16 %v6734
      %v7274 = vunpack.c.h.b16 %v6735
      %v7275 = vunpack.c.h.b16 %v6736
      %v7276 = vunpack.c.h.b16 %v6737
      %v7277 = vunpack.c.h.b16 %v6738
      %v7278 = vunpack.c.h.b16 %v6739
      %v7279 = vunpack.c.h.b16 %v6740
      %v7280 = vunpack.c.l.b16 %v6741
      %v7281 = vunpack.c.l.b16 %v6742
      %v7282 = vunpack.c.l.b16 %v6743
      %v7283 = vunpack.c.l.b16 %v6744
      %v7284 = vunpack.c.l.b16 %v6745
      %v7285 = vunpack.c.l.b16 %v6746
      %v7286 = vunpack.c.l.b16 %v6747
      %v7287 = vunpack.c.h.b16 %v6741
      %v7288 = vunpack.c.h.b16 %v6742
      %v7289 = vunpack.c.h.b16 %v6743
      %v7290 = vunpack.c.h.b16 %v6744
      %v7291 = vunpack.c.h.b16 %v6745
      %v7292 = vunpack.c.h.b16 %v6746
      %v7293 = vunpack.c.h.b16 %v6747
      %v7294 = vunpack.c.l.b16 %v6748
      %v7295 = vunpack.c.l.b16 %v6749
      %v7296 = vunpack.c.l.b16 %v6750
      %v7297 = vunpack.c.l.b16 %v6751
      %v7298 = vunpack.c.l.b16 %v6752
      %v7299 = vunpack.c.l.b16 %v6753
      %v7300 = vunpack.c.l.b16 %v6754
      %v7301 = vunpack.c.h.b16 %v6748
      %v7302 = vunpack.c.h.b16 %v6749
      %v7303 = vunpack.c.h.b16 %v6750
      %v7304 = vunpack.c.h.b16 %v6751
      %v7305 = vunpack.c.h.b16 %v6752
      %v7306 = vunpack.c.h.b16 %v6753
      %v7307 = vunpack.c.h.b16 %v6754
      %v7308 = vunpack.c.l.b16 %v6755
      %v7309 = vunpack.c.l.b16 %v6756
      %v7310 = vunpack.c.l.b16 %v6757
      %v7311 = vunpack.c.l.b16 %v6758
      %v7312 = vunpack.c.l.b16 %v6759
      %v7313 = vunpack.c.l.b16 %v6760
      %v7314 = vunpack.c.l.b16 %v6761
      %v7315 = vunpack.c.h.b16 %v6755
      %v7316 = vunpack.c.h.b16 %v6756
      %v7317 = vunpack.c.h.b16 %v6757
      %v7318 = vunpack.c.h.b16 %v6758
      %v7319 = vunpack.c.h.b16 %v6759
      %v7320 = vunpack.c.h.b16 %v6760
      %v7321 = vunpack.c.h.b16 %v6761
      %v7322 = vunpack.c.l.b16 %v6762
      %v7323 = vunpack.c.l.b16 %v6763
      %v7324 = vunpack.c.l.b16 %v6764
      %v7325 = vunpack.c.l.b16 %v6765
      %v7326 = vunpack.c.l.b16 %v6766
      %v7327 = vunpack.c.l.b16 %v6767
      %v7328 = vunpack.c.l.b16 %v6768
      %v7329 = vunpack.c.h.b16 %v6762
      %v7330 = vunpack.c.h.b16 %v6763
      %v7331 = vunpack.c.h.b16 %v6764
      %v7332 = vunpack.c.h.b16 %v6765
      %v7333 = vunpack.c.h.b16 %v6766
      %v7334 = vunpack.c.h.b16 %v6767
      %v7335 = vunpack.c.h.b16 %v6768
      %v7336 = vunpack.c.l.b16 %v6769
      %v7337 = vunpack.c.l.b16 %v6770
      %v7338 = vunpack.c.l.b16 %v6771
      %v7339 = vunpack.c.l.b16 %v6772
      %v7340 = vunpack.c.l.b16 %v6773
      %v7341 = vunpack.c.l.b16 %v6774
      %v7342 = vunpack.c.l.b16 %v6775
      %v7343 = vunpack.c.h.b16 %v6769
      %v7344 = vunpack.c.h.b16 %v6770
      %v7345 = vunpack.c.h.b16 %v6771
      %v7346 = vunpack.c.h.b16 %v6772
      %v7347 = vunpack.c.h.b16 %v6773
      %v7348 = vunpack.c.h.b16 %v6774
      %v7349 = vunpack.c.h.b16 %v6775
      %v7350 = vunpack.c.l.b16 %v6776
      %v7351 = vunpack.c.l.b16 %v6777
      %v7352 = vunpack.c.l.b16 %v6778
      %v7353 = vunpack.c.l.b16 %v6779
      %v7354 = vunpack.c.l.b16 %v6780
      %v7355 = vunpack.c.l.b16 %v6781
      %v7356 = vunpack.c.l.b16 %v6782
      %v7357 = vunpack.c.h.b16 %v6776
      %v7358 = vunpack.c.h.b16 %v6777
      %v7359 = vunpack.c.h.b16 %v6778
      %v7360 = vunpack.c.h.b16 %v6779
      %v7361 = vunpack.c.h.b16 %v6780
      %v7362 = vunpack.c.h.b16 %v6781
      %v7363 = vunpack.c.h.b16 %v6782
      %v7364 = vunpack.c.l.b16 %v6783
      %v7365 = vunpack.c.l.b16 %v6784
      %v7366 = vunpack.c.l.b16 %v6785
      %v7367 = vunpack.c.l.b16 %v6786
      %v7368 = vunpack.c.l.b16 %v6787
      %v7369 = vunpack.c.l.b16 %v6788
      %v7370 = vunpack.c.l.b16 %v6789
      %v7371 = vunpack.c.h.b16 %v6783
      %v7372 = vunpack.c.h.b16 %v6784
      %v7373 = vunpack.c.h.b16 %v6785
      %v7374 = vunpack.c.h.b16 %v6786
      %v7375 = vunpack.c.h.b16 %v6787
      %v7376 = vunpack.c.h.b16 %v6788
      %v7377 = vunpack.c.h.b16 %v6789
      %v7378 = vunpack.c.l.b16 %v6790
      %v7379 = vunpack.c.l.b16 %v6791
      %v7380 = vunpack.c.l.b16 %v6792
      %v7381 = vunpack.c.l.b16 %v6793
      %v7382 = vunpack.c.l.b16 %v6794
      %v7383 = vunpack.c.l.b16 %v6795
      %v7384 = vunpack.c.l.b16 %v6796
      %v7385 = vunpack.c.h.b16 %v6790
      %v7386 = vunpack.c.h.b16 %v6791
      %v7387 = vunpack.c.h.b16 %v6792
      %v7388 = vunpack.c.h.b16 %v6793
      %v7389 = vunpack.c.h.b16 %v6794
      %v7390 = vunpack.c.h.b16 %v6795
      %v7391 = vunpack.c.h.b16 %v6796
      %v7392 = vunpack.c.l.b16 %v6797
      %v7393 = vunpack.c.l.b16 %v6798
      %v7394 = vunpack.c.l.b16 %v6799
      %v7395 = vunpack.c.l.b16 %v6800
      %v7396 = vunpack.c.l.b16 %v6801
      %v7397 = vunpack.c.l.b16 %v6802
      %v7398 = vunpack.c.l.b16 %v6803
      %v7399 = vunpack.c.h.b16 %v6797
      %v7400 = vunpack.c.h.b16 %v6798
      %v7401 = vunpack.c.h.b16 %v6799
      %v7402 = vunpack.c.h.b16 %v6800
      %v7403 = vunpack.c.h.b16 %v6801
      %v7404 = vunpack.c.h.b16 %v6802
      %v7405 = vunpack.c.h.b16 %v6803
      %v7406 = vunpack.c.l.b16 %v6804
      %v7407 = vunpack.c.l.b16 %v6805
      %v7408 = vunpack.c.l.b16 %v6806
      %v7409 = vunpack.c.l.b16 %v6807
      %v7410 = vunpack.c.l.b16 %v6808
      %v7411 = vunpack.c.l.b16 %v6809
      %v7412 = vunpack.c.l.b16 %v6810
      %v7413 = vunpack.c.h.b16 %v6804
      %v7414 = vunpack.c.h.b16 %v6805
      %v7415 = vunpack.c.h.b16 %v6806
      %v7416 = vunpack.c.h.b16 %v6807
      %v7417 = vunpack.c.h.b16 %v6808
      %v7418 = vunpack.c.h.b16 %v6809
      %v7419 = vunpack.c.h.b16 %v6810
      %v7420 = vunpack.c.l.b16 %v6811
      %v7421 = vunpack.c.l.b16 %v6812
      %v7422 = vunpack.c.l.b16 %v6813
      %v7423 = vunpack.c.l.b16 %v6814
      %v7424 = vunpack.c.l.b16 %v6815
      %v7425 = vunpack.c.l.b16 %v6816
      %v7426 = vunpack.c.l.b16 %v6817
      %v7427 = vunpack.c.h.b16 %v6811
      %v7428 = vunpack.c.h.b16 %v6812
      %v7429 = vunpack.c.h.b16 %v6813
      %v7430 = vunpack.c.h.b16 %v6814
      %v7431 = vunpack.c.h.b16 %v6815
      %v7432 = vunpack.c.h.b16 %v6816
      %v7433 = vunpack.c.h.b16 %v6817
      %v7434 = vunpack.c.l.b16 %v6818
      %v7435 = vunpack.c.l.b16 %v6819
      %v7436 = vunpack.c.l.b16 %v6820
      %v7437 = vunpack.c.l.b16 %v6821
      %v7438 = vunpack.c.l.b16 %v6822
      %v7439 = vunpack.c.l.b16 %v6823
      %v7440 = vunpack.c.l.b16 %v6824
      %v7441 = vunpack.c.h.b16 %v6818
      %v7442 = vunpack.c.h.b16 %v6819
      %v7443 = vunpack.c.h.b16 %v6820
      %v7444 = vunpack.c.h.b16 %v6821
      %v7445 = vunpack.c.h.b16 %v6822
      %v7446 = vunpack.c.h.b16 %v6823
      %v7447 = vunpack.c.h.b16 %v6824
      %v7448 = vunpack.c.l.b16 %v6825
      %v7449 = vunpack.c.l.b16 %v6826
      %v7450 = vunpack.c.l.b16 %v6827
      %v7451 = vunpack.c.l.b16 %v6828
      %v7452 = vunpack.c.l.b16 %v6829
      %v7453 = vunpack.c.l.b16 %v6830
      %v7454 = vunpack.c.l.b16 %v6831
      %v7455 = vunpack.c.h.b16 %v6825
      %v7456 = vunpack.c.h.b16 %v6826
      %v7457 = vunpack.c.h.b16 %v6827
      %v7458 = vunpack.c.h.b16 %v6828
      %v7459 = vunpack.c.h.b16 %v6829
      %v7460 = vunpack.c.h.b16 %v6830
      %v7461 = vunpack.c.h.b16 %v6831
      %v7462 = vunpack.c.l.b16 %v6832
      %v7463 = vunpack.c.l.b16 %v6833
      %v7464 = vunpack.c.l.b16 %v6834
      %v7465 = vunpack.c.l.b16 %v6835
      %v7466 = vunpack.c.l.b16 %v6836
      %v7467 = vunpack.c.l.b16 %v6837
      %v7468 = vunpack.c.l.b16 %v6838
      %v7469 = vunpack.c.h.b16 %v6832
      %v7470 = vunpack.c.h.b16 %v6833
      %v7471 = vunpack.c.h.b16 %v6834
      %v7472 = vunpack.c.h.b16 %v6835
      %v7473 = vunpack.c.h.b16 %v6836
      %v7474 = vunpack.c.h.b16 %v6837
      %v7475 = vunpack.c.h.b16 %v6838
      %v7476 = vunpack.c.l.b16 %v6839
      %v7477 = vunpack.c.l.b16 %v6840
      %v7478 = vunpack.c.l.b16 %v6841
      %v7479 = vunpack.c.l.b16 %v6842
      %v7480 = vunpack.c.l.b16 %v6843
      %v7481 = vunpack.c.l.b16 %v6844
      %v7482 = vunpack.c.l.b16 %v6845
      %v7483 = vunpack.c.h.b16 %v6839
      %v7484 = vunpack.c.h.b16 %v6840
      %v7485 = vunpack.c.h.b16 %v6841
      %v7486 = vunpack.c.h.b16 %v6842
      %v7487 = vunpack.c.h.b16 %v6843
      %v7488 = vunpack.c.h.b16 %v6844
      %v7489 = vunpack.c.h.b16 %v6845
      %v7490 = vunpack.c.l.b16 %v6846
      %v7491 = vunpack.c.l.b16 %v6847
      %v7492 = vunpack.c.l.b16 %v6848
      %v7493 = vunpack.c.l.b16 %v6849
      %v7494 = vunpack.c.l.b16 %v6850
      %v7495 = vunpack.c.l.b16 %v6851
      %v7496 = vunpack.c.l.b16 %v6852
      %v7497 = vunpack.c.h.b16 %v6846
      %v7498 = vunpack.c.h.b16 %v6847
      %v7499 = vunpack.c.h.b16 %v6848
      %v7500 = vunpack.c.h.b16 %v6849
      %v7501 = vunpack.c.h.b16 %v6850
      %v7502 = vunpack.c.h.b16 %v6851
      %v7503 = vunpack.c.h.b16 %v6852
      %v7504 = vunpack.c.l.b16 %v6853
      %v7505 = vunpack.c.l.b16 %v6854
      %v7506 = vunpack.c.l.b16 %v6855
      %v7507 = vunpack.c.l.b16 %v6856
      %v7508 = vunpack.c.l.b16 %v6857
      %v7509 = vunpack.c.l.b16 %v6858
      %v7510 = vunpack.c.l.b16 %v6859
      %v7511 = vunpack.c.h.b16 %v6853
      %v7512 = vunpack.c.h.b16 %v6854
      %v7513 = vunpack.c.h.b16 %v6855
      %v7514 = vunpack.c.h.b16 %v6856
      %v7515 = vunpack.c.h.b16 %v6857
      %v7516 = vunpack.c.h.b16 %v6858
      %v7517 = vunpack.c.h.b16 %v6859
      %v7518 = vunpack.c.l.b16 %v6860
      %v7519 = vunpack.c.l.b16 %v6861
      %v7520 = vunpack.c.l.b16 %v6862
      %v7521 = vunpack.c.l.b16 %v6863
      %v7522 = vunpack.c.l.b16 %v6864
      %v7523 = vunpack.c.l.b16 %v6865
      %v7524 = vunpack.c.l.b16 %v6866
      %v7525 = vunpack.c.h.b16 %v6860
      %v7526 = vunpack.c.h.b16 %v6861
      %v7527 = vunpack.c.h.b16 %v6862
      %v7528 = vunpack.c.h.b16 %v6863
      %v7529 = vunpack.c.h.b16 %v6864
      %v7530 = vunpack.c.h.b16 %v6865
      %v7531 = vunpack.c.h.b16 %v6866
      %v7532 = vunpack.c.l.b16 %v6867
      %v7533 = vunpack.c.l.b16 %v6868
      %v7534 = vunpack.c.l.b16 %v6869
      %v7535 = vunpack.c.l.b16 %v6870
      %v7536 = vunpack.c.l.b16 %v6871
      %v7537 = vunpack.c.l.b16 %v6872
      %v7538 = vunpack.c.l.b16 %v6873
      %v7539 = vunpack.c.h.b16 %v6867
      %v7540 = vunpack.c.h.b16 %v6868
      %v7541 = vunpack.c.h.b16 %v6869
      %v7542 = vunpack.c.h.b16 %v6870
      %v7543 = vunpack.c.h.b16 %v6871
      %v7544 = vunpack.c.h.b16 %v6872
      %v7545 = vunpack.c.h.b16 %v6873
      %v7546 = vpack.c.b16 %v7099, %v7098
      %v7547 = vpack.c.b16 %v7101, %v7100
      %v7548 = vpack.c.b16 %v7103, %v7102
      %v7549 = vpack.c.b16 %v7104, %v7104
      %v7550 = vpack.c.b16 %v7106, %v7105
      %v7551 = vpack.c.b16 %v7108, %v7107
      %v7552 = vpack.c.b16 %v7110, %v7109
      %v7553 = vpack.c.b16 %v7111, %v7111
      %v7554 = vpack.c.b16 %v7113, %v7112
      %v7555 = vpack.c.b16 %v7115, %v7114
      %v7556 = vpack.c.b16 %v7117, %v7116
      %v7557 = vpack.c.b16 %v7118, %v7118
      %v7558 = vpack.c.b16 %v7120, %v7119
      %v7559 = vpack.c.b16 %v7122, %v7121
      %v7560 = vpack.c.b16 %v7124, %v7123
      %v7561 = vpack.c.b16 %v7125, %v7125
      %v7562 = vpack.c.b16 %v7127, %v7126
      %v7563 = vpack.c.b16 %v7129, %v7128
      %v7564 = vpack.c.b16 %v7131, %v7130
      %v7565 = vpack.c.b16 %v7132, %v7132
      %v7566 = vpack.c.b16 %v7134, %v7133
      %v7567 = vpack.c.b16 %v7136, %v7135
      %v7568 = vpack.c.b16 %v7138, %v7137
      %v7569 = vpack.c.b16 %v7139, %v7139
      %v7570 = vpack.c.b16 %v7141, %v7140
      %v7571 = vpack.c.b16 %v7143, %v7142
      %v7572 = vpack.c.b16 %v7145, %v7144
      %v7573 = vpack.c.b16 %v7146, %v7146
      %v7574 = vpack.c.b16 %v7148, %v7147
      %v7575 = vpack.c.b16 %v7150, %v7149
      %v7576 = vpack.c.b16 %v7152, %v7151
      %v7577 = vpack.c.b16 %v7153, %v7153
      %v7578 = vpack.c.b16 %v7155, %v7154
      %v7579 = vpack.c.b16 %v7157, %v7156
      %v7580 = vpack.c.b16 %v7159, %v7158
      %v7581 = vpack.c.b16 %v7160, %v7160
      %v7582 = vpack.c.b16 %v7162, %v7161
      %v7583 = vpack.c.b16 %v7164, %v7163
      %v7584 = vpack.c.b16 %v7166, %v7165
      %v7585 = vpack.c.b16 %v7167, %v7167
      %v7586 = vpack.c.b16 %v7169, %v7168
      %v7587 = vpack.c.b16 %v7171, %v7170
      %v7588 = vpack.c.b16 %v7173, %v7172
      %v7589 = vpack.c.b16 %v7174, %v7174
      %v7590 = vpack.c.b16 %v7176, %v7175
      %v7591 = vpack.c.b16 %v7178, %v7177
      %v7592 = vpack.c.b16 %v7180, %v7179
      %v7593 = vpack.c.b16 %v7181, %v7181
      %v7594 = vpack.c.b16 %v7183, %v7182
      %v7595 = vpack.c.b16 %v7185, %v7184
      %v7596 = vpack.c.b16 %v7187, %v7186
      %v7597 = vpack.c.b16 %v7188, %v7188
      %v7598 = vpack.c.b16 %v7190, %v7189
      %v7599 = vpack.c.b16 %v7192, %v7191
      %v7600 = vpack.c.b16 %v7194, %v7193
      %v7601 = vpack.c.b16 %v7195, %v7195
      %v7602 = vpack.c.b16 %v7197, %v7196
      %v7603 = vpack.c.b16 %v7199, %v7198
      %v7604 = vpack.c.b16 %v7201, %v7200
      %v7605 = vpack.c.b16 %v7202, %v7202
      %v7606 = vpack.c.b16 %v7204, %v7203
      %v7607 = vpack.c.b16 %v7206, %v7205
      %v7608 = vpack.c.b16 %v7208, %v7207
      %v7609 = vpack.c.b16 %v7209, %v7209
      %v7610 = vpack.c.b16 %v7211, %v7210
      %v7611 = vpack.c.b16 %v7213, %v7212
      %v7612 = vpack.c.b16 %v7215, %v7214
      %v7613 = vpack.c.b16 %v7216, %v7216
      %v7614 = vpack.c.b16 %v7218, %v7217
      %v7615 = vpack.c.b16 %v7220, %v7219
      %v7616 = vpack.c.b16 %v7222, %v7221
      %v7617 = vpack.c.b16 %v7223, %v7223
      %v7618 = vpack.c.b16 %v7225, %v7224
      %v7619 = vpack.c.b16 %v7227, %v7226
      %v7620 = vpack.c.b16 %v7229, %v7228
      %v7621 = vpack.c.b16 %v7230, %v7230
      %v7622 = vpack.c.b16 %v7232, %v7231
      %v7623 = vpack.c.b16 %v7234, %v7233
      %v7624 = vpack.c.b16 %v7236, %v7235
      %v7625 = vpack.c.b16 %v7237, %v7237
      %v7626 = vpack.c.b16 %v7239, %v7238
      %v7627 = vpack.c.b16 %v7241, %v7240
      %v7628 = vpack.c.b16 %v7243, %v7242
      %v7629 = vpack.c.b16 %v7244, %v7244
      %v7630 = vpack.c.b16 %v7246, %v7245
      %v7631 = vpack.c.b16 %v7248, %v7247
      %v7632 = vpack.c.b16 %v7250, %v7249
      %v7633 = vpack.c.b16 %v7251, %v7251
      %v7634 = vpack.c.b16 %v7253, %v7252
      %v7635 = vpack.c.b16 %v7255, %v7254
      %v7636 = vpack.c.b16 %v7257, %v7256
      %v7637 = vpack.c.b16 %v7258, %v7258
      %v7638 = vpack.c.b16 %v7260, %v7259
      %v7639 = vpack.c.b16 %v7262, %v7261
      %v7640 = vpack.c.b16 %v7264, %v7263
      %v7641 = vpack.c.b16 %v7265, %v7265
      %v7642 = vpack.c.b16 %v7267, %v7266
      %v7643 = vpack.c.b16 %v7269, %v7268
      %v7644 = vpack.c.b16 %v7271, %v7270
      %v7645 = vpack.c.b16 %v7272, %v7272
      %v7646 = vpack.c.b16 %v7274, %v7273
      %v7647 = vpack.c.b16 %v7276, %v7275
      %v7648 = vpack.c.b16 %v7278, %v7277
      %v7649 = vpack.c.b16 %v7279, %v7279
      %v7650 = vpack.c.b16 %v7281, %v7280
      %v7651 = vpack.c.b16 %v7283, %v7282
      %v7652 = vpack.c.b16 %v7285, %v7284
      %v7653 = vpack.c.b16 %v7286, %v7286
      %v7654 = vpack.c.b16 %v7288, %v7287
      %v7655 = vpack.c.b16 %v7290, %v7289
      %v7656 = vpack.c.b16 %v7292, %v7291
      %v7657 = vpack.c.b16 %v7293, %v7293
      %v7658 = vpack.c.b16 %v7295, %v7294
      %v7659 = vpack.c.b16 %v7297, %v7296
      %v7660 = vpack.c.b16 %v7299, %v7298
      %v7661 = vpack.c.b16 %v7300, %v7300
      %v7662 = vpack.c.b16 %v7302, %v7301
      %v7663 = vpack.c.b16 %v7304, %v7303
      %v7664 = vpack.c.b16 %v7306, %v7305
      %v7665 = vpack.c.b16 %v7307, %v7307
      %v7666 = vpack.c.b16 %v7309, %v7308
      %v7667 = vpack.c.b16 %v7311, %v7310
      %v7668 = vpack.c.b16 %v7313, %v7312
      %v7669 = vpack.c.b16 %v7314, %v7314
      %v7670 = vpack.c.b16 %v7316, %v7315
      %v7671 = vpack.c.b16 %v7318, %v7317
      %v7672 = vpack.c.b16 %v7320, %v7319
      %v7673 = vpack.c.b16 %v7321, %v7321
      %v7674 = vpack.c.b16 %v7323, %v7322
      %v7675 = vpack.c.b16 %v7325, %v7324
      %v7676 = vpack.c.b16 %v7327, %v7326
      %v7677 = vpack.c.b16 %v7328, %v7328
      %v7678 = vpack.c.b16 %v7330, %v7329
      %v7679 = vpack.c.b16 %v7332, %v7331
      %v7680 = vpack.c.b16 %v7334, %v7333
      %v7681 = vpack.c.b16 %v7335, %v7335
      %v7682 = vpack.c.b16 %v7337, %v7336
      %v7683 = vpack.c.b16 %v7339, %v7338
      %v7684 = vpack.c.b16 %v7341, %v7340
      %v7685 = vpack.c.b16 %v7342, %v7342
      %v7686 = vpack.c.b16 %v7344, %v7343
      %v7687 = vpack.c.b16 %v7346, %v7345
      %v7688 = vpack.c.b16 %v7348, %v7347
      %v7689 = vpack.c.b16 %v7349, %v7349
      %v7690 = vpack.c.b16 %v7351, %v7350
      %v7691 = vpack.c.b16 %v7353, %v7352
      %v7692 = vpack.c.b16 %v7355, %v7354
      %v7693 = vpack.c.b16 %v7356, %v7356
      %v7694 = vpack.c.b16 %v7358, %v7357
      %v7695 = vpack.c.b16 %v7360, %v7359
      %v7696 = vpack.c.b16 %v7362, %v7361
      %v7697 = vpack.c.b16 %v7363, %v7363
      %v7698 = vpack.c.b16 %v7365, %v7364
      %v7699 = vpack.c.b16 %v7367, %v7366
      %v7700 = vpack.c.b16 %v7369, %v7368
      %v7701 = vpack.c.b16 %v7370, %v7370
      %v7702 = vpack.c.b16 %v7372, %v7371
      %v7703 = vpack.c.b16 %v7374, %v7373
      %v7704 = vpack.c.b16 %v7376, %v7375
      %v7705 = vpack.c.b16 %v7377, %v7377
      %v7706 = vpack.c.b16 %v7379, %v7378
      %v7707 = vpack.c.b16 %v7381, %v7380
      %v7708 = vpack.c.b16 %v7383, %v7382
      %v7709 = vpack.c.b16 %v7384, %v7384
      %v7710 = vpack.c.b16 %v7386, %v7385
      %v7711 = vpack.c.b16 %v7388, %v7387
      %v7712 = vpack.c.b16 %v7390, %v7389
      %v7713 = vpack.c.b16 %v7391, %v7391
      %v7714 = vpack.c.b16 %v7393, %v7392
      %v7715 = vpack.c.b16 %v7395, %v7394
      %v7716 = vpack.c.b16 %v7397, %v7396
      %v7717 = vpack.c.b16 %v7398, %v7398
      %v7718 = vpack.c.b16 %v7400, %v7399
      %v7719 = vpack.c.b16 %v7402, %v7401
      %v7720 = vpack.c.b16 %v7404, %v7403
      %v7721 = vpack.c.b16 %v7405, %v7405
      %v7722 = vpack.c.b16 %v7407, %v7406
      %v7723 = vpack.c.b16 %v7409, %v7408
      %v7724 = vpack.c.b16 %v7411, %v7410
      %v7725 = vpack.c.b16 %v7412, %v7412
      %v7726 = vpack.c.b16 %v7414, %v7413
      %v7727 = vpack.c.b16 %v7416, %v7415
      %v7728 = vpack.c.b16 %v7418, %v7417
      %v7729 = vpack.c.b16 %v7419, %v7419
      %v7730 = vpack.c.b16 %v7421, %v7420
      %v7731 = vpack.c.b16 %v7423, %v7422
      %v7732 = vpack.c.b16 %v7425, %v7424
      %v7733 = vpack.c.b16 %v7426, %v7426
      %v7734 = vpack.c.b16 %v7428, %v7427
      %v7735 = vpack.c.b16 %v7430, %v7429
      %v7736 = vpack.c.b16 %v7432, %v7431
      %v7737 = vpack.c.b16 %v7433, %v7433
      %v7738 = vpack.c.b16 %v7435, %v7434
      %v7739 = vpack.c.b16 %v7437, %v7436
      %v7740 = vpack.c.b16 %v7439, %v7438
      %v7741 = vpack.c.b16 %v7440, %v7440
      %v7742 = vpack.c.b16 %v7442, %v7441
      %v7743 = vpack.c.b16 %v7444, %v7443
      %v7744 = vpack.c.b16 %v7446, %v7445
      %v7745 = vpack.c.b16 %v7447, %v7447
      %v7746 = vpack.c.b16 %v7449, %v7448
      %v7747 = vpack.c.b16 %v7451, %v7450
      %v7748 = vpack.c.b16 %v7453, %v7452
      %v7749 = vpack.c.b16 %v7454, %v7454
      %v7750 = vpack.c.b16 %v7456, %v7455
      %v7751 = vpack.c.b16 %v7458, %v7457
      %v7752 = vpack.c.b16 %v7460, %v7459
      %v7753 = vpack.c.b16 %v7461, %v7461
      %v7754 = vpack.c.b16 %v7463, %v7462
      %v7755 = vpack.c.b16 %v7465, %v7464
      %v7756 = vpack.c.b16 %v7467, %v7466
      %v7757 = vpack.c.b16 %v7468, %v7468
      %v7758 = vpack.c.b16 %v7470, %v7469
      %v7759 = vpack.c.b16 %v7472, %v7471
      %v7760 = vpack.c.b16 %v7474, %v7473
      %v7761 = vpack.c.b16 %v7475, %v7475
      %v7762 = vpack.c.b16 %v7477, %v7476
      %v7763 = vpack.c.b16 %v7479, %v7478
      %v7764 = vpack.c.b16 %v7481, %v7480
      %v7765 = vpack.c.b16 %v7482, %v7482
      %v7766 = vpack.c.b16 %v7484, %v7483
      %v7767 = vpack.c.b16 %v7486, %v7485
      %v7768 = vpack.c.b16 %v7488, %v7487
      %v7769 = vpack.c.b16 %v7489, %v7489
      %v7770 = vpack.c.b16 %v7491, %v7490
      %v7771 = vpack.c.b16 %v7493, %v7492
      %v7772 = vpack.c.b16 %v7495, %v7494
      %v7773 = vpack.c.b16 %v7496, %v7496
      %v7774 = vpack.c.b16 %v7498, %v7497
      %v7775 = vpack.c.b16 %v7500, %v7499
      %v7776 = vpack.c.b16 %v7502, %v7501
      %v7777 = vpack.c.b16 %v7503, %v7503
      %v7778 = vpack.c.b16 %v7505, %v7504
      %v7779 = vpack.c.b16 %v7507, %v7506
      %v7780 = vpack.c.b16 %v7509, %v7508
      %v7781 = vpack.c.b16 %v7510, %v7510
      %v7782 = vpack.c.b16 %v7512, %v7511
      %v7783 = vpack.c.b16 %v7514, %v7513
      %v7784 = vpack.c.b16 %v7516, %v7515
      %v7785 = vpack.c.b16 %v7517, %v7517
      %v7786 = vpack.c.b16 %v7519, %v7518
      %v7787 = vpack.c.b16 %v7521, %v7520
      %v7788 = vpack.c.b16 %v7523, %v7522
      %v7789 = vpack.c.b16 %v7524, %v7524
      %v7790 = vpack.c.b16 %v7526, %v7525
      %v7791 = vpack.c.b16 %v7528, %v7527
      %v7792 = vpack.c.b16 %v7530, %v7529
      %v7793 = vpack.c.b16 %v7531, %v7531
      %v7794 = vpack.c.b16 %v7533, %v7532
      %v7795 = vpack.c.b16 %v7535, %v7534
      %v7796 = vpack.c.b16 %v7537, %v7536
      %v7797 = vpack.c.b16 %v7538, %v7538
      %v7798 = vpack.c.b16 %v7540, %v7539
      %v7799 = vpack.c.b16 %v7542, %v7541
      %v7800 = vpack.c.b16 %v7544, %v7543
      %v7801 = vpack.c.b16 %v7545, %v7545
      %8058 = vst [vmem:[%s488] sm:$0xff] %v7546
      %8059 = vst [vmem:[%s488 + $0x8] sm:$0xff] %v7547
      %8060 = vst [vmem:[%s488 + $0x10] sm:$0xff] %v7548
      %vm8061 = vcmask 125952
      %8062 = vst.msk [vmem:[%s488 + $0x18] sm:$0xf] %vm8061, %v7549
      %8063 = vst [vmem:[%s488 + $0x1c] sm:$0xff] %v7550
      %8064 = vst [vmem:[%s488 + $0x24] sm:$0xff] %v7551
      %8065 = vst [vmem:[%s488 + $0x2c] sm:$0xff] %v7552
      %8066 = vst.msk [vmem:[%s488 + $0x34] sm:$0xf] %vm8061, %v7553
      %8067 = vst [vmem:[%s488 + $0x38] sm:$0xff] %v7554
      %8068 = vst [vmem:[%s488 + $0x40] sm:$0xff] %v7555
      %8069 = vst [vmem:[%s488 + $0x48] sm:$0xff] %v7556
      %8070 = vst.msk [vmem:[%s488 + $0x50] sm:$0xf] %vm8061, %v7557
      %8071 = vst [vmem:[%s488 + $0x54] sm:$0xff] %v7558
      %8072 = vst [vmem:[%s488 + $0x5c] sm:$0xff] %v7559
      %8073 = vst [vmem:[%s488 + $0x64] sm:$0xff] %v7560
      %8074 = vst.msk [vmem:[%s488 + $0x6c] sm:$0xf] %vm8061, %v7561
      %8075 = vst [vmem:[%s488 + $0x70] sm:$0xff] %v7562
      %8076 = vst [vmem:[%s488 + $0x78] sm:$0xff] %v7563
      %8077 = vst [vmem:[%s488 + $0x80] sm:$0xff] %v7564
      %8078 = vst.msk [vmem:[%s488 + $0x88] sm:$0xf] %vm8061, %v7565
      %8079 = vst [vmem:[%s488 + $0x8c] sm:$0xff] %v7566
      %8080 = vst [vmem:[%s488 + $0x94] sm:$0xff] %v7567
      %8081 = vst [vmem:[%s488 + $0x9c] sm:$0xff] %v7568
      %8082 = vst.msk [vmem:[%s488 + $0xa4] sm:$0xf] %vm8061, %v7569
      %8083 = vst [vmem:[%s488 + $0xa8] sm:$0xff] %v7570
      %8084 = vst [vmem:[%s488 + $0xb0] sm:$0xff] %v7571
      %8085 = vst [vmem:[%s488 + $0xb8] sm:$0xff] %v7572
      %8086 = vst.msk [vmem:[%s488 + $0xc0] sm:$0xf] %vm8061, %v7573
      %8087 = vst [vmem:[%s488 + $0xc4] sm:$0xff] %v7574
      %8088 = vst [vmem:[%s488 + $0xcc] sm:$0xff] %v7575
      %8089 = vst [vmem:[%s488 + $0xd4] sm:$0xff] %v7576
      %8090 = vst.msk [vmem:[%s488 + $0xdc] sm:$0xf] %vm8061, %v7577
      %8091 = vst [vmem:[%s488 + $0xe0] sm:$0xff] %v7578
      %8092 = vst [vmem:[%s488 + $0xe8] sm:$0xff] %v7579
      %8093 = vst [vmem:[%s488 + $0xf0] sm:$0xff] %v7580
      %8094 = vst.msk [vmem:[%s488 + $0xf8] sm:$0xf] %vm8061, %v7581
      %8095 = vst [vmem:[%s488 + $0xfc] sm:$0xff] %v7582
      %8096 = vst [vmem:[%s488 + $0x104] sm:$0xff] %v7583
      %8097 = vst [vmem:[%s488 + $0x10c] sm:$0xff] %v7584
      %8098 = vst.msk [vmem:[%s488 + $0x114] sm:$0xf] %vm8061, %v7585
      %8099 = vst [vmem:[%s488 + $0x118] sm:$0xff] %v7586
      %8100 = vst [vmem:[%s488 + $0x120] sm:$0xff] %v7587
      %8101 = vst [vmem:[%s488 + $0x128] sm:$0xff] %v7588
      %8102 = vst.msk [vmem:[%s488 + $0x130] sm:$0xf] %vm8061, %v7589
      %8103 = vst [vmem:[%s488 + $0x134] sm:$0xff] %v7590
      %8104 = vst [vmem:[%s488 + $0x13c] sm:$0xff] %v7591
      %8105 = vst [vmem:[%s488 + $0x144] sm:$0xff] %v7592
      %8106 = vst.msk [vmem:[%s488 + $0x14c] sm:$0xf] %vm8061, %v7593
      %8107 = vst [vmem:[%s488 + $0x150] sm:$0xff] %v7594
      %8108 = vst [vmem:[%s488 + $0x158] sm:$0xff] %v7595
      %8109 = vst [vmem:[%s488 + $0x160] sm:$0xff] %v7596
      %8110 = vst.msk [vmem:[%s488 + $0x168] sm:$0xf] %vm8061, %v7597
      %8111 = vst [vmem:[%s488 + $0x16c] sm:$0xff] %v7598
      %8112 = vst [vmem:[%s488 + $0x174] sm:$0xff] %v7599
      %8113 = vst [vmem:[%s488 + $0x17c] sm:$0xff] %v7600
      %8114 = vst.msk [vmem:[%s488 + $0x184] sm:$0xf] %vm8061, %v7601
      %8115 = vst [vmem:[%s488 + $0x188] sm:$0xff] %v7602
      %8116 = vst [vmem:[%s488 + $0x190] sm:$0xff] %v7603
      %8117 = vst [vmem:[%s488 + $0x198] sm:$0xff] %v7604
      %8118 = vst.msk [vmem:[%s488 + $0x1a0] sm:$0xf] %vm8061, %v7605
      %8119 = vst [vmem:[%s488 + $0x1a4] sm:$0xff] %v7606
      %8120 = vst [vmem:[%s488 + $0x1ac] sm:$0xff] %v7607
      %8121 = vst [vmem:[%s488 + $0x1b4] sm:$0xff] %v7608
      %8122 = vst.msk [vmem:[%s488 + $0x1bc] sm:$0xf] %vm8061, %v7609
      %8123 = vst [vmem:[%s488 + $0x1c0] sm:$0xff] %v7610
      %8124 = vst [vmem:[%s488 + $0x1c8] sm:$0xff] %v7611
      %8125 = vst [vmem:[%s488 + $0x1d0] sm:$0xff] %v7612
      %8126 = vst.msk [vmem:[%s488 + $0x1d8] sm:$0xf] %vm8061, %v7613
      %8127 = vst [vmem:[%s488 + $0x1dc] sm:$0xff] %v7614
      %8128 = vst [vmem:[%s488 + $0x1e4] sm:$0xff] %v7615
      %8129 = vst [vmem:[%s488 + $0x1ec] sm:$0xff] %v7616
      %8130 = vst.msk [vmem:[%s488 + $0x1f4] sm:$0xf] %vm8061, %v7617
      %8131 = vst [vmem:[%s488 + $0x1f8] sm:$0xff] %v7618
      %8132 = vst [vmem:[%s488 + $0x200] sm:$0xff] %v7619
      %8133 = vst [vmem:[%s488 + $0x208] sm:$0xff] %v7620
      %8134 = vst.msk [vmem:[%s488 + $0x210] sm:$0xf] %vm8061, %v7621
      %8135 = vst [vmem:[%s488 + $0x214] sm:$0xff] %v7622
      %8136 = vst [vmem:[%s488 + $0x21c] sm:$0xff] %v7623
      %8137 = vst [vmem:[%s488 + $0x224] sm:$0xff] %v7624
      %8138 = vst.msk [vmem:[%s488 + $0x22c] sm:$0xf] %vm8061, %v7625
      %8139 = vst [vmem:[%s488 + $0x230] sm:$0xff] %v7626
      %8140 = vst [vmem:[%s488 + $0x238] sm:$0xff] %v7627
      %8141 = vst [vmem:[%s488 + $0x240] sm:$0xff] %v7628
      %8142 = vst.msk [vmem:[%s488 + $0x248] sm:$0xf] %vm8061, %v7629
      %8143 = vst [vmem:[%s488 + $0x24c] sm:$0xff] %v7630
      %8144 = vst [vmem:[%s488 + $0x254] sm:$0xff] %v7631
      %8145 = vst [vmem:[%s488 + $0x25c] sm:$0xff] %v7632
      %8146 = vst.msk [vmem:[%s488 + $0x264] sm:$0xf] %vm8061, %v7633
      %8147 = vst [vmem:[%s488 + $0x268] sm:$0xff] %v7634
      %8148 = vst [vmem:[%s488 + $0x270] sm:$0xff] %v7635
      %8149 = vst [vmem:[%s488 + $0x278] sm:$0xff] %v7636
      %8150 = vst.msk [vmem:[%s488 + $0x280] sm:$0xf] %vm8061, %v7637
      %8151 = vst [vmem:[%s488 + $0x284] sm:$0xff] %v7638
      %8152 = vst [vmem:[%s488 + $0x28c] sm:$0xff] %v7639
      %8153 = vst [vmem:[%s488 + $0x294] sm:$0xff] %v7640
      %8154 = vst.msk [vmem:[%s488 + $0x29c] sm:$0xf] %vm8061, %v7641
      %8155 = vst [vmem:[%s488 + $0x2a0] sm:$0xff] %v7642
      %8156 = vst [vmem:[%s488 + $0x2a8] sm:$0xff] %v7643
      %8157 = vst [vmem:[%s488 + $0x2b0] sm:$0xff] %v7644
      %8158 = vst.msk [vmem:[%s488 + $0x2b8] sm:$0xf] %vm8061, %v7645
      %8159 = vst [vmem:[%s488 + $0x2bc] sm:$0xff] %v7646
      %8160 = vst [vmem:[%s488 + $0x2c4] sm:$0xff] %v7647
      %8161 = vst [vmem:[%s488 + $0x2cc] sm:$0xff] %v7648
      %8162 = vst.msk [vmem:[%s488 + $0x2d4] sm:$0xf] %vm8061, %v7649
      %8163 = vst [vmem:[%s488 + $0x2d8] sm:$0xff] %v7650
      %8164 = vst [vmem:[%s488 + $0x2e0] sm:$0xff] %v7651
      %8165 = vst [vmem:[%s488 + $0x2e8] sm:$0xff] %v7652
      %8166 = vst.msk [vmem:[%s488 + $0x2f0] sm:$0xf] %vm8061, %v7653
      %8167 = vst [vmem:[%s488 + $0x2f4] sm:$0xff] %v7654
      %8168 = vst [vmem:[%s488 + $0x2fc] sm:$0xff] %v7655
      %8169 = vst [vmem:[%s488 + $0x304] sm:$0xff] %v7656
      %8170 = vst.msk [vmem:[%s488 + $0x30c] sm:$0xf] %vm8061, %v7657
      %8171 = vst [vmem:[%s488 + $0x310] sm:$0xff] %v7658
      %8172 = vst [vmem:[%s488 + $0x318] sm:$0xff] %v7659
      %8173 = vst [vmem:[%s488 + $0x320] sm:$0xff] %v7660
      %8174 = vst.msk [vmem:[%s488 + $0x328] sm:$0xf] %vm8061, %v7661
      %8175 = vst [vmem:[%s488 + $0x32c] sm:$0xff] %v7662
      %8176 = vst [vmem:[%s488 + $0x334] sm:$0xff] %v7663
      %8177 = vst [vmem:[%s488 + $0x33c] sm:$0xff] %v7664
      %8178 = vst.msk [vmem:[%s488 + $0x344] sm:$0xf] %vm8061, %v7665
      %8179 = vst [vmem:[%s488 + $0x348] sm:$0xff] %v7666
      %8180 = vst [vmem:[%s488 + $0x350] sm:$0xff] %v7667
      %8181 = vst [vmem:[%s488 + $0x358] sm:$0xff] %v7668
      %8182 = vst.msk [vmem:[%s488 + $0x360] sm:$0xf] %vm8061, %v7669
      %8183 = vst [vmem:[%s488 + $0x364] sm:$0xff] %v7670
      %8184 = vst [vmem:[%s488 + $0x36c] sm:$0xff] %v7671
      %8185 = vst [vmem:[%s488 + $0x374] sm:$0xff] %v7672
      %8186 = vst.msk [vmem:[%s488 + $0x37c] sm:$0xf] %vm8061, %v7673
      %8187 = vst [vmem:[%s488 + $0x380] sm:$0xff] %v7674
      %8188 = vst [vmem:[%s488 + $0x388] sm:$0xff] %v7675
      %8189 = vst [vmem:[%s488 + $0x390] sm:$0xff] %v7676
      %8190 = vst.msk [vmem:[%s488 + $0x398] sm:$0xf] %vm8061, %v7677
      %8191 = vst [vmem:[%s488 + $0x39c] sm:$0xff] %v7678
      %8192 = vst [vmem:[%s488 + $0x3a4] sm:$0xff] %v7679
      %8193 = vst [vmem:[%s488 + $0x3ac] sm:$0xff] %v7680
      %8194 = vst.msk [vmem:[%s488 + $0x3b4] sm:$0xf] %vm8061, %v7681
      %8195 = vst [vmem:[%s488 + $0x3b8] sm:$0xff] %v7682
      %8196 = vst [vmem:[%s488 + $0x3c0] sm:$0xff] %v7683
      %8197 = vst [vmem:[%s488 + $0x3c8] sm:$0xff] %v7684
      %8198 = vst.msk [vmem:[%s488 + $0x3d0] sm:$0xf] %vm8061, %v7685
      %8199 = vst [vmem:[%s488 + $0x3d4] sm:$0xff] %v7686
      %8200 = vst [vmem:[%s488 + $0x3dc] sm:$0xff] %v7687
      %8201 = vst [vmem:[%s488 + $0x3e4] sm:$0xff] %v7688
      %8202 = vst.msk [vmem:[%s488 + $0x3ec] sm:$0xf] %vm8061, %v7689
      %8203 = vst [vmem:[%s488 + $0x3f0] sm:$0xff] %v7690
      %8204 = vst [vmem:[%s488 + $0x3f8] sm:$0xff] %v7691
      %8205 = vst [vmem:[%s488 + $0x400] sm:$0xff] %v7692
      %8206 = vst.msk [vmem:[%s488 + $0x408] sm:$0xf] %vm8061, %v7693
      %8207 = vst [vmem:[%s488 + $0x40c] sm:$0xff] %v7694
      %8208 = vst [vmem:[%s488 + $0x414] sm:$0xff] %v7695
      %8209 = vst [vmem:[%s488 + $0x41c] sm:$0xff] %v7696
      %8210 = vst.msk [vmem:[%s488 + $0x424] sm:$0xf] %vm8061, %v7697
      %8211 = vst [vmem:[%s488 + $0x428] sm:$0xff] %v7698
      %8212 = vst [vmem:[%s488 + $0x430] sm:$0xff] %v7699
      %8213 = vst [vmem:[%s488 + $0x438] sm:$0xff] %v7700
      %8214 = vst.msk [vmem:[%s488 + $0x440] sm:$0xf] %vm8061, %v7701
      %8215 = vst [vmem:[%s488 + $0x444] sm:$0xff] %v7702
      %8216 = vst [vmem:[%s488 + $0x44c] sm:$0xff] %v7703
      %8217 = vst [vmem:[%s488 + $0x454] sm:$0xff] %v7704
      %8218 = vst.msk [vmem:[%s488 + $0x45c] sm:$0xf] %vm8061, %v7705
      %8219 = vst [vmem:[%s488 + $0x460] sm:$0xff] %v7706
      %8220 = vst [vmem:[%s488 + $0x468] sm:$0xff] %v7707
      %8221 = vst [vmem:[%s488 + $0x470] sm:$0xff] %v7708
      %8222 = vst.msk [vmem:[%s488 + $0x478] sm:$0xf] %vm8061, %v7709
      %8223 = vst [vmem:[%s488 + $0x47c] sm:$0xff] %v7710
      %8224 = vst [vmem:[%s488 + $0x484] sm:$0xff] %v7711
      %8225 = vst [vmem:[%s488 + $0x48c] sm:$0xff] %v7712
      %8226 = vst.msk [vmem:[%s488 + $0x494] sm:$0xf] %vm8061, %v7713
      %8227 = vst [vmem:[%s488 + $0x498] sm:$0xff] %v7714
      %8228 = vst [vmem:[%s488 + $0x4a0] sm:$0xff] %v7715
      %8229 = vst [vmem:[%s488 + $0x4a8] sm:$0xff] %v7716
      %8230 = vst.msk [vmem:[%s488 + $0x4b0] sm:$0xf] %vm8061, %v7717
      %8231 = vst [vmem:[%s488 + $0x4b4] sm:$0xff] %v7718
      %8232 = vst [vmem:[%s488 + $0x4bc] sm:$0xff] %v7719
      %8233 = vst [vmem:[%s488 + $0x4c4] sm:$0xff] %v7720
      %8234 = vst.msk [vmem:[%s488 + $0x4cc] sm:$0xf] %vm8061, %v7721
      %8235 = vst [vmem:[%s488 + $0x4d0] sm:$0xff] %v7722
      %8236 = vst [vmem:[%s488 + $0x4d8] sm:$0xff] %v7723
      %8237 = vst [vmem:[%s488 + $0x4e0] sm:$0xff] %v7724
      %8238 = vst.msk [vmem:[%s488 + $0x4e8] sm:$0xf] %vm8061, %v7725
      %8239 = vst [vmem:[%s488 + $0x4ec] sm:$0xff] %v7726
      %8240 = vst [vmem:[%s488 + $0x4f4] sm:$0xff] %v7727
      %8241 = vst [vmem:[%s488 + $0x4fc] sm:$0xff] %v7728
      %8242 = vst.msk [vmem:[%s488 + $0x504] sm:$0xf] %vm8061, %v7729
      %8243 = vst [vmem:[%s488 + $0x508] sm:$0xff] %v7730
      %8244 = vst [vmem:[%s488 + $0x510] sm:$0xff] %v7731
      %8245 = vst [vmem:[%s488 + $0x518] sm:$0xff] %v7732
      %8246 = vst.msk [vmem:[%s488 + $0x520] sm:$0xf] %vm8061, %v7733
      %8247 = vst [vmem:[%s488 + $0x524] sm:$0xff] %v7734
      %8248 = vst [vmem:[%s488 + $0x52c] sm:$0xff] %v7735
      %8249 = vst [vmem:[%s488 + $0x534] sm:$0xff] %v7736
      %8250 = vst.msk [vmem:[%s488 + $0x53c] sm:$0xf] %vm8061, %v7737
      %8251 = vst [vmem:[%s488 + $0x540] sm:$0xff] %v7738
      %8252 = vst [vmem:[%s488 + $0x548] sm:$0xff] %v7739
      %8253 = vst [vmem:[%s488 + $0x550] sm:$0xff] %v7740
      %8254 = vst.msk [vmem:[%s488 + $0x558] sm:$0xf] %vm8061, %v7741
      %8255 = vst [vmem:[%s488 + $0x55c] sm:$0xff] %v7742
      %8256 = vst [vmem:[%s488 + $0x564] sm:$0xff] %v7743
      %8257 = vst [vmem:[%s488 + $0x56c] sm:$0xff] %v7744
      %8258 = vst.msk [vmem:[%s488 + $0x574] sm:$0xf] %vm8061, %v7745
      %8259 = vst [vmem:[%s488 + $0x578] sm:$0xff] %v7746
      %8260 = vst [vmem:[%s488 + $0x580] sm:$0xff] %v7747
      %8261 = vst [vmem:[%s488 + $0x588] sm:$0xff] %v7748
      %8262 = vst.msk [vmem:[%s488 + $0x590] sm:$0xf] %vm8061, %v7749
      %8263 = vst [vmem:[%s488 + $0x594] sm:$0xff] %v7750
      %8264 = vst [vmem:[%s488 + $0x59c] sm:$0xff] %v7751
      %8265 = vst [vmem:[%s488 + $0x5a4] sm:$0xff] %v7752
      %8266 = vst.msk [vmem:[%s488 + $0x5ac] sm:$0xf] %vm8061, %v7753
      %8267 = vst [vmem:[%s488 + $0x5b0] sm:$0xff] %v7754
      %8268 = vst [vmem:[%s488 + $0x5b8] sm:$0xff] %v7755
      %8269 = vst [vmem:[%s488 + $0x5c0] sm:$0xff] %v7756
      %8270 = vst.msk [vmem:[%s488 + $0x5c8] sm:$0xf] %vm8061, %v7757
      %8271 = vst [vmem:[%s488 + $0x5cc] sm:$0xff] %v7758
      %8272 = vst [vmem:[%s488 + $0x5d4] sm:$0xff] %v7759
      %8273 = vst [vmem:[%s488 + $0x5dc] sm:$0xff] %v7760
      %8274 = vst.msk [vmem:[%s488 + $0x5e4] sm:$0xf] %vm8061, %v7761
      %8275 = vst [vmem:[%s488 + $0x5e8] sm:$0xff] %v7762
      %8276 = vst [vmem:[%s488 + $0x5f0] sm:$0xff] %v7763
      %8277 = vst [vmem:[%s488 + $0x5f8] sm:$0xff] %v7764
      %8278 = vst.msk [vmem:[%s488 + $0x600] sm:$0xf] %vm8061, %v7765
      %8279 = vst [vmem:[%s488 + $0x604] sm:$0xff] %v7766
      %8280 = vst [vmem:[%s488 + $0x60c] sm:$0xff] %v7767
      %8281 = vst [vmem:[%s488 + $0x614] sm:$0xff] %v7768
      %8282 = vst.msk [vmem:[%s488 + $0x61c] sm:$0xf] %vm8061, %v7769
      %8283 = vst [vmem:[%s488 + $0x620] sm:$0xff] %v7770
      %8284 = vst [vmem:[%s488 + $0x628] sm:$0xff] %v7771
      %8285 = vst [vmem:[%s488 + $0x630] sm:$0xff] %v7772
      %8286 = vst.msk [vmem:[%s488 + $0x638] sm:$0xf] %vm8061, %v7773
      %8287 = vst [vmem:[%s488 + $0x63c] sm:$0xff] %v7774
      %8288 = vst [vmem:[%s488 + $0x644] sm:$0xff] %v7775
      %8289 = vst [vmem:[%s488 + $0x64c] sm:$0xff] %v7776
      %8290 = vst.msk [vmem:[%s488 + $0x654] sm:$0xf] %vm8061, %v7777
      %8291 = vst [vmem:[%s488 + $0x658] sm:$0xff] %v7778
      %8292 = vst [vmem:[%s488 + $0x660] sm:$0xff] %v7779
      %8293 = vst [vmem:[%s488 + $0x668] sm:$0xff] %v7780
      %8294 = vst.msk [vmem:[%s488 + $0x670] sm:$0xf] %vm8061, %v7781
      %8295 = vst [vmem:[%s488 + $0x674] sm:$0xff] %v7782
      %8296 = vst [vmem:[%s488 + $0x67c] sm:$0xff] %v7783
      %8297 = vst [vmem:[%s488 + $0x684] sm:$0xff] %v7784
      %8298 = vst.msk [vmem:[%s488 + $0x68c] sm:$0xf] %vm8061, %v7785
      %8299 = vst [vmem:[%s488 + $0x690] sm:$0xff] %v7786
      %8300 = vst [vmem:[%s488 + $0x698] sm:$0xff] %v7787
      %8301 = vst [vmem:[%s488 + $0x6a0] sm:$0xff] %v7788
      %8302 = vst.msk [vmem:[%s488 + $0x6a8] sm:$0xf] %vm8061, %v7789
      %8303 = vst [vmem:[%s488 + $0x6ac] sm:$0xff] %v7790
      %8304 = vst [vmem:[%s488 + $0x6b4] sm:$0xff] %v7791
      %8305 = vst [vmem:[%s488 + $0x6bc] sm:$0xff] %v7792
      %8306 = vst.msk [vmem:[%s488 + $0x6c4] sm:$0xf] %vm8061, %v7793
      %8307 = vst [vmem:[%s488 + $0x6c8] sm:$0xff] %v7794
      %8308 = vst [vmem:[%s488 + $0x6d0] sm:$0xff] %v7795
      %8309 = vst [vmem:[%s488 + $0x6d8] sm:$0xff] %v7796
      %8310 = vst.msk [vmem:[%s488 + $0x6e0] sm:$0xf] %vm8061, %v7797
      %8311 = vst [vmem:[%s488 + $0x6e4] sm:$0xff] %v7798
      %8312 = vst [vmem:[%s488 + $0x6ec] sm:$0xff] %v7799
      %8313 = vst [vmem:[%s488 + $0x6f4] sm:$0xff] %v7800
      %8314 = vst.msk [vmem:[%s488 + $0x6fc] sm:$0xf] %vm8061, %v7801
      %s8315 = smul.u32 64, %s26
      %p8316 = scmp.lt.s32.totalorder %s8315, 255
      %s8317 = scalar_select %p8316, %s8315, 255
      %s8318 = smul.addr %s8317, 8
      %s8319 = scalar_lea.vmem %s13, %s8318
      %s8320 = smul.u32 64, %s26
      %p8321 = scmp.lt.s32.totalorder %s8320, 255
      %s8322 = scalar_select %p8321, %s8320, 255
      %s8323 = smul.addr %s8322, 7
      %s8324 = smul.addr %s8323, 4
      %s8325 = scalar_lea.vmem %s14, %s8324
      // Predicated region
      $region73: #{sae_forward.1} parent=71 // pred_check
        %p8326 = pneg %p322
      $region74: #{sae_forward.1} parent=71 // pred_check_branch
        %8328 = sbr.rel (%p8326) target = $region76
      $region75: #{sae_forward.1} parent=71 // pred_region
        %s8329 = smul.u32 64, %s26
      $region76: #{sae_forward.1} parent=71 // pred_fallthru
        _
      // Predicated region
      $region77: #{sae_forward.1} parent=71 // pred_check
        %p8330 = pneg %p348
      $region78: #{sae_forward.1} parent=71 // pred_check_branch
        %8332 = sbr.rel (%p8330) target = $region80
      $region79: #{sae_forward.1} parent=71 // pred_region
        %s8333 = smul.u32 64, %s26
      $region80: #{sae_forward.1} parent=71 // pred_fallthru
        _
    $region72: #{sae_forward.1} parent=5 // pred_fallthru
      _
    %p8334 = scmp.le.s32.totalorder 2, %s21
    // Predicated region
    $region81: #{sae_forward.1} parent=5 // pred_check
      %p8335 = pneg %p8334
    $region82: #{sae_forward.1} parent=5 // pred_check_branch
      %8337 = sbr.rel (%p8335) target = $region84
    $region83: #{sae_forward.1} parent=5 // pred_region
      %s8338 = ssub.s32 %s21, 2
      // Predicated region
      $region85: #{sae_forward.1} parent=83 // pred_check
        %p8339 = pneg %p328
      $region86: #{sae_forward.1} parent=83 // pred_check_branch
        %8341 = sbr.rel (%p8339) target = $region88
      $region87: #{sae_forward.1} parent=83 // pred_region
        %s8342 = smul.u32 64, %s27
        %p8343 = scmp.lt.s32.totalorder %s8342, 255
        %s8344 = scalar_select %p8343, %s8342, 255
        %s8345 = smul.addr %s8344, 8
        %s8346 = scalar_lea.vmem %s13, %s8345
      $region88: #{sae_forward.1} parent=83 // pred_fallthru
        _
      // Predicated region
      $region89: #{sae_forward.1} parent=83 // pred_check
        %p8347 = pneg %p354
      $region90: #{sae_forward.1} parent=83 // pred_check_branch
        %8349 = sbr.rel (%p8347) target = $region92
      $region91: #{sae_forward.1} parent=83 // pred_region
        %s8350 = smul.u32 64, %s27
        %p8351 = scmp.lt.s32.totalorder %s8350, 255
        %s8352 = scalar_select %p8351, %s8350, 255
        %s8353 = smul.addr %s8352, 7
        %s8354 = smul.addr %s8353, 4
        %s8355 = scalar_lea.vmem %s14, %s8354
      $region92: #{sae_forward.1} parent=83 // pred_fallthru
        _
    $region84: #{sae_forward.1} parent=5 // pred_fallthru
      _
  $region6: #{sae_forward.1} parent=0 // loop_footer
    %s25 = sadd.s32 1, %s21
  $region7: #{sae_forward.1} parent=0 // loop_footer_branch
    %20 = sbr.rel target = $region3
  $region8: #{sae_forward.1} parent=0 // loop_exit
    _

</llo_original>
